<compile_context>
chip_gen: v7x
topology: tpu7x:2x2x1
jax: 0.10.0
libtpu: 0.0.40
codegen_flags: <defaults>
</compile_context>

<pallas_src>
import functools

import jax
import jax.numpy as jnp
from jax import lax
from jax.experimental import pallas as pl
from jax.experimental.pallas import tpu as pltpu


# ----------------------------------------------------------------------------
# Conv3d(kernel_size=3, padding='same') + bias + ReLU   (Cin % 8 == 0 path)
# ----------------------------------------------------------------------------
def _conv3d_kernel(x_ref, w_ref, b_ref, o_ref, acc_ref, *,
                   TD, H, W2, Cin, rows, fold_kh):
    """One (depth-tile, cout-tile, batch) grid step.

    x_ref  : (1, D+2, H+2, W2+2, Cin) bf16  zero-padded volume (VMEM resident)
    w_ref  : fold_kh -> (3, 9*Cin, TCo) bf16   (tap = kd,      K = (kh, kw, cin))
             else    -> (9, 3*Cin, TCo) bf16   (tap = kd*3+kh, K = (kw, cin))
    b_ref  : (1, TCo) f32
    o_ref  : (1, 1, rows, TCo) bf16   rows = TD*H*W2 flattened output voxels
    acc_ref: (rows, TCo) f32 VMEM scratch accumulator
    """
    d0 = pl.program_id(0) * TD

    def window(kd, kh, kw):
        # (TD, H, W2, Cin) shifted window, flattened to (rows, Cin).
        # W2 % 8 == 0 keeps this reshape layout-preserving.
        p = x_ref[0, pl.ds(d0 + kd, TD), pl.ds(kh, H), pl.ds(kw, W2), :]
        return p.reshape(rows, Cin)

    first = True
    if fold_kh:
        # K = 9*Cin, 3 matmuls -> 3 accumulator RMW passes.
        for kd in range(3):
            patch = jnp.concatenate(
                [window(kd, kh, kw) for kh in range(3) for kw in range(3)],
                axis=1)
            contrib = jnp.dot(patch, w_ref[kd],
                              preferred_element_type=jnp.float32)
            if first:
                acc_ref[...] = contrib
                first = False
            else:
                acc_ref[...] += contrib
    else:
        # K = 3*Cin, 9 matmuls.
        for kd in range(3):
            for kh in range(3):
                patch = jnp.concatenate(
                    [window(kd, kh, kw) for kw in range(3)], axis=1)
                contrib = jnp.dot(patch, w_ref[kd * 3 + kh],
                                  preferred_element_type=jnp.float32)
                if first:
                    acc_ref[...] = contrib
                    first = False
                else:
                    acc_ref[...] += contrib

    o_ref[0, 0] = jnp.maximum(acc_ref[...] + b_ref[...], 0.0).astype(o_ref.dtype)


def _conv3d_folded(x, w, b):
    """x: (N,D,H,W,Cin) with Cin % 8 == 0;  w: (3,3,3,Cin,Cout);  b: (Cout,)."""
    N, D, H, W, Cin = x.shape
    Cout = w.shape[-1]

    x = x.astype(jnp.bfloat16)
    w_bf = w.astype(jnp.bfloat16)
    b_f = b.astype(jnp.float32).reshape(1, Cout)

    # Pad W up to a multiple of 8 so the in-kernel (TD,H,W2,Cin)->(rows,Cin)
    # flatten is layout-preserving (sublane dim stays a multiple of 8).
    W2 = ((W + 7) // 8) * 8
    xp = jnp.pad(x, ((0, 0), (1, 1), (1, 1), (1, 1 + (W2 - W)), (0, 0)))
    Dp, Hp, Wp = D + 2, H + 2, W2 + 2

    # Depth tile so the flattened row count per step stays <= 4096.
    ROWS_CAP = 4096
    TD = D
    while TD * H * W2 > ROWS_CAP and TD % 2 == 0:
        TD //= 2
    rows = TD * H * W2
    d_steps = D // TD

    # Cout tile: 256 fills the 256-wide v6e/v7x MXU with lane-dense stores;
    # capped at 256 so the Cin=512 weight tiles stay comfortable on v7x VMEM.
    if Cout % 256 == 0:
        TCo = 256
    elif Cout % 128 == 0:
        TCo = 128
    else:
        TCo = Cout
    c_steps = Cout // TCo

    fold_kh = Cin <= 64
    if fold_kh:
        wk = w_bf.reshape(3, 9 * Cin, Cout)        # (kd, (kh,kw,cin), cout)
        w_spec = pl.BlockSpec((3, 9 * Cin, TCo), lambda d, c, n: (0, 0, c))
    else:
        wk = w_bf.reshape(9, 3 * Cin, Cout)        # ((kd,kh), (kw,cin), cout)
        w_spec = pl.BlockSpec((9, 3 * Cin, TCo), lambda d, c, n: (0, 0, c))

    kernel = functools.partial(_conv3d_kernel, TD=TD, H=H, W2=W2, Cin=Cin,
                               rows=rows, fold_kh=fold_kh)

    out = pl.pallas_call(
        kernel,
        out_shape=jax.ShapeDtypeStruct((N, d_steps, rows, Cout), jnp.bfloat16),
        # Depth tiles lead so a non-trivial "parallel" axis is first when N==1
        # (v7x megacore); batch is last (trivial for N==1, keeps x revisited).
        grid=(d_steps, c_steps, N),
        in_specs=[
            pl.BlockSpec((1, Dp, Hp, Wp, Cin), lambda d, c, n: (n, 0, 0, 0, 0)),
            w_spec,
            pl.BlockSpec((1, TCo), lambda d, c, n: (0, c)),
        ],
        out_specs=pl.BlockSpec((1, 1, rows, TCo), lambda d, c, n: (n, d, 0, c)),
        scratch_shapes=[pltpu.VMEM((rows, TCo), jnp.float32)],
        compiler_params=pltpu.CompilerParams(
            # No cross-step accumulation (first tap assigns acc), so every
            # axis is parallel-safe.
            dimension_semantics=("parallel", "parallel", "parallel"),
            vmem_limit_bytes=48 * 1024 * 1024,
        ),
    )(xp, wk, b_f)

    out = out.reshape(N, D, H, W2, Cout)
    if W2 != W:
        out = out[:, :, :, :W, :]   # drop relu(bias) columns from W padding
    return out


# ----------------------------------------------------------------------------
# First layer (tiny Cin): im2col + single matmul-bias-relu kernel
# ----------------------------------------------------------------------------
def _mm_bias_relu_kernel(x_ref, w_ref, b_ref, o_ref):
    y = jnp.dot(x_ref[...], w_ref[...], preferred_element_type=jnp.float32)
    o_ref[...] = jnp.maximum(y + b_ref[...], 0.0).astype(o_ref.dtype)


def _conv3d_im2col(x, w, b):
    """General fallback (used for Cin=2): im2col in the wrapper, one matmul."""
    N, D, H, W, Cin = x.shape
    Cout = w.shape[-1]
    x = x.astype(jnp.bfloat16)
    xp = jnp.pad(x, ((0, 0), (1, 1), (1, 1), (1, 1), (0, 0)))
    cols = [xp[:, kd:kd + D, kh:kh + H, kw:kw + W, :]
            for kd in range(3) for kh in range(3) for kw in range(3)]
    K = 27 * Cin
    xcol = jnp.concatenate(cols, axis=-1).reshape(N * D * H * W, K)
    wmat = w.astype(jnp.bfloat16).reshape(K, Cout)
    b_f = b.astype(jnp.float32).reshape(1, Cout)

    M = N * D * H * W
    TM = M
    for t in (4096, 2048, 1024, 512, 256, 128, 64, 32, 16, 8):
        if M % t == 0:
            TM = t
            break
    TCo = 256 if Cout % 256 == 0 else (128 if Cout % 128 == 0 else Cout)

    out = pl.pallas_call(
        _mm_bias_relu_kernel,
        out_shape=jax.ShapeDtypeStruct((M, Cout), jnp.bfloat16),
        grid=(M // TM, Cout // TCo),
        in_specs=[
            pl.BlockSpec((TM, K), lambda i, j: (i, 0)),
            pl.BlockSpec((K, TCo), lambda i, j: (0, j)),
            pl.BlockSpec((1, TCo), lambda i, j: (0, j)),
        ],
        out_specs=pl.BlockSpec((TM, TCo), lambda i, j: (i, j)),
        compiler_params=pltpu.CompilerParams(
            dimension_semantics=("parallel", "parallel"),
            vmem_limit_bytes=48 * 1024 * 1024,
        ),
    )(xcol, wmat, b_f)
    return out.reshape(N, D, H, W, Cout)


def conv3d_same_relu(x, w, b):
    """Conv3d(k=3, padding='same') + bias + ReLU, NDHWC, bf16 out."""
    if x.shape[-1] % 8 == 0:
        return _conv3d_folded(x, w, b)
    return _conv3d_im2col(x, w, b)


# ----------------------------------------------------------------------------
# MaxPool3d(kernel_size=2, stride=2)
# ----------------------------------------------------------------------------
def _maxpool_kernel(x_ref, o_ref, *, TDp, H, Wh):
    # x_ref: (1, 2*TDp, H, Wh, 2, C)  -- trailing 2 holds adjacent-W pairs
    # o_ref: (1, TDp, H//2, Wh, 1, C)
    for t in range(TDp):
        a = jnp.maximum(x_ref[0, 2 * t], x_ref[0, 2 * t + 1])       # D pool
        a = a.reshape(H // 2, 2, Wh, 2, a.shape[-1])                 # major split
        a = jnp.maximum(a[:, 0], a[:, 1])                            # H pool
        # W pool: max of the two sublane positions of the trailing pair axis.
        o_ref[0, t] = jnp.maximum(a[:, :, 0:1, :], a[:, :, 1:2, :])


def maxpool3d_2x2x2(x):
    """x: (N, D, H, W, C) -> (N, D/2, H/2, W/2, C); no XLA gather copy."""
    N, D, H, W, C = x.shape
    D2, H2, Wh = D // 2, H // 2, W // 2
    xr = x.reshape(N, D, H, Wh, 2, C)   # free (row-major preserving) view

    # Depth-pairs per step, bounded by the sublane-padded VMEM block size.
    pair_bytes = 2 * H * Wh * 8 * C * x.dtype.itemsize
    TDp = D2
    while TDp > 1 and TDp % 2 == 0 and TDp * pair_bytes > (4 << 20):
        TDp //= 2

    kernel = functools.partial(_maxpool_kernel, TDp=TDp, H=H, Wh=Wh)
    out = pl.pallas_call(
        kernel,
        out_shape=jax.ShapeDtypeStruct((N, D2, H2, Wh, 1, C), x.dtype),
        grid=(N, D2 // TDp),
        in_specs=[pl.BlockSpec((1, 2 * TDp, H, Wh, 2, C),
                               lambda n, d: (n, d, 0, 0, 0, 0))],
        out_specs=pl.BlockSpec((1, TDp, H2, Wh, 1, C),
                               lambda n, d: (n, d, 0, 0, 0, 0)),
        compiler_params=pltpu.CompilerParams(
            dimension_semantics=("parallel", "parallel"),
            vmem_limit_bytes=48 * 1024 * 1024,
        ),
    )(xr)
    return out.reshape(N, D2, H2, Wh, C)


# ----------------------------------------------------------------------------
# Encoder: parameters + forward
# ----------------------------------------------------------------------------
def init_encoder_params(key, in_channels=2, out_features=512):
    blocks = [
        (in_channels, [64, 64]),
        (64, [128, 128]),
        (128, [256, 256, 256]),
        (256, [512, 512, 512]),
        (512, [512, 512, out_features]),
    ]
    params = []
    for cin0, couts in blocks:
        convs = []
        cin = cin0
        for cout in couts:
            key, kw_, kb_ = jax.random.split(key, 3)
            std = (2.0 / (cin * 27)) ** 0.5
            w = std * jax.random.normal(kw_, (3, 3, 3, cin, cout), jnp.float32)
            b = 0.01 * jax.random.normal(kb_, (cout,), jnp.float32)
            convs.append((w, b))
            cin = cout
        params.append(convs)
    return params


def encoder_forward(x_ncdhw, params):
    # PyTorch-style NCDHW in / NCDHW out; kernels run in NDHWC, bf16.
    x = jnp.transpose(x_ncdhw, (0, 2, 3, 4, 1)).astype(jnp.bfloat16)
    for block in params:
        for w, b in block:
            x = conv3d_same_relu(x, w, b)   # Conv3d(k=3, 'same') + ReLU
        x = maxpool3d_2x2x2(x)              # MaxPool3d(kernel_size=2, stride=2)
    return jnp.transpose(x, (0, 4, 1, 2, 3)).astype(jnp.float32)


# ----------------------------------------------------------------------------
# Self-test
# ----------------------------------------------------------------------------
def _xla_conv_relu_bf16(x_ndhwc, w, b):
    """XLA reference: bf16 operands / f32 accumulation, returns f32."""
    y = lax.conv_general_dilated(
        x_ndhwc.astype(jnp.bfloat16), w.astype(jnp.bfloat16),
        window_strides=(1, 1, 1), padding="SAME",
        dimension_numbers=("NDHWC", "DHWIO", "NDHWC"),
        preferred_element_type=jnp.float32,
    )
    return jnp.maximum(y + b.astype(jnp.float32), 0.0)


def _check_conv(got_bf16, ref_f32, tag):
    got = got_bf16.astype(jnp.float32)
    scale = float(jnp.max(jnp.abs(ref_f32))) + 1e-6
    err = float(jnp.max(jnp.abs(got - ref_f32)))
    assert err <= 0.01 * scale + 1e-3, f"{tag}: max abs err {err} (scale {scale})"


if __name__ == "__main__":
    key = jax.random.PRNGKey(0)
    kx, kp, k2, kw2, kb2, k3, kw3, kb3, kpool = jax.random.split(key, 9)

    N, C_IN, S = 1, 2, 32               # spatial 32 -> five 2x pools -> 1
    x = jax.random.normal(kx, (N, C_IN, S, S, S), jnp.float32)  # NCDHW
    params = init_encoder_params(kp, in_channels=C_IN, out_features=512)
    x_ndhwc = jnp.transpose(x, (0, 2, 3, 4, 1)).astype(jnp.bfloat16)

    # Check 1: first layer (Cin=2 -> im2col path) vs XLA reference.
    w0, b0 = params[0][0]
    _check_conv(conv3d_same_relu(x_ndhwc, w0, b0),
                _xla_conv_relu_bf16(x_ndhwc, w0, b0), "im2col conv")

    # Check 2: folded path with kh+kw fold (Cin=64 -> Cout=128).
    x2 = jax.random.normal(k2, (1, 8, 8, 8, 64), jnp.float32).astype(jnp.bfloat16)
    w2 = (2.0 / (64 * 27)) ** 0.5 * jax.random.normal(
        kw2, (3, 3, 3, 64, 128), jnp.float32)
    b2 = 0.01 * jax.random.normal(kb2, (128,), jnp.float32)
    _check_conv(conv3d_same_relu(x2, w2, b2),
                _xla_conv_relu_bf16(x2, w2, b2), "khkw-fold conv")

    # Check 3: kw-only fold, Cout tiling (TCo=256 x 2) and W padding (W=4->8).
    x3 = jax.random.normal(k3, (1, 4, 4, 4, 256), jnp.float32).astype(jnp.bfloat16)
    w3 = (2.0 / (256 * 27)) ** 0.5 * jax.random.normal(
        kw3, (3, 3, 3, 256, 512), jnp.float32)
    b3 = 0.01 * jax.random.normal(kb3, (512,), jnp.float32)
    _check_conv(conv3d_same_relu(x3, w3, b3),
                _xla_conv_relu_bf16(x3, w3, b3), "kw-fold conv")

    # Check 4: max pool vs reshape-max reference (exact for bf16).
    xp_t = jax.random.normal(kpool, (1, 4, 4, 4, 128), jnp.float32).astype(jnp.bfloat16)
    gotp = maxpool3d_2x2x2(xp_t).astype(jnp.float32)
    refp = xp_t.astype(jnp.float32).reshape(1, 2, 2, 2, 2, 2, 2, 128).max(axis=(2, 4, 6))
    assert float(jnp.max(jnp.abs(gotp - refp))) == 0.0, "maxpool mismatch"

    # Full encoder forward.
    out = jax.jit(encoder_forward)(x, params)
    out = jax.block_until_ready(out)
    assert out.shape == (N, 512, 1, 1, 1), out.shape
    assert bool(jnp.all(jnp.isfinite(out)))
    print("KERNEL_OK")
</pallas_src>

<mosaic_0001>
module attributes {stable_mosaic.version = 11 : i64} {
  func.func @_mm_bias_relu_kernel(%arg0: i32, %arg1: i32, %arg2: memref<4096x54xbf16, #tpu.memory_space<vmem>>, %arg3: memref<54x64xbf16, #tpu.memory_space<vmem>>, %arg4: memref<1x64xf32, #tpu.memory_space<vmem>>, %arg5: memref<4096x64xbf16, #tpu.memory_space<vmem>>) attributes {dimension_semantics = [#tpu.dimension_semantics<parallel>, #tpu.dimension_semantics<parallel>], iteration_bounds = array<i64: 8, 1>, scalar_prefetch = 0 : i64, scratch_operands = 0 : i64, tpu.core_type = #tpu.core_type<tc>, window_params = [{transform_indices = @transform_0, window_bounds = array<i64: 4096, 54>}, {transform_indices = @transform_1, window_bounds = array<i64: 54, 64>}, {transform_indices = @transform_2, window_bounds = array<i64: 1, 64>}, {transform_indices = @transform_3, window_bounds = array<i64: 4096, 64>}]} {
    %c0 = arith.constant 0 : index
    %c0_0 = arith.constant 0 : index
    %0 = vector.load %arg2[%c0, %c0_0] : memref<4096x54xbf16, #tpu.memory_space<vmem>>, vector<4096x54xbf16>
    %c0_1 = arith.constant 0 : index
    %c0_2 = arith.constant 0 : index
    %1 = vector.load %arg3[%c0_1, %c0_2] : memref<54x64xbf16, #tpu.memory_space<vmem>>, vector<54x64xbf16>
    %cst = arith.constant dense<0.000000e+00> : vector<4096x64xf32>
    %2 = tpu.matmul %0, %1, %cst {dimension_numbers = #tpu.dot_dimension_numbers<[1], [0], [0], [1], [0, 0, 1, 1], [], []>} : vector<4096x54xbf16>, vector<54x64xbf16>, vector<4096x64xf32> -> vector<4096x64xf32>
    %c0_3 = arith.constant 0 : index
    %c0_4 = arith.constant 0 : index
    %3 = vector.load %arg4[%c0_3, %c0_4] : memref<1x64xf32, #tpu.memory_space<vmem>>, vector<1x64xf32>
    %4 = vector.broadcast %3 : vector<1x64xf32> to vector<4096x64xf32>
    %5 = arith.addf %2, %4 : vector<4096x64xf32>
    %cst_5 = arith.constant 0.000000e+00 : f32
    %6 = vector.broadcast %cst_5 : f32 to vector<4096x64xf32>
    %7 = arith.maximumf %5, %6 : vector<4096x64xf32>
    %8 = arith.truncf %7 : vector<4096x64xf32> to vector<4096x64xbf16>
    %c0_6 = arith.constant 0 : index
    %c0_7 = arith.constant 0 : index
    %9 = vector.load %arg5[%c0_6, %c0_7] : memref<4096x64xbf16, #tpu.memory_space<vmem>>, vector<4096x64xbf16>
    tpu.vector_store %arg5[%c0_6, %c0_7], %8 {strides = array<i32>} : memref<4096x64xbf16, #tpu.memory_space<vmem>>, vector<4096x64xbf16>,
    return
  }
  func.func @transform_0(%arg0: i32, %arg1: i32) -> (i32, i32) {
    %c0_i32 = arith.constant 0 : i32
    %c0_i32_0 = arith.constant 0 : i32
    return %arg0, %c0_i32 : i32, i32
  }
  func.func @transform_1(%arg0: i32, %arg1: i32) -> (i32, i32) {
    %c0_i32 = arith.constant 0 : i32
    %c0_i32_0 = arith.constant 0 : i32
    return %c0_i32, %arg1 : i32, i32
  }
  func.func @transform_2(%arg0: i32, %arg1: i32) -> (i32, i32) {
    %c0_i32 = arith.constant 0 : i32
    %c0_i32_0 = arith.constant 0 : i32
    return %c0_i32, %arg1 : i32, i32
  }
  func.func @transform_3(%arg0: i32, %arg1: i32) -> (i32, i32) {
    %c0_i32 = arith.constant 0 : i32
    return %arg0, %arg1 : i32, i32
  }
}

</mosaic_0001>

<llo_original>
// kernel: tpu_custom_call.1
$region0: #{tpu_custom_call.1}
  #allocation0 [shape = 'u32[]', space=smem, size = 0x4, offset = 0x4, fixed_abs, tag = 'smem constant byte address 0x4 - core index']
  #allocation1 [shape = 'u32[144,128]{1,0:T(1,128)}', space=vmem, size = 0x12000, scoped, tag = 'internal scratch']
  %s0 = inlined_call_operand.vmem [shape: bf16[32768,54], index: 0, kind: input, shape index: {}]
  %s1 = inlined_call_operand.hbm [shape: bf16[54,64], index: 1, kind: input, shape index: {}]
  %s2 = inlined_call_operand.hbm [shape: f32[1,64], index: 2, kind: input, shape index: {}]
  %s3 = inlined_call_operand.vmem [shape: bf16[32768,64], index: 3, kind: output, shape index: {}]
  %s4 = sld [smem:[#allocation0]]
  $region53: #{tpu_custom_call.1} parent=0
    _
  %s6 = ssub.s32 1, %s4
  %s7 = scalar_select 0, %s6, %s4
  $region1: #{tpu_custom_call.1} parent=0
    #allocation2 [shape = 'u8[14336]{0}', space=vmem, size = 0x3800, scoped, tag = 'input window, operand 1, single buffered']
    #allocation3 [shape = 's32[2]{0}', space=sflag, size = 0x8, scoped, tag = 'scoped memory for tpu_custom_call.1']
    #allocation4 [shape = 'u8[512]{0}', space=vmem, size = 0x400, scoped, tag = 'input window, operand 2, single buffered']
    #allocation5 [shape = 's32[1]{0}', space=sflag, size = 0x4, scoped, tag = 'scoped memory for tpu_custom_call.1']
    %8 = vsyncpa [#allocation3], 0
    %9 = vsyncpa [#allocation5], 0
    loop: start=0, step=1, limit=10
    $region2: #{tpu_custom_call.1} parent=1 // loop_pre_header
      _
    $region3: #{tpu_custom_call.1} parent=1 // loop_header
      %s11 = sphi 0, %s15
      %p12 = scmp.ge.s32.totalorder %s11, 10
      %s18 = sphi 0, %s30
      %s19 = sphi 0, %s26
      %s20 = sphi 0, %s18
      %s21 = sphi 0, %s19
      %s22 = sphi 0, %s20
      %s23 = sphi 0, %s21
      %s33 = sphi 0, %s35
      %s36 = sphi 0, %s33
      %s37 = sphi 0, %s36
      %s53 = sphi 0, %s37
      %s59 = sphi 0, %s61
      %s62 = sphi 0, %s59
      %s63 = sphi 0, %s62
      %s79 = sphi 0, %s63
      %s85 = sphi 0, %s87
      %s88 = sphi 0, %s85
      %s89 = sphi 0, %s88
      %s105 = sphi 0, %s89
      %s113 = sphi 0, %s115
      %s116 = sphi 0, %s113
      %s117 = sphi 0, %s116
      %s133 = sphi 0, %s117
    $region4: #{tpu_custom_call.1} parent=1 // loop_header_branch
      %14 = sbr.rel (%p12) target = $region8
    $region5: #{tpu_custom_call.1} parent=1 // loop_body
      %s16 = ssub.s32 %s11, 1
      %s17 = ssub.s32 %s11, 2
      %s24 = sadd.s32 1, %s19
      %p25 = scmp.ge.s32.totalorder %s24, 1
      %s26 = scalar_select %p25, 0, %s24
      %s27 = sadd.s32 1, %s18
      %s28 = scalar_select %p25, %s27, %s18
      %p29 = scmp.ge.s32.totalorder %s28, 8
      %s30 = scalar_select %p29, 0, %s28
      %s31 = ssub.s32 %s18, %s30
      %p32 = scmp.eq.s32.totalorder %s31, 0
      %s34 = sadd.s32 %s33, 1
      %s35 = scalar_select %p32, %s33, %s34
      %p38 = pneg %p32
      %p39 = scmp.eq.s32.totalorder %s11, 7
      %p40 = por %p38, %p39
      %p41 = scmp.ne.s32.totalorder %s33, %s36
      %p42 = scmp.eq.s32.totalorder %s11, 0
      %p43 = por %p41, %p42
      %p44 = scmp.ne.s32.totalorder %s33, %s36
      %p45 = scmp.eq.s32.totalorder %s16, 7
      %p46 = por %p44, %p45
      %p47 = scmp.ne.s32.totalorder %s36, %s37
      %p48 = scmp.eq.s32.totalorder %s16, 0
      %p49 = por %p47, %p48
      %p50 = scmp.ne.s32.totalorder %s36, %s37
      %p51 = scmp.eq.s32.totalorder %s17, 7
      %p52 = por %p50, %p51
      %p54 = scmp.ne.s32.totalorder %s37, %s53
      %p55 = scmp.eq.s32.totalorder %s17, 0
      %p56 = por %p54, %p55
      %s57 = ssub.s32 %s19, %s26
      %p58 = scmp.eq.s32.totalorder %s57, 0
      %s60 = sadd.s32 %s59, 1
      %s61 = scalar_select %p58, %s59, %s60
      %p64 = pneg %p58
      %p65 = scmp.eq.s32.totalorder %s11, 7
      %p66 = por %p64, %p65
      %p67 = scmp.ne.s32.totalorder %s59, %s62
      %p68 = scmp.eq.s32.totalorder %s11, 0
      %p69 = por %p67, %p68
      %p70 = scmp.ne.s32.totalorder %s59, %s62
      %p71 = scmp.eq.s32.totalorder %s16, 7
      %p72 = por %p70, %p71
      %p73 = scmp.ne.s32.totalorder %s62, %s63
      %p74 = scmp.eq.s32.totalorder %s16, 0
      %p75 = por %p73, %p74
      %p76 = scmp.ne.s32.totalorder %s62, %s63
      %p77 = scmp.eq.s32.totalorder %s17, 7
      %p78 = por %p76, %p77
      %p80 = scmp.ne.s32.totalorder %s63, %s79
      %p81 = scmp.eq.s32.totalorder %s17, 0
      %p82 = por %p80, %p81
      %s83 = ssub.s32 %s19, %s26
      %p84 = scmp.eq.s32.totalorder %s83, 0
      %s86 = sadd.s32 %s85, 1
      %s87 = scalar_select %p84, %s85, %s86
      %p90 = pneg %p84
      %p91 = scmp.eq.s32.totalorder %s11, 7
      %p92 = por %p90, %p91
      %p93 = scmp.ne.s32.totalorder %s85, %s88
      %p94 = scmp.eq.s32.totalorder %s11, 0
      %p95 = por %p93, %p94
      %p96 = scmp.ne.s32.totalorder %s85, %s88
      %p97 = scmp.eq.s32.totalorder %s16, 7
      %p98 = por %p96, %p97
      %p99 = scmp.ne.s32.totalorder %s88, %s89
      %p100 = scmp.eq.s32.totalorder %s16, 0
      %p101 = por %p99, %p100
      %p102 = scmp.ne.s32.totalorder %s88, %s89
      %p103 = scmp.eq.s32.totalorder %s17, 7
      %p104 = por %p102, %p103
      %p106 = scmp.ne.s32.totalorder %s89, %s105
      %p107 = scmp.eq.s32.totalorder %s17, 0
      %p108 = por %p106, %p107
      %s109 = ssub.s32 %s18, %s30
      %s110 = ssub.s32 %s19, %s26
      %s111 = sor.u32 %s109, %s110
      %p112 = scmp.eq.s32.totalorder %s111, 0
      %s114 = sadd.s32 %s113, 1
      %s115 = scalar_select %p112, %s113, %s114
      %p118 = pneg %p112
      %p119 = scmp.eq.s32.totalorder %s11, 7
      %p120 = por %p118, %p119
      %p121 = scmp.ne.s32.totalorder %s113, %s116
      %p122 = scmp.eq.s32.totalorder %s11, 0
      %p123 = por %p121, %p122
      %p124 = scmp.ne.s32.totalorder %s113, %s116
      %p125 = scmp.eq.s32.totalorder %s16, 7
      %p126 = por %p124, %p125
      %p127 = scmp.ne.s32.totalorder %s116, %s117
      %p128 = scmp.eq.s32.totalorder %s16, 0
      %p129 = por %p127, %p128
      %p130 = scmp.ne.s32.totalorder %s116, %s117
      %p131 = scmp.eq.s32.totalorder %s17, 7
      %p132 = por %p130, %p131
      %p134 = scmp.ne.s32.totalorder %s117, %s133
      %p135 = scmp.eq.s32.totalorder %s17, 0
      %p136 = por %p134, %p135
      %p137 = scmp.le.s32.totalorder 1, %s11
      %p138 = scmp.lt.s32.totalorder %s11, 9
      %p139 = pnand %p137, %p138
      %p140 = pneg %p139
      // Predicated region
      $region9: #{tpu_custom_call.1} parent=5 // pred_check
        _
      $region10: #{tpu_custom_call.1} parent=5 // pred_check_branch
        %142 = sbr.rel (%p139) target = $region12
      $region11: #{tpu_custom_call.1} parent=5 // pred_region
        %s143 = ssub.s32 %s11, 1
        // Predicated region
        $region13: #{tpu_custom_call.1} parent=11 // pred_check
          %p144 = pneg %p75
        $region14: #{tpu_custom_call.1} parent=11 // pred_check_branch
          %146 = sbr.rel (%p144) target = $region16
        $region15: #{tpu_custom_call.1} parent=11 // pred_region
          %s148 = ssub.s32 448, 448
          %149 = vsyncadd [#allocation3], %s148
          %s150 = smul.addr %s21, 64
          %s151 = scalar_lea.hbm %s1, %s150
          %s152 = sshll.u32 [#allocation2], 4
          %s153 = int_to_ptr.vmem [resolvable:$true] %s152
          %158 = dma.hbm_to_vmem [thread:$0]  %s151, 448, %s153, [#allocation3], 64, 64, 4
        $region16: #{tpu_custom_call.1} parent=11 // pred_fallthru
          _
        // Predicated region
        $region17: #{tpu_custom_call.1} parent=11 // pred_check
          %p159 = pneg %p101
        $region18: #{tpu_custom_call.1} parent=11 // pred_check_branch
          %161 = sbr.rel (%p159) target = $region20
        $region19: #{tpu_custom_call.1} parent=11 // pred_region
          %s163 = ssub.s32 16, 16
          %164 = vsyncadd [#allocation5], %s163
          %s165 = smul.addr %s21, 16
          %s166 = scalar_lea.hbm %s2, %s165
          %s168 = sshll.u32 [#allocation4], 4
          %s169 = int_to_ptr.vmem [resolvable:$true] %s168
          %171 = dma.hbm_to_vmem [thread:$0]  %s166, 16, %s169, [#allocation5]
        $region20: #{tpu_custom_call.1} parent=11 // pred_fallthru
          _
      $region12: #{tpu_custom_call.1} parent=5 // pred_fallthru
        _
      %p172 = scmp.lt.s32.totalorder %s11, 8
      // Predicated region
      $region21: #{tpu_custom_call.1} parent=5 // pred_check
        %p173 = pneg %p172
      $region22: #{tpu_custom_call.1} parent=5 // pred_check_branch
        %175 = sbr.rel (%p173) target = $region24
      $region23: #{tpu_custom_call.1} parent=5 // pred_region
        // Predicated region
        $region25: #{tpu_custom_call.1} parent=23 // pred_check
          %p176 = pneg %p43
        $region26: #{tpu_custom_call.1} parent=23 // pred_check_branch
          %178 = sbr.rel (%p176) target = $region28
        $region27: #{tpu_custom_call.1} parent=23 // pred_region
          %s179 = smul.u32 512, %s18
          %p180 = scmp.lt.s32.totalorder %s179, 4095
          %s181 = scalar_select %p180, %s179, 4095
          %s182 = smul.addr %s181, 4
          %s183 = scalar_lea.vmem %s0, %s182
          %s184 = smul.u32 512, %s18
        $region28: #{tpu_custom_call.1} parent=23 // pred_fallthru
          _
      $region24: #{tpu_custom_call.1} parent=5 // pred_fallthru
        _
      %p185 = scmp.le.s32.totalorder 1, %s11
      %p186 = scmp.lt.s32.totalorder %s11, 9
      %p187 = pnand %p185, %p186
      %p188 = pneg %p187
      // Predicated region
      $region29: #{tpu_custom_call.1} parent=5 // pred_check
        _
      $region30: #{tpu_custom_call.1} parent=5 // pred_check_branch
        %190 = sbr.rel (%p187) target = $region32
      $region31: #{tpu_custom_call.1} parent=5 // pred_region
        %s191 = ssub.s32 %s11, 1
        // Predicated region
        $region33: #{tpu_custom_call.1} parent=31 // pred_check
          %p192 = pneg %p75
        $region34: #{tpu_custom_call.1} parent=31 // pred_check_branch
          %194 = sbr.rel (%p192) target = $region36
        $region35: #{tpu_custom_call.1} parent=31 // pred_region
          %195 = dma.done [#allocation3], 448
        $region36: #{tpu_custom_call.1} parent=31 // pred_fallthru
          _
        // Predicated region
        $region37: #{tpu_custom_call.1} parent=31 // pred_check
          %p196 = pneg %p101
        $region38: #{tpu_custom_call.1} parent=31 // pred_check_branch
          %198 = sbr.rel (%p196) target = $region40
        $region39: #{tpu_custom_call.1} parent=31 // pred_region
          %199 = dma.done [#allocation5], 16
        $region40: #{tpu_custom_call.1} parent=31 // pred_fallthru
          _
        %s200 = smul.u32 512, %s20
        %p201 = scmp.lt.s32.totalorder %s200, 4095
        %s202 = scalar_select %p201, %s200, 4095
        %s203 = smul.addr %s202, 4
        %s204 = scalar_lea.vmem %s0, %s203
        %p205 = pneg %p49
        %p206 = pneg %p46
        %p207 = pneg %p75
        %p208 = pneg %p72
        %p209 = pneg %p101
        %p210 = pneg %p98
        %p211 = pneg %p129
        %p212 = pneg %p126
        %s213 = smul.u32 512, %s20
        %p214 = scmp.lt.s32.totalorder %s213, 4095
        %s215 = scalar_select %p214, %s213, 4095
        %p216 = scmp.lt.s32.totalorder %s21, 0
        %s217 = scalar_select %p216, %s21, 0
        %s218 = sadd.s32 %s217, %s215
        %s219 = smul.addr %s218, 4
        %s220 = scalar_lea.vmem %s3, %s219
        %s221 = smul.u32 512, %s20
        %p222 = scmp.lt.s32.totalorder %s221, 4095
        %s223 = scalar_select %p222, %s221, 4095
        %s224 = smul.addr %s223, 4
        %s225 = scalar_lea.vmem %s0, %s224
        %s226 = smul.u32 512, %s20
        %s227 = smul.u32 512, %s20
        %p228 = scmp.lt.s32.totalorder %s227, 4095
        %s229 = scalar_select %p228, %s227, 4095
        %p230 = scmp.lt.s32.totalorder %s21, 0
        %s231 = scalar_select %p230, %s21, 0
        %s232 = sadd.s32 %s231, %s229
        %s233 = smul.addr %s232, 4
        %s234 = scalar_lea.vmem %s3, %s233
        %s235 = smul.u32 512, %s20
        %v237 = vld [vmem:[%s225] sm:$0xf]
        %v238 = vld [vmem:[%s225 + $0x4] sm:$0xf]
        %v239 = vld [vmem:[%s225 + $0x8] sm:$0xf]
        %v240 = vld [vmem:[%s225 + $0xc] sm:$0xf]
        %v241 = vld [vmem:[%s225 + $0x10] sm:$0xf]
        %v242 = vld [vmem:[%s225 + $0x14] sm:$0xf]
        %v243 = vld [vmem:[%s225 + $0x18] sm:$0xf]
        %v244 = vld [vmem:[%s225 + $0x1c] sm:$0xf]
        %v245 = vld [vmem:[%s225 + $0x20] sm:$0xf]
        %v246 = vld [vmem:[%s225 + $0x24] sm:$0xf]
        %v247 = vld [vmem:[%s225 + $0x28] sm:$0xf]
        %v248 = vld [vmem:[%s225 + $0x2c] sm:$0xf]
        %v249 = vld [vmem:[%s225 + $0x30] sm:$0xf]
        %v250 = vld [vmem:[%s225 + $0x34] sm:$0xf]
        %v251 = vld [vmem:[%s225 + $0x38] sm:$0xf]
        %v252 = vld [vmem:[%s225 + $0x3c] sm:$0xf]
        %v253 = vld [vmem:[%s225 + $0x40] sm:$0xf]
        %v254 = vld [vmem:[%s225 + $0x44] sm:$0xf]
        %v255 = vld [vmem:[%s225 + $0x48] sm:$0xf]
        %v256 = vld [vmem:[%s225 + $0x4c] sm:$0xf]
        %v257 = vld [vmem:[%s225 + $0x50] sm:$0xf]
        %v258 = vld [vmem:[%s225 + $0x54] sm:$0xf]
        %v259 = vld [vmem:[%s225 + $0x58] sm:$0xf]
        %v260 = vld [vmem:[%s225 + $0x5c] sm:$0xf]
        %v261 = vld [vmem:[%s225 + $0x60] sm:$0xf]
        %v262 = vld [vmem:[%s225 + $0x64] sm:$0xf]
        %v263 = vld [vmem:[%s225 + $0x68] sm:$0xf]
        %v264 = vld [vmem:[%s225 + $0x6c] sm:$0xf]
        %v265 = vld [vmem:[%s225 + $0x70] sm:$0xf]
        %v266 = vld [vmem:[%s225 + $0x74] sm:$0xf]
        %v267 = vld [vmem:[%s225 + $0x78] sm:$0xf]
        %v268 = vld [vmem:[%s225 + $0x7c] sm:$0xf]
        %v269 = vld [vmem:[%s225 + $0x80] sm:$0xf]
        %v270 = vld [vmem:[%s225 + $0x84] sm:$0xf]
        %v271 = vld [vmem:[%s225 + $0x88] sm:$0xf]
        %v272 = vld [vmem:[%s225 + $0x8c] sm:$0xf]
        %v273 = vld [vmem:[%s225 + $0x90] sm:$0xf]
        %v274 = vld [vmem:[%s225 + $0x94] sm:$0xf]
        %v275 = vld [vmem:[%s225 + $0x98] sm:$0xf]
        %v276 = vld [vmem:[%s225 + $0x9c] sm:$0xf]
        %v277 = vld [vmem:[%s225 + $0xa0] sm:$0xf]
        %v278 = vld [vmem:[%s225 + $0xa4] sm:$0xf]
        %v279 = vld [vmem:[%s225 + $0xa8] sm:$0xf]
        %v280 = vld [vmem:[%s225 + $0xac] sm:$0xf]
        %v281 = vld [vmem:[%s225 + $0xb0] sm:$0xf]
        %v282 = vld [vmem:[%s225 + $0xb4] sm:$0xf]
        %v283 = vld [vmem:[%s225 + $0xb8] sm:$0xf]
        %v284 = vld [vmem:[%s225 + $0xbc] sm:$0xf]
        %v285 = vld [vmem:[%s225 + $0xc0] sm:$0xf]
        %v286 = vld [vmem:[%s225 + $0xc4] sm:$0xf]
        %v287 = vld [vmem:[%s225 + $0xc8] sm:$0xf]
        %v288 = vld [vmem:[%s225 + $0xcc] sm:$0xf]
        %v289 = vld [vmem:[%s225 + $0xd0] sm:$0xf]
        %v290 = vld [vmem:[%s225 + $0xd4] sm:$0xf]
        %v291 = vld [vmem:[%s225 + $0xd8] sm:$0xf]
        %v292 = vld [vmem:[%s225 + $0xdc] sm:$0xf]
        %v293 = vld [vmem:[%s225 + $0xe0] sm:$0xf]
        %v294 = vld [vmem:[%s225 + $0xe4] sm:$0xf]
        %v295 = vld [vmem:[%s225 + $0xe8] sm:$0xf]
        %v296 = vld [vmem:[%s225 + $0xec] sm:$0xf]
        %v297 = vld [vmem:[%s225 + $0xf0] sm:$0xf]
        %v298 = vld [vmem:[%s225 + $0xf4] sm:$0xf]
        %v299 = vld [vmem:[%s225 + $0xf8] sm:$0xf]
        %v300 = vld [vmem:[%s225 + $0xfc] sm:$0xf]
        %v301 = vld [vmem:[%s225 + $0x100] sm:$0xf]
        %v302 = vld [vmem:[%s225 + $0x104] sm:$0xf]
        %v303 = vld [vmem:[%s225 + $0x108] sm:$0xf]
        %v304 = vld [vmem:[%s225 + $0x10c] sm:$0xf]
        %v305 = vld [vmem:[%s225 + $0x110] sm:$0xf]
        %v306 = vld [vmem:[%s225 + $0x114] sm:$0xf]
        %v307 = vld [vmem:[%s225 + $0x118] sm:$0xf]
        %v308 = vld [vmem:[%s225 + $0x11c] sm:$0xf]
        %v309 = vld [vmem:[%s225 + $0x120] sm:$0xf]
        %v310 = vld [vmem:[%s225 + $0x124] sm:$0xf]
        %v311 = vld [vmem:[%s225 + $0x128] sm:$0xf]
        %v312 = vld [vmem:[%s225 + $0x12c] sm:$0xf]
        %v313 = vld [vmem:[%s225 + $0x130] sm:$0xf]
        %v314 = vld [vmem:[%s225 + $0x134] sm:$0xf]
        %v315 = vld [vmem:[%s225 + $0x138] sm:$0xf]
        %v316 = vld [vmem:[%s225 + $0x13c] sm:$0xf]
        %v317 = vld [vmem:[%s225 + $0x140] sm:$0xf]
        %v318 = vld [vmem:[%s225 + $0x144] sm:$0xf]
        %v319 = vld [vmem:[%s225 + $0x148] sm:$0xf]
        %v320 = vld [vmem:[%s225 + $0x14c] sm:$0xf]
        %v321 = vld [vmem:[%s225 + $0x150] sm:$0xf]
        %v322 = vld [vmem:[%s225 + $0x154] sm:$0xf]
        %v323 = vld [vmem:[%s225 + $0x158] sm:$0xf]
        %v324 = vld [vmem:[%s225 + $0x15c] sm:$0xf]
        %v325 = vld [vmem:[%s225 + $0x160] sm:$0xf]
        %v326 = vld [vmem:[%s225 + $0x164] sm:$0xf]
        %v327 = vld [vmem:[%s225 + $0x168] sm:$0xf]
        %v328 = vld [vmem:[%s225 + $0x16c] sm:$0xf]
        %v329 = vld [vmem:[%s225 + $0x170] sm:$0xf]
        %v330 = vld [vmem:[%s225 + $0x174] sm:$0xf]
        %v331 = vld [vmem:[%s225 + $0x178] sm:$0xf]
        %v332 = vld [vmem:[%s225 + $0x17c] sm:$0xf]
        %v333 = vld [vmem:[%s225 + $0x180] sm:$0xf]
        %v334 = vld [vmem:[%s225 + $0x184] sm:$0xf]
        %v335 = vld [vmem:[%s225 + $0x188] sm:$0xf]
        %v336 = vld [vmem:[%s225 + $0x18c] sm:$0xf]
        %v337 = vld [vmem:[%s225 + $0x190] sm:$0xf]
        %v338 = vld [vmem:[%s225 + $0x194] sm:$0xf]
        %v339 = vld [vmem:[%s225 + $0x198] sm:$0xf]
        %v340 = vld [vmem:[%s225 + $0x19c] sm:$0xf]
        %v341 = vld [vmem:[%s225 + $0x1a0] sm:$0xf]
        %v342 = vld [vmem:[%s225 + $0x1a4] sm:$0xf]
        %v343 = vld [vmem:[%s225 + $0x1a8] sm:$0xf]
        %v344 = vld [vmem:[%s225 + $0x1ac] sm:$0xf]
        %v345 = vld [vmem:[%s225 + $0x1b0] sm:$0xf]
        %v346 = vld [vmem:[%s225 + $0x1b4] sm:$0xf]
        %v347 = vld [vmem:[%s225 + $0x1b8] sm:$0xf]
        %v348 = vld [vmem:[%s225 + $0x1bc] sm:$0xf]
        %v349 = vld [vmem:[%s225 + $0x1c0] sm:$0xf]
        %v350 = vld [vmem:[%s225 + $0x1c4] sm:$0xf]
        %v351 = vld [vmem:[%s225 + $0x1c8] sm:$0xf]
        %v352 = vld [vmem:[%s225 + $0x1cc] sm:$0xf]
        %v353 = vld [vmem:[%s225 + $0x1d0] sm:$0xf]
        %v354 = vld [vmem:[%s225 + $0x1d4] sm:$0xf]
        %v355 = vld [vmem:[%s225 + $0x1d8] sm:$0xf]
        %v356 = vld [vmem:[%s225 + $0x1dc] sm:$0xf]
        %v357 = vld [vmem:[%s225 + $0x1e0] sm:$0xf]
        %v358 = vld [vmem:[%s225 + $0x1e4] sm:$0xf]
        %v359 = vld [vmem:[%s225 + $0x1e8] sm:$0xf]
        %v360 = vld [vmem:[%s225 + $0x1ec] sm:$0xf]
        %v361 = vld [vmem:[%s225 + $0x1f0] sm:$0xf]
        %v362 = vld [vmem:[%s225 + $0x1f4] sm:$0xf]
        %v363 = vld [vmem:[%s225 + $0x1f8] sm:$0xf]
        %v364 = vld [vmem:[%s225 + $0x1fc] sm:$0xf]
        %v365 = vld [vmem:[%s225 + $0x200] sm:$0xf]
        %v366 = vld [vmem:[%s225 + $0x204] sm:$0xf]
        %v367 = vld [vmem:[%s225 + $0x208] sm:$0xf]
        %v368 = vld [vmem:[%s225 + $0x20c] sm:$0xf]
        %v369 = vld [vmem:[%s225 + $0x210] sm:$0xf]
        %v370 = vld [vmem:[%s225 + $0x214] sm:$0xf]
        %v371 = vld [vmem:[%s225 + $0x218] sm:$0xf]
        %v372 = vld [vmem:[%s225 + $0x21c] sm:$0xf]
        %v373 = vld [vmem:[%s225 + $0x220] sm:$0xf]
        %v374 = vld [vmem:[%s225 + $0x224] sm:$0xf]
        %v375 = vld [vmem:[%s225 + $0x228] sm:$0xf]
        %v376 = vld [vmem:[%s225 + $0x22c] sm:$0xf]
        %v377 = vld [vmem:[%s225 + $0x230] sm:$0xf]
        %v378 = vld [vmem:[%s225 + $0x234] sm:$0xf]
        %v379 = vld [vmem:[%s225 + $0x238] sm:$0xf]
        %v380 = vld [vmem:[%s225 + $0x23c] sm:$0xf]
        %v381 = vld [vmem:[%s225 + $0x240] sm:$0xf]
        %v382 = vld [vmem:[%s225 + $0x244] sm:$0xf]
        %v383 = vld [vmem:[%s225 + $0x248] sm:$0xf]
        %v384 = vld [vmem:[%s225 + $0x24c] sm:$0xf]
        %v385 = vld [vmem:[%s225 + $0x250] sm:$0xf]
        %v386 = vld [vmem:[%s225 + $0x254] sm:$0xf]
        %v387 = vld [vmem:[%s225 + $0x258] sm:$0xf]
        %v388 = vld [vmem:[%s225 + $0x25c] sm:$0xf]
        %v389 = vld [vmem:[%s225 + $0x260] sm:$0xf]
        %v390 = vld [vmem:[%s225 + $0x264] sm:$0xf]
        %v391 = vld [vmem:[%s225 + $0x268] sm:$0xf]
        %v392 = vld [vmem:[%s225 + $0x26c] sm:$0xf]
        %v393 = vld [vmem:[%s225 + $0x270] sm:$0xf]
        %v394 = vld [vmem:[%s225 + $0x274] sm:$0xf]
        %v395 = vld [vmem:[%s225 + $0x278] sm:$0xf]
        %v396 = vld [vmem:[%s225 + $0x27c] sm:$0xf]
        %v397 = vld [vmem:[%s225 + $0x280] sm:$0xf]
        %v398 = vld [vmem:[%s225 + $0x284] sm:$0xf]
        %v399 = vld [vmem:[%s225 + $0x288] sm:$0xf]
        %v400 = vld [vmem:[%s225 + $0x28c] sm:$0xf]
        %v401 = vld [vmem:[%s225 + $0x290] sm:$0xf]
        %v402 = vld [vmem:[%s225 + $0x294] sm:$0xf]
        %v403 = vld [vmem:[%s225 + $0x298] sm:$0xf]
        %v404 = vld [vmem:[%s225 + $0x29c] sm:$0xf]
        %v405 = vld [vmem:[%s225 + $0x2a0] sm:$0xf]
        %v406 = vld [vmem:[%s225 + $0x2a4] sm:$0xf]
        %v407 = vld [vmem:[%s225 + $0x2a8] sm:$0xf]
        %v408 = vld [vmem:[%s225 + $0x2ac] sm:$0xf]
        %v409 = vld [vmem:[%s225 + $0x2b0] sm:$0xf]
        %v410 = vld [vmem:[%s225 + $0x2b4] sm:$0xf]
        %v411 = vld [vmem:[%s225 + $0x2b8] sm:$0xf]
        %v412 = vld [vmem:[%s225 + $0x2bc] sm:$0xf]
        %v413 = vld [vmem:[%s225 + $0x2c0] sm:$0xf]
        %v414 = vld [vmem:[%s225 + $0x2c4] sm:$0xf]
        %v415 = vld [vmem:[%s225 + $0x2c8] sm:$0xf]
        %v416 = vld [vmem:[%s225 + $0x2cc] sm:$0xf]
        %v417 = vld [vmem:[%s225 + $0x2d0] sm:$0xf]
        %v418 = vld [vmem:[%s225 + $0x2d4] sm:$0xf]
        %v419 = vld [vmem:[%s225 + $0x2d8] sm:$0xf]
        %v420 = vld [vmem:[%s225 + $0x2dc] sm:$0xf]
        %v421 = vld [vmem:[%s225 + $0x2e0] sm:$0xf]
        %v422 = vld [vmem:[%s225 + $0x2e4] sm:$0xf]
        %v423 = vld [vmem:[%s225 + $0x2e8] sm:$0xf]
        %v424 = vld [vmem:[%s225 + $0x2ec] sm:$0xf]
        %v425 = vld [vmem:[%s225 + $0x2f0] sm:$0xf]
        %v426 = vld [vmem:[%s225 + $0x2f4] sm:$0xf]
        %v427 = vld [vmem:[%s225 + $0x2f8] sm:$0xf]
        %v428 = vld [vmem:[%s225 + $0x2fc] sm:$0xf]
        %v429 = vld [vmem:[%s225 + $0x300] sm:$0xf]
        %v430 = vld [vmem:[%s225 + $0x304] sm:$0xf]
        %v431 = vld [vmem:[%s225 + $0x308] sm:$0xf]
        %v432 = vld [vmem:[%s225 + $0x30c] sm:$0xf]
        %v433 = vld [vmem:[%s225 + $0x310] sm:$0xf]
        %v434 = vld [vmem:[%s225 + $0x314] sm:$0xf]
        %v435 = vld [vmem:[%s225 + $0x318] sm:$0xf]
        %v436 = vld [vmem:[%s225 + $0x31c] sm:$0xf]
        %v437 = vld [vmem:[%s225 + $0x320] sm:$0xf]
        %v438 = vld [vmem:[%s225 + $0x324] sm:$0xf]
        %v439 = vld [vmem:[%s225 + $0x328] sm:$0xf]
        %v440 = vld [vmem:[%s225 + $0x32c] sm:$0xf]
        %v441 = vld [vmem:[%s225 + $0x330] sm:$0xf]
        %v442 = vld [vmem:[%s225 + $0x334] sm:$0xf]
        %v443 = vld [vmem:[%s225 + $0x338] sm:$0xf]
        %v444 = vld [vmem:[%s225 + $0x33c] sm:$0xf]
        %v445 = vld [vmem:[%s225 + $0x340] sm:$0xf]
        %v446 = vld [vmem:[%s225 + $0x344] sm:$0xf]
        %v447 = vld [vmem:[%s225 + $0x348] sm:$0xf]
        %v448 = vld [vmem:[%s225 + $0x34c] sm:$0xf]
        %v449 = vld [vmem:[%s225 + $0x350] sm:$0xf]
        %v450 = vld [vmem:[%s225 + $0x354] sm:$0xf]
        %v451 = vld [vmem:[%s225 + $0x358] sm:$0xf]
        %v452 = vld [vmem:[%s225 + $0x35c] sm:$0xf]
        %v453 = vld [vmem:[%s225 + $0x360] sm:$0xf]
        %v454 = vld [vmem:[%s225 + $0x364] sm:$0xf]
        %v455 = vld [vmem:[%s225 + $0x368] sm:$0xf]
        %v456 = vld [vmem:[%s225 + $0x36c] sm:$0xf]
        %v457 = vld [vmem:[%s225 + $0x370] sm:$0xf]
        %v458 = vld [vmem:[%s225 + $0x374] sm:$0xf]
        %v459 = vld [vmem:[%s225 + $0x378] sm:$0xf]
        %v460 = vld [vmem:[%s225 + $0x37c] sm:$0xf]
        %v461 = vld [vmem:[%s225 + $0x380] sm:$0xf]
        %v462 = vld [vmem:[%s225 + $0x384] sm:$0xf]
        %v463 = vld [vmem:[%s225 + $0x388] sm:$0xf]
        %v464 = vld [vmem:[%s225 + $0x38c] sm:$0xf]
        %v465 = vld [vmem:[%s225 + $0x390] sm:$0xf]
        %v466 = vld [vmem:[%s225 + $0x394] sm:$0xf]
        %v467 = vld [vmem:[%s225 + $0x398] sm:$0xf]
        %v468 = vld [vmem:[%s225 + $0x39c] sm:$0xf]
        %v469 = vld [vmem:[%s225 + $0x3a0] sm:$0xf]
        %v470 = vld [vmem:[%s225 + $0x3a4] sm:$0xf]
        %v471 = vld [vmem:[%s225 + $0x3a8] sm:$0xf]
        %v472 = vld [vmem:[%s225 + $0x3ac] sm:$0xf]
        %v473 = vld [vmem:[%s225 + $0x3b0] sm:$0xf]
        %v474 = vld [vmem:[%s225 + $0x3b4] sm:$0xf]
        %v475 = vld [vmem:[%s225 + $0x3b8] sm:$0xf]
        %v476 = vld [vmem:[%s225 + $0x3bc] sm:$0xf]
        %v477 = vld [vmem:[%s225 + $0x3c0] sm:$0xf]
        %v478 = vld [vmem:[%s225 + $0x3c4] sm:$0xf]
        %v479 = vld [vmem:[%s225 + $0x3c8] sm:$0xf]
        %v480 = vld [vmem:[%s225 + $0x3cc] sm:$0xf]
        %v481 = vld [vmem:[%s225 + $0x3d0] sm:$0xf]
        %v482 = vld [vmem:[%s225 + $0x3d4] sm:$0xf]
        %v483 = vld [vmem:[%s225 + $0x3d8] sm:$0xf]
        %v484 = vld [vmem:[%s225 + $0x3dc] sm:$0xf]
        %v485 = vld [vmem:[%s225 + $0x3e0] sm:$0xf]
        %v486 = vld [vmem:[%s225 + $0x3e4] sm:$0xf]
        %v487 = vld [vmem:[%s225 + $0x3e8] sm:$0xf]
        %v488 = vld [vmem:[%s225 + $0x3ec] sm:$0xf]
        %v489 = vld [vmem:[%s225 + $0x3f0] sm:$0xf]
        %v490 = vld [vmem:[%s225 + $0x3f4] sm:$0xf]
        %v491 = vld [vmem:[%s225 + $0x3f8] sm:$0xf]
        %v492 = vld [vmem:[%s225 + $0x3fc] sm:$0xf]
        %v493 = vld [vmem:[%s225 + $0x400] sm:$0xf]
        %v494 = vld [vmem:[%s225 + $0x404] sm:$0xf]
        %v495 = vld [vmem:[%s225 + $0x408] sm:$0xf]
        %v496 = vld [vmem:[%s225 + $0x40c] sm:$0xf]
        %v497 = vld [vmem:[%s225 + $0x410] sm:$0xf]
        %v498 = vld [vmem:[%s225 + $0x414] sm:$0xf]
        %v499 = vld [vmem:[%s225 + $0x418] sm:$0xf]
        %v500 = vld [vmem:[%s225 + $0x41c] sm:$0xf]
        %v501 = vld [vmem:[%s225 + $0x420] sm:$0xf]
        %v502 = vld [vmem:[%s225 + $0x424] sm:$0xf]
        %v503 = vld [vmem:[%s225 + $0x428] sm:$0xf]
        %v504 = vld [vmem:[%s225 + $0x42c] sm:$0xf]
        %v505 = vld [vmem:[%s225 + $0x430] sm:$0xf]
        %v506 = vld [vmem:[%s225 + $0x434] sm:$0xf]
        %v507 = vld [vmem:[%s225 + $0x438] sm:$0xf]
        %v508 = vld [vmem:[%s225 + $0x43c] sm:$0xf]
        %v509 = vld [vmem:[%s225 + $0x440] sm:$0xf]
        %v510 = vld [vmem:[%s225 + $0x444] sm:$0xf]
        %v511 = vld [vmem:[%s225 + $0x448] sm:$0xf]
        %v512 = vld [vmem:[%s225 + $0x44c] sm:$0xf]
        %v513 = vld [vmem:[%s225 + $0x450] sm:$0xf]
        %v514 = vld [vmem:[%s225 + $0x454] sm:$0xf]
        %v515 = vld [vmem:[%s225 + $0x458] sm:$0xf]
        %v516 = vld [vmem:[%s225 + $0x45c] sm:$0xf]
        %v517 = vld [vmem:[%s225 + $0x460] sm:$0xf]
        %v518 = vld [vmem:[%s225 + $0x464] sm:$0xf]
        %v519 = vld [vmem:[%s225 + $0x468] sm:$0xf]
        %v520 = vld [vmem:[%s225 + $0x46c] sm:$0xf]
        %v521 = vld [vmem:[%s225 + $0x470] sm:$0xf]
        %v522 = vld [vmem:[%s225 + $0x474] sm:$0xf]
        %v523 = vld [vmem:[%s225 + $0x478] sm:$0xf]
        %v524 = vld [vmem:[%s225 + $0x47c] sm:$0xf]
        %v525 = vld [vmem:[%s225 + $0x480] sm:$0xf]
        %v526 = vld [vmem:[%s225 + $0x484] sm:$0xf]
        %v527 = vld [vmem:[%s225 + $0x488] sm:$0xf]
        %v528 = vld [vmem:[%s225 + $0x48c] sm:$0xf]
        %v529 = vld [vmem:[%s225 + $0x490] sm:$0xf]
        %v530 = vld [vmem:[%s225 + $0x494] sm:$0xf]
        %v531 = vld [vmem:[%s225 + $0x498] sm:$0xf]
        %v532 = vld [vmem:[%s225 + $0x49c] sm:$0xf]
        %v533 = vld [vmem:[%s225 + $0x4a0] sm:$0xf]
        %v534 = vld [vmem:[%s225 + $0x4a4] sm:$0xf]
        %v535 = vld [vmem:[%s225 + $0x4a8] sm:$0xf]
        %v536 = vld [vmem:[%s225 + $0x4ac] sm:$0xf]
        %v537 = vld [vmem:[%s225 + $0x4b0] sm:$0xf]
        %v538 = vld [vmem:[%s225 + $0x4b4] sm:$0xf]
        %v539 = vld [vmem:[%s225 + $0x4b8] sm:$0xf]
        %v540 = vld [vmem:[%s225 + $0x4bc] sm:$0xf]
        %v541 = vld [vmem:[%s225 + $0x4c0] sm:$0xf]
        %v542 = vld [vmem:[%s225 + $0x4c4] sm:$0xf]
        %v543 = vld [vmem:[%s225 + $0x4c8] sm:$0xf]
        %v544 = vld [vmem:[%s225 + $0x4cc] sm:$0xf]
        %v545 = vld [vmem:[%s225 + $0x4d0] sm:$0xf]
        %v546 = vld [vmem:[%s225 + $0x4d4] sm:$0xf]
        %v547 = vld [vmem:[%s225 + $0x4d8] sm:$0xf]
        %v548 = vld [vmem:[%s225 + $0x4dc] sm:$0xf]
        %v549 = vld [vmem:[%s225 + $0x4e0] sm:$0xf]
        %v550 = vld [vmem:[%s225 + $0x4e4] sm:$0xf]
        %v551 = vld [vmem:[%s225 + $0x4e8] sm:$0xf]
        %v552 = vld [vmem:[%s225 + $0x4ec] sm:$0xf]
        %v553 = vld [vmem:[%s225 + $0x4f0] sm:$0xf]
        %v554 = vld [vmem:[%s225 + $0x4f4] sm:$0xf]
        %v555 = vld [vmem:[%s225 + $0x4f8] sm:$0xf]
        %v556 = vld [vmem:[%s225 + $0x4fc] sm:$0xf]
        %v557 = vld [vmem:[%s225 + $0x500] sm:$0xf]
        %v558 = vld [vmem:[%s225 + $0x504] sm:$0xf]
        %v559 = vld [vmem:[%s225 + $0x508] sm:$0xf]
        %v560 = vld [vmem:[%s225 + $0x50c] sm:$0xf]
        %v561 = vld [vmem:[%s225 + $0x510] sm:$0xf]
        %v562 = vld [vmem:[%s225 + $0x514] sm:$0xf]
        %v563 = vld [vmem:[%s225 + $0x518] sm:$0xf]
        %v564 = vld [vmem:[%s225 + $0x51c] sm:$0xf]
        %v565 = vld [vmem:[%s225 + $0x520] sm:$0xf]
        %v566 = vld [vmem:[%s225 + $0x524] sm:$0xf]
        %v567 = vld [vmem:[%s225 + $0x528] sm:$0xf]
        %v568 = vld [vmem:[%s225 + $0x52c] sm:$0xf]
        %v569 = vld [vmem:[%s225 + $0x530] sm:$0xf]
        %v570 = vld [vmem:[%s225 + $0x534] sm:$0xf]
        %v571 = vld [vmem:[%s225 + $0x538] sm:$0xf]
        %v572 = vld [vmem:[%s225 + $0x53c] sm:$0xf]
        %v573 = vld [vmem:[%s225 + $0x540] sm:$0xf]
        %v574 = vld [vmem:[%s225 + $0x544] sm:$0xf]
        %v575 = vld [vmem:[%s225 + $0x548] sm:$0xf]
        %v576 = vld [vmem:[%s225 + $0x54c] sm:$0xf]
        %v577 = vld [vmem:[%s225 + $0x550] sm:$0xf]
        %v578 = vld [vmem:[%s225 + $0x554] sm:$0xf]
        %v579 = vld [vmem:[%s225 + $0x558] sm:$0xf]
        %v580 = vld [vmem:[%s225 + $0x55c] sm:$0xf]
        %v581 = vld [vmem:[%s225 + $0x560] sm:$0xf]
        %v582 = vld [vmem:[%s225 + $0x564] sm:$0xf]
        %v583 = vld [vmem:[%s225 + $0x568] sm:$0xf]
        %v584 = vld [vmem:[%s225 + $0x56c] sm:$0xf]
        %v585 = vld [vmem:[%s225 + $0x570] sm:$0xf]
        %v586 = vld [vmem:[%s225 + $0x574] sm:$0xf]
        %v587 = vld [vmem:[%s225 + $0x578] sm:$0xf]
        %v588 = vld [vmem:[%s225 + $0x57c] sm:$0xf]
        %v589 = vld [vmem:[%s225 + $0x580] sm:$0xf]
        %v590 = vld [vmem:[%s225 + $0x584] sm:$0xf]
        %v591 = vld [vmem:[%s225 + $0x588] sm:$0xf]
        %v592 = vld [vmem:[%s225 + $0x58c] sm:$0xf]
        %v593 = vld [vmem:[%s225 + $0x590] sm:$0xf]
        %v594 = vld [vmem:[%s225 + $0x594] sm:$0xf]
        %v595 = vld [vmem:[%s225 + $0x598] sm:$0xf]
        %v596 = vld [vmem:[%s225 + $0x59c] sm:$0xf]
        %v597 = vld [vmem:[%s225 + $0x5a0] sm:$0xf]
        %v598 = vld [vmem:[%s225 + $0x5a4] sm:$0xf]
        %v599 = vld [vmem:[%s225 + $0x5a8] sm:$0xf]
        %v600 = vld [vmem:[%s225 + $0x5ac] sm:$0xf]
        %v601 = vld [vmem:[%s225 + $0x5b0] sm:$0xf]
        %v602 = vld [vmem:[%s225 + $0x5b4] sm:$0xf]
        %v603 = vld [vmem:[%s225 + $0x5b8] sm:$0xf]
        %v604 = vld [vmem:[%s225 + $0x5bc] sm:$0xf]
        %v605 = vld [vmem:[%s225 + $0x5c0] sm:$0xf]
        %v606 = vld [vmem:[%s225 + $0x5c4] sm:$0xf]
        %v607 = vld [vmem:[%s225 + $0x5c8] sm:$0xf]
        %v608 = vld [vmem:[%s225 + $0x5cc] sm:$0xf]
        %v609 = vld [vmem:[%s225 + $0x5d0] sm:$0xf]
        %v610 = vld [vmem:[%s225 + $0x5d4] sm:$0xf]
        %v611 = vld [vmem:[%s225 + $0x5d8] sm:$0xf]
        %v612 = vld [vmem:[%s225 + $0x5dc] sm:$0xf]
        %v613 = vld [vmem:[%s225 + $0x5e0] sm:$0xf]
        %v614 = vld [vmem:[%s225 + $0x5e4] sm:$0xf]
        %v615 = vld [vmem:[%s225 + $0x5e8] sm:$0xf]
        %v616 = vld [vmem:[%s225 + $0x5ec] sm:$0xf]
        %v617 = vld [vmem:[%s225 + $0x5f0] sm:$0xf]
        %v618 = vld [vmem:[%s225 + $0x5f4] sm:$0xf]
        %v619 = vld [vmem:[%s225 + $0x5f8] sm:$0xf]
        %v620 = vld [vmem:[%s225 + $0x5fc] sm:$0xf]
        %v621 = vld [vmem:[%s225 + $0x600] sm:$0xf]
        %v622 = vld [vmem:[%s225 + $0x604] sm:$0xf]
        %v623 = vld [vmem:[%s225 + $0x608] sm:$0xf]
        %v624 = vld [vmem:[%s225 + $0x60c] sm:$0xf]
        %v625 = vld [vmem:[%s225 + $0x610] sm:$0xf]
        %v626 = vld [vmem:[%s225 + $0x614] sm:$0xf]
        %v627 = vld [vmem:[%s225 + $0x618] sm:$0xf]
        %v628 = vld [vmem:[%s225 + $0x61c] sm:$0xf]
        %v629 = vld [vmem:[%s225 + $0x620] sm:$0xf]
        %v630 = vld [vmem:[%s225 + $0x624] sm:$0xf]
        %v631 = vld [vmem:[%s225 + $0x628] sm:$0xf]
        %v632 = vld [vmem:[%s225 + $0x62c] sm:$0xf]
        %v633 = vld [vmem:[%s225 + $0x630] sm:$0xf]
        %v634 = vld [vmem:[%s225 + $0x634] sm:$0xf]
        %v635 = vld [vmem:[%s225 + $0x638] sm:$0xf]
        %v636 = vld [vmem:[%s225 + $0x63c] sm:$0xf]
        %v637 = vld [vmem:[%s225 + $0x640] sm:$0xf]
        %v638 = vld [vmem:[%s225 + $0x644] sm:$0xf]
        %v639 = vld [vmem:[%s225 + $0x648] sm:$0xf]
        %v640 = vld [vmem:[%s225 + $0x64c] sm:$0xf]
        %v641 = vld [vmem:[%s225 + $0x650] sm:$0xf]
        %v642 = vld [vmem:[%s225 + $0x654] sm:$0xf]
        %v643 = vld [vmem:[%s225 + $0x658] sm:$0xf]
        %v644 = vld [vmem:[%s225 + $0x65c] sm:$0xf]
        %v645 = vld [vmem:[%s225 + $0x660] sm:$0xf]
        %v646 = vld [vmem:[%s225 + $0x664] sm:$0xf]
        %v647 = vld [vmem:[%s225 + $0x668] sm:$0xf]
        %v648 = vld [vmem:[%s225 + $0x66c] sm:$0xf]
        %v649 = vld [vmem:[%s225 + $0x670] sm:$0xf]
        %v650 = vld [vmem:[%s225 + $0x674] sm:$0xf]
        %v651 = vld [vmem:[%s225 + $0x678] sm:$0xf]
        %v652 = vld [vmem:[%s225 + $0x67c] sm:$0xf]
        %v653 = vld [vmem:[%s225 + $0x680] sm:$0xf]
        %v654 = vld [vmem:[%s225 + $0x684] sm:$0xf]
        %v655 = vld [vmem:[%s225 + $0x688] sm:$0xf]
        %v656 = vld [vmem:[%s225 + $0x68c] sm:$0xf]
        %v657 = vld [vmem:[%s225 + $0x690] sm:$0xf]
        %v658 = vld [vmem:[%s225 + $0x694] sm:$0xf]
        %v659 = vld [vmem:[%s225 + $0x698] sm:$0xf]
        %v660 = vld [vmem:[%s225 + $0x69c] sm:$0xf]
        %v661 = vld [vmem:[%s225 + $0x6a0] sm:$0xf]
        %v662 = vld [vmem:[%s225 + $0x6a4] sm:$0xf]
        %v663 = vld [vmem:[%s225 + $0x6a8] sm:$0xf]
        %v664 = vld [vmem:[%s225 + $0x6ac] sm:$0xf]
        %v665 = vld [vmem:[%s225 + $0x6b0] sm:$0xf]
        %v666 = vld [vmem:[%s225 + $0x6b4] sm:$0xf]
        %v667 = vld [vmem:[%s225 + $0x6b8] sm:$0xf]
        %v668 = vld [vmem:[%s225 + $0x6bc] sm:$0xf]
        %v669 = vld [vmem:[%s225 + $0x6c0] sm:$0xf]
        %v670 = vld [vmem:[%s225 + $0x6c4] sm:$0xf]
        %v671 = vld [vmem:[%s225 + $0x6c8] sm:$0xf]
        %v672 = vld [vmem:[%s225 + $0x6cc] sm:$0xf]
        %v673 = vld [vmem:[%s225 + $0x6d0] sm:$0xf]
        %v674 = vld [vmem:[%s225 + $0x6d4] sm:$0xf]
        %v675 = vld [vmem:[%s225 + $0x6d8] sm:$0xf]
        %v676 = vld [vmem:[%s225 + $0x6dc] sm:$0xf]
        %v677 = vld [vmem:[%s225 + $0x6e0] sm:$0xf]
        %v678 = vld [vmem:[%s225 + $0x6e4] sm:$0xf]
        %v679 = vld [vmem:[%s225 + $0x6e8] sm:$0xf]
        %v680 = vld [vmem:[%s225 + $0x6ec] sm:$0xf]
        %v681 = vld [vmem:[%s225 + $0x6f0] sm:$0xf]
        %v682 = vld [vmem:[%s225 + $0x6f4] sm:$0xf]
        %v683 = vld [vmem:[%s225 + $0x6f8] sm:$0xf]
        %v684 = vld [vmem:[%s225 + $0x6fc] sm:$0xf]
        %v685 = vld [vmem:[%s225 + $0x700] sm:$0xf]
        %v686 = vld [vmem:[%s225 + $0x704] sm:$0xf]
        %v687 = vld [vmem:[%s225 + $0x708] sm:$0xf]
        %v688 = vld [vmem:[%s225 + $0x70c] sm:$0xf]
        %v689 = vld [vmem:[%s225 + $0x710] sm:$0xf]
        %v690 = vld [vmem:[%s225 + $0x714] sm:$0xf]
        %v691 = vld [vmem:[%s225 + $0x718] sm:$0xf]
        %v692 = vld [vmem:[%s225 + $0x71c] sm:$0xf]
        %v693 = vld [vmem:[%s225 + $0x720] sm:$0xf]
        %v694 = vld [vmem:[%s225 + $0x724] sm:$0xf]
        %v695 = vld [vmem:[%s225 + $0x728] sm:$0xf]
        %v696 = vld [vmem:[%s225 + $0x72c] sm:$0xf]
        %v697 = vld [vmem:[%s225 + $0x730] sm:$0xf]
        %v698 = vld [vmem:[%s225 + $0x734] sm:$0xf]
        %v699 = vld [vmem:[%s225 + $0x738] sm:$0xf]
        %v700 = vld [vmem:[%s225 + $0x73c] sm:$0xf]
        %v701 = vld [vmem:[%s225 + $0x740] sm:$0xf]
        %v702 = vld [vmem:[%s225 + $0x744] sm:$0xf]
        %v703 = vld [vmem:[%s225 + $0x748] sm:$0xf]
        %v704 = vld [vmem:[%s225 + $0x74c] sm:$0xf]
        %v705 = vld [vmem:[%s225 + $0x750] sm:$0xf]
        %v706 = vld [vmem:[%s225 + $0x754] sm:$0xf]
        %v707 = vld [vmem:[%s225 + $0x758] sm:$0xf]
        %v708 = vld [vmem:[%s225 + $0x75c] sm:$0xf]
        %v709 = vld [vmem:[%s225 + $0x760] sm:$0xf]
        %v710 = vld [vmem:[%s225 + $0x764] sm:$0xf]
        %v711 = vld [vmem:[%s225 + $0x768] sm:$0xf]
        %v712 = vld [vmem:[%s225 + $0x76c] sm:$0xf]
        %v713 = vld [vmem:[%s225 + $0x770] sm:$0xf]
        %v714 = vld [vmem:[%s225 + $0x774] sm:$0xf]
        %v715 = vld [vmem:[%s225 + $0x778] sm:$0xf]
        %v716 = vld [vmem:[%s225 + $0x77c] sm:$0xf]
        %v717 = vld [vmem:[%s225 + $0x780] sm:$0xf]
        %v718 = vld [vmem:[%s225 + $0x784] sm:$0xf]
        %v719 = vld [vmem:[%s225 + $0x788] sm:$0xf]
        %v720 = vld [vmem:[%s225 + $0x78c] sm:$0xf]
        %v721 = vld [vmem:[%s225 + $0x790] sm:$0xf]
        %v722 = vld [vmem:[%s225 + $0x794] sm:$0xf]
        %v723 = vld [vmem:[%s225 + $0x798] sm:$0xf]
        %v724 = vld [vmem:[%s225 + $0x79c] sm:$0xf]
        %v725 = vld [vmem:[%s225 + $0x7a0] sm:$0xf]
        %v726 = vld [vmem:[%s225 + $0x7a4] sm:$0xf]
        %v727 = vld [vmem:[%s225 + $0x7a8] sm:$0xf]
        %v728 = vld [vmem:[%s225 + $0x7ac] sm:$0xf]
        %v729 = vld [vmem:[%s225 + $0x7b0] sm:$0xf]
        %v730 = vld [vmem:[%s225 + $0x7b4] sm:$0xf]
        %v731 = vld [vmem:[%s225 + $0x7b8] sm:$0xf]
        %v732 = vld [vmem:[%s225 + $0x7bc] sm:$0xf]
        %v733 = vld [vmem:[%s225 + $0x7c0] sm:$0xf]
        %v734 = vld [vmem:[%s225 + $0x7c4] sm:$0xf]
        %v735 = vld [vmem:[%s225 + $0x7c8] sm:$0xf]
        %v736 = vld [vmem:[%s225 + $0x7cc] sm:$0xf]
        %v737 = vld [vmem:[%s225 + $0x7d0] sm:$0xf]
        %v738 = vld [vmem:[%s225 + $0x7d4] sm:$0xf]
        %v739 = vld [vmem:[%s225 + $0x7d8] sm:$0xf]
        %v740 = vld [vmem:[%s225 + $0x7dc] sm:$0xf]
        %v741 = vld [vmem:[%s225 + $0x7e0] sm:$0xf]
        %v742 = vld [vmem:[%s225 + $0x7e4] sm:$0xf]
        %v743 = vld [vmem:[%s225 + $0x7e8] sm:$0xf]
        %v744 = vld [vmem:[%s225 + $0x7ec] sm:$0xf]
        %v745 = vld [vmem:[%s225 + $0x7f0] sm:$0xf]
        %v746 = vld [vmem:[%s225 + $0x7f4] sm:$0xf]
        %v747 = vld [vmem:[%s225 + $0x7f8] sm:$0xf]
        %v748 = vld [vmem:[%s225 + $0x7fc] sm:$0xf]
        %v749 = vld [vmem:[#allocation2] sm:$0xf]
        %v750 = vld [vmem:[#allocation2 + $0x4] sm:$0xf]
        %v751 = vld [vmem:[#allocation2 + $0x8] sm:$0xf]
        %v752 = vld [vmem:[#allocation2 + $0xc] sm:$0xf]
        %v753 = vld [vmem:[#allocation2 + $0x10] sm:$0xf]
        %v754 = vld [vmem:[#allocation2 + $0x14] sm:$0xf]
        %v755 = vld [vmem:[#allocation2 + $0x18] sm:$0x7]
        %v756 = vld [vmem:[#allocation4] sm:$0x1]
        %v758 = vlaneseq
        %v759 = vshrl.u32 %v758, 7
        %v760 = vsub.s32 0, %v759
        %v761 = vrot.slane %v756, %v760
        %v1275 = vunpack.c.l.b16 %v237
        %v1276 = vunpack.c.l.b16 %v238
        %v1277 = vunpack.c.l.b16 %v239
        %v1278 = vunpack.c.l.b16 %v240
        %v1279 = vunpack.c.l.b16 %v241
        %v1280 = vunpack.c.l.b16 %v242
        %v1281 = vunpack.c.l.b16 %v243
        %v1282 = vunpack.c.l.b16 %v244
        %v1283 = vunpack.c.l.b16 %v245
        %v1284 = vunpack.c.l.b16 %v246
        %v1285 = vunpack.c.l.b16 %v247
        %v1286 = vunpack.c.l.b16 %v248
        %v1287 = vunpack.c.l.b16 %v249
        %v1288 = vunpack.c.l.b16 %v250
        %v1289 = vunpack.c.l.b16 %v251
        %v1290 = vunpack.c.l.b16 %v252
        %v1291 = vunpack.c.l.b16 %v253
        %v1292 = vunpack.c.l.b16 %v254
        %v1293 = vunpack.c.l.b16 %v255
        %v1294 = vunpack.c.l.b16 %v256
        %v1295 = vunpack.c.l.b16 %v257
        %v1296 = vunpack.c.l.b16 %v258
        %v1297 = vunpack.c.l.b16 %v259
        %v1298 = vunpack.c.l.b16 %v260
        %v1299 = vunpack.c.l.b16 %v261
        %v1300 = vunpack.c.l.b16 %v262
        %v1301 = vunpack.c.l.b16 %v263
        %v1302 = vunpack.c.l.b16 %v264
        %v1303 = vunpack.c.l.b16 %v265
        %v1304 = vunpack.c.l.b16 %v266
        %v1305 = vunpack.c.l.b16 %v267
        %v1306 = vunpack.c.l.b16 %v268
        %v1307 = vunpack.c.l.b16 %v269
        %v1308 = vunpack.c.l.b16 %v270
        %v1309 = vunpack.c.l.b16 %v271
        %v1310 = vunpack.c.l.b16 %v272
        %v1311 = vunpack.c.l.b16 %v273
        %v1312 = vunpack.c.l.b16 %v274
        %v1313 = vunpack.c.l.b16 %v275
        %v1314 = vunpack.c.l.b16 %v276
        %v1315 = vunpack.c.l.b16 %v277
        %v1316 = vunpack.c.l.b16 %v278
        %v1317 = vunpack.c.l.b16 %v279
        %v1318 = vunpack.c.l.b16 %v280
        %v1319 = vunpack.c.l.b16 %v281
        %v1320 = vunpack.c.l.b16 %v282
        %v1321 = vunpack.c.l.b16 %v283
        %v1322 = vunpack.c.l.b16 %v284
        %v1323 = vunpack.c.l.b16 %v285
        %v1324 = vunpack.c.l.b16 %v286
        %v1325 = vunpack.c.l.b16 %v287
        %v1326 = vunpack.c.l.b16 %v288
        %v1327 = vunpack.c.l.b16 %v289
        %v1328 = vunpack.c.l.b16 %v290
        %v1329 = vunpack.c.l.b16 %v291
        %v1330 = vunpack.c.l.b16 %v292
        %v1331 = vunpack.c.l.b16 %v293
        %v1332 = vunpack.c.l.b16 %v294
        %v1333 = vunpack.c.l.b16 %v295
        %v1334 = vunpack.c.l.b16 %v296
        %v1335 = vunpack.c.l.b16 %v297
        %v1336 = vunpack.c.l.b16 %v298
        %v1337 = vunpack.c.l.b16 %v299
        %v1338 = vunpack.c.l.b16 %v300
        %v1339 = vunpack.c.l.b16 %v301
        %v1340 = vunpack.c.l.b16 %v302
        %v1341 = vunpack.c.l.b16 %v303
        %v1342 = vunpack.c.l.b16 %v304
        %v1343 = vunpack.c.l.b16 %v305
        %v1344 = vunpack.c.l.b16 %v306
        %v1345 = vunpack.c.l.b16 %v307
        %v1346 = vunpack.c.l.b16 %v308
        %v1347 = vunpack.c.l.b16 %v309
        %v1348 = vunpack.c.l.b16 %v310
        %v1349 = vunpack.c.l.b16 %v311
        %v1350 = vunpack.c.l.b16 %v312
        %v1351 = vunpack.c.l.b16 %v313
        %v1352 = vunpack.c.l.b16 %v314
        %v1353 = vunpack.c.l.b16 %v315
        %v1354 = vunpack.c.l.b16 %v316
        %v1355 = vunpack.c.l.b16 %v317
        %v1356 = vunpack.c.l.b16 %v318
        %v1357 = vunpack.c.l.b16 %v319
        %v1358 = vunpack.c.l.b16 %v320
        %v1359 = vunpack.c.l.b16 %v321
        %v1360 = vunpack.c.l.b16 %v322
        %v1361 = vunpack.c.l.b16 %v323
        %v1362 = vunpack.c.l.b16 %v324
        %v1363 = vunpack.c.l.b16 %v325
        %v1364 = vunpack.c.l.b16 %v326
        %v1365 = vunpack.c.l.b16 %v327
        %v1366 = vunpack.c.l.b16 %v328
        %v1367 = vunpack.c.l.b16 %v329
        %v1368 = vunpack.c.l.b16 %v330
        %v1369 = vunpack.c.l.b16 %v331
        %v1370 = vunpack.c.l.b16 %v332
        %v1371 = vunpack.c.l.b16 %v333
        %v1372 = vunpack.c.l.b16 %v334
        %v1373 = vunpack.c.l.b16 %v335
        %v1374 = vunpack.c.l.b16 %v336
        %v1375 = vunpack.c.l.b16 %v337
        %v1376 = vunpack.c.l.b16 %v338
        %v1377 = vunpack.c.l.b16 %v339
        %v1378 = vunpack.c.l.b16 %v340
        %v1379 = vunpack.c.l.b16 %v341
        %v1380 = vunpack.c.l.b16 %v342
        %v1381 = vunpack.c.l.b16 %v343
        %v1382 = vunpack.c.l.b16 %v344
        %v1383 = vunpack.c.l.b16 %v345
        %v1384 = vunpack.c.l.b16 %v346
        %v1385 = vunpack.c.l.b16 %v347
        %v1386 = vunpack.c.l.b16 %v348
        %v1387 = vunpack.c.l.b16 %v349
        %v1388 = vunpack.c.l.b16 %v350
        %v1389 = vunpack.c.l.b16 %v351
        %v1390 = vunpack.c.l.b16 %v352
        %v1391 = vunpack.c.l.b16 %v353
        %v1392 = vunpack.c.l.b16 %v354
        %v1393 = vunpack.c.l.b16 %v355
        %v1394 = vunpack.c.l.b16 %v356
        %v1395 = vunpack.c.l.b16 %v357
        %v1396 = vunpack.c.l.b16 %v358
        %v1397 = vunpack.c.l.b16 %v359
        %v1398 = vunpack.c.l.b16 %v360
        %v1399 = vunpack.c.l.b16 %v361
        %v1400 = vunpack.c.l.b16 %v362
        %v1401 = vunpack.c.l.b16 %v363
        %v1402 = vunpack.c.l.b16 %v364
        %v1403 = vunpack.c.l.b16 %v365
        %v1404 = vunpack.c.l.b16 %v366
        %v1405 = vunpack.c.l.b16 %v367
        %v1406 = vunpack.c.l.b16 %v368
        %v1407 = vunpack.c.l.b16 %v369
        %v1408 = vunpack.c.l.b16 %v370
        %v1409 = vunpack.c.l.b16 %v371
        %v1410 = vunpack.c.l.b16 %v372
        %v1411 = vunpack.c.l.b16 %v373
        %v1412 = vunpack.c.l.b16 %v374
        %v1413 = vunpack.c.l.b16 %v375
        %v1414 = vunpack.c.l.b16 %v376
        %v1415 = vunpack.c.l.b16 %v377
        %v1416 = vunpack.c.l.b16 %v378
        %v1417 = vunpack.c.l.b16 %v379
        %v1418 = vunpack.c.l.b16 %v380
        %v1419 = vunpack.c.l.b16 %v381
        %v1420 = vunpack.c.l.b16 %v382
        %v1421 = vunpack.c.l.b16 %v383
        %v1422 = vunpack.c.l.b16 %v384
        %v1423 = vunpack.c.l.b16 %v385
        %v1424 = vunpack.c.l.b16 %v386
        %v1425 = vunpack.c.l.b16 %v387
        %v1426 = vunpack.c.l.b16 %v388
        %v1427 = vunpack.c.l.b16 %v389
        %v1428 = vunpack.c.l.b16 %v390
        %v1429 = vunpack.c.l.b16 %v391
        %v1430 = vunpack.c.l.b16 %v392
        %v1431 = vunpack.c.l.b16 %v393
        %v1432 = vunpack.c.l.b16 %v394
        %v1433 = vunpack.c.l.b16 %v395
        %v1434 = vunpack.c.l.b16 %v396
        %v1435 = vunpack.c.l.b16 %v397
        %v1436 = vunpack.c.l.b16 %v398
        %v1437 = vunpack.c.l.b16 %v399
        %v1438 = vunpack.c.l.b16 %v400
        %v1439 = vunpack.c.l.b16 %v401
        %v1440 = vunpack.c.l.b16 %v402
        %v1441 = vunpack.c.l.b16 %v403
        %v1442 = vunpack.c.l.b16 %v404
        %v1443 = vunpack.c.l.b16 %v405
        %v1444 = vunpack.c.l.b16 %v406
        %v1445 = vunpack.c.l.b16 %v407
        %v1446 = vunpack.c.l.b16 %v408
        %v1447 = vunpack.c.l.b16 %v409
        %v1448 = vunpack.c.l.b16 %v410
        %v1449 = vunpack.c.l.b16 %v411
        %v1450 = vunpack.c.l.b16 %v412
        %v1451 = vunpack.c.l.b16 %v413
        %v1452 = vunpack.c.l.b16 %v414
        %v1453 = vunpack.c.l.b16 %v415
        %v1454 = vunpack.c.l.b16 %v416
        %v1455 = vunpack.c.l.b16 %v417
        %v1456 = vunpack.c.l.b16 %v418
        %v1457 = vunpack.c.l.b16 %v419
        %v1458 = vunpack.c.l.b16 %v420
        %v1459 = vunpack.c.l.b16 %v421
        %v1460 = vunpack.c.l.b16 %v422
        %v1461 = vunpack.c.l.b16 %v423
        %v1462 = vunpack.c.l.b16 %v424
        %v1463 = vunpack.c.l.b16 %v425
        %v1464 = vunpack.c.l.b16 %v426
        %v1465 = vunpack.c.l.b16 %v427
        %v1466 = vunpack.c.l.b16 %v428
        %v1467 = vunpack.c.l.b16 %v429
        %v1468 = vunpack.c.l.b16 %v430
        %v1469 = vunpack.c.l.b16 %v431
        %v1470 = vunpack.c.l.b16 %v432
        %v1471 = vunpack.c.l.b16 %v433
        %v1472 = vunpack.c.l.b16 %v434
        %v1473 = vunpack.c.l.b16 %v435
        %v1474 = vunpack.c.l.b16 %v436
        %v1475 = vunpack.c.l.b16 %v437
        %v1476 = vunpack.c.l.b16 %v438
        %v1477 = vunpack.c.l.b16 %v439
        %v1478 = vunpack.c.l.b16 %v440
        %v1479 = vunpack.c.l.b16 %v441
        %v1480 = vunpack.c.l.b16 %v442
        %v1481 = vunpack.c.l.b16 %v443
        %v1482 = vunpack.c.l.b16 %v444
        %v1483 = vunpack.c.l.b16 %v445
        %v1484 = vunpack.c.l.b16 %v446
        %v1485 = vunpack.c.l.b16 %v447
        %v1486 = vunpack.c.l.b16 %v448
        %v1487 = vunpack.c.l.b16 %v449
        %v1488 = vunpack.c.l.b16 %v450
        %v1489 = vunpack.c.l.b16 %v451
        %v1490 = vunpack.c.l.b16 %v452
        %v1491 = vunpack.c.l.b16 %v453
        %v1492 = vunpack.c.l.b16 %v454
        %v1493 = vunpack.c.l.b16 %v455
        %v1494 = vunpack.c.l.b16 %v456
        %v1495 = vunpack.c.l.b16 %v457
        %v1496 = vunpack.c.l.b16 %v458
        %v1497 = vunpack.c.l.b16 %v459
        %v1498 = vunpack.c.l.b16 %v460
        %v1499 = vunpack.c.l.b16 %v461
        %v1500 = vunpack.c.l.b16 %v462
        %v1501 = vunpack.c.l.b16 %v463
        %v1502 = vunpack.c.l.b16 %v464
        %v1503 = vunpack.c.l.b16 %v465
        %v1504 = vunpack.c.l.b16 %v466
        %v1505 = vunpack.c.l.b16 %v467
        %v1506 = vunpack.c.l.b16 %v468
        %v1507 = vunpack.c.l.b16 %v469
        %v1508 = vunpack.c.l.b16 %v470
        %v1509 = vunpack.c.l.b16 %v471
        %v1510 = vunpack.c.l.b16 %v472
        %v1511 = vunpack.c.l.b16 %v473
        %v1512 = vunpack.c.l.b16 %v474
        %v1513 = vunpack.c.l.b16 %v475
        %v1514 = vunpack.c.l.b16 %v476
        %v1515 = vunpack.c.l.b16 %v477
        %v1516 = vunpack.c.l.b16 %v478
        %v1517 = vunpack.c.l.b16 %v479
        %v1518 = vunpack.c.l.b16 %v480
        %v1519 = vunpack.c.l.b16 %v481
        %v1520 = vunpack.c.l.b16 %v482
        %v1521 = vunpack.c.l.b16 %v483
        %v1522 = vunpack.c.l.b16 %v484
        %v1523 = vunpack.c.l.b16 %v485
        %v1524 = vunpack.c.l.b16 %v486
        %v1525 = vunpack.c.l.b16 %v487
        %v1526 = vunpack.c.l.b16 %v488
        %v1527 = vunpack.c.l.b16 %v489
        %v1528 = vunpack.c.l.b16 %v490
        %v1529 = vunpack.c.l.b16 %v491
        %v1530 = vunpack.c.l.b16 %v492
        %v1531 = vunpack.c.l.b16 %v493
        %v1532 = vunpack.c.l.b16 %v494
        %v1533 = vunpack.c.l.b16 %v495
        %v1534 = vunpack.c.l.b16 %v496
        %v1535 = vunpack.c.l.b16 %v497
        %v1536 = vunpack.c.l.b16 %v498
        %v1537 = vunpack.c.l.b16 %v499
        %v1538 = vunpack.c.l.b16 %v500
        %v1539 = vunpack.c.l.b16 %v501
        %v1540 = vunpack.c.l.b16 %v502
        %v1541 = vunpack.c.l.b16 %v503
        %v1542 = vunpack.c.l.b16 %v504
        %v1543 = vunpack.c.l.b16 %v505
        %v1544 = vunpack.c.l.b16 %v506
        %v1545 = vunpack.c.l.b16 %v507
        %v1546 = vunpack.c.l.b16 %v508
        %v1547 = vunpack.c.l.b16 %v509
        %v1548 = vunpack.c.l.b16 %v510
        %v1549 = vunpack.c.l.b16 %v511
        %v1550 = vunpack.c.l.b16 %v512
        %v1551 = vunpack.c.l.b16 %v513
        %v1552 = vunpack.c.l.b16 %v514
        %v1553 = vunpack.c.l.b16 %v515
        %v1554 = vunpack.c.l.b16 %v516
        %v1555 = vunpack.c.l.b16 %v517
        %v1556 = vunpack.c.l.b16 %v518
        %v1557 = vunpack.c.l.b16 %v519
        %v1558 = vunpack.c.l.b16 %v520
        %v1559 = vunpack.c.l.b16 %v521
        %v1560 = vunpack.c.l.b16 %v522
        %v1561 = vunpack.c.l.b16 %v523
        %v1562 = vunpack.c.l.b16 %v524
        %v1563 = vunpack.c.l.b16 %v525
        %v1564 = vunpack.c.l.b16 %v526
        %v1565 = vunpack.c.l.b16 %v527
        %v1566 = vunpack.c.l.b16 %v528
        %v1567 = vunpack.c.l.b16 %v529
        %v1568 = vunpack.c.l.b16 %v530
        %v1569 = vunpack.c.l.b16 %v531
        %v1570 = vunpack.c.l.b16 %v532
        %v1571 = vunpack.c.l.b16 %v533
        %v1572 = vunpack.c.l.b16 %v534
        %v1573 = vunpack.c.l.b16 %v535
        %v1574 = vunpack.c.l.b16 %v536
        %v1575 = vunpack.c.l.b16 %v537
        %v1576 = vunpack.c.l.b16 %v538
        %v1577 = vunpack.c.l.b16 %v539
        %v1578 = vunpack.c.l.b16 %v540
        %v1579 = vunpack.c.l.b16 %v541
        %v1580 = vunpack.c.l.b16 %v542
        %v1581 = vunpack.c.l.b16 %v543
        %v1582 = vunpack.c.l.b16 %v544
        %v1583 = vunpack.c.l.b16 %v545
        %v1584 = vunpack.c.l.b16 %v546
        %v1585 = vunpack.c.l.b16 %v547
        %v1586 = vunpack.c.l.b16 %v548
        %v1587 = vunpack.c.l.b16 %v549
        %v1588 = vunpack.c.l.b16 %v550
        %v1589 = vunpack.c.l.b16 %v551
        %v1590 = vunpack.c.l.b16 %v552
        %v1591 = vunpack.c.l.b16 %v553
        %v1592 = vunpack.c.l.b16 %v554
        %v1593 = vunpack.c.l.b16 %v555
        %v1594 = vunpack.c.l.b16 %v556
        %v1595 = vunpack.c.l.b16 %v557
        %v1596 = vunpack.c.l.b16 %v558
        %v1597 = vunpack.c.l.b16 %v559
        %v1598 = vunpack.c.l.b16 %v560
        %v1599 = vunpack.c.l.b16 %v561
        %v1600 = vunpack.c.l.b16 %v562
        %v1601 = vunpack.c.l.b16 %v563
        %v1602 = vunpack.c.l.b16 %v564
        %v1603 = vunpack.c.l.b16 %v565
        %v1604 = vunpack.c.l.b16 %v566
        %v1605 = vunpack.c.l.b16 %v567
        %v1606 = vunpack.c.l.b16 %v568
        %v1607 = vunpack.c.l.b16 %v569
        %v1608 = vunpack.c.l.b16 %v570
        %v1609 = vunpack.c.l.b16 %v571
        %v1610 = vunpack.c.l.b16 %v572
        %v1611 = vunpack.c.l.b16 %v573
        %v1612 = vunpack.c.l.b16 %v574
        %v1613 = vunpack.c.l.b16 %v575
        %v1614 = vunpack.c.l.b16 %v576
        %v1615 = vunpack.c.l.b16 %v577
        %v1616 = vunpack.c.l.b16 %v578
        %v1617 = vunpack.c.l.b16 %v579
        %v1618 = vunpack.c.l.b16 %v580
        %v1619 = vunpack.c.l.b16 %v581
        %v1620 = vunpack.c.l.b16 %v582
        %v1621 = vunpack.c.l.b16 %v583
        %v1622 = vunpack.c.l.b16 %v584
        %v1623 = vunpack.c.l.b16 %v585
        %v1624 = vunpack.c.l.b16 %v586
        %v1625 = vunpack.c.l.b16 %v587
        %v1626 = vunpack.c.l.b16 %v588
        %v1627 = vunpack.c.l.b16 %v589
        %v1628 = vunpack.c.l.b16 %v590
        %v1629 = vunpack.c.l.b16 %v591
        %v1630 = vunpack.c.l.b16 %v592
        %v1631 = vunpack.c.l.b16 %v593
        %v1632 = vunpack.c.l.b16 %v594
        %v1633 = vunpack.c.l.b16 %v595
        %v1634 = vunpack.c.l.b16 %v596
        %v1635 = vunpack.c.l.b16 %v597
        %v1636 = vunpack.c.l.b16 %v598
        %v1637 = vunpack.c.l.b16 %v599
        %v1638 = vunpack.c.l.b16 %v600
        %v1639 = vunpack.c.l.b16 %v601
        %v1640 = vunpack.c.l.b16 %v602
        %v1641 = vunpack.c.l.b16 %v603
        %v1642 = vunpack.c.l.b16 %v604
        %v1643 = vunpack.c.l.b16 %v605
        %v1644 = vunpack.c.l.b16 %v606
        %v1645 = vunpack.c.l.b16 %v607
        %v1646 = vunpack.c.l.b16 %v608
        %v1647 = vunpack.c.l.b16 %v609
        %v1648 = vunpack.c.l.b16 %v610
        %v1649 = vunpack.c.l.b16 %v611
        %v1650 = vunpack.c.l.b16 %v612
        %v1651 = vunpack.c.l.b16 %v613
        %v1652 = vunpack.c.l.b16 %v614
        %v1653 = vunpack.c.l.b16 %v615
        %v1654 = vunpack.c.l.b16 %v616
        %v1655 = vunpack.c.l.b16 %v617
        %v1656 = vunpack.c.l.b16 %v618
        %v1657 = vunpack.c.l.b16 %v619
        %v1658 = vunpack.c.l.b16 %v620
        %v1659 = vunpack.c.l.b16 %v621
        %v1660 = vunpack.c.l.b16 %v622
        %v1661 = vunpack.c.l.b16 %v623
        %v1662 = vunpack.c.l.b16 %v624
        %v1663 = vunpack.c.l.b16 %v625
        %v1664 = vunpack.c.l.b16 %v626
        %v1665 = vunpack.c.l.b16 %v627
        %v1666 = vunpack.c.l.b16 %v628
        %v1667 = vunpack.c.l.b16 %v629
        %v1668 = vunpack.c.l.b16 %v630
        %v1669 = vunpack.c.l.b16 %v631
        %v1670 = vunpack.c.l.b16 %v632
        %v1671 = vunpack.c.l.b16 %v633
        %v1672 = vunpack.c.l.b16 %v634
        %v1673 = vunpack.c.l.b16 %v635
        %v1674 = vunpack.c.l.b16 %v636
        %v1675 = vunpack.c.l.b16 %v637
        %v1676 = vunpack.c.l.b16 %v638
        %v1677 = vunpack.c.l.b16 %v639
        %v1678 = vunpack.c.l.b16 %v640
        %v1679 = vunpack.c.l.b16 %v641
        %v1680 = vunpack.c.l.b16 %v642
        %v1681 = vunpack.c.l.b16 %v643
        %v1682 = vunpack.c.l.b16 %v644
        %v1683 = vunpack.c.l.b16 %v645
        %v1684 = vunpack.c.l.b16 %v646
        %v1685 = vunpack.c.l.b16 %v647
        %v1686 = vunpack.c.l.b16 %v648
        %v1687 = vunpack.c.l.b16 %v649
        %v1688 = vunpack.c.l.b16 %v650
        %v1689 = vunpack.c.l.b16 %v651
        %v1690 = vunpack.c.l.b16 %v652
        %v1691 = vunpack.c.l.b16 %v653
        %v1692 = vunpack.c.l.b16 %v654
        %v1693 = vunpack.c.l.b16 %v655
        %v1694 = vunpack.c.l.b16 %v656
        %v1695 = vunpack.c.l.b16 %v657
        %v1696 = vunpack.c.l.b16 %v658
        %v1697 = vunpack.c.l.b16 %v659
        %v1698 = vunpack.c.l.b16 %v660
        %v1699 = vunpack.c.l.b16 %v661
        %v1700 = vunpack.c.l.b16 %v662
        %v1701 = vunpack.c.l.b16 %v663
        %v1702 = vunpack.c.l.b16 %v664
        %v1703 = vunpack.c.l.b16 %v665
        %v1704 = vunpack.c.l.b16 %v666
        %v1705 = vunpack.c.l.b16 %v667
        %v1706 = vunpack.c.l.b16 %v668
        %v1707 = vunpack.c.l.b16 %v669
        %v1708 = vunpack.c.l.b16 %v670
        %v1709 = vunpack.c.l.b16 %v671
        %v1710 = vunpack.c.l.b16 %v672
        %v1711 = vunpack.c.l.b16 %v673
        %v1712 = vunpack.c.l.b16 %v674
        %v1713 = vunpack.c.l.b16 %v675
        %v1714 = vunpack.c.l.b16 %v676
        %v1715 = vunpack.c.l.b16 %v677
        %v1716 = vunpack.c.l.b16 %v678
        %v1717 = vunpack.c.l.b16 %v679
        %v1718 = vunpack.c.l.b16 %v680
        %v1719 = vunpack.c.l.b16 %v681
        %v1720 = vunpack.c.l.b16 %v682
        %v1721 = vunpack.c.l.b16 %v683
        %v1722 = vunpack.c.l.b16 %v684
        %v1723 = vunpack.c.l.b16 %v685
        %v1724 = vunpack.c.l.b16 %v686
        %v1725 = vunpack.c.l.b16 %v687
        %v1726 = vunpack.c.l.b16 %v688
        %v1727 = vunpack.c.l.b16 %v689
        %v1728 = vunpack.c.l.b16 %v690
        %v1729 = vunpack.c.l.b16 %v691
        %v1730 = vunpack.c.l.b16 %v692
        %v1731 = vunpack.c.l.b16 %v693
        %v1732 = vunpack.c.l.b16 %v694
        %v1733 = vunpack.c.l.b16 %v695
        %v1734 = vunpack.c.l.b16 %v696
        %v1735 = vunpack.c.l.b16 %v697
        %v1736 = vunpack.c.l.b16 %v698
        %v1737 = vunpack.c.l.b16 %v699
        %v1738 = vunpack.c.l.b16 %v700
        %v1739 = vunpack.c.l.b16 %v701
        %v1740 = vunpack.c.l.b16 %v702
        %v1741 = vunpack.c.l.b16 %v703
        %v1742 = vunpack.c.l.b16 %v704
        %v1743 = vunpack.c.l.b16 %v705
        %v1744 = vunpack.c.l.b16 %v706
        %v1745 = vunpack.c.l.b16 %v707
        %v1746 = vunpack.c.l.b16 %v708
        %v1747 = vunpack.c.l.b16 %v709
        %v1748 = vunpack.c.l.b16 %v710
        %v1749 = vunpack.c.l.b16 %v711
        %v1750 = vunpack.c.l.b16 %v712
        %v1751 = vunpack.c.l.b16 %v713
        %v1752 = vunpack.c.l.b16 %v714
        %v1753 = vunpack.c.l.b16 %v715
        %v1754 = vunpack.c.l.b16 %v716
        %v1755 = vunpack.c.l.b16 %v717
        %v1756 = vunpack.c.l.b16 %v718
        %v1757 = vunpack.c.l.b16 %v719
        %v1758 = vunpack.c.l.b16 %v720
        %v1759 = vunpack.c.l.b16 %v721
        %v1760 = vunpack.c.l.b16 %v722
        %v1761 = vunpack.c.l.b16 %v723
        %v1762 = vunpack.c.l.b16 %v724
        %v1763 = vunpack.c.l.b16 %v725
        %v1764 = vunpack.c.l.b16 %v726
        %v1765 = vunpack.c.l.b16 %v727
        %v1766 = vunpack.c.l.b16 %v728
        %v1767 = vunpack.c.l.b16 %v729
        %v1768 = vunpack.c.l.b16 %v730
        %v1769 = vunpack.c.l.b16 %v731
        %v1770 = vunpack.c.l.b16 %v732
        %v1771 = vunpack.c.l.b16 %v733
        %v1772 = vunpack.c.l.b16 %v734
        %v1773 = vunpack.c.l.b16 %v735
        %v1774 = vunpack.c.l.b16 %v736
        %v1775 = vunpack.c.l.b16 %v737
        %v1776 = vunpack.c.l.b16 %v738
        %v1777 = vunpack.c.l.b16 %v739
        %v1778 = vunpack.c.l.b16 %v740
        %v1779 = vunpack.c.l.b16 %v741
        %v1780 = vunpack.c.l.b16 %v742
        %v1781 = vunpack.c.l.b16 %v743
        %v1782 = vunpack.c.l.b16 %v744
        %v1783 = vunpack.c.l.b16 %v745
        %v1784 = vunpack.c.l.b16 %v746
        %v1785 = vunpack.c.l.b16 %v747
        %v1786 = vunpack.c.l.b16 %v748
        %v1787 = vpack.c.b16 %v1276, %v1275
        %v1788 = vpack.c.b16 %v1278, %v1277
        %v1789 = vpack.c.b16 %v1280, %v1279
        %v1790 = vpack.c.b16 %v1282, %v1281
        %v1791 = vpack.c.b16 %v1284, %v1283
        %v1792 = vpack.c.b16 %v1286, %v1285
        %v1793 = vpack.c.b16 %v1288, %v1287
        %v1794 = vpack.c.b16 %v1290, %v1289
        %v1795 = vpack.c.b16 %v1292, %v1291
        %v1796 = vpack.c.b16 %v1294, %v1293
        %v1797 = vpack.c.b16 %v1296, %v1295
        %v1798 = vpack.c.b16 %v1298, %v1297
        %v1799 = vpack.c.b16 %v1300, %v1299
        %v1800 = vpack.c.b16 %v1302, %v1301
        %v1801 = vpack.c.b16 %v1304, %v1303
        %v1802 = vpack.c.b16 %v1306, %v1305
        %v1803 = vpack.c.b16 %v1308, %v1307
        %v1804 = vpack.c.b16 %v1310, %v1309
        %v1805 = vpack.c.b16 %v1312, %v1311
        %v1806 = vpack.c.b16 %v1314, %v1313
        %v1807 = vpack.c.b16 %v1316, %v1315
        %v1808 = vpack.c.b16 %v1318, %v1317
        %v1809 = vpack.c.b16 %v1320, %v1319
        %v1810 = vpack.c.b16 %v1322, %v1321
        %v1811 = vpack.c.b16 %v1324, %v1323
        %v1812 = vpack.c.b16 %v1326, %v1325
        %v1813 = vpack.c.b16 %v1328, %v1327
        %v1814 = vpack.c.b16 %v1330, %v1329
        %v1815 = vpack.c.b16 %v1332, %v1331
        %v1816 = vpack.c.b16 %v1334, %v1333
        %v1817 = vpack.c.b16 %v1336, %v1335
        %v1818 = vpack.c.b16 %v1338, %v1337
        %v1819 = vpack.c.b16 %v1340, %v1339
        %v1820 = vpack.c.b16 %v1342, %v1341
        %v1821 = vpack.c.b16 %v1344, %v1343
        %v1822 = vpack.c.b16 %v1346, %v1345
        %v1823 = vpack.c.b16 %v1348, %v1347
        %v1824 = vpack.c.b16 %v1350, %v1349
        %v1825 = vpack.c.b16 %v1352, %v1351
        %v1826 = vpack.c.b16 %v1354, %v1353
        %v1827 = vpack.c.b16 %v1356, %v1355
        %v1828 = vpack.c.b16 %v1358, %v1357
        %v1829 = vpack.c.b16 %v1360, %v1359
        %v1830 = vpack.c.b16 %v1362, %v1361
        %v1831 = vpack.c.b16 %v1364, %v1363
        %v1832 = vpack.c.b16 %v1366, %v1365
        %v1833 = vpack.c.b16 %v1368, %v1367
        %v1834 = vpack.c.b16 %v1370, %v1369
        %v1835 = vpack.c.b16 %v1372, %v1371
        %v1836 = vpack.c.b16 %v1374, %v1373
        %v1837 = vpack.c.b16 %v1376, %v1375
        %v1838 = vpack.c.b16 %v1378, %v1377
        %v1839 = vpack.c.b16 %v1380, %v1379
        %v1840 = vpack.c.b16 %v1382, %v1381
        %v1841 = vpack.c.b16 %v1384, %v1383
        %v1842 = vpack.c.b16 %v1386, %v1385
        %v1843 = vpack.c.b16 %v1388, %v1387
        %v1844 = vpack.c.b16 %v1390, %v1389
        %v1845 = vpack.c.b16 %v1392, %v1391
        %v1846 = vpack.c.b16 %v1394, %v1393
        %v1847 = vpack.c.b16 %v1396, %v1395
        %v1848 = vpack.c.b16 %v1398, %v1397
        %v1849 = vpack.c.b16 %v1400, %v1399
        %v1850 = vpack.c.b16 %v1402, %v1401
        %v1851 = vpack.c.b16 %v1404, %v1403
        %v1852 = vpack.c.b16 %v1406, %v1405
        %v1853 = vpack.c.b16 %v1408, %v1407
        %v1854 = vpack.c.b16 %v1410, %v1409
        %v1855 = vpack.c.b16 %v1412, %v1411
        %v1856 = vpack.c.b16 %v1414, %v1413
        %v1857 = vpack.c.b16 %v1416, %v1415
        %v1858 = vpack.c.b16 %v1418, %v1417
        %v1859 = vpack.c.b16 %v1420, %v1419
        %v1860 = vpack.c.b16 %v1422, %v1421
        %v1861 = vpack.c.b16 %v1424, %v1423
        %v1862 = vpack.c.b16 %v1426, %v1425
        %v1863 = vpack.c.b16 %v1428, %v1427
        %v1864 = vpack.c.b16 %v1430, %v1429
        %v1865 = vpack.c.b16 %v1432, %v1431
        %v1866 = vpack.c.b16 %v1434, %v1433
        %v1867 = vpack.c.b16 %v1436, %v1435
        %v1868 = vpack.c.b16 %v1438, %v1437
        %v1869 = vpack.c.b16 %v1440, %v1439
        %v1870 = vpack.c.b16 %v1442, %v1441
        %v1871 = vpack.c.b16 %v1444, %v1443
        %v1872 = vpack.c.b16 %v1446, %v1445
        %v1873 = vpack.c.b16 %v1448, %v1447
        %v1874 = vpack.c.b16 %v1450, %v1449
        %v1875 = vpack.c.b16 %v1452, %v1451
        %v1876 = vpack.c.b16 %v1454, %v1453
        %v1877 = vpack.c.b16 %v1456, %v1455
        %v1878 = vpack.c.b16 %v1458, %v1457
        %v1879 = vpack.c.b16 %v1460, %v1459
        %v1880 = vpack.c.b16 %v1462, %v1461
        %v1881 = vpack.c.b16 %v1464, %v1463
        %v1882 = vpack.c.b16 %v1466, %v1465
        %v1883 = vpack.c.b16 %v1468, %v1467
        %v1884 = vpack.c.b16 %v1470, %v1469
        %v1885 = vpack.c.b16 %v1472, %v1471
        %v1886 = vpack.c.b16 %v1474, %v1473
        %v1887 = vpack.c.b16 %v1476, %v1475
        %v1888 = vpack.c.b16 %v1478, %v1477
        %v1889 = vpack.c.b16 %v1480, %v1479
        %v1890 = vpack.c.b16 %v1482, %v1481
        %v1891 = vpack.c.b16 %v1484, %v1483
        %v1892 = vpack.c.b16 %v1486, %v1485
        %v1893 = vpack.c.b16 %v1488, %v1487
        %v1894 = vpack.c.b16 %v1490, %v1489
        %v1895 = vpack.c.b16 %v1492, %v1491
        %v1896 = vpack.c.b16 %v1494, %v1493
        %v1897 = vpack.c.b16 %v1496, %v1495
        %v1898 = vpack.c.b16 %v1498, %v1497
        %v1899 = vpack.c.b16 %v1500, %v1499
        %v1900 = vpack.c.b16 %v1502, %v1501
        %v1901 = vpack.c.b16 %v1504, %v1503
        %v1902 = vpack.c.b16 %v1506, %v1505
        %v1903 = vpack.c.b16 %v1508, %v1507
        %v1904 = vpack.c.b16 %v1510, %v1509
        %v1905 = vpack.c.b16 %v1512, %v1511
        %v1906 = vpack.c.b16 %v1514, %v1513
        %v1907 = vpack.c.b16 %v1516, %v1515
        %v1908 = vpack.c.b16 %v1518, %v1517
        %v1909 = vpack.c.b16 %v1520, %v1519
        %v1910 = vpack.c.b16 %v1522, %v1521
        %v1911 = vpack.c.b16 %v1524, %v1523
        %v1912 = vpack.c.b16 %v1526, %v1525
        %v1913 = vpack.c.b16 %v1528, %v1527
        %v1914 = vpack.c.b16 %v1530, %v1529
        %v1915 = vpack.c.b16 %v1532, %v1531
        %v1916 = vpack.c.b16 %v1534, %v1533
        %v1917 = vpack.c.b16 %v1536, %v1535
        %v1918 = vpack.c.b16 %v1538, %v1537
        %v1919 = vpack.c.b16 %v1540, %v1539
        %v1920 = vpack.c.b16 %v1542, %v1541
        %v1921 = vpack.c.b16 %v1544, %v1543
        %v1922 = vpack.c.b16 %v1546, %v1545
        %v1923 = vpack.c.b16 %v1548, %v1547
        %v1924 = vpack.c.b16 %v1550, %v1549
        %v1925 = vpack.c.b16 %v1552, %v1551
        %v1926 = vpack.c.b16 %v1554, %v1553
        %v1927 = vpack.c.b16 %v1556, %v1555
        %v1928 = vpack.c.b16 %v1558, %v1557
        %v1929 = vpack.c.b16 %v1560, %v1559
        %v1930 = vpack.c.b16 %v1562, %v1561
        %v1931 = vpack.c.b16 %v1564, %v1563
        %v1932 = vpack.c.b16 %v1566, %v1565
        %v1933 = vpack.c.b16 %v1568, %v1567
        %v1934 = vpack.c.b16 %v1570, %v1569
        %v1935 = vpack.c.b16 %v1572, %v1571
        %v1936 = vpack.c.b16 %v1574, %v1573
        %v1937 = vpack.c.b16 %v1576, %v1575
        %v1938 = vpack.c.b16 %v1578, %v1577
        %v1939 = vpack.c.b16 %v1580, %v1579
        %v1940 = vpack.c.b16 %v1582, %v1581
        %v1941 = vpack.c.b16 %v1584, %v1583
        %v1942 = vpack.c.b16 %v1586, %v1585
        %v1943 = vpack.c.b16 %v1588, %v1587
        %v1944 = vpack.c.b16 %v1590, %v1589
        %v1945 = vpack.c.b16 %v1592, %v1591
        %v1946 = vpack.c.b16 %v1594, %v1593
        %v1947 = vpack.c.b16 %v1596, %v1595
        %v1948 = vpack.c.b16 %v1598, %v1597
        %v1949 = vpack.c.b16 %v1600, %v1599
        %v1950 = vpack.c.b16 %v1602, %v1601
        %v1951 = vpack.c.b16 %v1604, %v1603
        %v1952 = vpack.c.b16 %v1606, %v1605
        %v1953 = vpack.c.b16 %v1608, %v1607
        %v1954 = vpack.c.b16 %v1610, %v1609
        %v1955 = vpack.c.b16 %v1612, %v1611
        %v1956 = vpack.c.b16 %v1614, %v1613
        %v1957 = vpack.c.b16 %v1616, %v1615
        %v1958 = vpack.c.b16 %v1618, %v1617
        %v1959 = vpack.c.b16 %v1620, %v1619
        %v1960 = vpack.c.b16 %v1622, %v1621
        %v1961 = vpack.c.b16 %v1624, %v1623
        %v1962 = vpack.c.b16 %v1626, %v1625
        %v1963 = vpack.c.b16 %v1628, %v1627
        %v1964 = vpack.c.b16 %v1630, %v1629
        %v1965 = vpack.c.b16 %v1632, %v1631
        %v1966 = vpack.c.b16 %v1634, %v1633
        %v1967 = vpack.c.b16 %v1636, %v1635
        %v1968 = vpack.c.b16 %v1638, %v1637
        %v1969 = vpack.c.b16 %v1640, %v1639
        %v1970 = vpack.c.b16 %v1642, %v1641
        %v1971 = vpack.c.b16 %v1644, %v1643
        %v1972 = vpack.c.b16 %v1646, %v1645
        %v1973 = vpack.c.b16 %v1648, %v1647
        %v1974 = vpack.c.b16 %v1650, %v1649
        %v1975 = vpack.c.b16 %v1652, %v1651
        %v1976 = vpack.c.b16 %v1654, %v1653
        %v1977 = vpack.c.b16 %v1656, %v1655
        %v1978 = vpack.c.b16 %v1658, %v1657
        %v1979 = vpack.c.b16 %v1660, %v1659
        %v1980 = vpack.c.b16 %v1662, %v1661
        %v1981 = vpack.c.b16 %v1664, %v1663
        %v1982 = vpack.c.b16 %v1666, %v1665
        %v1983 = vpack.c.b16 %v1668, %v1667
        %v1984 = vpack.c.b16 %v1670, %v1669
        %v1985 = vpack.c.b16 %v1672, %v1671
        %v1986 = vpack.c.b16 %v1674, %v1673
        %v1987 = vpack.c.b16 %v1676, %v1675
        %v1988 = vpack.c.b16 %v1678, %v1677
        %v1989 = vpack.c.b16 %v1680, %v1679
        %v1990 = vpack.c.b16 %v1682, %v1681
        %v1991 = vpack.c.b16 %v1684, %v1683
        %v1992 = vpack.c.b16 %v1686, %v1685
        %v1993 = vpack.c.b16 %v1688, %v1687
        %v1994 = vpack.c.b16 %v1690, %v1689
        %v1995 = vpack.c.b16 %v1692, %v1691
        %v1996 = vpack.c.b16 %v1694, %v1693
        %v1997 = vpack.c.b16 %v1696, %v1695
        %v1998 = vpack.c.b16 %v1698, %v1697
        %v1999 = vpack.c.b16 %v1700, %v1699
        %v2000 = vpack.c.b16 %v1702, %v1701
        %v2001 = vpack.c.b16 %v1704, %v1703
        %v2002 = vpack.c.b16 %v1706, %v1705
        %v2003 = vpack.c.b16 %v1708, %v1707
        %v2004 = vpack.c.b16 %v1710, %v1709
        %v2005 = vpack.c.b16 %v1712, %v1711
        %v2006 = vpack.c.b16 %v1714, %v1713
        %v2007 = vpack.c.b16 %v1716, %v1715
        %v2008 = vpack.c.b16 %v1718, %v1717
        %v2009 = vpack.c.b16 %v1720, %v1719
        %v2010 = vpack.c.b16 %v1722, %v1721
        %v2011 = vpack.c.b16 %v1724, %v1723
        %v2012 = vpack.c.b16 %v1726, %v1725
        %v2013 = vpack.c.b16 %v1728, %v1727
        %v2014 = vpack.c.b16 %v1730, %v1729
        %v2015 = vpack.c.b16 %v1732, %v1731
        %v2016 = vpack.c.b16 %v1734, %v1733
        %v2017 = vpack.c.b16 %v1736, %v1735
        %v2018 = vpack.c.b16 %v1738, %v1737
        %v2019 = vpack.c.b16 %v1740, %v1739
        %v2020 = vpack.c.b16 %v1742, %v1741
        %v2021 = vpack.c.b16 %v1744, %v1743
        %v2022 = vpack.c.b16 %v1746, %v1745
        %v2023 = vpack.c.b16 %v1748, %v1747
        %v2024 = vpack.c.b16 %v1750, %v1749
        %v2025 = vpack.c.b16 %v1752, %v1751
        %v2026 = vpack.c.b16 %v1754, %v1753
        %v2027 = vpack.c.b16 %v1756, %v1755
        %v2028 = vpack.c.b16 %v1758, %v1757
        %v2029 = vpack.c.b16 %v1760, %v1759
        %v2030 = vpack.c.b16 %v1762, %v1761
        %v2031 = vpack.c.b16 %v1764, %v1763
        %v2032 = vpack.c.b16 %v1766, %v1765
        %v2033 = vpack.c.b16 %v1768, %v1767
        %v2034 = vpack.c.b16 %v1770, %v1769
        %v2035 = vpack.c.b16 %v1772, %v1771
        %v2036 = vpack.c.b16 %v1774, %v1773
        %v2037 = vpack.c.b16 %v1776, %v1775
        %v2038 = vpack.c.b16 %v1778, %v1777
        %v2039 = vpack.c.b16 %v1780, %v1779
        %v2040 = vpack.c.b16 %v1782, %v1781
        %v2041 = vpack.c.b16 %v1784, %v1783
        %v2042 = vpack.c.b16 %v1786, %v1785
        %v2050 = vunpack.c.l.b16 %v749
        %v2051 = vunpack.c.l.b16 %v750
        %v2052 = vunpack.c.l.b16 %v751
        %v2053 = vunpack.c.l.b16 %v752
        %v2054 = vunpack.c.l.b16 %v753
        %v2055 = vunpack.c.l.b16 %v754
        %v2056 = vunpack.c.l.b16 %v755
        %v2057 = vpack.c.b16 %v2051, %v2050
        %v2058 = vpack.c.b16 %v2053, %v2052
        %v2059 = vpack.c.b16 %v2055, %v2054
        %v2060 = vpack.c.b16 %v2056, %v2056
        %vm2064 = vcmask 441344
        %v2066 = vsel %vm2064, %v1787, 0
        %v2069 = vsel %vm2064, %v1788, 0
        %v2072 = vsel %vm2064, %v1789, 0
        %v2075 = vsel %vm2064, %v1790, 0
        %v2078 = vsel %vm2064, %v1791, 0
        %v2081 = vsel %vm2064, %v1792, 0
        %v2084 = vsel %vm2064, %v1793, 0
        %v2087 = vsel %vm2064, %v1794, 0
        %v2090 = vsel %vm2064, %v1795, 0
        %v2093 = vsel %vm2064, %v1796, 0
        %v2096 = vsel %vm2064, %v1797, 0
        %v2099 = vsel %vm2064, %v1798, 0
        %v2102 = vsel %vm2064, %v1799, 0
        %v2105 = vsel %vm2064, %v1800, 0
        %v2108 = vsel %vm2064, %v1801, 0
        %v2111 = vsel %vm2064, %v1802, 0
        %v2114 = vsel %vm2064, %v1803, 0
        %v2117 = vsel %vm2064, %v1804, 0
        %v2120 = vsel %vm2064, %v1805, 0
        %v2123 = vsel %vm2064, %v1806, 0
        %v2126 = vsel %vm2064, %v1807, 0
        %v2129 = vsel %vm2064, %v1808, 0
        %v2132 = vsel %vm2064, %v1809, 0
        %v2135 = vsel %vm2064, %v1810, 0
        %v2138 = vsel %vm2064, %v1811, 0
        %v2141 = vsel %vm2064, %v1812, 0
        %v2144 = vsel %vm2064, %v1813, 0
        %v2147 = vsel %vm2064, %v1814, 0
        %v2150 = vsel %vm2064, %v1815, 0
        %v2153 = vsel %vm2064, %v1816, 0
        %v2156 = vsel %vm2064, %v1817, 0
        %v2159 = vsel %vm2064, %v1818, 0
        %v2162 = vsel %vm2064, %v1819, 0
        %v2165 = vsel %vm2064, %v1820, 0
        %v2168 = vsel %vm2064, %v1821, 0
        %v2171 = vsel %vm2064, %v1822, 0
        %v2174 = vsel %vm2064, %v1823, 0
        %v2177 = vsel %vm2064, %v1824, 0
        %v2180 = vsel %vm2064, %v1825, 0
        %v2183 = vsel %vm2064, %v1826, 0
        %v2186 = vsel %vm2064, %v1827, 0
        %v2189 = vsel %vm2064, %v1828, 0
        %v2192 = vsel %vm2064, %v1829, 0
        %v2195 = vsel %vm2064, %v1830, 0
        %v2198 = vsel %vm2064, %v1831, 0
        %v2201 = vsel %vm2064, %v1832, 0
        %v2204 = vsel %vm2064, %v1833, 0
        %v2207 = vsel %vm2064, %v1834, 0
        %v2210 = vsel %vm2064, %v1835, 0
        %v2213 = vsel %vm2064, %v1836, 0
        %v2216 = vsel %vm2064, %v1837, 0
        %v2219 = vsel %vm2064, %v1838, 0
        %v2222 = vsel %vm2064, %v1839, 0
        %v2225 = vsel %vm2064, %v1840, 0
        %v2228 = vsel %vm2064, %v1841, 0
        %v2231 = vsel %vm2064, %v1842, 0
        %v2234 = vsel %vm2064, %v1843, 0
        %v2237 = vsel %vm2064, %v1844, 0
        %v2240 = vsel %vm2064, %v1845, 0
        %v2243 = vsel %vm2064, %v1846, 0
        %v2246 = vsel %vm2064, %v1847, 0
        %v2249 = vsel %vm2064, %v1848, 0
        %v2252 = vsel %vm2064, %v1849, 0
        %v2255 = vsel %vm2064, %v1850, 0
        %v2258 = vsel %vm2064, %v1851, 0
        %v2261 = vsel %vm2064, %v1852, 0
        %v2264 = vsel %vm2064, %v1853, 0
        %v2267 = vsel %vm2064, %v1854, 0
        %v2270 = vsel %vm2064, %v1855, 0
        %v2273 = vsel %vm2064, %v1856, 0
        %v2276 = vsel %vm2064, %v1857, 0
        %v2279 = vsel %vm2064, %v1858, 0
        %v2282 = vsel %vm2064, %v1859, 0
        %v2285 = vsel %vm2064, %v1860, 0
        %v2288 = vsel %vm2064, %v1861, 0
        %v2291 = vsel %vm2064, %v1862, 0
        %v2294 = vsel %vm2064, %v1863, 0
        %v2297 = vsel %vm2064, %v1864, 0
        %v2300 = vsel %vm2064, %v1865, 0
        %v2303 = vsel %vm2064, %v1866, 0
        %v2306 = vsel %vm2064, %v1867, 0
        %v2309 = vsel %vm2064, %v1868, 0
        %v2312 = vsel %vm2064, %v1869, 0
        %v2315 = vsel %vm2064, %v1870, 0
        %v2318 = vsel %vm2064, %v1871, 0
        %v2321 = vsel %vm2064, %v1872, 0
        %v2324 = vsel %vm2064, %v1873, 0
        %v2327 = vsel %vm2064, %v1874, 0
        %v2330 = vsel %vm2064, %v1875, 0
        %v2333 = vsel %vm2064, %v1876, 0
        %v2336 = vsel %vm2064, %v1877, 0
        %v2339 = vsel %vm2064, %v1878, 0
        %v2342 = vsel %vm2064, %v1879, 0
        %v2345 = vsel %vm2064, %v1880, 0
        %v2348 = vsel %vm2064, %v1881, 0
        %v2351 = vsel %vm2064, %v1882, 0
        %v2354 = vsel %vm2064, %v1883, 0
        %v2357 = vsel %vm2064, %v1884, 0
        %v2360 = vsel %vm2064, %v1885, 0
        %v2363 = vsel %vm2064, %v1886, 0
        %v2366 = vsel %vm2064, %v1887, 0
        %v2369 = vsel %vm2064, %v1888, 0
        %v2372 = vsel %vm2064, %v1889, 0
        %v2375 = vsel %vm2064, %v1890, 0
        %v2378 = vsel %vm2064, %v1891, 0
        %v2381 = vsel %vm2064, %v1892, 0
        %v2384 = vsel %vm2064, %v1893, 0
        %v2387 = vsel %vm2064, %v1894, 0
        %v2390 = vsel %vm2064, %v1895, 0
        %v2393 = vsel %vm2064, %v1896, 0
        %v2396 = vsel %vm2064, %v1897, 0
        %v2399 = vsel %vm2064, %v1898, 0
        %v2402 = vsel %vm2064, %v1899, 0
        %v2405 = vsel %vm2064, %v1900, 0
        %v2408 = vsel %vm2064, %v1901, 0
        %v2411 = vsel %vm2064, %v1902, 0
        %v2414 = vsel %vm2064, %v1903, 0
        %v2417 = vsel %vm2064, %v1904, 0
        %v2420 = vsel %vm2064, %v1905, 0
        %v2423 = vsel %vm2064, %v1906, 0
        %v2426 = vsel %vm2064, %v1907, 0
        %v2429 = vsel %vm2064, %v1908, 0
        %v2432 = vsel %vm2064, %v1909, 0
        %v2435 = vsel %vm2064, %v1910, 0
        %v2438 = vsel %vm2064, %v1911, 0
        %v2441 = vsel %vm2064, %v1912, 0
        %v2444 = vsel %vm2064, %v1913, 0
        %v2447 = vsel %vm2064, %v1914, 0
        %v2450 = vsel %vm2064, %v1915, 0
        %v2453 = vsel %vm2064, %v1916, 0
        %v2456 = vsel %vm2064, %v1917, 0
        %v2459 = vsel %vm2064, %v1918, 0
        %v2462 = vsel %vm2064, %v1919, 0
        %v2465 = vsel %vm2064, %v1920, 0
        %v2468 = vsel %vm2064, %v1921, 0
        %v2471 = vsel %vm2064, %v1922, 0
        %v2474 = vsel %vm2064, %v1923, 0
        %v2477 = vsel %vm2064, %v1924, 0
        %v2480 = vsel %vm2064, %v1925, 0
        %v2483 = vsel %vm2064, %v1926, 0
        %v2486 = vsel %vm2064, %v1927, 0
        %v2489 = vsel %vm2064, %v1928, 0
        %v2492 = vsel %vm2064, %v1929, 0
        %v2495 = vsel %vm2064, %v1930, 0
        %v2498 = vsel %vm2064, %v1931, 0
        %v2501 = vsel %vm2064, %v1932, 0
        %v2504 = vsel %vm2064, %v1933, 0
        %v2507 = vsel %vm2064, %v1934, 0
        %v2510 = vsel %vm2064, %v1935, 0
        %v2513 = vsel %vm2064, %v1936, 0
        %v2516 = vsel %vm2064, %v1937, 0
        %v2519 = vsel %vm2064, %v1938, 0
        %v2522 = vsel %vm2064, %v1939, 0
        %v2525 = vsel %vm2064, %v1940, 0
        %v2528 = vsel %vm2064, %v1941, 0
        %v2531 = vsel %vm2064, %v1942, 0
        %v2534 = vsel %vm2064, %v1943, 0
        %v2537 = vsel %vm2064, %v1944, 0
        %v2540 = vsel %vm2064, %v1945, 0
        %v2543 = vsel %vm2064, %v1946, 0
        %v2546 = vsel %vm2064, %v1947, 0
        %v2549 = vsel %vm2064, %v1948, 0
        %v2552 = vsel %vm2064, %v1949, 0
        %v2555 = vsel %vm2064, %v1950, 0
        %v2558 = vsel %vm2064, %v1951, 0
        %v2561 = vsel %vm2064, %v1952, 0
        %v2564 = vsel %vm2064, %v1953, 0
        %v2567 = vsel %vm2064, %v1954, 0
        %v2570 = vsel %vm2064, %v1955, 0
        %v2573 = vsel %vm2064, %v1956, 0
        %v2576 = vsel %vm2064, %v1957, 0
        %v2579 = vsel %vm2064, %v1958, 0
        %v2582 = vsel %vm2064, %v1959, 0
        %v2585 = vsel %vm2064, %v1960, 0
        %v2588 = vsel %vm2064, %v1961, 0
        %v2591 = vsel %vm2064, %v1962, 0
        %v2594 = vsel %vm2064, %v1963, 0
        %v2597 = vsel %vm2064, %v1964, 0
        %v2600 = vsel %vm2064, %v1965, 0
        %v2603 = vsel %vm2064, %v1966, 0
        %v2606 = vsel %vm2064, %v1967, 0
        %v2609 = vsel %vm2064, %v1968, 0
        %v2612 = vsel %vm2064, %v1969, 0
        %v2615 = vsel %vm2064, %v1970, 0
        %v2618 = vsel %vm2064, %v1971, 0
        %v2621 = vsel %vm2064, %v1972, 0
        %v2624 = vsel %vm2064, %v1973, 0
        %v2627 = vsel %vm2064, %v1974, 0
        %v2630 = vsel %vm2064, %v1975, 0
        %v2633 = vsel %vm2064, %v1976, 0
        %v2636 = vsel %vm2064, %v1977, 0
        %v2639 = vsel %vm2064, %v1978, 0
        %v2642 = vsel %vm2064, %v1979, 0
        %v2645 = vsel %vm2064, %v1980, 0
        %v2648 = vsel %vm2064, %v1981, 0
        %v2651 = vsel %vm2064, %v1982, 0
        %v2654 = vsel %vm2064, %v1983, 0
        %v2657 = vsel %vm2064, %v1984, 0
        %v2660 = vsel %vm2064, %v1985, 0
        %v2663 = vsel %vm2064, %v1986, 0
        %v2666 = vsel %vm2064, %v1987, 0
        %v2669 = vsel %vm2064, %v1988, 0
        %v2672 = vsel %vm2064, %v1989, 0
        %v2675 = vsel %vm2064, %v1990, 0
        %v2678 = vsel %vm2064, %v1991, 0
        %v2681 = vsel %vm2064, %v1992, 0
        %v2684 = vsel %vm2064, %v1993, 0
        %v2687 = vsel %vm2064, %v1994, 0
        %v2690 = vsel %vm2064, %v1995, 0
        %v2693 = vsel %vm2064, %v1996, 0
        %v2696 = vsel %vm2064, %v1997, 0
        %v2699 = vsel %vm2064, %v1998, 0
        %v2702 = vsel %vm2064, %v1999, 0
        %v2705 = vsel %vm2064, %v2000, 0
        %v2708 = vsel %vm2064, %v2001, 0
        %v2711 = vsel %vm2064, %v2002, 0
        %v2714 = vsel %vm2064, %v2003, 0
        %v2717 = vsel %vm2064, %v2004, 0
        %v2720 = vsel %vm2064, %v2005, 0
        %v2723 = vsel %vm2064, %v2006, 0
        %v2726 = vsel %vm2064, %v2007, 0
        %v2729 = vsel %vm2064, %v2008, 0
        %v2732 = vsel %vm2064, %v2009, 0
        %v2735 = vsel %vm2064, %v2010, 0
        %v2738 = vsel %vm2064, %v2011, 0
        %v2741 = vsel %vm2064, %v2012, 0
        %v2744 = vsel %vm2064, %v2013, 0
        %v2747 = vsel %vm2064, %v2014, 0
        %v2750 = vsel %vm2064, %v2015, 0
        %v2753 = vsel %vm2064, %v2016, 0
        %v2756 = vsel %vm2064, %v2017, 0
        %v2759 = vsel %vm2064, %v2018, 0
        %v2762 = vsel %vm2064, %v2019, 0
        %v2765 = vsel %vm2064, %v2020, 0
        %v2768 = vsel %vm2064, %v2021, 0
        %v2771 = vsel %vm2064, %v2022, 0
        %v2774 = vsel %vm2064, %v2023, 0
        %v2777 = vsel %vm2064, %v2024, 0
        %v2780 = vsel %vm2064, %v2025, 0
        %v2783 = vsel %vm2064, %v2026, 0
        %v2786 = vsel %vm2064, %v2027, 0
        %v2789 = vsel %vm2064, %v2028, 0
        %v2792 = vsel %vm2064, %v2029, 0
        %v2795 = vsel %vm2064, %v2030, 0
        %v2798 = vsel %vm2064, %v2031, 0
        %v2801 = vsel %vm2064, %v2032, 0
        %v2804 = vsel %vm2064, %v2033, 0
        %v2807 = vsel %vm2064, %v2034, 0
        %v2810 = vsel %vm2064, %v2035, 0
        %v2813 = vsel %vm2064, %v2036, 0
        %v2816 = vsel %vm2064, %v2037, 0
        %v2819 = vsel %vm2064, %v2038, 0
        %v2822 = vsel %vm2064, %v2039, 0
        %v2825 = vsel %vm2064, %v2040, 0
        %v2828 = vsel %vm2064, %v2041, 0
        %v2831 = vsel %vm2064, %v2042, 0
        %vm2833 = vcmask 1042432
        %v2835 = vsel %vm2833, %v2060, 0
        %2837 = vmatprep.subr.bf16.mxu0 0
        %2838 = vmatpush1.bf16.msra.mxu0 %v2057
        %2839 = vmatprep.subr.bf16.mxu0 0
        %2840 = vmatpush1.bf16.msra.mxu0 %v2058
        %2841 = vmatprep.subr.bf16.mxu0 0
        %2842 = vmatpush1.bf16.msra.mxu0 %v2059
        %2843 = vmatprep.subr.bf16.mxu0 0
        %2844 = vmatpush1.bf16.msra.mxu0 %v2835
        %2845 = vmatprep.subr.bf16.mxu0 0
        %2846 = vmatpush1.bf16.msra.mxu0 0
        %2847 = vmatprep.subr.bf16.mxu0 0
        %2848 = vmatpush1.bf16.msra.mxu0 0
        %2849 = vmatprep.subr.bf16.mxu0 0
        %2850 = vmatpush1.bf16.msra.mxu0 0
        %2851 = vmatprep.subr.bf16.mxu0 0
        %2852 = vmatpush1.bf16.msra.mxu0 0
        %2853 = vmatprep.subr.bf16.mxu0 0
        %2854 = vmatpush1.bf16.msra.mxu0 0
        %2855 = vmatprep.subr.bf16.mxu0 0
        %2856 = vmatpush1.bf16.msra.mxu0 0
        %2857 = vmatprep.subr.bf16.mxu0 0
        %2858 = vmatpush1.bf16.msra.mxu0 0
        %2859 = vmatprep.subr.bf16.mxu0 0
        %2860 = vmatpush1.bf16.msra.mxu0 0
        %2861 = vmatprep.subr.bf16.mxu0 0
        %2862 = vmatpush1.bf16.msra.mxu0 0
        %2863 = vmatprep.subr.bf16.mxu0 0
        %2864 = vmatpush1.bf16.msra.mxu0 0
        %2865 = vmatprep.subr.bf16.mxu0 0
        %2866 = vmatpush1.bf16.msra.mxu0 0
        %2867 = vmatprep.subr.bf16.mxu0 0
        %2868 = vmatpush1.bf16.msra.mxu0 0
        %2869 = vmatprep.mubr.bf16.mxu0 0
        %2870 = vmatmul.mubr.bf16.gmra.mrb[0].mxu0 %v2066
        %v2871 = vpop.f32.mrb[0].mxu0
        %v2872 = vadd.f32 %v761, %v2871
        %v2873 = vpop.f32.mrb[0].mxu0
        %v2874 = vpop.f32.mrb[0].mxu0
        %v2875 = vadd.f32 %v761, %v2874
        %v2876 = vpop.f32.mrb[0].mxu0
        %2877 = vmatprep.mubr.bf16.mxu0 0
        %2878 = vmatmul.mubr.bf16.gmra.mrb[0].mxu0 %v2069
        %v2879 = vpop.f32.mrb[0].mxu0
        %v2880 = vadd.f32 %v761, %v2879
        %v2881 = vpop.f32.mrb[0].mxu0
        %v2882 = vpop.f32.mrb[0].mxu0
        %v2883 = vadd.f32 %v761, %v2882
        %v2884 = vpop.f32.mrb[0].mxu0
        %2885 = vmatprep.mubr.bf16.mxu0 0
        %2886 = vmatmul.mubr.bf16.gmra.mrb[0].mxu0 %v2072
        %v2887 = vpop.f32.mrb[0].mxu0
        %v2888 = vadd.f32 %v761, %v2887
        %v2889 = vpop.f32.mrb[0].mxu0
        %v2890 = vpop.f32.mrb[0].mxu0
        %v2891 = vadd.f32 %v761, %v2890
        %v2892 = vpop.f32.mrb[0].mxu0
        %2893 = vmatprep.mubr.bf16.mxu0 0
        %2894 = vmatmul.mubr.bf16.gmra.mrb[0].mxu0 %v2075
        %v2895 = vpop.f32.mrb[0].mxu0
        %v2896 = vadd.f32 %v761, %v2895
        %v2897 = vpop.f32.mrb[0].mxu0
        %v2898 = vpop.f32.mrb[0].mxu0
        %v2899 = vadd.f32 %v761, %v2898
        %v2900 = vpop.f32.mrb[0].mxu0
        %2901 = vmatprep.mubr.bf16.mxu0 0
        %2902 = vmatmul.mubr.bf16.gmra.mrb[0].mxu0 %v2078
        %v2903 = vpop.f32.mrb[0].mxu0
        %v2904 = vadd.f32 %v761, %v2903
        %v2905 = vpop.f32.mrb[0].mxu0
        %v2906 = vpop.f32.mrb[0].mxu0
        %v2907 = vadd.f32 %v761, %v2906
        %v2908 = vpop.f32.mrb[0].mxu0
        %2909 = vmatprep.mubr.bf16.mxu0 0
        %2910 = vmatmul.mubr.bf16.gmra.mrb[0].mxu0 %v2081
        %v2911 = vpop.f32.mrb[0].mxu0
        %v2912 = vadd.f32 %v761, %v2911
        %v2913 = vpop.f32.mrb[0].mxu0
        %v2914 = vpop.f32.mrb[0].mxu0
        %v2915 = vadd.f32 %v761, %v2914
        %v2916 = vpop.f32.mrb[0].mxu0
        %2917 = vmatprep.mubr.bf16.mxu0 0
        %2918 = vmatmul.mubr.bf16.gmra.mrb[0].mxu0 %v2084
        %v2919 = vpop.f32.mrb[0].mxu0
        %v2920 = vadd.f32 %v761, %v2919
        %v2921 = vpop.f32.mrb[0].mxu0
        %v2922 = vpop.f32.mrb[0].mxu0
        %v2923 = vadd.f32 %v761, %v2922
        %v2924 = vpop.f32.mrb[0].mxu0
        %2925 = vmatprep.mubr.bf16.mxu0 0
        %2926 = vmatmul.mubr.bf16.gmra.mrb[0].mxu0 %v2087
        %v2927 = vpop.f32.mrb[0].mxu0
        %v2928 = vadd.f32 %v761, %v2927
        %v2929 = vpop.f32.mrb[0].mxu0
        %v2930 = vpop.f32.mrb[0].mxu0
        %v2931 = vadd.f32 %v761, %v2930
        %v2932 = vpop.f32.mrb[0].mxu0
        %2933 = vmatprep.mubr.bf16.mxu0 0
        %2934 = vmatmul.mubr.bf16.gmra.mrb[0].mxu0 %v2090
        %v2935 = vpop.f32.mrb[0].mxu0
        %v2936 = vadd.f32 %v761, %v2935
        %v2937 = vpop.f32.mrb[0].mxu0
        %v2938 = vpop.f32.mrb[0].mxu0
        %v2939 = vadd.f32 %v761, %v2938
        %v2940 = vpop.f32.mrb[0].mxu0
        %2941 = vmatprep.mubr.bf16.mxu0 0
        %2942 = vmatmul.mubr.bf16.gmra.mrb[0].mxu0 %v2093
        %v2943 = vpop.f32.mrb[0].mxu0
        %v2944 = vadd.f32 %v761, %v2943
        %v2945 = vpop.f32.mrb[0].mxu0
        %v2946 = vpop.f32.mrb[0].mxu0
        %v2947 = vadd.f32 %v761, %v2946
        %v2948 = vpop.f32.mrb[0].mxu0
        %2949 = vmatprep.mubr.bf16.mxu0 0
        %2950 = vmatmul.mubr.bf16.gmra.mrb[0].mxu0 %v2096
        %v2951 = vpop.f32.mrb[0].mxu0
        %v2952 = vadd.f32 %v761, %v2951
        %v2953 = vpop.f32.mrb[0].mxu0
        %v2954 = vpop.f32.mrb[0].mxu0
        %v2955 = vadd.f32 %v761, %v2954
        %v2956 = vpop.f32.mrb[0].mxu0
        %2957 = vmatprep.mubr.bf16.mxu0 0
        %2958 = vmatmul.mubr.bf16.gmra.mrb[0].mxu0 %v2099
        %v2959 = vpop.f32.mrb[0].mxu0
        %v2960 = vadd.f32 %v761, %v2959
        %v2961 = vpop.f32.mrb[0].mxu0
        %v2962 = vpop.f32.mrb[0].mxu0
        %v2963 = vadd.f32 %v761, %v2962
        %v2964 = vpop.f32.mrb[0].mxu0
        %2965 = vmatprep.mubr.bf16.mxu0 0
        %2966 = vmatmul.mubr.bf16.gmra.mrb[0].mxu0 %v2102
        %v2967 = vpop.f32.mrb[0].mxu0
        %v2968 = vadd.f32 %v761, %v2967
        %v2969 = vpop.f32.mrb[0].mxu0
        %v2970 = vpop.f32.mrb[0].mxu0
        %v2971 = vadd.f32 %v761, %v2970
        %v2972 = vpop.f32.mrb[0].mxu0
        %2973 = vmatprep.mubr.bf16.mxu0 0
        %2974 = vmatmul.mubr.bf16.gmra.mrb[0].mxu0 %v2105
        %v2975 = vpop.f32.mrb[0].mxu0
        %v2976 = vadd.f32 %v761, %v2975
        %v2977 = vpop.f32.mrb[0].mxu0
        %v2978 = vpop.f32.mrb[0].mxu0
        %v2979 = vadd.f32 %v761, %v2978
        %v2980 = vpop.f32.mrb[0].mxu0
        %2981 = vmatprep.mubr.bf16.mxu0 0
        %2982 = vmatmul.mubr.bf16.gmra.mrb[0].mxu0 %v2108
        %v2983 = vpop.f32.mrb[0].mxu0
        %v2984 = vadd.f32 %v761, %v2983
        %v2985 = vpop.f32.mrb[0].mxu0
        %v2986 = vpop.f32.mrb[0].mxu0
        %v2987 = vadd.f32 %v761, %v2986
        %v2988 = vpop.f32.mrb[0].mxu0
        %2989 = vmatprep.mubr.bf16.mxu0 0
        %2990 = vmatmul.mubr.bf16.gmra.mrb[0].mxu0 %v2111
        %v2991 = vpop.f32.mrb[0].mxu0
        %v2992 = vadd.f32 %v761, %v2991
        %v2993 = vpop.f32.mrb[0].mxu0
        %v2994 = vpop.f32.mrb[0].mxu0
        %v2995 = vadd.f32 %v761, %v2994
        %v2996 = vpop.f32.mrb[0].mxu0
        %2997 = vmatprep.mubr.bf16.mxu0 0
        %2998 = vmatmul.mubr.bf16.gmra.mrb[0].mxu0 %v2114
        %v2999 = vpop.f32.mrb[0].mxu0
        %v3000 = vadd.f32 %v761, %v2999
        %v3001 = vpop.f32.mrb[0].mxu0
        %v3002 = vpop.f32.mrb[0].mxu0
        %v3003 = vadd.f32 %v761, %v3002
        %v3004 = vpop.f32.mrb[0].mxu0
        %3005 = vmatprep.mubr.bf16.mxu0 0
        %3006 = vmatmul.mubr.bf16.gmra.mrb[0].mxu0 %v2117
        %v3007 = vpop.f32.mrb[0].mxu0
        %v3008 = vadd.f32 %v761, %v3007
        %v3009 = vpop.f32.mrb[0].mxu0
        %v3010 = vpop.f32.mrb[0].mxu0
        %v3011 = vadd.f32 %v761, %v3010
        %v3012 = vpop.f32.mrb[0].mxu0
        %3013 = vmatprep.mubr.bf16.mxu0 0
        %3014 = vmatmul.mubr.bf16.gmra.mrb[0].mxu0 %v2120
        %v3015 = vpop.f32.mrb[0].mxu0
        %v3016 = vadd.f32 %v761, %v3015
        %v3017 = vpop.f32.mrb[0].mxu0
        %v3018 = vpop.f32.mrb[0].mxu0
        %v3019 = vadd.f32 %v761, %v3018
        %v3020 = vpop.f32.mrb[0].mxu0
        %3021 = vmatprep.mubr.bf16.mxu0 0
        %3022 = vmatmul.mubr.bf16.gmra.mrb[0].mxu0 %v2123
        %v3023 = vpop.f32.mrb[0].mxu0
        %v3024 = vadd.f32 %v761, %v3023
        %v3025 = vpop.f32.mrb[0].mxu0
        %v3026 = vpop.f32.mrb[0].mxu0
        %v3027 = vadd.f32 %v761, %v3026
        %v3028 = vpop.f32.mrb[0].mxu0
        %3029 = vmatprep.mubr.bf16.mxu0 0
        %3030 = vmatmul.mubr.bf16.gmra.mrb[0].mxu0 %v2126
        %v3031 = vpop.f32.mrb[0].mxu0
        %v3032 = vadd.f32 %v761, %v3031
        %v3033 = vpop.f32.mrb[0].mxu0
        %v3034 = vpop.f32.mrb[0].mxu0
        %v3035 = vadd.f32 %v761, %v3034
        %v3036 = vpop.f32.mrb[0].mxu0
        %3037 = vmatprep.mubr.bf16.mxu0 0
        %3038 = vmatmul.mubr.bf16.gmra.mrb[0].mxu0 %v2129
        %v3039 = vpop.f32.mrb[0].mxu0
        %v3040 = vadd.f32 %v761, %v3039
        %v3041 = vpop.f32.mrb[0].mxu0
        %v3042 = vpop.f32.mrb[0].mxu0
        %v3043 = vadd.f32 %v761, %v3042
        %v3044 = vpop.f32.mrb[0].mxu0
        %3045 = vmatprep.mubr.bf16.mxu0 0
        %3046 = vmatmul.mubr.bf16.gmra.mrb[0].mxu0 %v2132
        %v3047 = vpop.f32.mrb[0].mxu0
        %v3048 = vadd.f32 %v761, %v3047
        %v3049 = vpop.f32.mrb[0].mxu0
        %v3050 = vpop.f32.mrb[0].mxu0
        %v3051 = vadd.f32 %v761, %v3050
        %v3052 = vpop.f32.mrb[0].mxu0
        %3053 = vmatprep.mubr.bf16.mxu0 0
        %3054 = vmatmul.mubr.bf16.gmra.mrb[0].mxu0 %v2135
        %v3055 = vpop.f32.mrb[0].mxu0
        %v3056 = vadd.f32 %v761, %v3055
        %v3057 = vpop.f32.mrb[0].mxu0
        %v3058 = vpop.f32.mrb[0].mxu0
        %v3059 = vadd.f32 %v761, %v3058
        %v3060 = vpop.f32.mrb[0].mxu0
        %3061 = vmatprep.mubr.bf16.mxu0 0
        %3062 = vmatmul.mubr.bf16.gmra.mrb[0].mxu0 %v2138
        %v3063 = vpop.f32.mrb[0].mxu0
        %v3064 = vadd.f32 %v761, %v3063
        %v3065 = vpop.f32.mrb[0].mxu0
        %v3066 = vpop.f32.mrb[0].mxu0
        %v3067 = vadd.f32 %v761, %v3066
        %v3068 = vpop.f32.mrb[0].mxu0
        %3069 = vmatprep.mubr.bf16.mxu0 0
        %3070 = vmatmul.mubr.bf16.gmra.mrb[0].mxu0 %v2141
        %v3071 = vpop.f32.mrb[0].mxu0
        %v3072 = vadd.f32 %v761, %v3071
        %v3073 = vpop.f32.mrb[0].mxu0
        %v3074 = vpop.f32.mrb[0].mxu0
        %v3075 = vadd.f32 %v761, %v3074
        %v3076 = vpop.f32.mrb[0].mxu0
        %3077 = vmatprep.mubr.bf16.mxu0 0
        %3078 = vmatmul.mubr.bf16.gmra.mrb[0].mxu0 %v2144
        %v3079 = vpop.f32.mrb[0].mxu0
        %v3080 = vadd.f32 %v761, %v3079
        %v3081 = vpop.f32.mrb[0].mxu0
        %v3082 = vpop.f32.mrb[0].mxu0
        %v3083 = vadd.f32 %v761, %v3082
        %v3084 = vpop.f32.mrb[0].mxu0
        %3085 = vmatprep.mubr.bf16.mxu0 0
        %3086 = vmatmul.mubr.bf16.gmra.mrb[0].mxu0 %v2147
        %v3087 = vpop.f32.mrb[0].mxu0
        %v3088 = vadd.f32 %v761, %v3087
        %v3089 = vpop.f32.mrb[0].mxu0
        %v3090 = vpop.f32.mrb[0].mxu0
        %v3091 = vadd.f32 %v761, %v3090
        %v3092 = vpop.f32.mrb[0].mxu0
        %3093 = vmatprep.mubr.bf16.mxu0 0
        %3094 = vmatmul.mubr.bf16.gmra.mrb[0].mxu0 %v2150
        %v3095 = vpop.f32.mrb[0].mxu0
        %v3096 = vadd.f32 %v761, %v3095
        %v3097 = vpop.f32.mrb[0].mxu0
        %v3098 = vpop.f32.mrb[0].mxu0
        %v3099 = vadd.f32 %v761, %v3098
        %v3100 = vpop.f32.mrb[0].mxu0
        %3101 = vmatprep.mubr.bf16.mxu0 0
        %3102 = vmatmul.mubr.bf16.gmra.mrb[0].mxu0 %v2153
        %v3103 = vpop.f32.mrb[0].mxu0
        %v3104 = vadd.f32 %v761, %v3103
        %v3105 = vpop.f32.mrb[0].mxu0
        %v3106 = vpop.f32.mrb[0].mxu0
        %v3107 = vadd.f32 %v761, %v3106
        %v3108 = vpop.f32.mrb[0].mxu0
        %3109 = vmatprep.mubr.bf16.mxu0 0
        %3110 = vmatmul.mubr.bf16.gmra.mrb[0].mxu0 %v2156
        %v3111 = vpop.f32.mrb[0].mxu0
        %v3112 = vadd.f32 %v761, %v3111
        %v3113 = vpop.f32.mrb[0].mxu0
        %v3114 = vpop.f32.mrb[0].mxu0
        %v3115 = vadd.f32 %v761, %v3114
        %v3116 = vpop.f32.mrb[0].mxu0
        %3117 = vmatprep.mubr.bf16.mxu0 0
        %3118 = vmatmul.mubr.bf16.gmra.mrb[0].mxu0 %v2159
        %v3119 = vpop.f32.mrb[0].mxu0
        %v3120 = vadd.f32 %v761, %v3119
        %v3121 = vpop.f32.mrb[0].mxu0
        %v3122 = vpop.f32.mrb[0].mxu0
        %v3123 = vadd.f32 %v761, %v3122
        %v3124 = vpop.f32.mrb[0].mxu0
        %3125 = vmatprep.mubr.bf16.mxu0 0
        %3126 = vmatmul.mubr.bf16.gmra.mrb[0].mxu0 %v2162
        %v3127 = vpop.f32.mrb[0].mxu0
        %v3128 = vadd.f32 %v761, %v3127
        %v3129 = vpop.f32.mrb[0].mxu0
        %v3130 = vpop.f32.mrb[0].mxu0
        %v3131 = vadd.f32 %v761, %v3130
        %v3132 = vpop.f32.mrb[0].mxu0
        %3133 = vmatprep.mubr.bf16.mxu0 0
        %3134 = vmatmul.mubr.bf16.gmra.mrb[0].mxu0 %v2165
        %v3135 = vpop.f32.mrb[0].mxu0
        %v3136 = vadd.f32 %v761, %v3135
        %v3137 = vpop.f32.mrb[0].mxu0
        %v3138 = vpop.f32.mrb[0].mxu0
        %v3139 = vadd.f32 %v761, %v3138
        %v3140 = vpop.f32.mrb[0].mxu0
        %3141 = vmatprep.mubr.bf16.mxu0 0
        %3142 = vmatmul.mubr.bf16.gmra.mrb[0].mxu0 %v2168
        %v3143 = vpop.f32.mrb[0].mxu0
        %v3144 = vadd.f32 %v761, %v3143
        %v3145 = vpop.f32.mrb[0].mxu0
        %v3146 = vpop.f32.mrb[0].mxu0
        %v3147 = vadd.f32 %v761, %v3146
        %v3148 = vpop.f32.mrb[0].mxu0
        %3149 = vmatprep.mubr.bf16.mxu0 0
        %3150 = vmatmul.mubr.bf16.gmra.mrb[0].mxu0 %v2171
        %v3151 = vpop.f32.mrb[0].mxu0
        %v3152 = vadd.f32 %v761, %v3151
        %v3153 = vpop.f32.mrb[0].mxu0
        %v3154 = vpop.f32.mrb[0].mxu0
        %v3155 = vadd.f32 %v761, %v3154
        %v3156 = vpop.f32.mrb[0].mxu0
        %3157 = vmatprep.mubr.bf16.mxu0 0
        %3158 = vmatmul.mubr.bf16.gmra.mrb[0].mxu0 %v2174
        %v3159 = vpop.f32.mrb[0].mxu0
        %v3160 = vadd.f32 %v761, %v3159
        %v3161 = vpop.f32.mrb[0].mxu0
        %v3162 = vpop.f32.mrb[0].mxu0
        %v3163 = vadd.f32 %v761, %v3162
        %v3164 = vpop.f32.mrb[0].mxu0
        %3165 = vmatprep.mubr.bf16.mxu0 0
        %3166 = vmatmul.mubr.bf16.gmra.mrb[0].mxu0 %v2177
        %v3167 = vpop.f32.mrb[0].mxu0
        %v3168 = vadd.f32 %v761, %v3167
        %v3169 = vpop.f32.mrb[0].mxu0
        %v3170 = vpop.f32.mrb[0].mxu0
        %v3171 = vadd.f32 %v761, %v3170
        %v3172 = vpop.f32.mrb[0].mxu0
        %3173 = vmatprep.mubr.bf16.mxu0 0
        %3174 = vmatmul.mubr.bf16.gmra.mrb[0].mxu0 %v2180
        %v3175 = vpop.f32.mrb[0].mxu0
        %v3176 = vadd.f32 %v761, %v3175
        %v3177 = vpop.f32.mrb[0].mxu0
        %v3178 = vpop.f32.mrb[0].mxu0
        %v3179 = vadd.f32 %v761, %v3178
        %v3180 = vpop.f32.mrb[0].mxu0
        %3181 = vmatprep.mubr.bf16.mxu0 0
        %3182 = vmatmul.mubr.bf16.gmra.mrb[0].mxu0 %v2183
        %v3183 = vpop.f32.mrb[0].mxu0
        %v3184 = vadd.f32 %v761, %v3183
        %v3185 = vpop.f32.mrb[0].mxu0
        %v3186 = vpop.f32.mrb[0].mxu0
        %v3187 = vadd.f32 %v761, %v3186
        %v3188 = vpop.f32.mrb[0].mxu0
        %3189 = vmatprep.mubr.bf16.mxu0 0
        %3190 = vmatmul.mubr.bf16.gmra.mrb[0].mxu0 %v2186
        %v3191 = vpop.f32.mrb[0].mxu0
        %v3192 = vadd.f32 %v761, %v3191
        %v3193 = vpop.f32.mrb[0].mxu0
        %v3194 = vpop.f32.mrb[0].mxu0
        %v3195 = vadd.f32 %v761, %v3194
        %v3196 = vpop.f32.mrb[0].mxu0
        %3197 = vmatprep.mubr.bf16.mxu0 0
        %3198 = vmatmul.mubr.bf16.gmra.mrb[0].mxu0 %v2189
        %v3199 = vpop.f32.mrb[0].mxu0
        %v3200 = vadd.f32 %v761, %v3199
        %v3201 = vpop.f32.mrb[0].mxu0
        %v3202 = vpop.f32.mrb[0].mxu0
        %v3203 = vadd.f32 %v761, %v3202
        %v3204 = vpop.f32.mrb[0].mxu0
        %3205 = vmatprep.mubr.bf16.mxu0 0
        %3206 = vmatmul.mubr.bf16.gmra.mrb[0].mxu0 %v2192
        %v3207 = vpop.f32.mrb[0].mxu0
        %v3208 = vadd.f32 %v761, %v3207
        %v3209 = vpop.f32.mrb[0].mxu0
        %v3210 = vpop.f32.mrb[0].mxu0
        %v3211 = vadd.f32 %v761, %v3210
        %v3212 = vpop.f32.mrb[0].mxu0
        %3213 = vmatprep.mubr.bf16.mxu0 0
        %3214 = vmatmul.mubr.bf16.gmra.mrb[0].mxu0 %v2195
        %v3215 = vpop.f32.mrb[0].mxu0
        %v3216 = vadd.f32 %v761, %v3215
        %v3217 = vpop.f32.mrb[0].mxu0
        %v3218 = vpop.f32.mrb[0].mxu0
        %v3219 = vadd.f32 %v761, %v3218
        %v3220 = vpop.f32.mrb[0].mxu0
        %3221 = vmatprep.mubr.bf16.mxu0 0
        %3222 = vmatmul.mubr.bf16.gmra.mrb[0].mxu0 %v2198
        %v3223 = vpop.f32.mrb[0].mxu0
        %v3224 = vadd.f32 %v761, %v3223
        %v3225 = vpop.f32.mrb[0].mxu0
        %v3226 = vpop.f32.mrb[0].mxu0
        %v3227 = vadd.f32 %v761, %v3226
        %v3228 = vpop.f32.mrb[0].mxu0
        %3229 = vmatprep.mubr.bf16.mxu0 0
        %3230 = vmatmul.mubr.bf16.gmra.mrb[0].mxu0 %v2201
        %v3231 = vpop.f32.mrb[0].mxu0
        %v3232 = vadd.f32 %v761, %v3231
        %v3233 = vpop.f32.mrb[0].mxu0
        %v3234 = vpop.f32.mrb[0].mxu0
        %v3235 = vadd.f32 %v761, %v3234
        %v3236 = vpop.f32.mrb[0].mxu0
        %3237 = vmatprep.mubr.bf16.mxu0 0
        %3238 = vmatmul.mubr.bf16.gmra.mrb[0].mxu0 %v2204
        %v3239 = vpop.f32.mrb[0].mxu0
        %v3240 = vadd.f32 %v761, %v3239
        %v3241 = vpop.f32.mrb[0].mxu0
        %v3242 = vpop.f32.mrb[0].mxu0
        %v3243 = vadd.f32 %v761, %v3242
        %v3244 = vpop.f32.mrb[0].mxu0
        %3245 = vmatprep.mubr.bf16.mxu0 0
        %3246 = vmatmul.mubr.bf16.gmra.mrb[0].mxu0 %v2207
        %v3247 = vpop.f32.mrb[0].mxu0
        %v3248 = vadd.f32 %v761, %v3247
        %v3249 = vpop.f32.mrb[0].mxu0
        %v3250 = vpop.f32.mrb[0].mxu0
        %v3251 = vadd.f32 %v761, %v3250
        %v3252 = vpop.f32.mrb[0].mxu0
        %3253 = vmatprep.mubr.bf16.mxu0 0
        %3254 = vmatmul.mubr.bf16.gmra.mrb[0].mxu0 %v2210
        %v3255 = vpop.f32.mrb[0].mxu0
        %v3256 = vadd.f32 %v761, %v3255
        %v3257 = vpop.f32.mrb[0].mxu0
        %v3258 = vpop.f32.mrb[0].mxu0
        %v3259 = vadd.f32 %v761, %v3258
        %v3260 = vpop.f32.mrb[0].mxu0
        %3261 = vmatprep.mubr.bf16.mxu0 0
        %3262 = vmatmul.mubr.bf16.gmra.mrb[0].mxu0 %v2213
        %v3263 = vpop.f32.mrb[0].mxu0
        %v3264 = vadd.f32 %v761, %v3263
        %v3265 = vpop.f32.mrb[0].mxu0
        %v3266 = vpop.f32.mrb[0].mxu0
        %v3267 = vadd.f32 %v761, %v3266
        %v3268 = vpop.f32.mrb[0].mxu0
        %3269 = vmatprep.mubr.bf16.mxu0 0
        %3270 = vmatmul.mubr.bf16.gmra.mrb[0].mxu0 %v2216
        %v3271 = vpop.f32.mrb[0].mxu0
        %v3272 = vadd.f32 %v761, %v3271
        %v3273 = vpop.f32.mrb[0].mxu0
        %v3274 = vpop.f32.mrb[0].mxu0
        %v3275 = vadd.f32 %v761, %v3274
        %v3276 = vpop.f32.mrb[0].mxu0
        %3277 = vmatprep.mubr.bf16.mxu0 0
        %3278 = vmatmul.mubr.bf16.gmra.mrb[0].mxu0 %v2219
        %v3279 = vpop.f32.mrb[0].mxu0
        %v3280 = vadd.f32 %v761, %v3279
        %v3281 = vpop.f32.mrb[0].mxu0
        %v3282 = vpop.f32.mrb[0].mxu0
        %v3283 = vadd.f32 %v761, %v3282
        %v3284 = vpop.f32.mrb[0].mxu0
        %3285 = vmatprep.mubr.bf16.mxu0 0
        %3286 = vmatmul.mubr.bf16.gmra.mrb[0].mxu0 %v2222
        %v3287 = vpop.f32.mrb[0].mxu0
        %v3288 = vadd.f32 %v761, %v3287
        %v3289 = vpop.f32.mrb[0].mxu0
        %v3290 = vpop.f32.mrb[0].mxu0
        %v3291 = vadd.f32 %v761, %v3290
        %v3292 = vpop.f32.mrb[0].mxu0
        %3293 = vmatprep.mubr.bf16.mxu0 0
        %3294 = vmatmul.mubr.bf16.gmra.mrb[0].mxu0 %v2225
        %v3295 = vpop.f32.mrb[0].mxu0
        %v3296 = vadd.f32 %v761, %v3295
        %v3297 = vpop.f32.mrb[0].mxu0
        %v3298 = vpop.f32.mrb[0].mxu0
        %v3299 = vadd.f32 %v761, %v3298
        %v3300 = vpop.f32.mrb[0].mxu0
        %3301 = vmatprep.mubr.bf16.mxu0 0
        %3302 = vmatmul.mubr.bf16.gmra.mrb[0].mxu0 %v2228
        %v3303 = vpop.f32.mrb[0].mxu0
        %v3304 = vadd.f32 %v761, %v3303
        %v3305 = vpop.f32.mrb[0].mxu0
        %v3306 = vpop.f32.mrb[0].mxu0
        %v3307 = vadd.f32 %v761, %v3306
        %v3308 = vpop.f32.mrb[0].mxu0
        %3309 = vmatprep.mubr.bf16.mxu0 0
        %3310 = vmatmul.mubr.bf16.gmra.mrb[0].mxu0 %v2231
        %v3311 = vpop.f32.mrb[0].mxu0
        %v3312 = vadd.f32 %v761, %v3311
        %v3313 = vpop.f32.mrb[0].mxu0
        %v3314 = vpop.f32.mrb[0].mxu0
        %v3315 = vadd.f32 %v761, %v3314
        %v3316 = vpop.f32.mrb[0].mxu0
        %3317 = vmatprep.mubr.bf16.mxu0 0
        %3318 = vmatmul.mubr.bf16.gmra.mrb[0].mxu0 %v2234
        %v3319 = vpop.f32.mrb[0].mxu0
        %v3320 = vadd.f32 %v761, %v3319
        %v3321 = vpop.f32.mrb[0].mxu0
        %v3322 = vpop.f32.mrb[0].mxu0
        %v3323 = vadd.f32 %v761, %v3322
        %v3324 = vpop.f32.mrb[0].mxu0
        %3325 = vmatprep.mubr.bf16.mxu0 0
        %3326 = vmatmul.mubr.bf16.gmra.mrb[0].mxu0 %v2237
        %v3327 = vpop.f32.mrb[0].mxu0
        %v3328 = vadd.f32 %v761, %v3327
        %v3329 = vpop.f32.mrb[0].mxu0
        %v3330 = vpop.f32.mrb[0].mxu0
        %v3331 = vadd.f32 %v761, %v3330
        %v3332 = vpop.f32.mrb[0].mxu0
        %3333 = vmatprep.mubr.bf16.mxu0 0
        %3334 = vmatmul.mubr.bf16.gmra.mrb[0].mxu0 %v2240
        %v3335 = vpop.f32.mrb[0].mxu0
        %v3336 = vadd.f32 %v761, %v3335
        %v3337 = vpop.f32.mrb[0].mxu0
        %v3338 = vpop.f32.mrb[0].mxu0
        %v3339 = vadd.f32 %v761, %v3338
        %v3340 = vpop.f32.mrb[0].mxu0
        %3341 = vmatprep.mubr.bf16.mxu0 0
        %3342 = vmatmul.mubr.bf16.gmra.mrb[0].mxu0 %v2243
        %v3343 = vpop.f32.mrb[0].mxu0
        %v3344 = vadd.f32 %v761, %v3343
        %v3345 = vpop.f32.mrb[0].mxu0
        %v3346 = vpop.f32.mrb[0].mxu0
        %v3347 = vadd.f32 %v761, %v3346
        %v3348 = vpop.f32.mrb[0].mxu0
        %3349 = vmatprep.mubr.bf16.mxu0 0
        %3350 = vmatmul.mubr.bf16.gmra.mrb[0].mxu0 %v2246
        %v3351 = vpop.f32.mrb[0].mxu0
        %v3352 = vadd.f32 %v761, %v3351
        %v3353 = vpop.f32.mrb[0].mxu0
        %v3354 = vpop.f32.mrb[0].mxu0
        %v3355 = vadd.f32 %v761, %v3354
        %v3356 = vpop.f32.mrb[0].mxu0
        %3357 = vmatprep.mubr.bf16.mxu0 0
        %3358 = vmatmul.mubr.bf16.gmra.mrb[0].mxu0 %v2249
        %v3359 = vpop.f32.mrb[0].mxu0
        %v3360 = vadd.f32 %v761, %v3359
        %v3361 = vpop.f32.mrb[0].mxu0
        %v3362 = vpop.f32.mrb[0].mxu0
        %v3363 = vadd.f32 %v761, %v3362
        %v3364 = vpop.f32.mrb[0].mxu0
        %3365 = vmatprep.mubr.bf16.mxu0 0
        %3366 = vmatmul.mubr.bf16.gmra.mrb[0].mxu0 %v2252
        %v3367 = vpop.f32.mrb[0].mxu0
        %v3368 = vadd.f32 %v761, %v3367
        %v3369 = vpop.f32.mrb[0].mxu0
        %v3370 = vpop.f32.mrb[0].mxu0
        %v3371 = vadd.f32 %v761, %v3370
        %v3372 = vpop.f32.mrb[0].mxu0
        %3373 = vmatprep.mubr.bf16.mxu0 0
        %3374 = vmatmul.mubr.bf16.gmra.mrb[0].mxu0 %v2255
        %v3375 = vpop.f32.mrb[0].mxu0
        %v3376 = vadd.f32 %v761, %v3375
        %v3377 = vpop.f32.mrb[0].mxu0
        %v3378 = vpop.f32.mrb[0].mxu0
        %v3379 = vadd.f32 %v761, %v3378
        %v3380 = vpop.f32.mrb[0].mxu0
        %3381 = vmatprep.mubr.bf16.mxu0 0
        %3382 = vmatmul.mubr.bf16.gmra.mrb[0].mxu0 %v2258
        %v3383 = vpop.f32.mrb[0].mxu0
        %v3384 = vadd.f32 %v761, %v3383
        %v3385 = vpop.f32.mrb[0].mxu0
        %v3386 = vpop.f32.mrb[0].mxu0
        %v3387 = vadd.f32 %v761, %v3386
        %v3388 = vpop.f32.mrb[0].mxu0
        %3389 = vmatprep.mubr.bf16.mxu0 0
        %3390 = vmatmul.mubr.bf16.gmra.mrb[0].mxu0 %v2261
        %v3391 = vpop.f32.mrb[0].mxu0
        %v3392 = vadd.f32 %v761, %v3391
        %v3393 = vpop.f32.mrb[0].mxu0
        %v3394 = vpop.f32.mrb[0].mxu0
        %v3395 = vadd.f32 %v761, %v3394
        %v3396 = vpop.f32.mrb[0].mxu0
        %3397 = vmatprep.mubr.bf16.mxu0 0
        %3398 = vmatmul.mubr.bf16.gmra.mrb[0].mxu0 %v2264
        %v3399 = vpop.f32.mrb[0].mxu0
        %v3400 = vadd.f32 %v761, %v3399
        %v3401 = vpop.f32.mrb[0].mxu0
        %v3402 = vpop.f32.mrb[0].mxu0
        %v3403 = vadd.f32 %v761, %v3402
        %v3404 = vpop.f32.mrb[0].mxu0
        %3405 = vmatprep.mubr.bf16.mxu0 0
        %3406 = vmatmul.mubr.bf16.gmra.mrb[0].mxu0 %v2267
        %v3407 = vpop.f32.mrb[0].mxu0
        %v3408 = vadd.f32 %v761, %v3407
        %v3409 = vpop.f32.mrb[0].mxu0
        %v3410 = vpop.f32.mrb[0].mxu0
        %v3411 = vadd.f32 %v761, %v3410
        %v3412 = vpop.f32.mrb[0].mxu0
        %3413 = vmatprep.mubr.bf16.mxu0 0
        %3414 = vmatmul.mubr.bf16.gmra.mrb[0].mxu0 %v2270
        %v3415 = vpop.f32.mrb[0].mxu0
        %v3416 = vadd.f32 %v761, %v3415
        %v3417 = vpop.f32.mrb[0].mxu0
        %v3418 = vpop.f32.mrb[0].mxu0
        %v3419 = vadd.f32 %v761, %v3418
        %v3420 = vpop.f32.mrb[0].mxu0
        %3421 = vmatprep.mubr.bf16.mxu0 0
        %3422 = vmatmul.mubr.bf16.gmra.mrb[0].mxu0 %v2273
        %v3423 = vpop.f32.mrb[0].mxu0
        %v3424 = vadd.f32 %v761, %v3423
        %v3425 = vpop.f32.mrb[0].mxu0
        %v3426 = vpop.f32.mrb[0].mxu0
        %v3427 = vadd.f32 %v761, %v3426
        %v3428 = vpop.f32.mrb[0].mxu0
        %3429 = vmatprep.mubr.bf16.mxu0 0
        %3430 = vmatmul.mubr.bf16.gmra.mrb[0].mxu0 %v2276
        %v3431 = vpop.f32.mrb[0].mxu0
        %v3432 = vadd.f32 %v761, %v3431
        %v3433 = vpop.f32.mrb[0].mxu0
        %v3434 = vpop.f32.mrb[0].mxu0
        %v3435 = vadd.f32 %v761, %v3434
        %v3436 = vpop.f32.mrb[0].mxu0
        %3437 = vmatprep.mubr.bf16.mxu0 0
        %3438 = vmatmul.mubr.bf16.gmra.mrb[0].mxu0 %v2279
        %v3439 = vpop.f32.mrb[0].mxu0
        %v3440 = vadd.f32 %v761, %v3439
        %v3441 = vpop.f32.mrb[0].mxu0
        %v3442 = vpop.f32.mrb[0].mxu0
        %v3443 = vadd.f32 %v761, %v3442
        %v3444 = vpop.f32.mrb[0].mxu0
        %3445 = vmatprep.mubr.bf16.mxu0 0
        %3446 = vmatmul.mubr.bf16.gmra.mrb[0].mxu0 %v2282
        %v3447 = vpop.f32.mrb[0].mxu0
        %v3448 = vadd.f32 %v761, %v3447
        %v3449 = vpop.f32.mrb[0].mxu0
        %v3450 = vpop.f32.mrb[0].mxu0
        %v3451 = vadd.f32 %v761, %v3450
        %v3452 = vpop.f32.mrb[0].mxu0
        %3453 = vmatprep.mubr.bf16.mxu0 0
        %3454 = vmatmul.mubr.bf16.gmra.mrb[0].mxu0 %v2285
        %v3455 = vpop.f32.mrb[0].mxu0
        %v3456 = vadd.f32 %v761, %v3455
        %v3457 = vpop.f32.mrb[0].mxu0
        %v3458 = vpop.f32.mrb[0].mxu0
        %v3459 = vadd.f32 %v761, %v3458
        %v3460 = vpop.f32.mrb[0].mxu0
        %3461 = vmatprep.mubr.bf16.mxu0 0
        %3462 = vmatmul.mubr.bf16.gmra.mrb[0].mxu0 %v2288
        %v3463 = vpop.f32.mrb[0].mxu0
        %v3464 = vadd.f32 %v761, %v3463
        %v3465 = vpop.f32.mrb[0].mxu0
        %v3466 = vpop.f32.mrb[0].mxu0
        %v3467 = vadd.f32 %v761, %v3466
        %v3468 = vpop.f32.mrb[0].mxu0
        %3469 = vmatprep.mubr.bf16.mxu0 0
        %3470 = vmatmul.mubr.bf16.gmra.mrb[0].mxu0 %v2291
        %v3471 = vpop.f32.mrb[0].mxu0
        %v3472 = vadd.f32 %v761, %v3471
        %v3473 = vpop.f32.mrb[0].mxu0
        %v3474 = vpop.f32.mrb[0].mxu0
        %v3475 = vadd.f32 %v761, %v3474
        %v3476 = vpop.f32.mrb[0].mxu0
        %3477 = vmatprep.mubr.bf16.mxu0 0
        %3478 = vmatmul.mubr.bf16.gmra.mrb[0].mxu0 %v2294
        %v3479 = vpop.f32.mrb[0].mxu0
        %v3480 = vadd.f32 %v761, %v3479
        %v3481 = vpop.f32.mrb[0].mxu0
        %v3482 = vpop.f32.mrb[0].mxu0
        %v3483 = vadd.f32 %v761, %v3482
        %v3484 = vpop.f32.mrb[0].mxu0
        %3485 = vmatprep.mubr.bf16.mxu0 0
        %3486 = vmatmul.mubr.bf16.gmra.mrb[0].mxu0 %v2297
        %v3487 = vpop.f32.mrb[0].mxu0
        %v3488 = vadd.f32 %v761, %v3487
        %v3489 = vpop.f32.mrb[0].mxu0
        %v3490 = vpop.f32.mrb[0].mxu0
        %v3491 = vadd.f32 %v761, %v3490
        %v3492 = vpop.f32.mrb[0].mxu0
        %3493 = vmatprep.mubr.bf16.mxu0 0
        %3494 = vmatmul.mubr.bf16.gmra.mrb[0].mxu0 %v2300
        %v3495 = vpop.f32.mrb[0].mxu0
        %v3496 = vadd.f32 %v761, %v3495
        %v3497 = vpop.f32.mrb[0].mxu0
        %v3498 = vpop.f32.mrb[0].mxu0
        %v3499 = vadd.f32 %v761, %v3498
        %v3500 = vpop.f32.mrb[0].mxu0
        %3501 = vmatprep.mubr.bf16.mxu0 0
        %3502 = vmatmul.mubr.bf16.gmra.mrb[0].mxu0 %v2303
        %v3503 = vpop.f32.mrb[0].mxu0
        %v3504 = vadd.f32 %v761, %v3503
        %v3505 = vpop.f32.mrb[0].mxu0
        %v3506 = vpop.f32.mrb[0].mxu0
        %v3507 = vadd.f32 %v761, %v3506
        %v3508 = vpop.f32.mrb[0].mxu0
        %3509 = vmatprep.mubr.bf16.mxu0 0
        %3510 = vmatmul.mubr.bf16.gmra.mrb[0].mxu0 %v2306
        %v3511 = vpop.f32.mrb[0].mxu0
        %v3512 = vadd.f32 %v761, %v3511
        %v3513 = vpop.f32.mrb[0].mxu0
        %v3514 = vpop.f32.mrb[0].mxu0
        %v3515 = vadd.f32 %v761, %v3514
        %v3516 = vpop.f32.mrb[0].mxu0
        %3517 = vmatprep.mubr.bf16.mxu0 0
        %3518 = vmatmul.mubr.bf16.gmra.mrb[0].mxu0 %v2309
        %v3519 = vpop.f32.mrb[0].mxu0
        %v3520 = vadd.f32 %v761, %v3519
        %v3521 = vpop.f32.mrb[0].mxu0
        %v3522 = vpop.f32.mrb[0].mxu0
        %v3523 = vadd.f32 %v761, %v3522
        %v3524 = vpop.f32.mrb[0].mxu0
        %3525 = vmatprep.mubr.bf16.mxu0 0
        %3526 = vmatmul.mubr.bf16.gmra.mrb[0].mxu0 %v2312
        %v3527 = vpop.f32.mrb[0].mxu0
        %v3528 = vadd.f32 %v761, %v3527
        %v3529 = vpop.f32.mrb[0].mxu0
        %v3530 = vpop.f32.mrb[0].mxu0
        %v3531 = vadd.f32 %v761, %v3530
        %v3532 = vpop.f32.mrb[0].mxu0
        %3533 = vmatprep.mubr.bf16.mxu0 0
        %3534 = vmatmul.mubr.bf16.gmra.mrb[0].mxu0 %v2315
        %v3535 = vpop.f32.mrb[0].mxu0
        %v3536 = vadd.f32 %v761, %v3535
        %v3537 = vpop.f32.mrb[0].mxu0
        %v3538 = vpop.f32.mrb[0].mxu0
        %v3539 = vadd.f32 %v761, %v3538
        %v3540 = vpop.f32.mrb[0].mxu0
        %3541 = vmatprep.mubr.bf16.mxu0 0
        %3542 = vmatmul.mubr.bf16.gmra.mrb[0].mxu0 %v2318
        %v3543 = vpop.f32.mrb[0].mxu0
        %v3544 = vadd.f32 %v761, %v3543
        %v3545 = vpop.f32.mrb[0].mxu0
        %v3546 = vpop.f32.mrb[0].mxu0
        %v3547 = vadd.f32 %v761, %v3546
        %v3548 = vpop.f32.mrb[0].mxu0
        %3549 = vmatprep.mubr.bf16.mxu0 0
        %3550 = vmatmul.mubr.bf16.gmra.mrb[0].mxu0 %v2321
        %v3551 = vpop.f32.mrb[0].mxu0
        %v3552 = vadd.f32 %v761, %v3551
        %v3553 = vpop.f32.mrb[0].mxu0
        %v3554 = vpop.f32.mrb[0].mxu0
        %v3555 = vadd.f32 %v761, %v3554
        %v3556 = vpop.f32.mrb[0].mxu0
        %3557 = vmatprep.mubr.bf16.mxu0 0
        %3558 = vmatmul.mubr.bf16.gmra.mrb[0].mxu0 %v2324
        %v3559 = vpop.f32.mrb[0].mxu0
        %v3560 = vadd.f32 %v761, %v3559
        %v3561 = vpop.f32.mrb[0].mxu0
        %v3562 = vpop.f32.mrb[0].mxu0
        %v3563 = vadd.f32 %v761, %v3562
        %v3564 = vpop.f32.mrb[0].mxu0
        %3565 = vmatprep.mubr.bf16.mxu0 0
        %3566 = vmatmul.mubr.bf16.gmra.mrb[0].mxu0 %v2327
        %v3567 = vpop.f32.mrb[0].mxu0
        %v3568 = vadd.f32 %v761, %v3567
        %v3569 = vpop.f32.mrb[0].mxu0
        %v3570 = vpop.f32.mrb[0].mxu0
        %v3571 = vadd.f32 %v761, %v3570
        %v3572 = vpop.f32.mrb[0].mxu0
        %3573 = vmatprep.mubr.bf16.mxu0 0
        %3574 = vmatmul.mubr.bf16.gmra.mrb[0].mxu0 %v2330
        %v3575 = vpop.f32.mrb[0].mxu0
        %v3576 = vadd.f32 %v761, %v3575
        %v3577 = vpop.f32.mrb[0].mxu0
        %v3578 = vpop.f32.mrb[0].mxu0
        %v3579 = vadd.f32 %v761, %v3578
        %v3580 = vpop.f32.mrb[0].mxu0
        %3581 = vmatprep.mubr.bf16.mxu0 0
        %3582 = vmatmul.mubr.bf16.gmra.mrb[0].mxu0 %v2333
        %v3583 = vpop.f32.mrb[0].mxu0
        %v3584 = vadd.f32 %v761, %v3583
        %v3585 = vpop.f32.mrb[0].mxu0
        %v3586 = vpop.f32.mrb[0].mxu0
        %v3587 = vadd.f32 %v761, %v3586
        %v3588 = vpop.f32.mrb[0].mxu0
        %3589 = vmatprep.mubr.bf16.mxu0 0
        %3590 = vmatmul.mubr.bf16.gmra.mrb[0].mxu0 %v2336
        %v3591 = vpop.f32.mrb[0].mxu0
        %v3592 = vadd.f32 %v761, %v3591
        %v3593 = vpop.f32.mrb[0].mxu0
        %v3594 = vpop.f32.mrb[0].mxu0
        %v3595 = vadd.f32 %v761, %v3594
        %v3596 = vpop.f32.mrb[0].mxu0
        %3597 = vmatprep.mubr.bf16.mxu0 0
        %3598 = vmatmul.mubr.bf16.gmra.mrb[0].mxu0 %v2339
        %v3599 = vpop.f32.mrb[0].mxu0
        %v3600 = vadd.f32 %v761, %v3599
        %v3601 = vpop.f32.mrb[0].mxu0
        %v3602 = vpop.f32.mrb[0].mxu0
        %v3603 = vadd.f32 %v761, %v3602
        %v3604 = vpop.f32.mrb[0].mxu0
        %3605 = vmatprep.mubr.bf16.mxu0 0
        %3606 = vmatmul.mubr.bf16.gmra.mrb[0].mxu0 %v2342
        %v3607 = vpop.f32.mrb[0].mxu0
        %v3608 = vadd.f32 %v761, %v3607
        %v3609 = vpop.f32.mrb[0].mxu0
        %v3610 = vpop.f32.mrb[0].mxu0
        %v3611 = vadd.f32 %v761, %v3610
        %v3612 = vpop.f32.mrb[0].mxu0
        %3613 = vmatprep.mubr.bf16.mxu0 0
        %3614 = vmatmul.mubr.bf16.gmra.mrb[0].mxu0 %v2345
        %v3615 = vpop.f32.mrb[0].mxu0
        %v3616 = vadd.f32 %v761, %v3615
        %v3617 = vpop.f32.mrb[0].mxu0
        %v3618 = vpop.f32.mrb[0].mxu0
        %v3619 = vadd.f32 %v761, %v3618
        %v3620 = vpop.f32.mrb[0].mxu0
        %3621 = vmatprep.mubr.bf16.mxu0 0
        %3622 = vmatmul.mubr.bf16.gmra.mrb[0].mxu0 %v2348
        %v3623 = vpop.f32.mrb[0].mxu0
        %v3624 = vadd.f32 %v761, %v3623
        %v3625 = vpop.f32.mrb[0].mxu0
        %v3626 = vpop.f32.mrb[0].mxu0
        %v3627 = vadd.f32 %v761, %v3626
        %v3628 = vpop.f32.mrb[0].mxu0
        %3629 = vmatprep.mubr.bf16.mxu0 0
        %3630 = vmatmul.mubr.bf16.gmra.mrb[0].mxu0 %v2351
        %v3631 = vpop.f32.mrb[0].mxu0
        %v3632 = vadd.f32 %v761, %v3631
        %v3633 = vpop.f32.mrb[0].mxu0
        %v3634 = vpop.f32.mrb[0].mxu0
        %v3635 = vadd.f32 %v761, %v3634
        %v3636 = vpop.f32.mrb[0].mxu0
        %3637 = vmatprep.mubr.bf16.mxu0 0
        %3638 = vmatmul.mubr.bf16.gmra.mrb[0].mxu0 %v2354
        %v3639 = vpop.f32.mrb[0].mxu0
        %v3640 = vadd.f32 %v761, %v3639
        %v3641 = vpop.f32.mrb[0].mxu0
        %v3642 = vpop.f32.mrb[0].mxu0
        %v3643 = vadd.f32 %v761, %v3642
        %v3644 = vpop.f32.mrb[0].mxu0
        %3645 = vmatprep.mubr.bf16.mxu0 0
        %3646 = vmatmul.mubr.bf16.gmra.mrb[0].mxu0 %v2357
        %v3647 = vpop.f32.mrb[0].mxu0
        %v3648 = vadd.f32 %v761, %v3647
        %v3649 = vpop.f32.mrb[0].mxu0
        %v3650 = vpop.f32.mrb[0].mxu0
        %v3651 = vadd.f32 %v761, %v3650
        %v3652 = vpop.f32.mrb[0].mxu0
        %3653 = vmatprep.mubr.bf16.mxu0 0
        %3654 = vmatmul.mubr.bf16.gmra.mrb[0].mxu0 %v2360
        %v3655 = vpop.f32.mrb[0].mxu0
        %v3656 = vadd.f32 %v761, %v3655
        %v3657 = vpop.f32.mrb[0].mxu0
        %v3658 = vpop.f32.mrb[0].mxu0
        %v3659 = vadd.f32 %v761, %v3658
        %v3660 = vpop.f32.mrb[0].mxu0
        %3661 = vmatprep.mubr.bf16.mxu0 0
        %3662 = vmatmul.mubr.bf16.gmra.mrb[0].mxu0 %v2363
        %v3663 = vpop.f32.mrb[0].mxu0
        %v3664 = vadd.f32 %v761, %v3663
        %v3665 = vpop.f32.mrb[0].mxu0
        %v3666 = vpop.f32.mrb[0].mxu0
        %v3667 = vadd.f32 %v761, %v3666
        %v3668 = vpop.f32.mrb[0].mxu0
        %3669 = vmatprep.mubr.bf16.mxu0 0
        %3670 = vmatmul.mubr.bf16.gmra.mrb[0].mxu0 %v2366
        %v3671 = vpop.f32.mrb[0].mxu0
        %v3672 = vadd.f32 %v761, %v3671
        %v3673 = vpop.f32.mrb[0].mxu0
        %v3674 = vpop.f32.mrb[0].mxu0
        %v3675 = vadd.f32 %v761, %v3674
        %v3676 = vpop.f32.mrb[0].mxu0
        %3677 = vmatprep.mubr.bf16.mxu0 0
        %3678 = vmatmul.mubr.bf16.gmra.mrb[0].mxu0 %v2369
        %v3679 = vpop.f32.mrb[0].mxu0
        %v3680 = vadd.f32 %v761, %v3679
        %v3681 = vpop.f32.mrb[0].mxu0
        %v3682 = vpop.f32.mrb[0].mxu0
        %v3683 = vadd.f32 %v761, %v3682
        %v3684 = vpop.f32.mrb[0].mxu0
        %3685 = vmatprep.mubr.bf16.mxu0 0
        %3686 = vmatmul.mubr.bf16.gmra.mrb[0].mxu0 %v2372
        %v3687 = vpop.f32.mrb[0].mxu0
        %v3688 = vadd.f32 %v761, %v3687
        %v3689 = vpop.f32.mrb[0].mxu0
        %v3690 = vpop.f32.mrb[0].mxu0
        %v3691 = vadd.f32 %v761, %v3690
        %v3692 = vpop.f32.mrb[0].mxu0
        %3693 = vmatprep.mubr.bf16.mxu0 0
        %3694 = vmatmul.mubr.bf16.gmra.mrb[0].mxu0 %v2375
        %v3695 = vpop.f32.mrb[0].mxu0
        %v3696 = vadd.f32 %v761, %v3695
        %v3697 = vpop.f32.mrb[0].mxu0
        %v3698 = vpop.f32.mrb[0].mxu0
        %v3699 = vadd.f32 %v761, %v3698
        %v3700 = vpop.f32.mrb[0].mxu0
        %3701 = vmatprep.mubr.bf16.mxu0 0
        %3702 = vmatmul.mubr.bf16.gmra.mrb[0].mxu0 %v2378
        %v3703 = vpop.f32.mrb[0].mxu0
        %v3704 = vadd.f32 %v761, %v3703
        %v3705 = vpop.f32.mrb[0].mxu0
        %v3706 = vpop.f32.mrb[0].mxu0
        %v3707 = vadd.f32 %v761, %v3706
        %v3708 = vpop.f32.mrb[0].mxu0
        %3709 = vmatprep.mubr.bf16.mxu0 0
        %3710 = vmatmul.mubr.bf16.gmra.mrb[0].mxu0 %v2381
        %v3711 = vpop.f32.mrb[0].mxu0
        %v3712 = vadd.f32 %v761, %v3711
        %v3713 = vpop.f32.mrb[0].mxu0
        %v3714 = vpop.f32.mrb[0].mxu0
        %v3715 = vadd.f32 %v761, %v3714
        %v3716 = vpop.f32.mrb[0].mxu0
        %3717 = vmatprep.mubr.bf16.mxu0 0
        %3718 = vmatmul.mubr.bf16.gmra.mrb[0].mxu0 %v2384
        %v3719 = vpop.f32.mrb[0].mxu0
        %v3720 = vadd.f32 %v761, %v3719
        %v3721 = vpop.f32.mrb[0].mxu0
        %v3722 = vpop.f32.mrb[0].mxu0
        %v3723 = vadd.f32 %v761, %v3722
        %v3724 = vpop.f32.mrb[0].mxu0
        %3725 = vmatprep.mubr.bf16.mxu0 0
        %3726 = vmatmul.mubr.bf16.gmra.mrb[0].mxu0 %v2387
        %v3727 = vpop.f32.mrb[0].mxu0
        %v3728 = vadd.f32 %v761, %v3727
        %v3729 = vpop.f32.mrb[0].mxu0
        %v3730 = vpop.f32.mrb[0].mxu0
        %v3731 = vadd.f32 %v761, %v3730
        %v3732 = vpop.f32.mrb[0].mxu0
        %3733 = vmatprep.mubr.bf16.mxu0 0
        %3734 = vmatmul.mubr.bf16.gmra.mrb[0].mxu0 %v2390
        %v3735 = vpop.f32.mrb[0].mxu0
        %v3736 = vadd.f32 %v761, %v3735
        %v3737 = vpop.f32.mrb[0].mxu0
        %v3738 = vpop.f32.mrb[0].mxu0
        %v3739 = vadd.f32 %v761, %v3738
        %v3740 = vpop.f32.mrb[0].mxu0
        %3741 = vmatprep.mubr.bf16.mxu0 0
        %3742 = vmatmul.mubr.bf16.gmra.mrb[0].mxu0 %v2393
        %v3743 = vpop.f32.mrb[0].mxu0
        %v3744 = vadd.f32 %v761, %v3743
        %v3745 = vpop.f32.mrb[0].mxu0
        %v3746 = vpop.f32.mrb[0].mxu0
        %v3747 = vadd.f32 %v761, %v3746
        %v3748 = vpop.f32.mrb[0].mxu0
        %3749 = vmatprep.mubr.bf16.mxu0 0
        %3750 = vmatmul.mubr.bf16.gmra.mrb[0].mxu0 %v2396
        %v3751 = vpop.f32.mrb[0].mxu0
        %v3752 = vadd.f32 %v761, %v3751
        %v3753 = vpop.f32.mrb[0].mxu0
        %v3754 = vpop.f32.mrb[0].mxu0
        %v3755 = vadd.f32 %v761, %v3754
        %v3756 = vpop.f32.mrb[0].mxu0
        %3757 = vmatprep.mubr.bf16.mxu0 0
        %3758 = vmatmul.mubr.bf16.gmra.mrb[0].mxu0 %v2399
        %v3759 = vpop.f32.mrb[0].mxu0
        %v3760 = vadd.f32 %v761, %v3759
        %v3761 = vpop.f32.mrb[0].mxu0
        %v3762 = vpop.f32.mrb[0].mxu0
        %v3763 = vadd.f32 %v761, %v3762
        %v3764 = vpop.f32.mrb[0].mxu0
        %3765 = vmatprep.mubr.bf16.mxu0 0
        %3766 = vmatmul.mubr.bf16.gmra.mrb[0].mxu0 %v2402
        %v3767 = vpop.f32.mrb[0].mxu0
        %v3768 = vadd.f32 %v761, %v3767
        %v3769 = vpop.f32.mrb[0].mxu0
        %v3770 = vpop.f32.mrb[0].mxu0
        %v3771 = vadd.f32 %v761, %v3770
        %v3772 = vpop.f32.mrb[0].mxu0
        %3773 = vmatprep.mubr.bf16.mxu0 0
        %3774 = vmatmul.mubr.bf16.gmra.mrb[0].mxu0 %v2405
        %v3775 = vpop.f32.mrb[0].mxu0
        %v3776 = vadd.f32 %v761, %v3775
        %v3777 = vpop.f32.mrb[0].mxu0
        %v3778 = vpop.f32.mrb[0].mxu0
        %v3779 = vadd.f32 %v761, %v3778
        %v3780 = vpop.f32.mrb[0].mxu0
        %3781 = vmatprep.mubr.bf16.mxu0 0
        %3782 = vmatmul.mubr.bf16.gmra.mrb[0].mxu0 %v2408
        %v3783 = vpop.f32.mrb[0].mxu0
        %v3784 = vadd.f32 %v761, %v3783
        %v3785 = vpop.f32.mrb[0].mxu0
        %v3786 = vpop.f32.mrb[0].mxu0
        %v3787 = vadd.f32 %v761, %v3786
        %v3788 = vpop.f32.mrb[0].mxu0
        %3789 = vmatprep.mubr.bf16.mxu0 0
        %3790 = vmatmul.mubr.bf16.gmra.mrb[0].mxu0 %v2411
        %v3791 = vpop.f32.mrb[0].mxu0
        %v3792 = vadd.f32 %v761, %v3791
        %v3793 = vpop.f32.mrb[0].mxu0
        %v3794 = vpop.f32.mrb[0].mxu0
        %v3795 = vadd.f32 %v761, %v3794
        %v3796 = vpop.f32.mrb[0].mxu0
        %3797 = vmatprep.mubr.bf16.mxu0 0
        %3798 = vmatmul.mubr.bf16.gmra.mrb[0].mxu0 %v2414
        %v3799 = vpop.f32.mrb[0].mxu0
        %v3800 = vadd.f32 %v761, %v3799
        %v3801 = vpop.f32.mrb[0].mxu0
        %v3802 = vpop.f32.mrb[0].mxu0
        %v3803 = vadd.f32 %v761, %v3802
        %v3804 = vpop.f32.mrb[0].mxu0
        %3805 = vmatprep.mubr.bf16.mxu0 0
        %3806 = vmatmul.mubr.bf16.gmra.mrb[0].mxu0 %v2417
        %v3807 = vpop.f32.mrb[0].mxu0
        %v3808 = vadd.f32 %v761, %v3807
        %v3809 = vpop.f32.mrb[0].mxu0
        %v3810 = vpop.f32.mrb[0].mxu0
        %v3811 = vadd.f32 %v761, %v3810
        %v3812 = vpop.f32.mrb[0].mxu0
        %3813 = vmatprep.mubr.bf16.mxu0 0
        %3814 = vmatmul.mubr.bf16.gmra.mrb[0].mxu0 %v2420
        %v3815 = vpop.f32.mrb[0].mxu0
        %v3816 = vadd.f32 %v761, %v3815
        %v3817 = vpop.f32.mrb[0].mxu0
        %v3818 = vpop.f32.mrb[0].mxu0
        %v3819 = vadd.f32 %v761, %v3818
        %v3820 = vpop.f32.mrb[0].mxu0
        %3821 = vmatprep.mubr.bf16.mxu0 0
        %3822 = vmatmul.mubr.bf16.gmra.mrb[0].mxu0 %v2423
        %v3823 = vpop.f32.mrb[0].mxu0
        %v3824 = vadd.f32 %v761, %v3823
        %v3825 = vpop.f32.mrb[0].mxu0
        %v3826 = vpop.f32.mrb[0].mxu0
        %v3827 = vadd.f32 %v761, %v3826
        %v3828 = vpop.f32.mrb[0].mxu0
        %3829 = vmatprep.mubr.bf16.mxu0 0
        %3830 = vmatmul.mubr.bf16.gmra.mrb[0].mxu0 %v2426
        %v3831 = vpop.f32.mrb[0].mxu0
        %v3832 = vadd.f32 %v761, %v3831
        %v3833 = vpop.f32.mrb[0].mxu0
        %v3834 = vpop.f32.mrb[0].mxu0
        %v3835 = vadd.f32 %v761, %v3834
        %v3836 = vpop.f32.mrb[0].mxu0
        %3837 = vmatprep.mubr.bf16.mxu0 0
        %3838 = vmatmul.mubr.bf16.gmra.mrb[0].mxu0 %v2429
        %v3839 = vpop.f32.mrb[0].mxu0
        %v3840 = vadd.f32 %v761, %v3839
        %v3841 = vpop.f32.mrb[0].mxu0
        %v3842 = vpop.f32.mrb[0].mxu0
        %v3843 = vadd.f32 %v761, %v3842
        %v3844 = vpop.f32.mrb[0].mxu0
        %3845 = vmatprep.mubr.bf16.mxu0 0
        %3846 = vmatmul.mubr.bf16.gmra.mrb[0].mxu0 %v2432
        %v3847 = vpop.f32.mrb[0].mxu0
        %v3848 = vadd.f32 %v761, %v3847
        %v3849 = vpop.f32.mrb[0].mxu0
        %v3850 = vpop.f32.mrb[0].mxu0
        %v3851 = vadd.f32 %v761, %v3850
        %v3852 = vpop.f32.mrb[0].mxu0
        %3853 = vmatprep.mubr.bf16.mxu0 0
        %3854 = vmatmul.mubr.bf16.gmra.mrb[0].mxu0 %v2435
        %v3855 = vpop.f32.mrb[0].mxu0
        %v3856 = vadd.f32 %v761, %v3855
        %v3857 = vpop.f32.mrb[0].mxu0
        %v3858 = vpop.f32.mrb[0].mxu0
        %v3859 = vadd.f32 %v761, %v3858
        %v3860 = vpop.f32.mrb[0].mxu0
        %3861 = vmatprep.mubr.bf16.mxu0 0
        %3862 = vmatmul.mubr.bf16.gmra.mrb[0].mxu0 %v2438
        %v3863 = vpop.f32.mrb[0].mxu0
        %v3864 = vadd.f32 %v761, %v3863
        %v3865 = vpop.f32.mrb[0].mxu0
        %v3866 = vpop.f32.mrb[0].mxu0
        %v3867 = vadd.f32 %v761, %v3866
        %v3868 = vpop.f32.mrb[0].mxu0
        %3869 = vmatprep.mubr.bf16.mxu0 0
        %3870 = vmatmul.mubr.bf16.gmra.mrb[0].mxu0 %v2441
        %v3871 = vpop.f32.mrb[0].mxu0
        %v3872 = vadd.f32 %v761, %v3871
        %v3873 = vpop.f32.mrb[0].mxu0
        %v3874 = vpop.f32.mrb[0].mxu0
        %v3875 = vadd.f32 %v761, %v3874
        %v3876 = vpop.f32.mrb[0].mxu0
        %3877 = vmatprep.mubr.bf16.mxu0 0
        %3878 = vmatmul.mubr.bf16.gmra.mrb[0].mxu0 %v2444
        %v3879 = vpop.f32.mrb[0].mxu0
        %v3880 = vadd.f32 %v761, %v3879
        %v3881 = vpop.f32.mrb[0].mxu0
        %v3882 = vpop.f32.mrb[0].mxu0
        %v3883 = vadd.f32 %v761, %v3882
        %v3884 = vpop.f32.mrb[0].mxu0
        %3885 = vmatprep.mubr.bf16.mxu0 0
        %3886 = vmatmul.mubr.bf16.gmra.mrb[0].mxu0 %v2447
        %v3887 = vpop.f32.mrb[0].mxu0
        %v3888 = vadd.f32 %v761, %v3887
        %v3889 = vpop.f32.mrb[0].mxu0
        %v3890 = vpop.f32.mrb[0].mxu0
        %v3891 = vadd.f32 %v761, %v3890
        %v3892 = vpop.f32.mrb[0].mxu0
        %3893 = vmatprep.mubr.bf16.mxu0 0
        %3894 = vmatmul.mubr.bf16.gmra.mrb[0].mxu0 %v2450
        %v3895 = vpop.f32.mrb[0].mxu0
        %v3896 = vadd.f32 %v761, %v3895
        %v3897 = vpop.f32.mrb[0].mxu0
        %v3898 = vpop.f32.mrb[0].mxu0
        %v3899 = vadd.f32 %v761, %v3898
        %v3900 = vpop.f32.mrb[0].mxu0
        %3901 = vmatprep.mubr.bf16.mxu0 0
        %3902 = vmatmul.mubr.bf16.gmra.mrb[0].mxu0 %v2453
        %v3903 = vpop.f32.mrb[0].mxu0
        %v3904 = vadd.f32 %v761, %v3903
        %v3905 = vpop.f32.mrb[0].mxu0
        %v3906 = vpop.f32.mrb[0].mxu0
        %v3907 = vadd.f32 %v761, %v3906
        %v3908 = vpop.f32.mrb[0].mxu0
        %3909 = vmatprep.mubr.bf16.mxu0 0
        %3910 = vmatmul.mubr.bf16.gmra.mrb[0].mxu0 %v2456
        %v3911 = vpop.f32.mrb[0].mxu0
        %v3912 = vadd.f32 %v761, %v3911
        %v3913 = vpop.f32.mrb[0].mxu0
        %v3914 = vpop.f32.mrb[0].mxu0
        %v3915 = vadd.f32 %v761, %v3914
        %v3916 = vpop.f32.mrb[0].mxu0
        %3917 = vmatprep.mubr.bf16.mxu0 0
        %3918 = vmatmul.mubr.bf16.gmra.mrb[0].mxu0 %v2459
        %v3919 = vpop.f32.mrb[0].mxu0
        %v3920 = vadd.f32 %v761, %v3919
        %v3921 = vpop.f32.mrb[0].mxu0
        %v3922 = vpop.f32.mrb[0].mxu0
        %v3923 = vadd.f32 %v761, %v3922
        %v3924 = vpop.f32.mrb[0].mxu0
        %3925 = vmatprep.mubr.bf16.mxu0 0
        %3926 = vmatmul.mubr.bf16.gmra.mrb[0].mxu0 %v2462
        %v3927 = vpop.f32.mrb[0].mxu0
        %v3928 = vadd.f32 %v761, %v3927
        %v3929 = vpop.f32.mrb[0].mxu0
        %v3930 = vpop.f32.mrb[0].mxu0
        %v3931 = vadd.f32 %v761, %v3930
        %v3932 = vpop.f32.mrb[0].mxu0
        %3933 = vmatprep.mubr.bf16.mxu0 0
        %3934 = vmatmul.mubr.bf16.gmra.mrb[0].mxu0 %v2465
        %v3935 = vpop.f32.mrb[0].mxu0
        %v3936 = vadd.f32 %v761, %v3935
        %v3937 = vpop.f32.mrb[0].mxu0
        %v3938 = vpop.f32.mrb[0].mxu0
        %v3939 = vadd.f32 %v761, %v3938
        %v3940 = vpop.f32.mrb[0].mxu0
        %3941 = vmatprep.mubr.bf16.mxu0 0
        %3942 = vmatmul.mubr.bf16.gmra.mrb[0].mxu0 %v2468
        %v3943 = vpop.f32.mrb[0].mxu0
        %v3944 = vadd.f32 %v761, %v3943
        %v3945 = vpop.f32.mrb[0].mxu0
        %v3946 = vpop.f32.mrb[0].mxu0
        %v3947 = vadd.f32 %v761, %v3946
        %v3948 = vpop.f32.mrb[0].mxu0
        %3949 = vmatprep.mubr.bf16.mxu0 0
        %3950 = vmatmul.mubr.bf16.gmra.mrb[0].mxu0 %v2471
        %v3951 = vpop.f32.mrb[0].mxu0
        %v3952 = vadd.f32 %v761, %v3951
        %v3953 = vpop.f32.mrb[0].mxu0
        %v3954 = vpop.f32.mrb[0].mxu0
        %v3955 = vadd.f32 %v761, %v3954
        %v3956 = vpop.f32.mrb[0].mxu0
        %3957 = vmatprep.mubr.bf16.mxu0 0
        %3958 = vmatmul.mubr.bf16.gmra.mrb[0].mxu0 %v2474
        %v3959 = vpop.f32.mrb[0].mxu0
        %v3960 = vadd.f32 %v761, %v3959
        %v3961 = vpop.f32.mrb[0].mxu0
        %v3962 = vpop.f32.mrb[0].mxu0
        %v3963 = vadd.f32 %v761, %v3962
        %v3964 = vpop.f32.mrb[0].mxu0
        %3965 = vmatprep.mubr.bf16.mxu0 0
        %3966 = vmatmul.mubr.bf16.gmra.mrb[0].mxu0 %v2477
        %v3967 = vpop.f32.mrb[0].mxu0
        %v3968 = vadd.f32 %v761, %v3967
        %v3969 = vpop.f32.mrb[0].mxu0
        %v3970 = vpop.f32.mrb[0].mxu0
        %v3971 = vadd.f32 %v761, %v3970
        %v3972 = vpop.f32.mrb[0].mxu0
        %3973 = vmatprep.mubr.bf16.mxu0 0
        %3974 = vmatmul.mubr.bf16.gmra.mrb[0].mxu0 %v2480
        %v3975 = vpop.f32.mrb[0].mxu0
        %v3976 = vadd.f32 %v761, %v3975
        %v3977 = vpop.f32.mrb[0].mxu0
        %v3978 = vpop.f32.mrb[0].mxu0
        %v3979 = vadd.f32 %v761, %v3978
        %v3980 = vpop.f32.mrb[0].mxu0
        %3981 = vmatprep.mubr.bf16.mxu0 0
        %3982 = vmatmul.mubr.bf16.gmra.mrb[0].mxu0 %v2483
        %v3983 = vpop.f32.mrb[0].mxu0
        %v3984 = vadd.f32 %v761, %v3983
        %v3985 = vpop.f32.mrb[0].mxu0
        %v3986 = vpop.f32.mrb[0].mxu0
        %v3987 = vadd.f32 %v761, %v3986
        %v3988 = vpop.f32.mrb[0].mxu0
        %3989 = vmatprep.mubr.bf16.mxu0 0
        %3990 = vmatmul.mubr.bf16.gmra.mrb[0].mxu0 %v2486
        %v3991 = vpop.f32.mrb[0].mxu0
        %v3992 = vadd.f32 %v761, %v3991
        %v3993 = vpop.f32.mrb[0].mxu0
        %v3994 = vpop.f32.mrb[0].mxu0
        %v3995 = vadd.f32 %v761, %v3994
        %v3996 = vpop.f32.mrb[0].mxu0
        %3997 = vmatprep.mubr.bf16.mxu0 0
        %3998 = vmatmul.mubr.bf16.gmra.mrb[0].mxu0 %v2489
        %v3999 = vpop.f32.mrb[0].mxu0
        %v4000 = vadd.f32 %v761, %v3999
        %v4001 = vpop.f32.mrb[0].mxu0
        %v4002 = vpop.f32.mrb[0].mxu0
        %v4003 = vadd.f32 %v761, %v4002
        %v4004 = vpop.f32.mrb[0].mxu0
        %4005 = vmatprep.mubr.bf16.mxu0 0
        %4006 = vmatmul.mubr.bf16.gmra.mrb[0].mxu0 %v2492
        %v4007 = vpop.f32.mrb[0].mxu0
        %v4008 = vadd.f32 %v761, %v4007
        %v4009 = vpop.f32.mrb[0].mxu0
        %v4010 = vpop.f32.mrb[0].mxu0
        %v4011 = vadd.f32 %v761, %v4010
        %v4012 = vpop.f32.mrb[0].mxu0
        %4013 = vmatprep.mubr.bf16.mxu0 0
        %4014 = vmatmul.mubr.bf16.gmra.mrb[0].mxu0 %v2495
        %v4015 = vpop.f32.mrb[0].mxu0
        %v4016 = vadd.f32 %v761, %v4015
        %v4017 = vpop.f32.mrb[0].mxu0
        %v4018 = vpop.f32.mrb[0].mxu0
        %v4019 = vadd.f32 %v761, %v4018
        %v4020 = vpop.f32.mrb[0].mxu0
        %4021 = vmatprep.mubr.bf16.mxu0 0
        %4022 = vmatmul.mubr.bf16.gmra.mrb[0].mxu0 %v2498
        %v4023 = vpop.f32.mrb[0].mxu0
        %v4024 = vadd.f32 %v761, %v4023
        %v4025 = vpop.f32.mrb[0].mxu0
        %v4026 = vpop.f32.mrb[0].mxu0
        %v4027 = vadd.f32 %v761, %v4026
        %v4028 = vpop.f32.mrb[0].mxu0
        %4029 = vmatprep.mubr.bf16.mxu0 0
        %4030 = vmatmul.mubr.bf16.gmra.mrb[0].mxu0 %v2501
        %v4031 = vpop.f32.mrb[0].mxu0
        %v4032 = vadd.f32 %v761, %v4031
        %v4033 = vpop.f32.mrb[0].mxu0
        %v4034 = vpop.f32.mrb[0].mxu0
        %v4035 = vadd.f32 %v761, %v4034
        %v4036 = vpop.f32.mrb[0].mxu0
        %4037 = vmatprep.mubr.bf16.mxu0 0
        %4038 = vmatmul.mubr.bf16.gmra.mrb[0].mxu0 %v2504
        %v4039 = vpop.f32.mrb[0].mxu0
        %v4040 = vadd.f32 %v761, %v4039
        %v4041 = vpop.f32.mrb[0].mxu0
        %v4042 = vpop.f32.mrb[0].mxu0
        %v4043 = vadd.f32 %v761, %v4042
        %v4044 = vpop.f32.mrb[0].mxu0
        %4045 = vmatprep.mubr.bf16.mxu0 0
        %4046 = vmatmul.mubr.bf16.gmra.mrb[0].mxu0 %v2507
        %v4047 = vpop.f32.mrb[0].mxu0
        %v4048 = vadd.f32 %v761, %v4047
        %v4049 = vpop.f32.mrb[0].mxu0
        %v4050 = vpop.f32.mrb[0].mxu0
        %v4051 = vadd.f32 %v761, %v4050
        %v4052 = vpop.f32.mrb[0].mxu0
        %4053 = vmatprep.mubr.bf16.mxu0 0
        %4054 = vmatmul.mubr.bf16.gmra.mrb[0].mxu0 %v2510
        %v4055 = vpop.f32.mrb[0].mxu0
        %v4056 = vadd.f32 %v761, %v4055
        %v4057 = vpop.f32.mrb[0].mxu0
        %v4058 = vpop.f32.mrb[0].mxu0
        %v4059 = vadd.f32 %v761, %v4058
        %v4060 = vpop.f32.mrb[0].mxu0
        %4061 = vmatprep.mubr.bf16.mxu0 0
        %4062 = vmatmul.mubr.bf16.gmra.mrb[0].mxu0 %v2513
        %v4063 = vpop.f32.mrb[0].mxu0
        %v4064 = vadd.f32 %v761, %v4063
        %v4065 = vpop.f32.mrb[0].mxu0
        %v4066 = vpop.f32.mrb[0].mxu0
        %v4067 = vadd.f32 %v761, %v4066
        %v4068 = vpop.f32.mrb[0].mxu0
        %4069 = vmatprep.mubr.bf16.mxu0 0
        %4070 = vmatmul.mubr.bf16.gmra.mrb[0].mxu0 %v2516
        %v4071 = vpop.f32.mrb[0].mxu0
        %v4072 = vadd.f32 %v761, %v4071
        %v4073 = vpop.f32.mrb[0].mxu0
        %v4074 = vpop.f32.mrb[0].mxu0
        %v4075 = vadd.f32 %v761, %v4074
        %v4076 = vpop.f32.mrb[0].mxu0
        %4077 = vmatprep.mubr.bf16.mxu0 0
        %4078 = vmatmul.mubr.bf16.gmra.mrb[0].mxu0 %v2519
        %v4079 = vpop.f32.mrb[0].mxu0
        %v4080 = vadd.f32 %v761, %v4079
        %v4081 = vpop.f32.mrb[0].mxu0
        %v4082 = vpop.f32.mrb[0].mxu0
        %v4083 = vadd.f32 %v761, %v4082
        %v4084 = vpop.f32.mrb[0].mxu0
        %4085 = vmatprep.mubr.bf16.mxu0 0
        %4086 = vmatmul.mubr.bf16.gmra.mrb[0].mxu0 %v2522
        %v4087 = vpop.f32.mrb[0].mxu0
        %v4088 = vadd.f32 %v761, %v4087
        %v4089 = vpop.f32.mrb[0].mxu0
        %v4090 = vpop.f32.mrb[0].mxu0
        %v4091 = vadd.f32 %v761, %v4090
        %v4092 = vpop.f32.mrb[0].mxu0
        %4093 = vmatprep.mubr.bf16.mxu0 0
        %4094 = vmatmul.mubr.bf16.gmra.mrb[0].mxu0 %v2525
        %v4095 = vpop.f32.mrb[0].mxu0
        %v4096 = vadd.f32 %v761, %v4095
        %v4097 = vpop.f32.mrb[0].mxu0
        %v4098 = vpop.f32.mrb[0].mxu0
        %v4099 = vadd.f32 %v761, %v4098
        %v4100 = vpop.f32.mrb[0].mxu0
        %4101 = vmatprep.mubr.bf16.mxu0 0
        %4102 = vmatmul.mubr.bf16.gmra.mrb[0].mxu0 %v2528
        %v4103 = vpop.f32.mrb[0].mxu0
        %v4104 = vadd.f32 %v761, %v4103
        %v4105 = vpop.f32.mrb[0].mxu0
        %v4106 = vpop.f32.mrb[0].mxu0
        %v4107 = vadd.f32 %v761, %v4106
        %v4108 = vpop.f32.mrb[0].mxu0
        %4109 = vmatprep.mubr.bf16.mxu0 0
        %4110 = vmatmul.mubr.bf16.gmra.mrb[0].mxu0 %v2531
        %v4111 = vpop.f32.mrb[0].mxu0
        %v4112 = vadd.f32 %v761, %v4111
        %v4113 = vpop.f32.mrb[0].mxu0
        %v4114 = vpop.f32.mrb[0].mxu0
        %v4115 = vadd.f32 %v761, %v4114
        %v4116 = vpop.f32.mrb[0].mxu0
        %4117 = vmatprep.mubr.bf16.mxu0 0
        %4118 = vmatmul.mubr.bf16.gmra.mrb[0].mxu0 %v2534
        %v4119 = vpop.f32.mrb[0].mxu0
        %v4120 = vadd.f32 %v761, %v4119
        %v4121 = vpop.f32.mrb[0].mxu0
        %v4122 = vpop.f32.mrb[0].mxu0
        %v4123 = vadd.f32 %v761, %v4122
        %v4124 = vpop.f32.mrb[0].mxu0
        %4125 = vmatprep.mubr.bf16.mxu0 0
        %4126 = vmatmul.mubr.bf16.gmra.mrb[0].mxu0 %v2537
        %v4127 = vpop.f32.mrb[0].mxu0
        %v4128 = vadd.f32 %v761, %v4127
        %v4129 = vpop.f32.mrb[0].mxu0
        %v4130 = vpop.f32.mrb[0].mxu0
        %v4131 = vadd.f32 %v761, %v4130
        %v4132 = vpop.f32.mrb[0].mxu0
        %4133 = vmatprep.mubr.bf16.mxu0 0
        %4134 = vmatmul.mubr.bf16.gmra.mrb[0].mxu0 %v2540
        %v4135 = vpop.f32.mrb[0].mxu0
        %v4136 = vadd.f32 %v761, %v4135
        %v4137 = vpop.f32.mrb[0].mxu0
        %v4138 = vpop.f32.mrb[0].mxu0
        %v4139 = vadd.f32 %v761, %v4138
        %v4140 = vpop.f32.mrb[0].mxu0
        %4141 = vmatprep.mubr.bf16.mxu0 0
        %4142 = vmatmul.mubr.bf16.gmra.mrb[0].mxu0 %v2543
        %v4143 = vpop.f32.mrb[0].mxu0
        %v4144 = vadd.f32 %v761, %v4143
        %v4145 = vpop.f32.mrb[0].mxu0
        %v4146 = vpop.f32.mrb[0].mxu0
        %v4147 = vadd.f32 %v761, %v4146
        %v4148 = vpop.f32.mrb[0].mxu0
        %4149 = vmatprep.mubr.bf16.mxu0 0
        %4150 = vmatmul.mubr.bf16.gmra.mrb[0].mxu0 %v2546
        %v4151 = vpop.f32.mrb[0].mxu0
        %v4152 = vadd.f32 %v761, %v4151
        %v4153 = vpop.f32.mrb[0].mxu0
        %v4154 = vpop.f32.mrb[0].mxu0
        %v4155 = vadd.f32 %v761, %v4154
        %v4156 = vpop.f32.mrb[0].mxu0
        %4157 = vmatprep.mubr.bf16.mxu0 0
        %4158 = vmatmul.mubr.bf16.gmra.mrb[0].mxu0 %v2549
        %v4159 = vpop.f32.mrb[0].mxu0
        %v4160 = vadd.f32 %v761, %v4159
        %v4161 = vpop.f32.mrb[0].mxu0
        %v4162 = vpop.f32.mrb[0].mxu0
        %v4163 = vadd.f32 %v761, %v4162
        %v4164 = vpop.f32.mrb[0].mxu0
        %4165 = vmatprep.mubr.bf16.mxu0 0
        %4166 = vmatmul.mubr.bf16.gmra.mrb[0].mxu0 %v2552
        %v4167 = vpop.f32.mrb[0].mxu0
        %v4168 = vadd.f32 %v761, %v4167
        %v4169 = vpop.f32.mrb[0].mxu0
        %v4170 = vpop.f32.mrb[0].mxu0
        %v4171 = vadd.f32 %v761, %v4170
        %v4172 = vpop.f32.mrb[0].mxu0
        %4173 = vmatprep.mubr.bf16.mxu0 0
        %4174 = vmatmul.mubr.bf16.gmra.mrb[0].mxu0 %v2555
        %v4175 = vpop.f32.mrb[0].mxu0
        %v4176 = vadd.f32 %v761, %v4175
        %v4177 = vpop.f32.mrb[0].mxu0
        %v4178 = vpop.f32.mrb[0].mxu0
        %v4179 = vadd.f32 %v761, %v4178
        %v4180 = vpop.f32.mrb[0].mxu0
        %4181 = vmatprep.mubr.bf16.mxu0 0
        %4182 = vmatmul.mubr.bf16.gmra.mrb[0].mxu0 %v2558
        %v4183 = vpop.f32.mrb[0].mxu0
        %v4184 = vadd.f32 %v761, %v4183
        %v4185 = vpop.f32.mrb[0].mxu0
        %v4186 = vpop.f32.mrb[0].mxu0
        %v4187 = vadd.f32 %v761, %v4186
        %v4188 = vpop.f32.mrb[0].mxu0
        %4189 = vmatprep.mubr.bf16.mxu0 0
        %4190 = vmatmul.mubr.bf16.gmra.mrb[0].mxu0 %v2561
        %v4191 = vpop.f32.mrb[0].mxu0
        %v4192 = vadd.f32 %v761, %v4191
        %v4193 = vpop.f32.mrb[0].mxu0
        %v4194 = vpop.f32.mrb[0].mxu0
        %v4195 = vadd.f32 %v761, %v4194
        %v4196 = vpop.f32.mrb[0].mxu0
        %4197 = vmatprep.mubr.bf16.mxu0 0
        %4198 = vmatmul.mubr.bf16.gmra.mrb[0].mxu0 %v2564
        %v4199 = vpop.f32.mrb[0].mxu0
        %v4200 = vadd.f32 %v761, %v4199
        %v4201 = vpop.f32.mrb[0].mxu0
        %v4202 = vpop.f32.mrb[0].mxu0
        %v4203 = vadd.f32 %v761, %v4202
        %v4204 = vpop.f32.mrb[0].mxu0
        %4205 = vmatprep.mubr.bf16.mxu0 0
        %4206 = vmatmul.mubr.bf16.gmra.mrb[0].mxu0 %v2567
        %v4207 = vpop.f32.mrb[0].mxu0
        %v4208 = vadd.f32 %v761, %v4207
        %v4209 = vpop.f32.mrb[0].mxu0
        %v4210 = vpop.f32.mrb[0].mxu0
        %v4211 = vadd.f32 %v761, %v4210
        %v4212 = vpop.f32.mrb[0].mxu0
        %4213 = vmatprep.mubr.bf16.mxu0 0
        %4214 = vmatmul.mubr.bf16.gmra.mrb[0].mxu0 %v2570
        %v4215 = vpop.f32.mrb[0].mxu0
        %v4216 = vadd.f32 %v761, %v4215
        %v4217 = vpop.f32.mrb[0].mxu0
        %v4218 = vpop.f32.mrb[0].mxu0
        %v4219 = vadd.f32 %v761, %v4218
        %v4220 = vpop.f32.mrb[0].mxu0
        %4221 = vmatprep.mubr.bf16.mxu0 0
        %4222 = vmatmul.mubr.bf16.gmra.mrb[0].mxu0 %v2573
        %v4223 = vpop.f32.mrb[0].mxu0
        %v4224 = vadd.f32 %v761, %v4223
        %v4225 = vpop.f32.mrb[0].mxu0
        %v4226 = vpop.f32.mrb[0].mxu0
        %v4227 = vadd.f32 %v761, %v4226
        %v4228 = vpop.f32.mrb[0].mxu0
        %4229 = vmatprep.mubr.bf16.mxu0 0
        %4230 = vmatmul.mubr.bf16.gmra.mrb[0].mxu0 %v2576
        %v4231 = vpop.f32.mrb[0].mxu0
        %v4232 = vadd.f32 %v761, %v4231
        %v4233 = vpop.f32.mrb[0].mxu0
        %v4234 = vpop.f32.mrb[0].mxu0
        %v4235 = vadd.f32 %v761, %v4234
        %v4236 = vpop.f32.mrb[0].mxu0
        %4237 = vmatprep.mubr.bf16.mxu0 0
        %4238 = vmatmul.mubr.bf16.gmra.mrb[0].mxu0 %v2579
        %v4239 = vpop.f32.mrb[0].mxu0
        %v4240 = vadd.f32 %v761, %v4239
        %v4241 = vpop.f32.mrb[0].mxu0
        %v4242 = vpop.f32.mrb[0].mxu0
        %v4243 = vadd.f32 %v761, %v4242
        %v4244 = vpop.f32.mrb[0].mxu0
        %4245 = vmatprep.mubr.bf16.mxu0 0
        %4246 = vmatmul.mubr.bf16.gmra.mrb[0].mxu0 %v2582
        %v4247 = vpop.f32.mrb[0].mxu0
        %v4248 = vadd.f32 %v761, %v4247
        %v4249 = vpop.f32.mrb[0].mxu0
        %v4250 = vpop.f32.mrb[0].mxu0
        %v4251 = vadd.f32 %v761, %v4250
        %v4252 = vpop.f32.mrb[0].mxu0
        %4253 = vmatprep.mubr.bf16.mxu0 0
        %4254 = vmatmul.mubr.bf16.gmra.mrb[0].mxu0 %v2585
        %v4255 = vpop.f32.mrb[0].mxu0
        %v4256 = vadd.f32 %v761, %v4255
        %v4257 = vpop.f32.mrb[0].mxu0
        %v4258 = vpop.f32.mrb[0].mxu0
        %v4259 = vadd.f32 %v761, %v4258
        %v4260 = vpop.f32.mrb[0].mxu0
        %4261 = vmatprep.mubr.bf16.mxu0 0
        %4262 = vmatmul.mubr.bf16.gmra.mrb[0].mxu0 %v2588
        %v4263 = vpop.f32.mrb[0].mxu0
        %v4264 = vadd.f32 %v761, %v4263
        %v4265 = vpop.f32.mrb[0].mxu0
        %v4266 = vpop.f32.mrb[0].mxu0
        %v4267 = vadd.f32 %v761, %v4266
        %v4268 = vpop.f32.mrb[0].mxu0
        %4269 = vmatprep.mubr.bf16.mxu0 0
        %4270 = vmatmul.mubr.bf16.gmra.mrb[0].mxu0 %v2591
        %v4271 = vpop.f32.mrb[0].mxu0
        %v4272 = vadd.f32 %v761, %v4271
        %v4273 = vpop.f32.mrb[0].mxu0
        %v4274 = vpop.f32.mrb[0].mxu0
        %v4275 = vadd.f32 %v761, %v4274
        %v4276 = vpop.f32.mrb[0].mxu0
        %4277 = vmatprep.mubr.bf16.mxu0 0
        %4278 = vmatmul.mubr.bf16.gmra.mrb[0].mxu0 %v2594
        %v4279 = vpop.f32.mrb[0].mxu0
        %v4280 = vadd.f32 %v761, %v4279
        %v4281 = vpop.f32.mrb[0].mxu0
        %v4282 = vpop.f32.mrb[0].mxu0
        %v4283 = vadd.f32 %v761, %v4282
        %v4284 = vpop.f32.mrb[0].mxu0
        %4285 = vmatprep.mubr.bf16.mxu0 0
        %4286 = vmatmul.mubr.bf16.gmra.mrb[0].mxu0 %v2597
        %v4287 = vpop.f32.mrb[0].mxu0
        %v4288 = vadd.f32 %v761, %v4287
        %v4289 = vpop.f32.mrb[0].mxu0
        %v4290 = vpop.f32.mrb[0].mxu0
        %v4291 = vadd.f32 %v761, %v4290
        %v4292 = vpop.f32.mrb[0].mxu0
        %4293 = vmatprep.mubr.bf16.mxu0 0
        %4294 = vmatmul.mubr.bf16.gmra.mrb[0].mxu0 %v2600
        %v4295 = vpop.f32.mrb[0].mxu0
        %v4296 = vadd.f32 %v761, %v4295
        %v4297 = vpop.f32.mrb[0].mxu0
        %v4298 = vpop.f32.mrb[0].mxu0
        %v4299 = vadd.f32 %v761, %v4298
        %v4300 = vpop.f32.mrb[0].mxu0
        %4301 = vmatprep.mubr.bf16.mxu0 0
        %4302 = vmatmul.mubr.bf16.gmra.mrb[0].mxu0 %v2603
        %v4303 = vpop.f32.mrb[0].mxu0
        %v4304 = vadd.f32 %v761, %v4303
        %v4305 = vpop.f32.mrb[0].mxu0
        %v4306 = vpop.f32.mrb[0].mxu0
        %v4307 = vadd.f32 %v761, %v4306
        %v4308 = vpop.f32.mrb[0].mxu0
        %4309 = vmatprep.mubr.bf16.mxu0 0
        %4310 = vmatmul.mubr.bf16.gmra.mrb[0].mxu0 %v2606
        %v4311 = vpop.f32.mrb[0].mxu0
        %v4312 = vadd.f32 %v761, %v4311
        %v4313 = vpop.f32.mrb[0].mxu0
        %v4314 = vpop.f32.mrb[0].mxu0
        %v4315 = vadd.f32 %v761, %v4314
        %v4316 = vpop.f32.mrb[0].mxu0
        %4317 = vmatprep.mubr.bf16.mxu0 0
        %4318 = vmatmul.mubr.bf16.gmra.mrb[0].mxu0 %v2609
        %v4319 = vpop.f32.mrb[0].mxu0
        %v4320 = vadd.f32 %v761, %v4319
        %v4321 = vpop.f32.mrb[0].mxu0
        %v4322 = vpop.f32.mrb[0].mxu0
        %v4323 = vadd.f32 %v761, %v4322
        %v4324 = vpop.f32.mrb[0].mxu0
        %4325 = vmatprep.mubr.bf16.mxu0 0
        %4326 = vmatmul.mubr.bf16.gmra.mrb[0].mxu0 %v2612
        %v4327 = vpop.f32.mrb[0].mxu0
        %v4328 = vadd.f32 %v761, %v4327
        %v4329 = vpop.f32.mrb[0].mxu0
        %v4330 = vpop.f32.mrb[0].mxu0
        %v4331 = vadd.f32 %v761, %v4330
        %v4332 = vpop.f32.mrb[0].mxu0
        %4333 = vmatprep.mubr.bf16.mxu0 0
        %4334 = vmatmul.mubr.bf16.gmra.mrb[0].mxu0 %v2615
        %v4335 = vpop.f32.mrb[0].mxu0
        %v4336 = vadd.f32 %v761, %v4335
        %v4337 = vpop.f32.mrb[0].mxu0
        %v4338 = vpop.f32.mrb[0].mxu0
        %v4339 = vadd.f32 %v761, %v4338
        %v4340 = vpop.f32.mrb[0].mxu0
        %4341 = vmatprep.mubr.bf16.mxu0 0
        %4342 = vmatmul.mubr.bf16.gmra.mrb[0].mxu0 %v2618
        %v4343 = vpop.f32.mrb[0].mxu0
        %v4344 = vadd.f32 %v761, %v4343
        %v4345 = vpop.f32.mrb[0].mxu0
        %v4346 = vpop.f32.mrb[0].mxu0
        %v4347 = vadd.f32 %v761, %v4346
        %v4348 = vpop.f32.mrb[0].mxu0
        %4349 = vmatprep.mubr.bf16.mxu0 0
        %4350 = vmatmul.mubr.bf16.gmra.mrb[0].mxu0 %v2621
        %v4351 = vpop.f32.mrb[0].mxu0
        %v4352 = vadd.f32 %v761, %v4351
        %v4353 = vpop.f32.mrb[0].mxu0
        %v4354 = vpop.f32.mrb[0].mxu0
        %v4355 = vadd.f32 %v761, %v4354
        %v4356 = vpop.f32.mrb[0].mxu0
        %4357 = vmatprep.mubr.bf16.mxu0 0
        %4358 = vmatmul.mubr.bf16.gmra.mrb[0].mxu0 %v2624
        %v4359 = vpop.f32.mrb[0].mxu0
        %v4360 = vadd.f32 %v761, %v4359
        %v4361 = vpop.f32.mrb[0].mxu0
        %v4362 = vpop.f32.mrb[0].mxu0
        %v4363 = vadd.f32 %v761, %v4362
        %v4364 = vpop.f32.mrb[0].mxu0
        %4365 = vmatprep.mubr.bf16.mxu0 0
        %4366 = vmatmul.mubr.bf16.gmra.mrb[0].mxu0 %v2627
        %v4367 = vpop.f32.mrb[0].mxu0
        %v4368 = vadd.f32 %v761, %v4367
        %v4369 = vpop.f32.mrb[0].mxu0
        %v4370 = vpop.f32.mrb[0].mxu0
        %v4371 = vadd.f32 %v761, %v4370
        %v4372 = vpop.f32.mrb[0].mxu0
        %4373 = vmatprep.mubr.bf16.mxu0 0
        %4374 = vmatmul.mubr.bf16.gmra.mrb[0].mxu0 %v2630
        %v4375 = vpop.f32.mrb[0].mxu0
        %v4376 = vadd.f32 %v761, %v4375
        %v4377 = vpop.f32.mrb[0].mxu0
        %v4378 = vpop.f32.mrb[0].mxu0
        %v4379 = vadd.f32 %v761, %v4378
        %v4380 = vpop.f32.mrb[0].mxu0
        %4381 = vmatprep.mubr.bf16.mxu0 0
        %4382 = vmatmul.mubr.bf16.gmra.mrb[0].mxu0 %v2633
        %v4383 = vpop.f32.mrb[0].mxu0
        %v4384 = vadd.f32 %v761, %v4383
        %v4385 = vpop.f32.mrb[0].mxu0
        %v4386 = vpop.f32.mrb[0].mxu0
        %v4387 = vadd.f32 %v761, %v4386
        %v4388 = vpop.f32.mrb[0].mxu0
        %4389 = vmatprep.mubr.bf16.mxu0 0
        %4390 = vmatmul.mubr.bf16.gmra.mrb[0].mxu0 %v2636
        %v4391 = vpop.f32.mrb[0].mxu0
        %v4392 = vadd.f32 %v761, %v4391
        %v4393 = vpop.f32.mrb[0].mxu0
        %v4394 = vpop.f32.mrb[0].mxu0
        %v4395 = vadd.f32 %v761, %v4394
        %v4396 = vpop.f32.mrb[0].mxu0
        %4397 = vmatprep.mubr.bf16.mxu0 0
        %4398 = vmatmul.mubr.bf16.gmra.mrb[0].mxu0 %v2639
        %v4399 = vpop.f32.mrb[0].mxu0
        %v4400 = vadd.f32 %v761, %v4399
        %v4401 = vpop.f32.mrb[0].mxu0
        %v4402 = vpop.f32.mrb[0].mxu0
        %v4403 = vadd.f32 %v761, %v4402
        %v4404 = vpop.f32.mrb[0].mxu0
        %4405 = vmatprep.mubr.bf16.mxu0 0
        %4406 = vmatmul.mubr.bf16.gmra.mrb[0].mxu0 %v2642
        %v4407 = vpop.f32.mrb[0].mxu0
        %v4408 = vadd.f32 %v761, %v4407
        %v4409 = vpop.f32.mrb[0].mxu0
        %v4410 = vpop.f32.mrb[0].mxu0
        %v4411 = vadd.f32 %v761, %v4410
        %v4412 = vpop.f32.mrb[0].mxu0
        %4413 = vmatprep.mubr.bf16.mxu0 0
        %4414 = vmatmul.mubr.bf16.gmra.mrb[0].mxu0 %v2645
        %v4415 = vpop.f32.mrb[0].mxu0
        %v4416 = vadd.f32 %v761, %v4415
        %v4417 = vpop.f32.mrb[0].mxu0
        %v4418 = vpop.f32.mrb[0].mxu0
        %v4419 = vadd.f32 %v761, %v4418
        %v4420 = vpop.f32.mrb[0].mxu0
        %4421 = vmatprep.mubr.bf16.mxu0 0
        %4422 = vmatmul.mubr.bf16.gmra.mrb[0].mxu0 %v2648
        %v4423 = vpop.f32.mrb[0].mxu0
        %v4424 = vadd.f32 %v761, %v4423
        %v4425 = vpop.f32.mrb[0].mxu0
        %v4426 = vpop.f32.mrb[0].mxu0
        %v4427 = vadd.f32 %v761, %v4426
        %v4428 = vpop.f32.mrb[0].mxu0
        %4429 = vmatprep.mubr.bf16.mxu0 0
        %4430 = vmatmul.mubr.bf16.gmra.mrb[0].mxu0 %v2651
        %v4431 = vpop.f32.mrb[0].mxu0
        %v4432 = vadd.f32 %v761, %v4431
        %v4433 = vpop.f32.mrb[0].mxu0
        %v4434 = vpop.f32.mrb[0].mxu0
        %v4435 = vadd.f32 %v761, %v4434
        %v4436 = vpop.f32.mrb[0].mxu0
        %4437 = vmatprep.mubr.bf16.mxu0 0
        %4438 = vmatmul.mubr.bf16.gmra.mrb[0].mxu0 %v2654
        %v4439 = vpop.f32.mrb[0].mxu0
        %v4440 = vadd.f32 %v761, %v4439
        %v4441 = vpop.f32.mrb[0].mxu0
        %v4442 = vpop.f32.mrb[0].mxu0
        %v4443 = vadd.f32 %v761, %v4442
        %v4444 = vpop.f32.mrb[0].mxu0
        %4445 = vmatprep.mubr.bf16.mxu0 0
        %4446 = vmatmul.mubr.bf16.gmra.mrb[0].mxu0 %v2657
        %v4447 = vpop.f32.mrb[0].mxu0
        %v4448 = vadd.f32 %v761, %v4447
        %v4449 = vpop.f32.mrb[0].mxu0
        %v4450 = vpop.f32.mrb[0].mxu0
        %v4451 = vadd.f32 %v761, %v4450
        %v4452 = vpop.f32.mrb[0].mxu0
        %4453 = vmatprep.mubr.bf16.mxu0 0
        %4454 = vmatmul.mubr.bf16.gmra.mrb[0].mxu0 %v2660
        %v4455 = vpop.f32.mrb[0].mxu0
        %v4456 = vadd.f32 %v761, %v4455
        %v4457 = vpop.f32.mrb[0].mxu0
        %v4458 = vpop.f32.mrb[0].mxu0
        %v4459 = vadd.f32 %v761, %v4458
        %v4460 = vpop.f32.mrb[0].mxu0
        %4461 = vmatprep.mubr.bf16.mxu0 0
        %4462 = vmatmul.mubr.bf16.gmra.mrb[0].mxu0 %v2663
        %v4463 = vpop.f32.mrb[0].mxu0
        %v4464 = vadd.f32 %v761, %v4463
        %v4465 = vpop.f32.mrb[0].mxu0
        %v4466 = vpop.f32.mrb[0].mxu0
        %v4467 = vadd.f32 %v761, %v4466
        %v4468 = vpop.f32.mrb[0].mxu0
        %4469 = vmatprep.mubr.bf16.mxu0 0
        %4470 = vmatmul.mubr.bf16.gmra.mrb[0].mxu0 %v2666
        %v4471 = vpop.f32.mrb[0].mxu0
        %v4472 = vadd.f32 %v761, %v4471
        %v4473 = vpop.f32.mrb[0].mxu0
        %v4474 = vpop.f32.mrb[0].mxu0
        %v4475 = vadd.f32 %v761, %v4474
        %v4476 = vpop.f32.mrb[0].mxu0
        %4477 = vmatprep.mubr.bf16.mxu0 0
        %4478 = vmatmul.mubr.bf16.gmra.mrb[0].mxu0 %v2669
        %v4479 = vpop.f32.mrb[0].mxu0
        %v4480 = vadd.f32 %v761, %v4479
        %v4481 = vpop.f32.mrb[0].mxu0
        %v4482 = vpop.f32.mrb[0].mxu0
        %v4483 = vadd.f32 %v761, %v4482
        %v4484 = vpop.f32.mrb[0].mxu0
        %4485 = vmatprep.mubr.bf16.mxu0 0
        %4486 = vmatmul.mubr.bf16.gmra.mrb[0].mxu0 %v2672
        %v4487 = vpop.f32.mrb[0].mxu0
        %v4488 = vadd.f32 %v761, %v4487
        %v4489 = vpop.f32.mrb[0].mxu0
        %v4490 = vpop.f32.mrb[0].mxu0
        %v4491 = vadd.f32 %v761, %v4490
        %v4492 = vpop.f32.mrb[0].mxu0
        %4493 = vmatprep.mubr.bf16.mxu0 0
        %4494 = vmatmul.mubr.bf16.gmra.mrb[0].mxu0 %v2675
        %v4495 = vpop.f32.mrb[0].mxu0
        %v4496 = vadd.f32 %v761, %v4495
        %v4497 = vpop.f32.mrb[0].mxu0
        %v4498 = vpop.f32.mrb[0].mxu0
        %v4499 = vadd.f32 %v761, %v4498
        %v4500 = vpop.f32.mrb[0].mxu0
        %4501 = vmatprep.mubr.bf16.mxu0 0
        %4502 = vmatmul.mubr.bf16.gmra.mrb[0].mxu0 %v2678
        %v4503 = vpop.f32.mrb[0].mxu0
        %v4504 = vadd.f32 %v761, %v4503
        %v4505 = vpop.f32.mrb[0].mxu0
        %v4506 = vpop.f32.mrb[0].mxu0
        %v4507 = vadd.f32 %v761, %v4506
        %v4508 = vpop.f32.mrb[0].mxu0
        %4509 = vmatprep.mubr.bf16.mxu0 0
        %4510 = vmatmul.mubr.bf16.gmra.mrb[0].mxu0 %v2681
        %v4511 = vpop.f32.mrb[0].mxu0
        %v4512 = vadd.f32 %v761, %v4511
        %v4513 = vpop.f32.mrb[0].mxu0
        %v4514 = vpop.f32.mrb[0].mxu0
        %v4515 = vadd.f32 %v761, %v4514
        %v4516 = vpop.f32.mrb[0].mxu0
        %4517 = vmatprep.mubr.bf16.mxu0 0
        %4518 = vmatmul.mubr.bf16.gmra.mrb[0].mxu0 %v2684
        %v4519 = vpop.f32.mrb[0].mxu0
        %v4520 = vadd.f32 %v761, %v4519
        %v4521 = vpop.f32.mrb[0].mxu0
        %v4522 = vpop.f32.mrb[0].mxu0
        %v4523 = vadd.f32 %v761, %v4522
        %v4524 = vpop.f32.mrb[0].mxu0
        %4525 = vmatprep.mubr.bf16.mxu0 0
        %4526 = vmatmul.mubr.bf16.gmra.mrb[0].mxu0 %v2687
        %v4527 = vpop.f32.mrb[0].mxu0
        %v4528 = vadd.f32 %v761, %v4527
        %v4529 = vpop.f32.mrb[0].mxu0
        %v4530 = vpop.f32.mrb[0].mxu0
        %v4531 = vadd.f32 %v761, %v4530
        %v4532 = vpop.f32.mrb[0].mxu0
        %4533 = vmatprep.mubr.bf16.mxu0 0
        %4534 = vmatmul.mubr.bf16.gmra.mrb[0].mxu0 %v2690
        %v4535 = vpop.f32.mrb[0].mxu0
        %v4536 = vadd.f32 %v761, %v4535
        %v4537 = vpop.f32.mrb[0].mxu0
        %v4538 = vpop.f32.mrb[0].mxu0
        %v4539 = vadd.f32 %v761, %v4538
        %v4540 = vpop.f32.mrb[0].mxu0
        %4541 = vmatprep.mubr.bf16.mxu0 0
        %4542 = vmatmul.mubr.bf16.gmra.mrb[0].mxu0 %v2693
        %v4543 = vpop.f32.mrb[0].mxu0
        %v4544 = vadd.f32 %v761, %v4543
        %v4545 = vpop.f32.mrb[0].mxu0
        %v4546 = vpop.f32.mrb[0].mxu0
        %v4547 = vadd.f32 %v761, %v4546
        %v4548 = vpop.f32.mrb[0].mxu0
        %4549 = vmatprep.mubr.bf16.mxu0 0
        %4550 = vmatmul.mubr.bf16.gmra.mrb[0].mxu0 %v2696
        %v4551 = vpop.f32.mrb[0].mxu0
        %v4552 = vadd.f32 %v761, %v4551
        %v4553 = vpop.f32.mrb[0].mxu0
        %v4554 = vpop.f32.mrb[0].mxu0
        %v4555 = vadd.f32 %v761, %v4554
        %v4556 = vpop.f32.mrb[0].mxu0
        %4557 = vmatprep.mubr.bf16.mxu0 0
        %4558 = vmatmul.mubr.bf16.gmra.mrb[0].mxu0 %v2699
        %v4559 = vpop.f32.mrb[0].mxu0
        %v4560 = vadd.f32 %v761, %v4559
        %v4561 = vpop.f32.mrb[0].mxu0
        %v4562 = vpop.f32.mrb[0].mxu0
        %v4563 = vadd.f32 %v761, %v4562
        %v4564 = vpop.f32.mrb[0].mxu0
        %4565 = vmatprep.mubr.bf16.mxu0 0
        %4566 = vmatmul.mubr.bf16.gmra.mrb[0].mxu0 %v2702
        %v4567 = vpop.f32.mrb[0].mxu0
        %v4568 = vadd.f32 %v761, %v4567
        %v4569 = vpop.f32.mrb[0].mxu0
        %v4570 = vpop.f32.mrb[0].mxu0
        %v4571 = vadd.f32 %v761, %v4570
        %v4572 = vpop.f32.mrb[0].mxu0
        %4573 = vmatprep.mubr.bf16.mxu0 0
        %4574 = vmatmul.mubr.bf16.gmra.mrb[0].mxu0 %v2705
        %v4575 = vpop.f32.mrb[0].mxu0
        %v4576 = vadd.f32 %v761, %v4575
        %v4577 = vpop.f32.mrb[0].mxu0
        %v4578 = vpop.f32.mrb[0].mxu0
        %v4579 = vadd.f32 %v761, %v4578
        %v4580 = vpop.f32.mrb[0].mxu0
        %4581 = vmatprep.mubr.bf16.mxu0 0
        %4582 = vmatmul.mubr.bf16.gmra.mrb[0].mxu0 %v2708
        %v4583 = vpop.f32.mrb[0].mxu0
        %v4584 = vadd.f32 %v761, %v4583
        %v4585 = vpop.f32.mrb[0].mxu0
        %v4586 = vpop.f32.mrb[0].mxu0
        %v4587 = vadd.f32 %v761, %v4586
        %v4588 = vpop.f32.mrb[0].mxu0
        %4589 = vmatprep.mubr.bf16.mxu0 0
        %4590 = vmatmul.mubr.bf16.gmra.mrb[0].mxu0 %v2711
        %v4591 = vpop.f32.mrb[0].mxu0
        %v4592 = vadd.f32 %v761, %v4591
        %v4593 = vpop.f32.mrb[0].mxu0
        %v4594 = vpop.f32.mrb[0].mxu0
        %v4595 = vadd.f32 %v761, %v4594
        %v4596 = vpop.f32.mrb[0].mxu0
        %4597 = vmatprep.mubr.bf16.mxu0 0
        %4598 = vmatmul.mubr.bf16.gmra.mrb[0].mxu0 %v2714
        %v4599 = vpop.f32.mrb[0].mxu0
        %v4600 = vadd.f32 %v761, %v4599
        %v4601 = vpop.f32.mrb[0].mxu0
        %v4602 = vpop.f32.mrb[0].mxu0
        %v4603 = vadd.f32 %v761, %v4602
        %v4604 = vpop.f32.mrb[0].mxu0
        %4605 = vmatprep.mubr.bf16.mxu0 0
        %4606 = vmatmul.mubr.bf16.gmra.mrb[0].mxu0 %v2717
        %v4607 = vpop.f32.mrb[0].mxu0
        %v4608 = vadd.f32 %v761, %v4607
        %v4609 = vpop.f32.mrb[0].mxu0
        %v4610 = vpop.f32.mrb[0].mxu0
        %v4611 = vadd.f32 %v761, %v4610
        %v4612 = vpop.f32.mrb[0].mxu0
        %4613 = vmatprep.mubr.bf16.mxu0 0
        %4614 = vmatmul.mubr.bf16.gmra.mrb[0].mxu0 %v2720
        %v4615 = vpop.f32.mrb[0].mxu0
        %v4616 = vadd.f32 %v761, %v4615
        %v4617 = vpop.f32.mrb[0].mxu0
        %v4618 = vpop.f32.mrb[0].mxu0
        %v4619 = vadd.f32 %v761, %v4618
        %v4620 = vpop.f32.mrb[0].mxu0
        %4621 = vmatprep.mubr.bf16.mxu0 0
        %4622 = vmatmul.mubr.bf16.gmra.mrb[0].mxu0 %v2723
        %v4623 = vpop.f32.mrb[0].mxu0
        %v4624 = vadd.f32 %v761, %v4623
        %v4625 = vpop.f32.mrb[0].mxu0
        %v4626 = vpop.f32.mrb[0].mxu0
        %v4627 = vadd.f32 %v761, %v4626
        %v4628 = vpop.f32.mrb[0].mxu0
        %4629 = vmatprep.mubr.bf16.mxu0 0
        %4630 = vmatmul.mubr.bf16.gmra.mrb[0].mxu0 %v2726
        %v4631 = vpop.f32.mrb[0].mxu0
        %v4632 = vadd.f32 %v761, %v4631
        %v4633 = vpop.f32.mrb[0].mxu0
        %v4634 = vpop.f32.mrb[0].mxu0
        %v4635 = vadd.f32 %v761, %v4634
        %v4636 = vpop.f32.mrb[0].mxu0
        %4637 = vmatprep.mubr.bf16.mxu0 0
        %4638 = vmatmul.mubr.bf16.gmra.mrb[0].mxu0 %v2729
        %v4639 = vpop.f32.mrb[0].mxu0
        %v4640 = vadd.f32 %v761, %v4639
        %v4641 = vpop.f32.mrb[0].mxu0
        %v4642 = vpop.f32.mrb[0].mxu0
        %v4643 = vadd.f32 %v761, %v4642
        %v4644 = vpop.f32.mrb[0].mxu0
        %4645 = vmatprep.mubr.bf16.mxu0 0
        %4646 = vmatmul.mubr.bf16.gmra.mrb[0].mxu0 %v2732
        %v4647 = vpop.f32.mrb[0].mxu0
        %v4648 = vadd.f32 %v761, %v4647
        %v4649 = vpop.f32.mrb[0].mxu0
        %v4650 = vpop.f32.mrb[0].mxu0
        %v4651 = vadd.f32 %v761, %v4650
        %v4652 = vpop.f32.mrb[0].mxu0
        %4653 = vmatprep.mubr.bf16.mxu0 0
        %4654 = vmatmul.mubr.bf16.gmra.mrb[0].mxu0 %v2735
        %v4655 = vpop.f32.mrb[0].mxu0
        %v4656 = vadd.f32 %v761, %v4655
        %v4657 = vpop.f32.mrb[0].mxu0
        %v4658 = vpop.f32.mrb[0].mxu0
        %v4659 = vadd.f32 %v761, %v4658
        %v4660 = vpop.f32.mrb[0].mxu0
        %4661 = vmatprep.mubr.bf16.mxu0 0
        %4662 = vmatmul.mubr.bf16.gmra.mrb[0].mxu0 %v2738
        %v4663 = vpop.f32.mrb[0].mxu0
        %v4664 = vadd.f32 %v761, %v4663
        %v4665 = vpop.f32.mrb[0].mxu0
        %v4666 = vpop.f32.mrb[0].mxu0
        %v4667 = vadd.f32 %v761, %v4666
        %v4668 = vpop.f32.mrb[0].mxu0
        %4669 = vmatprep.mubr.bf16.mxu0 0
        %4670 = vmatmul.mubr.bf16.gmra.mrb[0].mxu0 %v2741
        %v4671 = vpop.f32.mrb[0].mxu0
        %v4672 = vadd.f32 %v761, %v4671
        %v4673 = vpop.f32.mrb[0].mxu0
        %v4674 = vpop.f32.mrb[0].mxu0
        %v4675 = vadd.f32 %v761, %v4674
        %v4676 = vpop.f32.mrb[0].mxu0
        %4677 = vmatprep.mubr.bf16.mxu0 0
        %4678 = vmatmul.mubr.bf16.gmra.mrb[0].mxu0 %v2744
        %v4679 = vpop.f32.mrb[0].mxu0
        %v4680 = vadd.f32 %v761, %v4679
        %v4681 = vpop.f32.mrb[0].mxu0
        %v4682 = vpop.f32.mrb[0].mxu0
        %v4683 = vadd.f32 %v761, %v4682
        %v4684 = vpop.f32.mrb[0].mxu0
        %4685 = vmatprep.mubr.bf16.mxu0 0
        %4686 = vmatmul.mubr.bf16.gmra.mrb[0].mxu0 %v2747
        %v4687 = vpop.f32.mrb[0].mxu0
        %v4688 = vadd.f32 %v761, %v4687
        %v4689 = vpop.f32.mrb[0].mxu0
        %v4690 = vpop.f32.mrb[0].mxu0
        %v4691 = vadd.f32 %v761, %v4690
        %v4692 = vpop.f32.mrb[0].mxu0
        %4693 = vmatprep.mubr.bf16.mxu0 0
        %4694 = vmatmul.mubr.bf16.gmra.mrb[0].mxu0 %v2750
        %v4695 = vpop.f32.mrb[0].mxu0
        %v4696 = vadd.f32 %v761, %v4695
        %v4697 = vpop.f32.mrb[0].mxu0
        %v4698 = vpop.f32.mrb[0].mxu0
        %v4699 = vadd.f32 %v761, %v4698
        %v4700 = vpop.f32.mrb[0].mxu0
        %4701 = vmatprep.mubr.bf16.mxu0 0
        %4702 = vmatmul.mubr.bf16.gmra.mrb[0].mxu0 %v2753
        %v4703 = vpop.f32.mrb[0].mxu0
        %v4704 = vadd.f32 %v761, %v4703
        %v4705 = vpop.f32.mrb[0].mxu0
        %v4706 = vpop.f32.mrb[0].mxu0
        %v4707 = vadd.f32 %v761, %v4706
        %v4708 = vpop.f32.mrb[0].mxu0
        %4709 = vmatprep.mubr.bf16.mxu0 0
        %4710 = vmatmul.mubr.bf16.gmra.mrb[0].mxu0 %v2756
        %v4711 = vpop.f32.mrb[0].mxu0
        %v4712 = vadd.f32 %v761, %v4711
        %v4713 = vpop.f32.mrb[0].mxu0
        %v4714 = vpop.f32.mrb[0].mxu0
        %v4715 = vadd.f32 %v761, %v4714
        %v4716 = vpop.f32.mrb[0].mxu0
        %4717 = vmatprep.mubr.bf16.mxu0 0
        %4718 = vmatmul.mubr.bf16.gmra.mrb[0].mxu0 %v2759
        %v4719 = vpop.f32.mrb[0].mxu0
        %v4720 = vadd.f32 %v761, %v4719
        %v4721 = vpop.f32.mrb[0].mxu0
        %v4722 = vpop.f32.mrb[0].mxu0
        %v4723 = vadd.f32 %v761, %v4722
        %v4724 = vpop.f32.mrb[0].mxu0
        %4725 = vmatprep.mubr.bf16.mxu0 0
        %4726 = vmatmul.mubr.bf16.gmra.mrb[0].mxu0 %v2762
        %v4727 = vpop.f32.mrb[0].mxu0
        %v4728 = vadd.f32 %v761, %v4727
        %v4729 = vpop.f32.mrb[0].mxu0
        %v4730 = vpop.f32.mrb[0].mxu0
        %v4731 = vadd.f32 %v761, %v4730
        %v4732 = vpop.f32.mrb[0].mxu0
        %4733 = vmatprep.mubr.bf16.mxu0 0
        %4734 = vmatmul.mubr.bf16.gmra.mrb[0].mxu0 %v2765
        %v4735 = vpop.f32.mrb[0].mxu0
        %v4736 = vadd.f32 %v761, %v4735
        %v4737 = vpop.f32.mrb[0].mxu0
        %v4738 = vpop.f32.mrb[0].mxu0
        %v4739 = vadd.f32 %v761, %v4738
        %v4740 = vpop.f32.mrb[0].mxu0
        %4741 = vmatprep.mubr.bf16.mxu0 0
        %4742 = vmatmul.mubr.bf16.gmra.mrb[0].mxu0 %v2768
        %v4743 = vpop.f32.mrb[0].mxu0
        %v4744 = vadd.f32 %v761, %v4743
        %v4745 = vpop.f32.mrb[0].mxu0
        %v4746 = vpop.f32.mrb[0].mxu0
        %v4747 = vadd.f32 %v761, %v4746
        %v4748 = vpop.f32.mrb[0].mxu0
        %4749 = vmatprep.mubr.bf16.mxu0 0
        %4750 = vmatmul.mubr.bf16.gmra.mrb[0].mxu0 %v2771
        %v4751 = vpop.f32.mrb[0].mxu0
        %v4752 = vadd.f32 %v761, %v4751
        %v4753 = vpop.f32.mrb[0].mxu0
        %v4754 = vpop.f32.mrb[0].mxu0
        %v4755 = vadd.f32 %v761, %v4754
        %v4756 = vpop.f32.mrb[0].mxu0
        %4757 = vmatprep.mubr.bf16.mxu0 0
        %4758 = vmatmul.mubr.bf16.gmra.mrb[0].mxu0 %v2774
        %v4759 = vpop.f32.mrb[0].mxu0
        %v4760 = vadd.f32 %v761, %v4759
        %v4761 = vpop.f32.mrb[0].mxu0
        %v4762 = vpop.f32.mrb[0].mxu0
        %v4763 = vadd.f32 %v761, %v4762
        %v4764 = vpop.f32.mrb[0].mxu0
        %4765 = vmatprep.mubr.bf16.mxu0 0
        %4766 = vmatmul.mubr.bf16.gmra.mrb[0].mxu0 %v2777
        %v4767 = vpop.f32.mrb[0].mxu0
        %v4768 = vadd.f32 %v761, %v4767
        %v4769 = vpop.f32.mrb[0].mxu0
        %v4770 = vpop.f32.mrb[0].mxu0
        %v4771 = vadd.f32 %v761, %v4770
        %v4772 = vpop.f32.mrb[0].mxu0
        %4773 = vmatprep.mubr.bf16.mxu0 0
        %4774 = vmatmul.mubr.bf16.gmra.mrb[0].mxu0 %v2780
        %v4775 = vpop.f32.mrb[0].mxu0
        %v4776 = vadd.f32 %v761, %v4775
        %v4777 = vpop.f32.mrb[0].mxu0
        %v4778 = vpop.f32.mrb[0].mxu0
        %v4779 = vadd.f32 %v761, %v4778
        %v4780 = vpop.f32.mrb[0].mxu0
        %4781 = vmatprep.mubr.bf16.mxu0 0
        %4782 = vmatmul.mubr.bf16.gmra.mrb[0].mxu0 %v2783
        %v4783 = vpop.f32.mrb[0].mxu0
        %v4784 = vadd.f32 %v761, %v4783
        %v4785 = vpop.f32.mrb[0].mxu0
        %v4786 = vpop.f32.mrb[0].mxu0
        %v4787 = vadd.f32 %v761, %v4786
        %v4788 = vpop.f32.mrb[0].mxu0
        %4789 = vmatprep.mubr.bf16.mxu0 0
        %4790 = vmatmul.mubr.bf16.gmra.mrb[0].mxu0 %v2786
        %v4791 = vpop.f32.mrb[0].mxu0
        %v4792 = vadd.f32 %v761, %v4791
        %v4793 = vpop.f32.mrb[0].mxu0
        %v4794 = vpop.f32.mrb[0].mxu0
        %v4795 = vadd.f32 %v761, %v4794
        %v4796 = vpop.f32.mrb[0].mxu0
        %4797 = vmatprep.mubr.bf16.mxu0 0
        %4798 = vmatmul.mubr.bf16.gmra.mrb[0].mxu0 %v2789
        %v4799 = vpop.f32.mrb[0].mxu0
        %v4800 = vadd.f32 %v761, %v4799
        %v4801 = vpop.f32.mrb[0].mxu0
        %v4802 = vpop.f32.mrb[0].mxu0
        %v4803 = vadd.f32 %v761, %v4802
        %v4804 = vpop.f32.mrb[0].mxu0
        %4805 = vmatprep.mubr.bf16.mxu0 0
        %4806 = vmatmul.mubr.bf16.gmra.mrb[0].mxu0 %v2792
        %v4807 = vpop.f32.mrb[0].mxu0
        %v4808 = vadd.f32 %v761, %v4807
        %v4809 = vpop.f32.mrb[0].mxu0
        %v4810 = vpop.f32.mrb[0].mxu0
        %v4811 = vadd.f32 %v761, %v4810
        %v4812 = vpop.f32.mrb[0].mxu0
        %4813 = vmatprep.mubr.bf16.mxu0 0
        %4814 = vmatmul.mubr.bf16.gmra.mrb[0].mxu0 %v2795
        %v4815 = vpop.f32.mrb[0].mxu0
        %v4816 = vadd.f32 %v761, %v4815
        %v4817 = vpop.f32.mrb[0].mxu0
        %v4818 = vpop.f32.mrb[0].mxu0
        %v4819 = vadd.f32 %v761, %v4818
        %v4820 = vpop.f32.mrb[0].mxu0
        %4821 = vmatprep.mubr.bf16.mxu0 0
        %4822 = vmatmul.mubr.bf16.gmra.mrb[0].mxu0 %v2798
        %v4823 = vpop.f32.mrb[0].mxu0
        %v4824 = vadd.f32 %v761, %v4823
        %v4825 = vpop.f32.mrb[0].mxu0
        %v4826 = vpop.f32.mrb[0].mxu0
        %v4827 = vadd.f32 %v761, %v4826
        %v4828 = vpop.f32.mrb[0].mxu0
        %4829 = vmatprep.mubr.bf16.mxu0 0
        %4830 = vmatmul.mubr.bf16.gmra.mrb[0].mxu0 %v2801
        %v4831 = vpop.f32.mrb[0].mxu0
        %v4832 = vadd.f32 %v761, %v4831
        %v4833 = vpop.f32.mrb[0].mxu0
        %v4834 = vpop.f32.mrb[0].mxu0
        %v4835 = vadd.f32 %v761, %v4834
        %v4836 = vpop.f32.mrb[0].mxu0
        %4837 = vmatprep.mubr.bf16.mxu0 0
        %4838 = vmatmul.mubr.bf16.gmra.mrb[0].mxu0 %v2804
        %v4839 = vpop.f32.mrb[0].mxu0
        %v4840 = vadd.f32 %v761, %v4839
        %v4841 = vpop.f32.mrb[0].mxu0
        %v4842 = vpop.f32.mrb[0].mxu0
        %v4843 = vadd.f32 %v761, %v4842
        %v4844 = vpop.f32.mrb[0].mxu0
        %4845 = vmatprep.mubr.bf16.mxu0 0
        %4846 = vmatmul.mubr.bf16.gmra.mrb[0].mxu0 %v2807
        %v4847 = vpop.f32.mrb[0].mxu0
        %v4848 = vadd.f32 %v761, %v4847
        %v4849 = vpop.f32.mrb[0].mxu0
        %v4850 = vpop.f32.mrb[0].mxu0
        %v4851 = vadd.f32 %v761, %v4850
        %v4852 = vpop.f32.mrb[0].mxu0
        %4853 = vmatprep.mubr.bf16.mxu0 0
        %4854 = vmatmul.mubr.bf16.gmra.mrb[0].mxu0 %v2810
        %v4855 = vpop.f32.mrb[0].mxu0
        %v4856 = vadd.f32 %v761, %v4855
        %v4857 = vpop.f32.mrb[0].mxu0
        %v4858 = vpop.f32.mrb[0].mxu0
        %v4859 = vadd.f32 %v761, %v4858
        %v4860 = vpop.f32.mrb[0].mxu0
        %4861 = vmatprep.mubr.bf16.mxu0 0
        %4862 = vmatmul.mubr.bf16.gmra.mrb[0].mxu0 %v2813
        %v4863 = vpop.f32.mrb[0].mxu0
        %v4864 = vadd.f32 %v761, %v4863
        %v4865 = vpop.f32.mrb[0].mxu0
        %v4866 = vpop.f32.mrb[0].mxu0
        %v4867 = vadd.f32 %v761, %v4866
        %v4868 = vpop.f32.mrb[0].mxu0
        %4869 = vmatprep.mubr.bf16.mxu0 0
        %4870 = vmatmul.mubr.bf16.gmra.mrb[0].mxu0 %v2816
        %v4871 = vpop.f32.mrb[0].mxu0
        %v4872 = vadd.f32 %v761, %v4871
        %v4873 = vpop.f32.mrb[0].mxu0
        %v4874 = vpop.f32.mrb[0].mxu0
        %v4875 = vadd.f32 %v761, %v4874
        %v4876 = vpop.f32.mrb[0].mxu0
        %4877 = vmatprep.mubr.bf16.mxu0 0
        %4878 = vmatmul.mubr.bf16.gmra.mrb[0].mxu0 %v2819
        %v4879 = vpop.f32.mrb[0].mxu0
        %v4880 = vadd.f32 %v761, %v4879
        %v4881 = vpop.f32.mrb[0].mxu0
        %v4882 = vpop.f32.mrb[0].mxu0
        %v4883 = vadd.f32 %v761, %v4882
        %v4884 = vpop.f32.mrb[0].mxu0
        %4885 = vmatprep.mubr.bf16.mxu0 0
        %4886 = vmatmul.mubr.bf16.gmra.mrb[0].mxu0 %v2822
        %v4887 = vpop.f32.mrb[0].mxu0
        %v4888 = vadd.f32 %v761, %v4887
        %v4889 = vpop.f32.mrb[0].mxu0
        %v4890 = vpop.f32.mrb[0].mxu0
        %v4891 = vadd.f32 %v761, %v4890
        %v4892 = vpop.f32.mrb[0].mxu0
        %4893 = vmatprep.mubr.bf16.mxu0 0
        %4894 = vmatmul.mubr.bf16.gmra.mrb[0].mxu0 %v2825
        %v4895 = vpop.f32.mrb[0].mxu0
        %v4896 = vadd.f32 %v761, %v4895
        %v4897 = vpop.f32.mrb[0].mxu0
        %v4898 = vpop.f32.mrb[0].mxu0
        %v4899 = vadd.f32 %v761, %v4898
        %v4900 = vpop.f32.mrb[0].mxu0
        %4901 = vmatprep.mubr.bf16.mxu0 0
        %4902 = vmatmul.mubr.bf16.gmra.mrb[0].mxu0 %v2828
        %v4903 = vpop.f32.mrb[0].mxu0
        %v4904 = vadd.f32 %v761, %v4903
        %v4905 = vpop.f32.mrb[0].mxu0
        %v4906 = vpop.f32.mrb[0].mxu0
        %v4907 = vadd.f32 %v761, %v4906
        %v4908 = vpop.f32.mrb[0].mxu0
        %4909 = vmatprep.mubr.bf16.mxu0 0
        %4910 = vmatmul.mubr.bf16.gmra.mrb[0].mxu0 %v2831
        %v4911 = vpop.f32.mrb[0].mxu0
        %v4912 = vadd.f32 %v761, %v4911
        %v4913 = vpop.f32.mrb[0].mxu0
        %v4914 = vpop.f32.mrb[0].mxu0
        %v4915 = vadd.f32 %v761, %v4914
        %v4916 = vpop.f32.mrb[0].mxu0
        %4917 = vdwg.mxu0
        %v4918 = vmax.f32 %v2872, 0.0
        %v4919 = vmax.f32 %v2875, 0.0
        %v4920 = vmax.f32 %v2880, 0.0
        %v4921 = vmax.f32 %v2883, 0.0
        %v4922 = vmax.f32 %v2888, 0.0
        %v4923 = vmax.f32 %v2891, 0.0
        %v4924 = vmax.f32 %v2896, 0.0
        %v4925 = vmax.f32 %v2899, 0.0
        %v4926 = vmax.f32 %v2904, 0.0
        %v4927 = vmax.f32 %v2907, 0.0
        %v4928 = vmax.f32 %v2912, 0.0
        %v4929 = vmax.f32 %v2915, 0.0
        %v4930 = vmax.f32 %v2920, 0.0
        %v4931 = vmax.f32 %v2923, 0.0
        %v4932 = vmax.f32 %v2928, 0.0
        %v4933 = vmax.f32 %v2931, 0.0
        %v4934 = vmax.f32 %v2936, 0.0
        %v4935 = vmax.f32 %v2939, 0.0
        %v4936 = vmax.f32 %v2944, 0.0
        %v4937 = vmax.f32 %v2947, 0.0
        %v4938 = vmax.f32 %v2952, 0.0
        %v4939 = vmax.f32 %v2955, 0.0
        %v4940 = vmax.f32 %v2960, 0.0
        %v4941 = vmax.f32 %v2963, 0.0
        %v4942 = vmax.f32 %v2968, 0.0
        %v4943 = vmax.f32 %v2971, 0.0
        %v4944 = vmax.f32 %v2976, 0.0
        %v4945 = vmax.f32 %v2979, 0.0
        %v4946 = vmax.f32 %v2984, 0.0
        %v4947 = vmax.f32 %v2987, 0.0
        %v4948 = vmax.f32 %v2992, 0.0
        %v4949 = vmax.f32 %v2995, 0.0
        %v4950 = vmax.f32 %v3000, 0.0
        %v4951 = vmax.f32 %v3003, 0.0
        %v4952 = vmax.f32 %v3008, 0.0
        %v4953 = vmax.f32 %v3011, 0.0
        %v4954 = vmax.f32 %v3016, 0.0
        %v4955 = vmax.f32 %v3019, 0.0
        %v4956 = vmax.f32 %v3024, 0.0
        %v4957 = vmax.f32 %v3027, 0.0
        %v4958 = vmax.f32 %v3032, 0.0
        %v4959 = vmax.f32 %v3035, 0.0
        %v4960 = vmax.f32 %v3040, 0.0
        %v4961 = vmax.f32 %v3043, 0.0
        %v4962 = vmax.f32 %v3048, 0.0
        %v4963 = vmax.f32 %v3051, 0.0
        %v4964 = vmax.f32 %v3056, 0.0
        %v4965 = vmax.f32 %v3059, 0.0
        %v4966 = vmax.f32 %v3064, 0.0
        %v4967 = vmax.f32 %v3067, 0.0
        %v4968 = vmax.f32 %v3072, 0.0
        %v4969 = vmax.f32 %v3075, 0.0
        %v4970 = vmax.f32 %v3080, 0.0
        %v4971 = vmax.f32 %v3083, 0.0
        %v4972 = vmax.f32 %v3088, 0.0
        %v4973 = vmax.f32 %v3091, 0.0
        %v4974 = vmax.f32 %v3096, 0.0
        %v4975 = vmax.f32 %v3099, 0.0
        %v4976 = vmax.f32 %v3104, 0.0
        %v4977 = vmax.f32 %v3107, 0.0
        %v4978 = vmax.f32 %v3112, 0.0
        %v4979 = vmax.f32 %v3115, 0.0
        %v4980 = vmax.f32 %v3120, 0.0
        %v4981 = vmax.f32 %v3123, 0.0
        %v4982 = vmax.f32 %v3128, 0.0
        %v4983 = vmax.f32 %v3131, 0.0
        %v4984 = vmax.f32 %v3136, 0.0
        %v4985 = vmax.f32 %v3139, 0.0
        %v4986 = vmax.f32 %v3144, 0.0
        %v4987 = vmax.f32 %v3147, 0.0
        %v4988 = vmax.f32 %v3152, 0.0
        %v4989 = vmax.f32 %v3155, 0.0
        %v4990 = vmax.f32 %v3160, 0.0
        %v4991 = vmax.f32 %v3163, 0.0
        %v4992 = vmax.f32 %v3168, 0.0
        %v4993 = vmax.f32 %v3171, 0.0
        %v4994 = vmax.f32 %v3176, 0.0
        %v4995 = vmax.f32 %v3179, 0.0
        %v4996 = vmax.f32 %v3184, 0.0
        %v4997 = vmax.f32 %v3187, 0.0
        %v4998 = vmax.f32 %v3192, 0.0
        %v4999 = vmax.f32 %v3195, 0.0
        %v5000 = vmax.f32 %v3200, 0.0
        %v5001 = vmax.f32 %v3203, 0.0
        %v5002 = vmax.f32 %v3208, 0.0
        %v5003 = vmax.f32 %v3211, 0.0
        %v5004 = vmax.f32 %v3216, 0.0
        %v5005 = vmax.f32 %v3219, 0.0
        %v5006 = vmax.f32 %v3224, 0.0
        %v5007 = vmax.f32 %v3227, 0.0
        %v5008 = vmax.f32 %v3232, 0.0
        %v5009 = vmax.f32 %v3235, 0.0
        %v5010 = vmax.f32 %v3240, 0.0
        %v5011 = vmax.f32 %v3243, 0.0
        %v5012 = vmax.f32 %v3248, 0.0
        %v5013 = vmax.f32 %v3251, 0.0
        %v5014 = vmax.f32 %v3256, 0.0
        %v5015 = vmax.f32 %v3259, 0.0
        %v5016 = vmax.f32 %v3264, 0.0
        %v5017 = vmax.f32 %v3267, 0.0
        %v5018 = vmax.f32 %v3272, 0.0
        %v5019 = vmax.f32 %v3275, 0.0
        %v5020 = vmax.f32 %v3280, 0.0
        %v5021 = vmax.f32 %v3283, 0.0
        %v5022 = vmax.f32 %v3288, 0.0
        %v5023 = vmax.f32 %v3291, 0.0
        %v5024 = vmax.f32 %v3296, 0.0
        %v5025 = vmax.f32 %v3299, 0.0
        %v5026 = vmax.f32 %v3304, 0.0
        %v5027 = vmax.f32 %v3307, 0.0
        %v5028 = vmax.f32 %v3312, 0.0
        %v5029 = vmax.f32 %v3315, 0.0
        %v5030 = vmax.f32 %v3320, 0.0
        %v5031 = vmax.f32 %v3323, 0.0
        %v5032 = vmax.f32 %v3328, 0.0
        %v5033 = vmax.f32 %v3331, 0.0
        %v5034 = vmax.f32 %v3336, 0.0
        %v5035 = vmax.f32 %v3339, 0.0
        %v5036 = vmax.f32 %v3344, 0.0
        %v5037 = vmax.f32 %v3347, 0.0
        %v5038 = vmax.f32 %v3352, 0.0
        %v5039 = vmax.f32 %v3355, 0.0
        %v5040 = vmax.f32 %v3360, 0.0
        %v5041 = vmax.f32 %v3363, 0.0
        %v5042 = vmax.f32 %v3368, 0.0
        %v5043 = vmax.f32 %v3371, 0.0
        %v5044 = vmax.f32 %v3376, 0.0
        %v5045 = vmax.f32 %v3379, 0.0
        %v5046 = vmax.f32 %v3384, 0.0
        %v5047 = vmax.f32 %v3387, 0.0
        %v5048 = vmax.f32 %v3392, 0.0
        %v5049 = vmax.f32 %v3395, 0.0
        %v5050 = vmax.f32 %v3400, 0.0
        %v5051 = vmax.f32 %v3403, 0.0
        %v5052 = vmax.f32 %v3408, 0.0
        %v5053 = vmax.f32 %v3411, 0.0
        %v5054 = vmax.f32 %v3416, 0.0
        %v5055 = vmax.f32 %v3419, 0.0
        %v5056 = vmax.f32 %v3424, 0.0
        %v5057 = vmax.f32 %v3427, 0.0
        %v5058 = vmax.f32 %v3432, 0.0
        %v5059 = vmax.f32 %v3435, 0.0
        %v5060 = vmax.f32 %v3440, 0.0
        %v5061 = vmax.f32 %v3443, 0.0
        %v5062 = vmax.f32 %v3448, 0.0
        %v5063 = vmax.f32 %v3451, 0.0
        %v5064 = vmax.f32 %v3456, 0.0
        %v5065 = vmax.f32 %v3459, 0.0
        %v5066 = vmax.f32 %v3464, 0.0
        %v5067 = vmax.f32 %v3467, 0.0
        %v5068 = vmax.f32 %v3472, 0.0
        %v5069 = vmax.f32 %v3475, 0.0
        %v5070 = vmax.f32 %v3480, 0.0
        %v5071 = vmax.f32 %v3483, 0.0
        %v5072 = vmax.f32 %v3488, 0.0
        %v5073 = vmax.f32 %v3491, 0.0
        %v5074 = vmax.f32 %v3496, 0.0
        %v5075 = vmax.f32 %v3499, 0.0
        %v5076 = vmax.f32 %v3504, 0.0
        %v5077 = vmax.f32 %v3507, 0.0
        %v5078 = vmax.f32 %v3512, 0.0
        %v5079 = vmax.f32 %v3515, 0.0
        %v5080 = vmax.f32 %v3520, 0.0
        %v5081 = vmax.f32 %v3523, 0.0
        %v5082 = vmax.f32 %v3528, 0.0
        %v5083 = vmax.f32 %v3531, 0.0
        %v5084 = vmax.f32 %v3536, 0.0
        %v5085 = vmax.f32 %v3539, 0.0
        %v5086 = vmax.f32 %v3544, 0.0
        %v5087 = vmax.f32 %v3547, 0.0
        %v5088 = vmax.f32 %v3552, 0.0
        %v5089 = vmax.f32 %v3555, 0.0
        %v5090 = vmax.f32 %v3560, 0.0
        %v5091 = vmax.f32 %v3563, 0.0
        %v5092 = vmax.f32 %v3568, 0.0
        %v5093 = vmax.f32 %v3571, 0.0
        %v5094 = vmax.f32 %v3576, 0.0
        %v5095 = vmax.f32 %v3579, 0.0
        %v5096 = vmax.f32 %v3584, 0.0
        %v5097 = vmax.f32 %v3587, 0.0
        %v5098 = vmax.f32 %v3592, 0.0
        %v5099 = vmax.f32 %v3595, 0.0
        %v5100 = vmax.f32 %v3600, 0.0
        %v5101 = vmax.f32 %v3603, 0.0
        %v5102 = vmax.f32 %v3608, 0.0
        %v5103 = vmax.f32 %v3611, 0.0
        %v5104 = vmax.f32 %v3616, 0.0
        %v5105 = vmax.f32 %v3619, 0.0
        %v5106 = vmax.f32 %v3624, 0.0
        %v5107 = vmax.f32 %v3627, 0.0
        %v5108 = vmax.f32 %v3632, 0.0
        %v5109 = vmax.f32 %v3635, 0.0
        %v5110 = vmax.f32 %v3640, 0.0
        %v5111 = vmax.f32 %v3643, 0.0
        %v5112 = vmax.f32 %v3648, 0.0
        %v5113 = vmax.f32 %v3651, 0.0
        %v5114 = vmax.f32 %v3656, 0.0
        %v5115 = vmax.f32 %v3659, 0.0
        %v5116 = vmax.f32 %v3664, 0.0
        %v5117 = vmax.f32 %v3667, 0.0
        %v5118 = vmax.f32 %v3672, 0.0
        %v5119 = vmax.f32 %v3675, 0.0
        %v5120 = vmax.f32 %v3680, 0.0
        %v5121 = vmax.f32 %v3683, 0.0
        %v5122 = vmax.f32 %v3688, 0.0
        %v5123 = vmax.f32 %v3691, 0.0
        %v5124 = vmax.f32 %v3696, 0.0
        %v5125 = vmax.f32 %v3699, 0.0
        %v5126 = vmax.f32 %v3704, 0.0
        %v5127 = vmax.f32 %v3707, 0.0
        %v5128 = vmax.f32 %v3712, 0.0
        %v5129 = vmax.f32 %v3715, 0.0
        %v5130 = vmax.f32 %v3720, 0.0
        %v5131 = vmax.f32 %v3723, 0.0
        %v5132 = vmax.f32 %v3728, 0.0
        %v5133 = vmax.f32 %v3731, 0.0
        %v5134 = vmax.f32 %v3736, 0.0
        %v5135 = vmax.f32 %v3739, 0.0
        %v5136 = vmax.f32 %v3744, 0.0
        %v5137 = vmax.f32 %v3747, 0.0
        %v5138 = vmax.f32 %v3752, 0.0
        %v5139 = vmax.f32 %v3755, 0.0
        %v5140 = vmax.f32 %v3760, 0.0
        %v5141 = vmax.f32 %v3763, 0.0
        %v5142 = vmax.f32 %v3768, 0.0
        %v5143 = vmax.f32 %v3771, 0.0
        %v5144 = vmax.f32 %v3776, 0.0
        %v5145 = vmax.f32 %v3779, 0.0
        %v5146 = vmax.f32 %v3784, 0.0
        %v5147 = vmax.f32 %v3787, 0.0
        %v5148 = vmax.f32 %v3792, 0.0
        %v5149 = vmax.f32 %v3795, 0.0
        %v5150 = vmax.f32 %v3800, 0.0
        %v5151 = vmax.f32 %v3803, 0.0
        %v5152 = vmax.f32 %v3808, 0.0
        %v5153 = vmax.f32 %v3811, 0.0
        %v5154 = vmax.f32 %v3816, 0.0
        %v5155 = vmax.f32 %v3819, 0.0
        %v5156 = vmax.f32 %v3824, 0.0
        %v5157 = vmax.f32 %v3827, 0.0
        %v5158 = vmax.f32 %v3832, 0.0
        %v5159 = vmax.f32 %v3835, 0.0
        %v5160 = vmax.f32 %v3840, 0.0
        %v5161 = vmax.f32 %v3843, 0.0
        %v5162 = vmax.f32 %v3848, 0.0
        %v5163 = vmax.f32 %v3851, 0.0
        %v5164 = vmax.f32 %v3856, 0.0
        %v5165 = vmax.f32 %v3859, 0.0
        %v5166 = vmax.f32 %v3864, 0.0
        %v5167 = vmax.f32 %v3867, 0.0
        %v5168 = vmax.f32 %v3872, 0.0
        %v5169 = vmax.f32 %v3875, 0.0
        %v5170 = vmax.f32 %v3880, 0.0
        %v5171 = vmax.f32 %v3883, 0.0
        %v5172 = vmax.f32 %v3888, 0.0
        %v5173 = vmax.f32 %v3891, 0.0
        %v5174 = vmax.f32 %v3896, 0.0
        %v5175 = vmax.f32 %v3899, 0.0
        %v5176 = vmax.f32 %v3904, 0.0
        %v5177 = vmax.f32 %v3907, 0.0
        %v5178 = vmax.f32 %v3912, 0.0
        %v5179 = vmax.f32 %v3915, 0.0
        %v5180 = vmax.f32 %v3920, 0.0
        %v5181 = vmax.f32 %v3923, 0.0
        %v5182 = vmax.f32 %v3928, 0.0
        %v5183 = vmax.f32 %v3931, 0.0
        %v5184 = vmax.f32 %v3936, 0.0
        %v5185 = vmax.f32 %v3939, 0.0
        %v5186 = vmax.f32 %v3944, 0.0
        %v5187 = vmax.f32 %v3947, 0.0
        %v5188 = vmax.f32 %v3952, 0.0
        %v5189 = vmax.f32 %v3955, 0.0
        %v5190 = vmax.f32 %v3960, 0.0
        %v5191 = vmax.f32 %v3963, 0.0
        %v5192 = vmax.f32 %v3968, 0.0
        %v5193 = vmax.f32 %v3971, 0.0
        %v5194 = vmax.f32 %v3976, 0.0
        %v5195 = vmax.f32 %v3979, 0.0
        %v5196 = vmax.f32 %v3984, 0.0
        %v5197 = vmax.f32 %v3987, 0.0
        %v5198 = vmax.f32 %v3992, 0.0
        %v5199 = vmax.f32 %v3995, 0.0
        %v5200 = vmax.f32 %v4000, 0.0
        %v5201 = vmax.f32 %v4003, 0.0
        %v5202 = vmax.f32 %v4008, 0.0
        %v5203 = vmax.f32 %v4011, 0.0
        %v5204 = vmax.f32 %v4016, 0.0
        %v5205 = vmax.f32 %v4019, 0.0
        %v5206 = vmax.f32 %v4024, 0.0
        %v5207 = vmax.f32 %v4027, 0.0
        %v5208 = vmax.f32 %v4032, 0.0
        %v5209 = vmax.f32 %v4035, 0.0
        %v5210 = vmax.f32 %v4040, 0.0
        %v5211 = vmax.f32 %v4043, 0.0
        %v5212 = vmax.f32 %v4048, 0.0
        %v5213 = vmax.f32 %v4051, 0.0
        %v5214 = vmax.f32 %v4056, 0.0
        %v5215 = vmax.f32 %v4059, 0.0
        %v5216 = vmax.f32 %v4064, 0.0
        %v5217 = vmax.f32 %v4067, 0.0
        %v5218 = vmax.f32 %v4072, 0.0
        %v5219 = vmax.f32 %v4075, 0.0
        %v5220 = vmax.f32 %v4080, 0.0
        %v5221 = vmax.f32 %v4083, 0.0
        %v5222 = vmax.f32 %v4088, 0.0
        %v5223 = vmax.f32 %v4091, 0.0
        %v5224 = vmax.f32 %v4096, 0.0
        %v5225 = vmax.f32 %v4099, 0.0
        %v5226 = vmax.f32 %v4104, 0.0
        %v5227 = vmax.f32 %v4107, 0.0
        %v5228 = vmax.f32 %v4112, 0.0
        %v5229 = vmax.f32 %v4115, 0.0
        %v5230 = vmax.f32 %v4120, 0.0
        %v5231 = vmax.f32 %v4123, 0.0
        %v5232 = vmax.f32 %v4128, 0.0
        %v5233 = vmax.f32 %v4131, 0.0
        %v5234 = vmax.f32 %v4136, 0.0
        %v5235 = vmax.f32 %v4139, 0.0
        %v5236 = vmax.f32 %v4144, 0.0
        %v5237 = vmax.f32 %v4147, 0.0
        %v5238 = vmax.f32 %v4152, 0.0
        %v5239 = vmax.f32 %v4155, 0.0
        %v5240 = vmax.f32 %v4160, 0.0
        %v5241 = vmax.f32 %v4163, 0.0
        %v5242 = vmax.f32 %v4168, 0.0
        %v5243 = vmax.f32 %v4171, 0.0
        %v5244 = vmax.f32 %v4176, 0.0
        %v5245 = vmax.f32 %v4179, 0.0
        %v5246 = vmax.f32 %v4184, 0.0
        %v5247 = vmax.f32 %v4187, 0.0
        %v5248 = vmax.f32 %v4192, 0.0
        %v5249 = vmax.f32 %v4195, 0.0
        %v5250 = vmax.f32 %v4200, 0.0
        %v5251 = vmax.f32 %v4203, 0.0
        %v5252 = vmax.f32 %v4208, 0.0
        %v5253 = vmax.f32 %v4211, 0.0
        %v5254 = vmax.f32 %v4216, 0.0
        %v5255 = vmax.f32 %v4219, 0.0
        %v5256 = vmax.f32 %v4224, 0.0
        %v5257 = vmax.f32 %v4227, 0.0
        %v5258 = vmax.f32 %v4232, 0.0
        %v5259 = vmax.f32 %v4235, 0.0
        %v5260 = vmax.f32 %v4240, 0.0
        %v5261 = vmax.f32 %v4243, 0.0
        %v5262 = vmax.f32 %v4248, 0.0
        %v5263 = vmax.f32 %v4251, 0.0
        %v5264 = vmax.f32 %v4256, 0.0
        %v5265 = vmax.f32 %v4259, 0.0
        %v5266 = vmax.f32 %v4264, 0.0
        %v5267 = vmax.f32 %v4267, 0.0
        %v5268 = vmax.f32 %v4272, 0.0
        %v5269 = vmax.f32 %v4275, 0.0
        %v5270 = vmax.f32 %v4280, 0.0
        %v5271 = vmax.f32 %v4283, 0.0
        %v5272 = vmax.f32 %v4288, 0.0
        %v5273 = vmax.f32 %v4291, 0.0
        %v5274 = vmax.f32 %v4296, 0.0
        %v5275 = vmax.f32 %v4299, 0.0
        %v5276 = vmax.f32 %v4304, 0.0
        %v5277 = vmax.f32 %v4307, 0.0
        %v5278 = vmax.f32 %v4312, 0.0
        %v5279 = vmax.f32 %v4315, 0.0
        %v5280 = vmax.f32 %v4320, 0.0
        %v5281 = vmax.f32 %v4323, 0.0
        %v5282 = vmax.f32 %v4328, 0.0
        %v5283 = vmax.f32 %v4331, 0.0
        %v5284 = vmax.f32 %v4336, 0.0
        %v5285 = vmax.f32 %v4339, 0.0
        %v5286 = vmax.f32 %v4344, 0.0
        %v5287 = vmax.f32 %v4347, 0.0
        %v5288 = vmax.f32 %v4352, 0.0
        %v5289 = vmax.f32 %v4355, 0.0
        %v5290 = vmax.f32 %v4360, 0.0
        %v5291 = vmax.f32 %v4363, 0.0
        %v5292 = vmax.f32 %v4368, 0.0
        %v5293 = vmax.f32 %v4371, 0.0
        %v5294 = vmax.f32 %v4376, 0.0
        %v5295 = vmax.f32 %v4379, 0.0
        %v5296 = vmax.f32 %v4384, 0.0
        %v5297 = vmax.f32 %v4387, 0.0
        %v5298 = vmax.f32 %v4392, 0.0
        %v5299 = vmax.f32 %v4395, 0.0
        %v5300 = vmax.f32 %v4400, 0.0
        %v5301 = vmax.f32 %v4403, 0.0
        %v5302 = vmax.f32 %v4408, 0.0
        %v5303 = vmax.f32 %v4411, 0.0
        %v5304 = vmax.f32 %v4416, 0.0
        %v5305 = vmax.f32 %v4419, 0.0
        %v5306 = vmax.f32 %v4424, 0.0
        %v5307 = vmax.f32 %v4427, 0.0
        %v5308 = vmax.f32 %v4432, 0.0
        %v5309 = vmax.f32 %v4435, 0.0
        %v5310 = vmax.f32 %v4440, 0.0
        %v5311 = vmax.f32 %v4443, 0.0
        %v5312 = vmax.f32 %v4448, 0.0
        %v5313 = vmax.f32 %v4451, 0.0
        %v5314 = vmax.f32 %v4456, 0.0
        %v5315 = vmax.f32 %v4459, 0.0
        %v5316 = vmax.f32 %v4464, 0.0
        %v5317 = vmax.f32 %v4467, 0.0
        %v5318 = vmax.f32 %v4472, 0.0
        %v5319 = vmax.f32 %v4475, 0.0
        %v5320 = vmax.f32 %v4480, 0.0
        %v5321 = vmax.f32 %v4483, 0.0
        %v5322 = vmax.f32 %v4488, 0.0
        %v5323 = vmax.f32 %v4491, 0.0
        %v5324 = vmax.f32 %v4496, 0.0
        %v5325 = vmax.f32 %v4499, 0.0
        %v5326 = vmax.f32 %v4504, 0.0
        %v5327 = vmax.f32 %v4507, 0.0
        %v5328 = vmax.f32 %v4512, 0.0
        %v5329 = vmax.f32 %v4515, 0.0
        %v5330 = vmax.f32 %v4520, 0.0
        %v5331 = vmax.f32 %v4523, 0.0
        %v5332 = vmax.f32 %v4528, 0.0
        %v5333 = vmax.f32 %v4531, 0.0
        %v5334 = vmax.f32 %v4536, 0.0
        %v5335 = vmax.f32 %v4539, 0.0
        %v5336 = vmax.f32 %v4544, 0.0
        %v5337 = vmax.f32 %v4547, 0.0
        %v5338 = vmax.f32 %v4552, 0.0
        %v5339 = vmax.f32 %v4555, 0.0
        %v5340 = vmax.f32 %v4560, 0.0
        %v5341 = vmax.f32 %v4563, 0.0
        %v5342 = vmax.f32 %v4568, 0.0
        %v5343 = vmax.f32 %v4571, 0.0
        %v5344 = vmax.f32 %v4576, 0.0
        %v5345 = vmax.f32 %v4579, 0.0
        %v5346 = vmax.f32 %v4584, 0.0
        %v5347 = vmax.f32 %v4587, 0.0
        %v5348 = vmax.f32 %v4592, 0.0
        %v5349 = vmax.f32 %v4595, 0.0
        %v5350 = vmax.f32 %v4600, 0.0
        %v5351 = vmax.f32 %v4603, 0.0
        %v5352 = vmax.f32 %v4608, 0.0
        %v5353 = vmax.f32 %v4611, 0.0
        %v5354 = vmax.f32 %v4616, 0.0
        %v5355 = vmax.f32 %v4619, 0.0
        %v5356 = vmax.f32 %v4624, 0.0
        %v5357 = vmax.f32 %v4627, 0.0
        %v5358 = vmax.f32 %v4632, 0.0
        %v5359 = vmax.f32 %v4635, 0.0
        %v5360 = vmax.f32 %v4640, 0.0
        %v5361 = vmax.f32 %v4643, 0.0
        %v5362 = vmax.f32 %v4648, 0.0
        %v5363 = vmax.f32 %v4651, 0.0
        %v5364 = vmax.f32 %v4656, 0.0
        %v5365 = vmax.f32 %v4659, 0.0
        %v5366 = vmax.f32 %v4664, 0.0
        %v5367 = vmax.f32 %v4667, 0.0
        %v5368 = vmax.f32 %v4672, 0.0
        %v5369 = vmax.f32 %v4675, 0.0
        %v5370 = vmax.f32 %v4680, 0.0
        %v5371 = vmax.f32 %v4683, 0.0
        %v5372 = vmax.f32 %v4688, 0.0
        %v5373 = vmax.f32 %v4691, 0.0
        %v5374 = vmax.f32 %v4696, 0.0
        %v5375 = vmax.f32 %v4699, 0.0
        %v5376 = vmax.f32 %v4704, 0.0
        %v5377 = vmax.f32 %v4707, 0.0
        %v5378 = vmax.f32 %v4712, 0.0
        %v5379 = vmax.f32 %v4715, 0.0
        %v5380 = vmax.f32 %v4720, 0.0
        %v5381 = vmax.f32 %v4723, 0.0
        %v5382 = vmax.f32 %v4728, 0.0
        %v5383 = vmax.f32 %v4731, 0.0
        %v5384 = vmax.f32 %v4736, 0.0
        %v5385 = vmax.f32 %v4739, 0.0
        %v5386 = vmax.f32 %v4744, 0.0
        %v5387 = vmax.f32 %v4747, 0.0
        %v5388 = vmax.f32 %v4752, 0.0
        %v5389 = vmax.f32 %v4755, 0.0
        %v5390 = vmax.f32 %v4760, 0.0
        %v5391 = vmax.f32 %v4763, 0.0
        %v5392 = vmax.f32 %v4768, 0.0
        %v5393 = vmax.f32 %v4771, 0.0
        %v5394 = vmax.f32 %v4776, 0.0
        %v5395 = vmax.f32 %v4779, 0.0
        %v5396 = vmax.f32 %v4784, 0.0
        %v5397 = vmax.f32 %v4787, 0.0
        %v5398 = vmax.f32 %v4792, 0.0
        %v5399 = vmax.f32 %v4795, 0.0
        %v5400 = vmax.f32 %v4800, 0.0
        %v5401 = vmax.f32 %v4803, 0.0
        %v5402 = vmax.f32 %v4808, 0.0
        %v5403 = vmax.f32 %v4811, 0.0
        %v5404 = vmax.f32 %v4816, 0.0
        %v5405 = vmax.f32 %v4819, 0.0
        %v5406 = vmax.f32 %v4824, 0.0
        %v5407 = vmax.f32 %v4827, 0.0
        %v5408 = vmax.f32 %v4832, 0.0
        %v5409 = vmax.f32 %v4835, 0.0
        %v5410 = vmax.f32 %v4840, 0.0
        %v5411 = vmax.f32 %v4843, 0.0
        %v5412 = vmax.f32 %v4848, 0.0
        %v5413 = vmax.f32 %v4851, 0.0
        %v5414 = vmax.f32 %v4856, 0.0
        %v5415 = vmax.f32 %v4859, 0.0
        %v5416 = vmax.f32 %v4864, 0.0
        %v5417 = vmax.f32 %v4867, 0.0
        %v5418 = vmax.f32 %v4872, 0.0
        %v5419 = vmax.f32 %v4875, 0.0
        %v5420 = vmax.f32 %v4880, 0.0
        %v5421 = vmax.f32 %v4883, 0.0
        %v5422 = vmax.f32 %v4888, 0.0
        %v5423 = vmax.f32 %v4891, 0.0
        %v5424 = vmax.f32 %v4896, 0.0
        %v5425 = vmax.f32 %v4899, 0.0
        %v5426 = vmax.f32 %v4904, 0.0
        %v5427 = vmax.f32 %v4907, 0.0
        %v5428 = vmax.f32 %v4912, 0.0
        %v5429 = vmax.f32 %v4915, 0.0
        %v5430 = vpack.c.bf16 %v4919, %v4918
        %v5431 = vpack.c.bf16 %v4921, %v4920
        %v5432 = vpack.c.bf16 %v4923, %v4922
        %v5433 = vpack.c.bf16 %v4925, %v4924
        %v5434 = vpack.c.bf16 %v4927, %v4926
        %v5435 = vpack.c.bf16 %v4929, %v4928
        %v5436 = vpack.c.bf16 %v4931, %v4930
        %v5437 = vpack.c.bf16 %v4933, %v4932
        %v5438 = vpack.c.bf16 %v4935, %v4934
        %v5439 = vpack.c.bf16 %v4937, %v4936
        %v5440 = vpack.c.bf16 %v4939, %v4938
        %v5441 = vpack.c.bf16 %v4941, %v4940
        %v5442 = vpack.c.bf16 %v4943, %v4942
        %v5443 = vpack.c.bf16 %v4945, %v4944
        %v5444 = vpack.c.bf16 %v4947, %v4946
        %v5445 = vpack.c.bf16 %v4949, %v4948
        %v5446 = vpack.c.bf16 %v4951, %v4950
        %v5447 = vpack.c.bf16 %v4953, %v4952
        %v5448 = vpack.c.bf16 %v4955, %v4954
        %v5449 = vpack.c.bf16 %v4957, %v4956
        %v5450 = vpack.c.bf16 %v4959, %v4958
        %v5451 = vpack.c.bf16 %v4961, %v4960
        %v5452 = vpack.c.bf16 %v4963, %v4962
        %v5453 = vpack.c.bf16 %v4965, %v4964
        %v5454 = vpack.c.bf16 %v4967, %v4966
        %v5455 = vpack.c.bf16 %v4969, %v4968
        %v5456 = vpack.c.bf16 %v4971, %v4970
        %v5457 = vpack.c.bf16 %v4973, %v4972
        %v5458 = vpack.c.bf16 %v4975, %v4974
        %v5459 = vpack.c.bf16 %v4977, %v4976
        %v5460 = vpack.c.bf16 %v4979, %v4978
        %v5461 = vpack.c.bf16 %v4981, %v4980
        %v5462 = vpack.c.bf16 %v4983, %v4982
        %v5463 = vpack.c.bf16 %v4985, %v4984
        %v5464 = vpack.c.bf16 %v4987, %v4986
        %v5465 = vpack.c.bf16 %v4989, %v4988
        %v5466 = vpack.c.bf16 %v4991, %v4990
        %v5467 = vpack.c.bf16 %v4993, %v4992
        %v5468 = vpack.c.bf16 %v4995, %v4994
        %v5469 = vpack.c.bf16 %v4997, %v4996
        %v5470 = vpack.c.bf16 %v4999, %v4998
        %v5471 = vpack.c.bf16 %v5001, %v5000
        %v5472 = vpack.c.bf16 %v5003, %v5002
        %v5473 = vpack.c.bf16 %v5005, %v5004
        %v5474 = vpack.c.bf16 %v5007, %v5006
        %v5475 = vpack.c.bf16 %v5009, %v5008
        %v5476 = vpack.c.bf16 %v5011, %v5010
        %v5477 = vpack.c.bf16 %v5013, %v5012
        %v5478 = vpack.c.bf16 %v5015, %v5014
        %v5479 = vpack.c.bf16 %v5017, %v5016
        %v5480 = vpack.c.bf16 %v5019, %v5018
        %v5481 = vpack.c.bf16 %v5021, %v5020
        %v5482 = vpack.c.bf16 %v5023, %v5022
        %v5483 = vpack.c.bf16 %v5025, %v5024
        %v5484 = vpack.c.bf16 %v5027, %v5026
        %v5485 = vpack.c.bf16 %v5029, %v5028
        %v5486 = vpack.c.bf16 %v5031, %v5030
        %v5487 = vpack.c.bf16 %v5033, %v5032
        %v5488 = vpack.c.bf16 %v5035, %v5034
        %v5489 = vpack.c.bf16 %v5037, %v5036
        %v5490 = vpack.c.bf16 %v5039, %v5038
        %v5491 = vpack.c.bf16 %v5041, %v5040
        %v5492 = vpack.c.bf16 %v5043, %v5042
        %v5493 = vpack.c.bf16 %v5045, %v5044
        %v5494 = vpack.c.bf16 %v5047, %v5046
        %v5495 = vpack.c.bf16 %v5049, %v5048
        %v5496 = vpack.c.bf16 %v5051, %v5050
        %v5497 = vpack.c.bf16 %v5053, %v5052
        %v5498 = vpack.c.bf16 %v5055, %v5054
        %v5499 = vpack.c.bf16 %v5057, %v5056
        %v5500 = vpack.c.bf16 %v5059, %v5058
        %v5501 = vpack.c.bf16 %v5061, %v5060
        %v5502 = vpack.c.bf16 %v5063, %v5062
        %v5503 = vpack.c.bf16 %v5065, %v5064
        %v5504 = vpack.c.bf16 %v5067, %v5066
        %v5505 = vpack.c.bf16 %v5069, %v5068
        %v5506 = vpack.c.bf16 %v5071, %v5070
        %v5507 = vpack.c.bf16 %v5073, %v5072
        %v5508 = vpack.c.bf16 %v5075, %v5074
        %v5509 = vpack.c.bf16 %v5077, %v5076
        %v5510 = vpack.c.bf16 %v5079, %v5078
        %v5511 = vpack.c.bf16 %v5081, %v5080
        %v5512 = vpack.c.bf16 %v5083, %v5082
        %v5513 = vpack.c.bf16 %v5085, %v5084
        %v5514 = vpack.c.bf16 %v5087, %v5086
        %v5515 = vpack.c.bf16 %v5089, %v5088
        %v5516 = vpack.c.bf16 %v5091, %v5090
        %v5517 = vpack.c.bf16 %v5093, %v5092
        %v5518 = vpack.c.bf16 %v5095, %v5094
        %v5519 = vpack.c.bf16 %v5097, %v5096
        %v5520 = vpack.c.bf16 %v5099, %v5098
        %v5521 = vpack.c.bf16 %v5101, %v5100
        %v5522 = vpack.c.bf16 %v5103, %v5102
        %v5523 = vpack.c.bf16 %v5105, %v5104
        %v5524 = vpack.c.bf16 %v5107, %v5106
        %v5525 = vpack.c.bf16 %v5109, %v5108
        %v5526 = vpack.c.bf16 %v5111, %v5110
        %v5527 = vpack.c.bf16 %v5113, %v5112
        %v5528 = vpack.c.bf16 %v5115, %v5114
        %v5529 = vpack.c.bf16 %v5117, %v5116
        %v5530 = vpack.c.bf16 %v5119, %v5118
        %v5531 = vpack.c.bf16 %v5121, %v5120
        %v5532 = vpack.c.bf16 %v5123, %v5122
        %v5533 = vpack.c.bf16 %v5125, %v5124
        %v5534 = vpack.c.bf16 %v5127, %v5126
        %v5535 = vpack.c.bf16 %v5129, %v5128
        %v5536 = vpack.c.bf16 %v5131, %v5130
        %v5537 = vpack.c.bf16 %v5133, %v5132
        %v5538 = vpack.c.bf16 %v5135, %v5134
        %v5539 = vpack.c.bf16 %v5137, %v5136
        %v5540 = vpack.c.bf16 %v5139, %v5138
        %v5541 = vpack.c.bf16 %v5141, %v5140
        %v5542 = vpack.c.bf16 %v5143, %v5142
        %v5543 = vpack.c.bf16 %v5145, %v5144
        %v5544 = vpack.c.bf16 %v5147, %v5146
        %v5545 = vpack.c.bf16 %v5149, %v5148
        %v5546 = vpack.c.bf16 %v5151, %v5150
        %v5547 = vpack.c.bf16 %v5153, %v5152
        %v5548 = vpack.c.bf16 %v5155, %v5154
        %v5549 = vpack.c.bf16 %v5157, %v5156
        %v5550 = vpack.c.bf16 %v5159, %v5158
        %v5551 = vpack.c.bf16 %v5161, %v5160
        %v5552 = vpack.c.bf16 %v5163, %v5162
        %v5553 = vpack.c.bf16 %v5165, %v5164
        %v5554 = vpack.c.bf16 %v5167, %v5166
        %v5555 = vpack.c.bf16 %v5169, %v5168
        %v5556 = vpack.c.bf16 %v5171, %v5170
        %v5557 = vpack.c.bf16 %v5173, %v5172
        %v5558 = vpack.c.bf16 %v5175, %v5174
        %v5559 = vpack.c.bf16 %v5177, %v5176
        %v5560 = vpack.c.bf16 %v5179, %v5178
        %v5561 = vpack.c.bf16 %v5181, %v5180
        %v5562 = vpack.c.bf16 %v5183, %v5182
        %v5563 = vpack.c.bf16 %v5185, %v5184
        %v5564 = vpack.c.bf16 %v5187, %v5186
        %v5565 = vpack.c.bf16 %v5189, %v5188
        %v5566 = vpack.c.bf16 %v5191, %v5190
        %v5567 = vpack.c.bf16 %v5193, %v5192
        %v5568 = vpack.c.bf16 %v5195, %v5194
        %v5569 = vpack.c.bf16 %v5197, %v5196
        %v5570 = vpack.c.bf16 %v5199, %v5198
        %v5571 = vpack.c.bf16 %v5201, %v5200
        %v5572 = vpack.c.bf16 %v5203, %v5202
        %v5573 = vpack.c.bf16 %v5205, %v5204
        %v5574 = vpack.c.bf16 %v5207, %v5206
        %v5575 = vpack.c.bf16 %v5209, %v5208
        %v5576 = vpack.c.bf16 %v5211, %v5210
        %v5577 = vpack.c.bf16 %v5213, %v5212
        %v5578 = vpack.c.bf16 %v5215, %v5214
        %v5579 = vpack.c.bf16 %v5217, %v5216
        %v5580 = vpack.c.bf16 %v5219, %v5218
        %v5581 = vpack.c.bf16 %v5221, %v5220
        %v5582 = vpack.c.bf16 %v5223, %v5222
        %v5583 = vpack.c.bf16 %v5225, %v5224
        %v5584 = vpack.c.bf16 %v5227, %v5226
        %v5585 = vpack.c.bf16 %v5229, %v5228
        %v5586 = vpack.c.bf16 %v5231, %v5230
        %v5587 = vpack.c.bf16 %v5233, %v5232
        %v5588 = vpack.c.bf16 %v5235, %v5234
        %v5589 = vpack.c.bf16 %v5237, %v5236
        %v5590 = vpack.c.bf16 %v5239, %v5238
        %v5591 = vpack.c.bf16 %v5241, %v5240
        %v5592 = vpack.c.bf16 %v5243, %v5242
        %v5593 = vpack.c.bf16 %v5245, %v5244
        %v5594 = vpack.c.bf16 %v5247, %v5246
        %v5595 = vpack.c.bf16 %v5249, %v5248
        %v5596 = vpack.c.bf16 %v5251, %v5250
        %v5597 = vpack.c.bf16 %v5253, %v5252
        %v5598 = vpack.c.bf16 %v5255, %v5254
        %v5599 = vpack.c.bf16 %v5257, %v5256
        %v5600 = vpack.c.bf16 %v5259, %v5258
        %v5601 = vpack.c.bf16 %v5261, %v5260
        %v5602 = vpack.c.bf16 %v5263, %v5262
        %v5603 = vpack.c.bf16 %v5265, %v5264
        %v5604 = vpack.c.bf16 %v5267, %v5266
        %v5605 = vpack.c.bf16 %v5269, %v5268
        %v5606 = vpack.c.bf16 %v5271, %v5270
        %v5607 = vpack.c.bf16 %v5273, %v5272
        %v5608 = vpack.c.bf16 %v5275, %v5274
        %v5609 = vpack.c.bf16 %v5277, %v5276
        %v5610 = vpack.c.bf16 %v5279, %v5278
        %v5611 = vpack.c.bf16 %v5281, %v5280
        %v5612 = vpack.c.bf16 %v5283, %v5282
        %v5613 = vpack.c.bf16 %v5285, %v5284
        %v5614 = vpack.c.bf16 %v5287, %v5286
        %v5615 = vpack.c.bf16 %v5289, %v5288
        %v5616 = vpack.c.bf16 %v5291, %v5290
        %v5617 = vpack.c.bf16 %v5293, %v5292
        %v5618 = vpack.c.bf16 %v5295, %v5294
        %v5619 = vpack.c.bf16 %v5297, %v5296
        %v5620 = vpack.c.bf16 %v5299, %v5298
        %v5621 = vpack.c.bf16 %v5301, %v5300
        %v5622 = vpack.c.bf16 %v5303, %v5302
        %v5623 = vpack.c.bf16 %v5305, %v5304
        %v5624 = vpack.c.bf16 %v5307, %v5306
        %v5625 = vpack.c.bf16 %v5309, %v5308
        %v5626 = vpack.c.bf16 %v5311, %v5310
        %v5627 = vpack.c.bf16 %v5313, %v5312
        %v5628 = vpack.c.bf16 %v5315, %v5314
        %v5629 = vpack.c.bf16 %v5317, %v5316
        %v5630 = vpack.c.bf16 %v5319, %v5318
        %v5631 = vpack.c.bf16 %v5321, %v5320
        %v5632 = vpack.c.bf16 %v5323, %v5322
        %v5633 = vpack.c.bf16 %v5325, %v5324
        %v5634 = vpack.c.bf16 %v5327, %v5326
        %v5635 = vpack.c.bf16 %v5329, %v5328
        %v5636 = vpack.c.bf16 %v5331, %v5330
        %v5637 = vpack.c.bf16 %v5333, %v5332
        %v5638 = vpack.c.bf16 %v5335, %v5334
        %v5639 = vpack.c.bf16 %v5337, %v5336
        %v5640 = vpack.c.bf16 %v5339, %v5338
        %v5641 = vpack.c.bf16 %v5341, %v5340
        %v5642 = vpack.c.bf16 %v5343, %v5342
        %v5643 = vpack.c.bf16 %v5345, %v5344
        %v5644 = vpack.c.bf16 %v5347, %v5346
        %v5645 = vpack.c.bf16 %v5349, %v5348
        %v5646 = vpack.c.bf16 %v5351, %v5350
        %v5647 = vpack.c.bf16 %v5353, %v5352
        %v5648 = vpack.c.bf16 %v5355, %v5354
        %v5649 = vpack.c.bf16 %v5357, %v5356
        %v5650 = vpack.c.bf16 %v5359, %v5358
        %v5651 = vpack.c.bf16 %v5361, %v5360
        %v5652 = vpack.c.bf16 %v5363, %v5362
        %v5653 = vpack.c.bf16 %v5365, %v5364
        %v5654 = vpack.c.bf16 %v5367, %v5366
        %v5655 = vpack.c.bf16 %v5369, %v5368
        %v5656 = vpack.c.bf16 %v5371, %v5370
        %v5657 = vpack.c.bf16 %v5373, %v5372
        %v5658 = vpack.c.bf16 %v5375, %v5374
        %v5659 = vpack.c.bf16 %v5377, %v5376
        %v5660 = vpack.c.bf16 %v5379, %v5378
        %v5661 = vpack.c.bf16 %v5381, %v5380
        %v5662 = vpack.c.bf16 %v5383, %v5382
        %v5663 = vpack.c.bf16 %v5385, %v5384
        %v5664 = vpack.c.bf16 %v5387, %v5386
        %v5665 = vpack.c.bf16 %v5389, %v5388
        %v5666 = vpack.c.bf16 %v5391, %v5390
        %v5667 = vpack.c.bf16 %v5393, %v5392
        %v5668 = vpack.c.bf16 %v5395, %v5394
        %v5669 = vpack.c.bf16 %v5397, %v5396
        %v5670 = vpack.c.bf16 %v5399, %v5398
        %v5671 = vpack.c.bf16 %v5401, %v5400
        %v5672 = vpack.c.bf16 %v5403, %v5402
        %v5673 = vpack.c.bf16 %v5405, %v5404
        %v5674 = vpack.c.bf16 %v5407, %v5406
        %v5675 = vpack.c.bf16 %v5409, %v5408
        %v5676 = vpack.c.bf16 %v5411, %v5410
        %v5677 = vpack.c.bf16 %v5413, %v5412
        %v5678 = vpack.c.bf16 %v5415, %v5414
        %v5679 = vpack.c.bf16 %v5417, %v5416
        %v5680 = vpack.c.bf16 %v5419, %v5418
        %v5681 = vpack.c.bf16 %v5421, %v5420
        %v5682 = vpack.c.bf16 %v5423, %v5422
        %v5683 = vpack.c.bf16 %v5425, %v5424
        %v5684 = vpack.c.bf16 %v5427, %v5426
        %v5685 = vpack.c.bf16 %v5429, %v5428
        %v5942 = vunpack.c.l.b16 %v5430
        %v5943 = vunpack.c.h.b16 %v5430
        %v5944 = vunpack.c.l.b16 %v5431
        %v5945 = vunpack.c.h.b16 %v5431
        %v5946 = vunpack.c.l.b16 %v5432
        %v5947 = vunpack.c.h.b16 %v5432
        %v5948 = vunpack.c.l.b16 %v5433
        %v5949 = vunpack.c.h.b16 %v5433
        %v5950 = vunpack.c.l.b16 %v5434
        %v5951 = vunpack.c.h.b16 %v5434
        %v5952 = vunpack.c.l.b16 %v5435
        %v5953 = vunpack.c.h.b16 %v5435
        %v5954 = vunpack.c.l.b16 %v5436
        %v5955 = vunpack.c.h.b16 %v5436
        %v5956 = vunpack.c.l.b16 %v5437
        %v5957 = vunpack.c.h.b16 %v5437
        %v5958 = vunpack.c.l.b16 %v5438
        %v5959 = vunpack.c.h.b16 %v5438
        %v5960 = vunpack.c.l.b16 %v5439
        %v5961 = vunpack.c.h.b16 %v5439
        %v5962 = vunpack.c.l.b16 %v5440
        %v5963 = vunpack.c.h.b16 %v5440
        %v5964 = vunpack.c.l.b16 %v5441
        %v5965 = vunpack.c.h.b16 %v5441
        %v5966 = vunpack.c.l.b16 %v5442
        %v5967 = vunpack.c.h.b16 %v5442
        %v5968 = vunpack.c.l.b16 %v5443
        %v5969 = vunpack.c.h.b16 %v5443
        %v5970 = vunpack.c.l.b16 %v5444
        %v5971 = vunpack.c.h.b16 %v5444
        %v5972 = vunpack.c.l.b16 %v5445
        %v5973 = vunpack.c.h.b16 %v5445
        %v5974 = vunpack.c.l.b16 %v5446
        %v5975 = vunpack.c.h.b16 %v5446
        %v5976 = vunpack.c.l.b16 %v5447
        %v5977 = vunpack.c.h.b16 %v5447
        %v5978 = vunpack.c.l.b16 %v5448
        %v5979 = vunpack.c.h.b16 %v5448
        %v5980 = vunpack.c.l.b16 %v5449
        %v5981 = vunpack.c.h.b16 %v5449
        %v5982 = vunpack.c.l.b16 %v5450
        %v5983 = vunpack.c.h.b16 %v5450
        %v5984 = vunpack.c.l.b16 %v5451
        %v5985 = vunpack.c.h.b16 %v5451
        %v5986 = vunpack.c.l.b16 %v5452
        %v5987 = vunpack.c.h.b16 %v5452
        %v5988 = vunpack.c.l.b16 %v5453
        %v5989 = vunpack.c.h.b16 %v5453
        %v5990 = vunpack.c.l.b16 %v5454
        %v5991 = vunpack.c.h.b16 %v5454
        %v5992 = vunpack.c.l.b16 %v5455
        %v5993 = vunpack.c.h.b16 %v5455
        %v5994 = vunpack.c.l.b16 %v5456
        %v5995 = vunpack.c.h.b16 %v5456
        %v5996 = vunpack.c.l.b16 %v5457
        %v5997 = vunpack.c.h.b16 %v5457
        %v5998 = vunpack.c.l.b16 %v5458
        %v5999 = vunpack.c.h.b16 %v5458
        %v6000 = vunpack.c.l.b16 %v5459
        %v6001 = vunpack.c.h.b16 %v5459
        %v6002 = vunpack.c.l.b16 %v5460
        %v6003 = vunpack.c.h.b16 %v5460
        %v6004 = vunpack.c.l.b16 %v5461
        %v6005 = vunpack.c.h.b16 %v5461
        %v6006 = vunpack.c.l.b16 %v5462
        %v6007 = vunpack.c.h.b16 %v5462
        %v6008 = vunpack.c.l.b16 %v5463
        %v6009 = vunpack.c.h.b16 %v5463
        %v6010 = vunpack.c.l.b16 %v5464
        %v6011 = vunpack.c.h.b16 %v5464
        %v6012 = vunpack.c.l.b16 %v5465
        %v6013 = vunpack.c.h.b16 %v5465
        %v6014 = vunpack.c.l.b16 %v5466
        %v6015 = vunpack.c.h.b16 %v5466
        %v6016 = vunpack.c.l.b16 %v5467
        %v6017 = vunpack.c.h.b16 %v5467
        %v6018 = vunpack.c.l.b16 %v5468
        %v6019 = vunpack.c.h.b16 %v5468
        %v6020 = vunpack.c.l.b16 %v5469
        %v6021 = vunpack.c.h.b16 %v5469
        %v6022 = vunpack.c.l.b16 %v5470
        %v6023 = vunpack.c.h.b16 %v5470
        %v6024 = vunpack.c.l.b16 %v5471
        %v6025 = vunpack.c.h.b16 %v5471
        %v6026 = vunpack.c.l.b16 %v5472
        %v6027 = vunpack.c.h.b16 %v5472
        %v6028 = vunpack.c.l.b16 %v5473
        %v6029 = vunpack.c.h.b16 %v5473
        %v6030 = vunpack.c.l.b16 %v5474
        %v6031 = vunpack.c.h.b16 %v5474
        %v6032 = vunpack.c.l.b16 %v5475
        %v6033 = vunpack.c.h.b16 %v5475
        %v6034 = vunpack.c.l.b16 %v5476
        %v6035 = vunpack.c.h.b16 %v5476
        %v6036 = vunpack.c.l.b16 %v5477
        %v6037 = vunpack.c.h.b16 %v5477
        %v6038 = vunpack.c.l.b16 %v5478
        %v6039 = vunpack.c.h.b16 %v5478
        %v6040 = vunpack.c.l.b16 %v5479
        %v6041 = vunpack.c.h.b16 %v5479
        %v6042 = vunpack.c.l.b16 %v5480
        %v6043 = vunpack.c.h.b16 %v5480
        %v6044 = vunpack.c.l.b16 %v5481
        %v6045 = vunpack.c.h.b16 %v5481
        %v6046 = vunpack.c.l.b16 %v5482
        %v6047 = vunpack.c.h.b16 %v5482
        %v6048 = vunpack.c.l.b16 %v5483
        %v6049 = vunpack.c.h.b16 %v5483
        %v6050 = vunpack.c.l.b16 %v5484
        %v6051 = vunpack.c.h.b16 %v5484
        %v6052 = vunpack.c.l.b16 %v5485
        %v6053 = vunpack.c.h.b16 %v5485
        %v6054 = vunpack.c.l.b16 %v5486
        %v6055 = vunpack.c.h.b16 %v5486
        %v6056 = vunpack.c.l.b16 %v5487
        %v6057 = vunpack.c.h.b16 %v5487
        %v6058 = vunpack.c.l.b16 %v5488
        %v6059 = vunpack.c.h.b16 %v5488
        %v6060 = vunpack.c.l.b16 %v5489
        %v6061 = vunpack.c.h.b16 %v5489
        %v6062 = vunpack.c.l.b16 %v5490
        %v6063 = vunpack.c.h.b16 %v5490
        %v6064 = vunpack.c.l.b16 %v5491
        %v6065 = vunpack.c.h.b16 %v5491
        %v6066 = vunpack.c.l.b16 %v5492
        %v6067 = vunpack.c.h.b16 %v5492
        %v6068 = vunpack.c.l.b16 %v5493
        %v6069 = vunpack.c.h.b16 %v5493
        %v6070 = vunpack.c.l.b16 %v5494
        %v6071 = vunpack.c.h.b16 %v5494
        %v6072 = vunpack.c.l.b16 %v5495
        %v6073 = vunpack.c.h.b16 %v5495
        %v6074 = vunpack.c.l.b16 %v5496
        %v6075 = vunpack.c.h.b16 %v5496
        %v6076 = vunpack.c.l.b16 %v5497
        %v6077 = vunpack.c.h.b16 %v5497
        %v6078 = vunpack.c.l.b16 %v5498
        %v6079 = vunpack.c.h.b16 %v5498
        %v6080 = vunpack.c.l.b16 %v5499
        %v6081 = vunpack.c.h.b16 %v5499
        %v6082 = vunpack.c.l.b16 %v5500
        %v6083 = vunpack.c.h.b16 %v5500
        %v6084 = vunpack.c.l.b16 %v5501
        %v6085 = vunpack.c.h.b16 %v5501
        %v6086 = vunpack.c.l.b16 %v5502
        %v6087 = vunpack.c.h.b16 %v5502
        %v6088 = vunpack.c.l.b16 %v5503
        %v6089 = vunpack.c.h.b16 %v5503
        %v6090 = vunpack.c.l.b16 %v5504
        %v6091 = vunpack.c.h.b16 %v5504
        %v6092 = vunpack.c.l.b16 %v5505
        %v6093 = vunpack.c.h.b16 %v5505
        %v6094 = vunpack.c.l.b16 %v5506
        %v6095 = vunpack.c.h.b16 %v5506
        %v6096 = vunpack.c.l.b16 %v5507
        %v6097 = vunpack.c.h.b16 %v5507
        %v6098 = vunpack.c.l.b16 %v5508
        %v6099 = vunpack.c.h.b16 %v5508
        %v6100 = vunpack.c.l.b16 %v5509
        %v6101 = vunpack.c.h.b16 %v5509
        %v6102 = vunpack.c.l.b16 %v5510
        %v6103 = vunpack.c.h.b16 %v5510
        %v6104 = vunpack.c.l.b16 %v5511
        %v6105 = vunpack.c.h.b16 %v5511
        %v6106 = vunpack.c.l.b16 %v5512
        %v6107 = vunpack.c.h.b16 %v5512
        %v6108 = vunpack.c.l.b16 %v5513
        %v6109 = vunpack.c.h.b16 %v5513
        %v6110 = vunpack.c.l.b16 %v5514
        %v6111 = vunpack.c.h.b16 %v5514
        %v6112 = vunpack.c.l.b16 %v5515
        %v6113 = vunpack.c.h.b16 %v5515
        %v6114 = vunpack.c.l.b16 %v5516
        %v6115 = vunpack.c.h.b16 %v5516
        %v6116 = vunpack.c.l.b16 %v5517
        %v6117 = vunpack.c.h.b16 %v5517
        %v6118 = vunpack.c.l.b16 %v5518
        %v6119 = vunpack.c.h.b16 %v5518
        %v6120 = vunpack.c.l.b16 %v5519
        %v6121 = vunpack.c.h.b16 %v5519
        %v6122 = vunpack.c.l.b16 %v5520
        %v6123 = vunpack.c.h.b16 %v5520
        %v6124 = vunpack.c.l.b16 %v5521
        %v6125 = vunpack.c.h.b16 %v5521
        %v6126 = vunpack.c.l.b16 %v5522
        %v6127 = vunpack.c.h.b16 %v5522
        %v6128 = vunpack.c.l.b16 %v5523
        %v6129 = vunpack.c.h.b16 %v5523
        %v6130 = vunpack.c.l.b16 %v5524
        %v6131 = vunpack.c.h.b16 %v5524
        %v6132 = vunpack.c.l.b16 %v5525
        %v6133 = vunpack.c.h.b16 %v5525
        %v6134 = vunpack.c.l.b16 %v5526
        %v6135 = vunpack.c.h.b16 %v5526
        %v6136 = vunpack.c.l.b16 %v5527
        %v6137 = vunpack.c.h.b16 %v5527
        %v6138 = vunpack.c.l.b16 %v5528
        %v6139 = vunpack.c.h.b16 %v5528
        %v6140 = vunpack.c.l.b16 %v5529
        %v6141 = vunpack.c.h.b16 %v5529
        %v6142 = vunpack.c.l.b16 %v5530
        %v6143 = vunpack.c.h.b16 %v5530
        %v6144 = vunpack.c.l.b16 %v5531
        %v6145 = vunpack.c.h.b16 %v5531
        %v6146 = vunpack.c.l.b16 %v5532
        %v6147 = vunpack.c.h.b16 %v5532
        %v6148 = vunpack.c.l.b16 %v5533
        %v6149 = vunpack.c.h.b16 %v5533
        %v6150 = vunpack.c.l.b16 %v5534
        %v6151 = vunpack.c.h.b16 %v5534
        %v6152 = vunpack.c.l.b16 %v5535
        %v6153 = vunpack.c.h.b16 %v5535
        %v6154 = vunpack.c.l.b16 %v5536
        %v6155 = vunpack.c.h.b16 %v5536
        %v6156 = vunpack.c.l.b16 %v5537
        %v6157 = vunpack.c.h.b16 %v5537
        %v6158 = vunpack.c.l.b16 %v5538
        %v6159 = vunpack.c.h.b16 %v5538
        %v6160 = vunpack.c.l.b16 %v5539
        %v6161 = vunpack.c.h.b16 %v5539
        %v6162 = vunpack.c.l.b16 %v5540
        %v6163 = vunpack.c.h.b16 %v5540
        %v6164 = vunpack.c.l.b16 %v5541
        %v6165 = vunpack.c.h.b16 %v5541
        %v6166 = vunpack.c.l.b16 %v5542
        %v6167 = vunpack.c.h.b16 %v5542
        %v6168 = vunpack.c.l.b16 %v5543
        %v6169 = vunpack.c.h.b16 %v5543
        %v6170 = vunpack.c.l.b16 %v5544
        %v6171 = vunpack.c.h.b16 %v5544
        %v6172 = vunpack.c.l.b16 %v5545
        %v6173 = vunpack.c.h.b16 %v5545
        %v6174 = vunpack.c.l.b16 %v5546
        %v6175 = vunpack.c.h.b16 %v5546
        %v6176 = vunpack.c.l.b16 %v5547
        %v6177 = vunpack.c.h.b16 %v5547
        %v6178 = vunpack.c.l.b16 %v5548
        %v6179 = vunpack.c.h.b16 %v5548
        %v6180 = vunpack.c.l.b16 %v5549
        %v6181 = vunpack.c.h.b16 %v5549
        %v6182 = vunpack.c.l.b16 %v5550
        %v6183 = vunpack.c.h.b16 %v5550
        %v6184 = vunpack.c.l.b16 %v5551
        %v6185 = vunpack.c.h.b16 %v5551
        %v6186 = vunpack.c.l.b16 %v5552
        %v6187 = vunpack.c.h.b16 %v5552
        %v6188 = vunpack.c.l.b16 %v5553
        %v6189 = vunpack.c.h.b16 %v5553
        %v6190 = vunpack.c.l.b16 %v5554
        %v6191 = vunpack.c.h.b16 %v5554
        %v6192 = vunpack.c.l.b16 %v5555
        %v6193 = vunpack.c.h.b16 %v5555
        %v6194 = vunpack.c.l.b16 %v5556
        %v6195 = vunpack.c.h.b16 %v5556
        %v6196 = vunpack.c.l.b16 %v5557
        %v6197 = vunpack.c.h.b16 %v5557
        %v6198 = vunpack.c.l.b16 %v5558
        %v6199 = vunpack.c.h.b16 %v5558
        %v6200 = vunpack.c.l.b16 %v5559
        %v6201 = vunpack.c.h.b16 %v5559
        %v6202 = vunpack.c.l.b16 %v5560
        %v6203 = vunpack.c.h.b16 %v5560
        %v6204 = vunpack.c.l.b16 %v5561
        %v6205 = vunpack.c.h.b16 %v5561
        %v6206 = vunpack.c.l.b16 %v5562
        %v6207 = vunpack.c.h.b16 %v5562
        %v6208 = vunpack.c.l.b16 %v5563
        %v6209 = vunpack.c.h.b16 %v5563
        %v6210 = vunpack.c.l.b16 %v5564
        %v6211 = vunpack.c.h.b16 %v5564
        %v6212 = vunpack.c.l.b16 %v5565
        %v6213 = vunpack.c.h.b16 %v5565
        %v6214 = vunpack.c.l.b16 %v5566
        %v6215 = vunpack.c.h.b16 %v5566
        %v6216 = vunpack.c.l.b16 %v5567
        %v6217 = vunpack.c.h.b16 %v5567
        %v6218 = vunpack.c.l.b16 %v5568
        %v6219 = vunpack.c.h.b16 %v5568
        %v6220 = vunpack.c.l.b16 %v5569
        %v6221 = vunpack.c.h.b16 %v5569
        %v6222 = vunpack.c.l.b16 %v5570
        %v6223 = vunpack.c.h.b16 %v5570
        %v6224 = vunpack.c.l.b16 %v5571
        %v6225 = vunpack.c.h.b16 %v5571
        %v6226 = vunpack.c.l.b16 %v5572
        %v6227 = vunpack.c.h.b16 %v5572
        %v6228 = vunpack.c.l.b16 %v5573
        %v6229 = vunpack.c.h.b16 %v5573
        %v6230 = vunpack.c.l.b16 %v5574
        %v6231 = vunpack.c.h.b16 %v5574
        %v6232 = vunpack.c.l.b16 %v5575
        %v6233 = vunpack.c.h.b16 %v5575
        %v6234 = vunpack.c.l.b16 %v5576
        %v6235 = vunpack.c.h.b16 %v5576
        %v6236 = vunpack.c.l.b16 %v5577
        %v6237 = vunpack.c.h.b16 %v5577
        %v6238 = vunpack.c.l.b16 %v5578
        %v6239 = vunpack.c.h.b16 %v5578
        %v6240 = vunpack.c.l.b16 %v5579
        %v6241 = vunpack.c.h.b16 %v5579
        %v6242 = vunpack.c.l.b16 %v5580
        %v6243 = vunpack.c.h.b16 %v5580
        %v6244 = vunpack.c.l.b16 %v5581
        %v6245 = vunpack.c.h.b16 %v5581
        %v6246 = vunpack.c.l.b16 %v5582
        %v6247 = vunpack.c.h.b16 %v5582
        %v6248 = vunpack.c.l.b16 %v5583
        %v6249 = vunpack.c.h.b16 %v5583
        %v6250 = vunpack.c.l.b16 %v5584
        %v6251 = vunpack.c.h.b16 %v5584
        %v6252 = vunpack.c.l.b16 %v5585
        %v6253 = vunpack.c.h.b16 %v5585
        %v6254 = vunpack.c.l.b16 %v5586
        %v6255 = vunpack.c.h.b16 %v5586
        %v6256 = vunpack.c.l.b16 %v5587
        %v6257 = vunpack.c.h.b16 %v5587
        %v6258 = vunpack.c.l.b16 %v5588
        %v6259 = vunpack.c.h.b16 %v5588
        %v6260 = vunpack.c.l.b16 %v5589
        %v6261 = vunpack.c.h.b16 %v5589
        %v6262 = vunpack.c.l.b16 %v5590
        %v6263 = vunpack.c.h.b16 %v5590
        %v6264 = vunpack.c.l.b16 %v5591
        %v6265 = vunpack.c.h.b16 %v5591
        %v6266 = vunpack.c.l.b16 %v5592
        %v6267 = vunpack.c.h.b16 %v5592
        %v6268 = vunpack.c.l.b16 %v5593
        %v6269 = vunpack.c.h.b16 %v5593
        %v6270 = vunpack.c.l.b16 %v5594
        %v6271 = vunpack.c.h.b16 %v5594
        %v6272 = vunpack.c.l.b16 %v5595
        %v6273 = vunpack.c.h.b16 %v5595
        %v6274 = vunpack.c.l.b16 %v5596
        %v6275 = vunpack.c.h.b16 %v5596
        %v6276 = vunpack.c.l.b16 %v5597
        %v6277 = vunpack.c.h.b16 %v5597
        %v6278 = vunpack.c.l.b16 %v5598
        %v6279 = vunpack.c.h.b16 %v5598
        %v6280 = vunpack.c.l.b16 %v5599
        %v6281 = vunpack.c.h.b16 %v5599
        %v6282 = vunpack.c.l.b16 %v5600
        %v6283 = vunpack.c.h.b16 %v5600
        %v6284 = vunpack.c.l.b16 %v5601
        %v6285 = vunpack.c.h.b16 %v5601
        %v6286 = vunpack.c.l.b16 %v5602
        %v6287 = vunpack.c.h.b16 %v5602
        %v6288 = vunpack.c.l.b16 %v5603
        %v6289 = vunpack.c.h.b16 %v5603
        %v6290 = vunpack.c.l.b16 %v5604
        %v6291 = vunpack.c.h.b16 %v5604
        %v6292 = vunpack.c.l.b16 %v5605
        %v6293 = vunpack.c.h.b16 %v5605
        %v6294 = vunpack.c.l.b16 %v5606
        %v6295 = vunpack.c.h.b16 %v5606
        %v6296 = vunpack.c.l.b16 %v5607
        %v6297 = vunpack.c.h.b16 %v5607
        %v6298 = vunpack.c.l.b16 %v5608
        %v6299 = vunpack.c.h.b16 %v5608
        %v6300 = vunpack.c.l.b16 %v5609
        %v6301 = vunpack.c.h.b16 %v5609
        %v6302 = vunpack.c.l.b16 %v5610
        %v6303 = vunpack.c.h.b16 %v5610
        %v6304 = vunpack.c.l.b16 %v5611
        %v6305 = vunpack.c.h.b16 %v5611
        %v6306 = vunpack.c.l.b16 %v5612
        %v6307 = vunpack.c.h.b16 %v5612
        %v6308 = vunpack.c.l.b16 %v5613
        %v6309 = vunpack.c.h.b16 %v5613
        %v6310 = vunpack.c.l.b16 %v5614
        %v6311 = vunpack.c.h.b16 %v5614
        %v6312 = vunpack.c.l.b16 %v5615
        %v6313 = vunpack.c.h.b16 %v5615
        %v6314 = vunpack.c.l.b16 %v5616
        %v6315 = vunpack.c.h.b16 %v5616
        %v6316 = vunpack.c.l.b16 %v5617
        %v6317 = vunpack.c.h.b16 %v5617
        %v6318 = vunpack.c.l.b16 %v5618
        %v6319 = vunpack.c.h.b16 %v5618
        %v6320 = vunpack.c.l.b16 %v5619
        %v6321 = vunpack.c.h.b16 %v5619
        %v6322 = vunpack.c.l.b16 %v5620
        %v6323 = vunpack.c.h.b16 %v5620
        %v6324 = vunpack.c.l.b16 %v5621
        %v6325 = vunpack.c.h.b16 %v5621
        %v6326 = vunpack.c.l.b16 %v5622
        %v6327 = vunpack.c.h.b16 %v5622
        %v6328 = vunpack.c.l.b16 %v5623
        %v6329 = vunpack.c.h.b16 %v5623
        %v6330 = vunpack.c.l.b16 %v5624
        %v6331 = vunpack.c.h.b16 %v5624
        %v6332 = vunpack.c.l.b16 %v5625
        %v6333 = vunpack.c.h.b16 %v5625
        %v6334 = vunpack.c.l.b16 %v5626
        %v6335 = vunpack.c.h.b16 %v5626
        %v6336 = vunpack.c.l.b16 %v5627
        %v6337 = vunpack.c.h.b16 %v5627
        %v6338 = vunpack.c.l.b16 %v5628
        %v6339 = vunpack.c.h.b16 %v5628
        %v6340 = vunpack.c.l.b16 %v5629
        %v6341 = vunpack.c.h.b16 %v5629
        %v6342 = vunpack.c.l.b16 %v5630
        %v6343 = vunpack.c.h.b16 %v5630
        %v6344 = vunpack.c.l.b16 %v5631
        %v6345 = vunpack.c.h.b16 %v5631
        %v6346 = vunpack.c.l.b16 %v5632
        %v6347 = vunpack.c.h.b16 %v5632
        %v6348 = vunpack.c.l.b16 %v5633
        %v6349 = vunpack.c.h.b16 %v5633
        %v6350 = vunpack.c.l.b16 %v5634
        %v6351 = vunpack.c.h.b16 %v5634
        %v6352 = vunpack.c.l.b16 %v5635
        %v6353 = vunpack.c.h.b16 %v5635
        %v6354 = vunpack.c.l.b16 %v5636
        %v6355 = vunpack.c.h.b16 %v5636
        %v6356 = vunpack.c.l.b16 %v5637
        %v6357 = vunpack.c.h.b16 %v5637
        %v6358 = vunpack.c.l.b16 %v5638
        %v6359 = vunpack.c.h.b16 %v5638
        %v6360 = vunpack.c.l.b16 %v5639
        %v6361 = vunpack.c.h.b16 %v5639
        %v6362 = vunpack.c.l.b16 %v5640
        %v6363 = vunpack.c.h.b16 %v5640
        %v6364 = vunpack.c.l.b16 %v5641
        %v6365 = vunpack.c.h.b16 %v5641
        %v6366 = vunpack.c.l.b16 %v5642
        %v6367 = vunpack.c.h.b16 %v5642
        %v6368 = vunpack.c.l.b16 %v5643
        %v6369 = vunpack.c.h.b16 %v5643
        %v6370 = vunpack.c.l.b16 %v5644
        %v6371 = vunpack.c.h.b16 %v5644
        %v6372 = vunpack.c.l.b16 %v5645
        %v6373 = vunpack.c.h.b16 %v5645
        %v6374 = vunpack.c.l.b16 %v5646
        %v6375 = vunpack.c.h.b16 %v5646
        %v6376 = vunpack.c.l.b16 %v5647
        %v6377 = vunpack.c.h.b16 %v5647
        %v6378 = vunpack.c.l.b16 %v5648
        %v6379 = vunpack.c.h.b16 %v5648
        %v6380 = vunpack.c.l.b16 %v5649
        %v6381 = vunpack.c.h.b16 %v5649
        %v6382 = vunpack.c.l.b16 %v5650
        %v6383 = vunpack.c.h.b16 %v5650
        %v6384 = vunpack.c.l.b16 %v5651
        %v6385 = vunpack.c.h.b16 %v5651
        %v6386 = vunpack.c.l.b16 %v5652
        %v6387 = vunpack.c.h.b16 %v5652
        %v6388 = vunpack.c.l.b16 %v5653
        %v6389 = vunpack.c.h.b16 %v5653
        %v6390 = vunpack.c.l.b16 %v5654
        %v6391 = vunpack.c.h.b16 %v5654
        %v6392 = vunpack.c.l.b16 %v5655
        %v6393 = vunpack.c.h.b16 %v5655
        %v6394 = vunpack.c.l.b16 %v5656
        %v6395 = vunpack.c.h.b16 %v5656
        %v6396 = vunpack.c.l.b16 %v5657
        %v6397 = vunpack.c.h.b16 %v5657
        %v6398 = vunpack.c.l.b16 %v5658
        %v6399 = vunpack.c.h.b16 %v5658
        %v6400 = vunpack.c.l.b16 %v5659
        %v6401 = vunpack.c.h.b16 %v5659
        %v6402 = vunpack.c.l.b16 %v5660
        %v6403 = vunpack.c.h.b16 %v5660
        %v6404 = vunpack.c.l.b16 %v5661
        %v6405 = vunpack.c.h.b16 %v5661
        %v6406 = vunpack.c.l.b16 %v5662
        %v6407 = vunpack.c.h.b16 %v5662
        %v6408 = vunpack.c.l.b16 %v5663
        %v6409 = vunpack.c.h.b16 %v5663
        %v6410 = vunpack.c.l.b16 %v5664
        %v6411 = vunpack.c.h.b16 %v5664
        %v6412 = vunpack.c.l.b16 %v5665
        %v6413 = vunpack.c.h.b16 %v5665
        %v6414 = vunpack.c.l.b16 %v5666
        %v6415 = vunpack.c.h.b16 %v5666
        %v6416 = vunpack.c.l.b16 %v5667
        %v6417 = vunpack.c.h.b16 %v5667
        %v6418 = vunpack.c.l.b16 %v5668
        %v6419 = vunpack.c.h.b16 %v5668
        %v6420 = vunpack.c.l.b16 %v5669
        %v6421 = vunpack.c.h.b16 %v5669
        %v6422 = vunpack.c.l.b16 %v5670
        %v6423 = vunpack.c.h.b16 %v5670
        %v6424 = vunpack.c.l.b16 %v5671
        %v6425 = vunpack.c.h.b16 %v5671
        %v6426 = vunpack.c.l.b16 %v5672
        %v6427 = vunpack.c.h.b16 %v5672
        %v6428 = vunpack.c.l.b16 %v5673
        %v6429 = vunpack.c.h.b16 %v5673
        %v6430 = vunpack.c.l.b16 %v5674
        %v6431 = vunpack.c.h.b16 %v5674
        %v6432 = vunpack.c.l.b16 %v5675
        %v6433 = vunpack.c.h.b16 %v5675
        %v6434 = vunpack.c.l.b16 %v5676
        %v6435 = vunpack.c.h.b16 %v5676
        %v6436 = vunpack.c.l.b16 %v5677
        %v6437 = vunpack.c.h.b16 %v5677
        %v6438 = vunpack.c.l.b16 %v5678
        %v6439 = vunpack.c.h.b16 %v5678
        %v6440 = vunpack.c.l.b16 %v5679
        %v6441 = vunpack.c.h.b16 %v5679
        %v6442 = vunpack.c.l.b16 %v5680
        %v6443 = vunpack.c.h.b16 %v5680
        %v6444 = vunpack.c.l.b16 %v5681
        %v6445 = vunpack.c.h.b16 %v5681
        %v6446 = vunpack.c.l.b16 %v5682
        %v6447 = vunpack.c.h.b16 %v5682
        %v6448 = vunpack.c.l.b16 %v5683
        %v6449 = vunpack.c.h.b16 %v5683
        %v6450 = vunpack.c.l.b16 %v5684
        %v6451 = vunpack.c.h.b16 %v5684
        %v6452 = vunpack.c.l.b16 %v5685
        %v6453 = vunpack.c.h.b16 %v5685
        %v6454 = vpack.c.b16 %v5942, %v5942
        %v6455 = vpack.c.b16 %v5943, %v5943
        %v6456 = vpack.c.b16 %v5944, %v5944
        %v6457 = vpack.c.b16 %v5945, %v5945
        %v6458 = vpack.c.b16 %v5946, %v5946
        %v6459 = vpack.c.b16 %v5947, %v5947
        %v6460 = vpack.c.b16 %v5948, %v5948
        %v6461 = vpack.c.b16 %v5949, %v5949
        %v6462 = vpack.c.b16 %v5950, %v5950
        %v6463 = vpack.c.b16 %v5951, %v5951
        %v6464 = vpack.c.b16 %v5952, %v5952
        %v6465 = vpack.c.b16 %v5953, %v5953
        %v6466 = vpack.c.b16 %v5954, %v5954
        %v6467 = vpack.c.b16 %v5955, %v5955
        %v6468 = vpack.c.b16 %v5956, %v5956
        %v6469 = vpack.c.b16 %v5957, %v5957
        %v6470 = vpack.c.b16 %v5958, %v5958
        %v6471 = vpack.c.b16 %v5959, %v5959
        %v6472 = vpack.c.b16 %v5960, %v5960
        %v6473 = vpack.c.b16 %v5961, %v5961
        %v6474 = vpack.c.b16 %v5962, %v5962
        %v6475 = vpack.c.b16 %v5963, %v5963
        %v6476 = vpack.c.b16 %v5964, %v5964
        %v6477 = vpack.c.b16 %v5965, %v5965
        %v6478 = vpack.c.b16 %v5966, %v5966
        %v6479 = vpack.c.b16 %v5967, %v5967
        %v6480 = vpack.c.b16 %v5968, %v5968
        %v6481 = vpack.c.b16 %v5969, %v5969
        %v6482 = vpack.c.b16 %v5970, %v5970
        %v6483 = vpack.c.b16 %v5971, %v5971
        %v6484 = vpack.c.b16 %v5972, %v5972
        %v6485 = vpack.c.b16 %v5973, %v5973
        %v6486 = vpack.c.b16 %v5974, %v5974
        %v6487 = vpack.c.b16 %v5975, %v5975
        %v6488 = vpack.c.b16 %v5976, %v5976
        %v6489 = vpack.c.b16 %v5977, %v5977
        %v6490 = vpack.c.b16 %v5978, %v5978
        %v6491 = vpack.c.b16 %v5979, %v5979
        %v6492 = vpack.c.b16 %v5980, %v5980
        %v6493 = vpack.c.b16 %v5981, %v5981
        %v6494 = vpack.c.b16 %v5982, %v5982
        %v6495 = vpack.c.b16 %v5983, %v5983
        %v6496 = vpack.c.b16 %v5984, %v5984
        %v6497 = vpack.c.b16 %v5985, %v5985
        %v6498 = vpack.c.b16 %v5986, %v5986
        %v6499 = vpack.c.b16 %v5987, %v5987
        %v6500 = vpack.c.b16 %v5988, %v5988
        %v6501 = vpack.c.b16 %v5989, %v5989
        %v6502 = vpack.c.b16 %v5990, %v5990
        %v6503 = vpack.c.b16 %v5991, %v5991
        %v6504 = vpack.c.b16 %v5992, %v5992
        %v6505 = vpack.c.b16 %v5993, %v5993
        %v6506 = vpack.c.b16 %v5994, %v5994
        %v6507 = vpack.c.b16 %v5995, %v5995
        %v6508 = vpack.c.b16 %v5996, %v5996
        %v6509 = vpack.c.b16 %v5997, %v5997
        %v6510 = vpack.c.b16 %v5998, %v5998
        %v6511 = vpack.c.b16 %v5999, %v5999
        %v6512 = vpack.c.b16 %v6000, %v6000
        %v6513 = vpack.c.b16 %v6001, %v6001
        %v6514 = vpack.c.b16 %v6002, %v6002
        %v6515 = vpack.c.b16 %v6003, %v6003
        %v6516 = vpack.c.b16 %v6004, %v6004
        %v6517 = vpack.c.b16 %v6005, %v6005
        %v6518 = vpack.c.b16 %v6006, %v6006
        %v6519 = vpack.c.b16 %v6007, %v6007
        %v6520 = vpack.c.b16 %v6008, %v6008
        %v6521 = vpack.c.b16 %v6009, %v6009
        %v6522 = vpack.c.b16 %v6010, %v6010
        %v6523 = vpack.c.b16 %v6011, %v6011
        %v6524 = vpack.c.b16 %v6012, %v6012
        %v6525 = vpack.c.b16 %v6013, %v6013
        %v6526 = vpack.c.b16 %v6014, %v6014
        %v6527 = vpack.c.b16 %v6015, %v6015
        %v6528 = vpack.c.b16 %v6016, %v6016
        %v6529 = vpack.c.b16 %v6017, %v6017
        %v6530 = vpack.c.b16 %v6018, %v6018
        %v6531 = vpack.c.b16 %v6019, %v6019
        %v6532 = vpack.c.b16 %v6020, %v6020
        %v6533 = vpack.c.b16 %v6021, %v6021
        %v6534 = vpack.c.b16 %v6022, %v6022
        %v6535 = vpack.c.b16 %v6023, %v6023
        %v6536 = vpack.c.b16 %v6024, %v6024
        %v6537 = vpack.c.b16 %v6025, %v6025
        %v6538 = vpack.c.b16 %v6026, %v6026
        %v6539 = vpack.c.b16 %v6027, %v6027
        %v6540 = vpack.c.b16 %v6028, %v6028
        %v6541 = vpack.c.b16 %v6029, %v6029
        %v6542 = vpack.c.b16 %v6030, %v6030
        %v6543 = vpack.c.b16 %v6031, %v6031
        %v6544 = vpack.c.b16 %v6032, %v6032
        %v6545 = vpack.c.b16 %v6033, %v6033
        %v6546 = vpack.c.b16 %v6034, %v6034
        %v6547 = vpack.c.b16 %v6035, %v6035
        %v6548 = vpack.c.b16 %v6036, %v6036
        %v6549 = vpack.c.b16 %v6037, %v6037
        %v6550 = vpack.c.b16 %v6038, %v6038
        %v6551 = vpack.c.b16 %v6039, %v6039
        %v6552 = vpack.c.b16 %v6040, %v6040
        %v6553 = vpack.c.b16 %v6041, %v6041
        %v6554 = vpack.c.b16 %v6042, %v6042
        %v6555 = vpack.c.b16 %v6043, %v6043
        %v6556 = vpack.c.b16 %v6044, %v6044
        %v6557 = vpack.c.b16 %v6045, %v6045
        %v6558 = vpack.c.b16 %v6046, %v6046
        %v6559 = vpack.c.b16 %v6047, %v6047
        %v6560 = vpack.c.b16 %v6048, %v6048
        %v6561 = vpack.c.b16 %v6049, %v6049
        %v6562 = vpack.c.b16 %v6050, %v6050
        %v6563 = vpack.c.b16 %v6051, %v6051
        %v6564 = vpack.c.b16 %v6052, %v6052
        %v6565 = vpack.c.b16 %v6053, %v6053
        %v6566 = vpack.c.b16 %v6054, %v6054
        %v6567 = vpack.c.b16 %v6055, %v6055
        %v6568 = vpack.c.b16 %v6056, %v6056
        %v6569 = vpack.c.b16 %v6057, %v6057
        %v6570 = vpack.c.b16 %v6058, %v6058
        %v6571 = vpack.c.b16 %v6059, %v6059
        %v6572 = vpack.c.b16 %v6060, %v6060
        %v6573 = vpack.c.b16 %v6061, %v6061
        %v6574 = vpack.c.b16 %v6062, %v6062
        %v6575 = vpack.c.b16 %v6063, %v6063
        %v6576 = vpack.c.b16 %v6064, %v6064
        %v6577 = vpack.c.b16 %v6065, %v6065
        %v6578 = vpack.c.b16 %v6066, %v6066
        %v6579 = vpack.c.b16 %v6067, %v6067
        %v6580 = vpack.c.b16 %v6068, %v6068
        %v6581 = vpack.c.b16 %v6069, %v6069
        %v6582 = vpack.c.b16 %v6070, %v6070
        %v6583 = vpack.c.b16 %v6071, %v6071
        %v6584 = vpack.c.b16 %v6072, %v6072
        %v6585 = vpack.c.b16 %v6073, %v6073
        %v6586 = vpack.c.b16 %v6074, %v6074
        %v6587 = vpack.c.b16 %v6075, %v6075
        %v6588 = vpack.c.b16 %v6076, %v6076
        %v6589 = vpack.c.b16 %v6077, %v6077
        %v6590 = vpack.c.b16 %v6078, %v6078
        %v6591 = vpack.c.b16 %v6079, %v6079
        %v6592 = vpack.c.b16 %v6080, %v6080
        %v6593 = vpack.c.b16 %v6081, %v6081
        %v6594 = vpack.c.b16 %v6082, %v6082
        %v6595 = vpack.c.b16 %v6083, %v6083
        %v6596 = vpack.c.b16 %v6084, %v6084
        %v6597 = vpack.c.b16 %v6085, %v6085
        %v6598 = vpack.c.b16 %v6086, %v6086
        %v6599 = vpack.c.b16 %v6087, %v6087
        %v6600 = vpack.c.b16 %v6088, %v6088
        %v6601 = vpack.c.b16 %v6089, %v6089
        %v6602 = vpack.c.b16 %v6090, %v6090
        %v6603 = vpack.c.b16 %v6091, %v6091
        %v6604 = vpack.c.b16 %v6092, %v6092
        %v6605 = vpack.c.b16 %v6093, %v6093
        %v6606 = vpack.c.b16 %v6094, %v6094
        %v6607 = vpack.c.b16 %v6095, %v6095
        %v6608 = vpack.c.b16 %v6096, %v6096
        %v6609 = vpack.c.b16 %v6097, %v6097
        %v6610 = vpack.c.b16 %v6098, %v6098
        %v6611 = vpack.c.b16 %v6099, %v6099
        %v6612 = vpack.c.b16 %v6100, %v6100
        %v6613 = vpack.c.b16 %v6101, %v6101
        %v6614 = vpack.c.b16 %v6102, %v6102
        %v6615 = vpack.c.b16 %v6103, %v6103
        %v6616 = vpack.c.b16 %v6104, %v6104
        %v6617 = vpack.c.b16 %v6105, %v6105
        %v6618 = vpack.c.b16 %v6106, %v6106
        %v6619 = vpack.c.b16 %v6107, %v6107
        %v6620 = vpack.c.b16 %v6108, %v6108
        %v6621 = vpack.c.b16 %v6109, %v6109
        %v6622 = vpack.c.b16 %v6110, %v6110
        %v6623 = vpack.c.b16 %v6111, %v6111
        %v6624 = vpack.c.b16 %v6112, %v6112
        %v6625 = vpack.c.b16 %v6113, %v6113
        %v6626 = vpack.c.b16 %v6114, %v6114
        %v6627 = vpack.c.b16 %v6115, %v6115
        %v6628 = vpack.c.b16 %v6116, %v6116
        %v6629 = vpack.c.b16 %v6117, %v6117
        %v6630 = vpack.c.b16 %v6118, %v6118
        %v6631 = vpack.c.b16 %v6119, %v6119
        %v6632 = vpack.c.b16 %v6120, %v6120
        %v6633 = vpack.c.b16 %v6121, %v6121
        %v6634 = vpack.c.b16 %v6122, %v6122
        %v6635 = vpack.c.b16 %v6123, %v6123
        %v6636 = vpack.c.b16 %v6124, %v6124
        %v6637 = vpack.c.b16 %v6125, %v6125
        %v6638 = vpack.c.b16 %v6126, %v6126
        %v6639 = vpack.c.b16 %v6127, %v6127
        %v6640 = vpack.c.b16 %v6128, %v6128
        %v6641 = vpack.c.b16 %v6129, %v6129
        %v6642 = vpack.c.b16 %v6130, %v6130
        %v6643 = vpack.c.b16 %v6131, %v6131
        %v6644 = vpack.c.b16 %v6132, %v6132
        %v6645 = vpack.c.b16 %v6133, %v6133
        %v6646 = vpack.c.b16 %v6134, %v6134
        %v6647 = vpack.c.b16 %v6135, %v6135
        %v6648 = vpack.c.b16 %v6136, %v6136
        %v6649 = vpack.c.b16 %v6137, %v6137
        %v6650 = vpack.c.b16 %v6138, %v6138
        %v6651 = vpack.c.b16 %v6139, %v6139
        %v6652 = vpack.c.b16 %v6140, %v6140
        %v6653 = vpack.c.b16 %v6141, %v6141
        %v6654 = vpack.c.b16 %v6142, %v6142
        %v6655 = vpack.c.b16 %v6143, %v6143
        %v6656 = vpack.c.b16 %v6144, %v6144
        %v6657 = vpack.c.b16 %v6145, %v6145
        %v6658 = vpack.c.b16 %v6146, %v6146
        %v6659 = vpack.c.b16 %v6147, %v6147
        %v6660 = vpack.c.b16 %v6148, %v6148
        %v6661 = vpack.c.b16 %v6149, %v6149
        %v6662 = vpack.c.b16 %v6150, %v6150
        %v6663 = vpack.c.b16 %v6151, %v6151
        %v6664 = vpack.c.b16 %v6152, %v6152
        %v6665 = vpack.c.b16 %v6153, %v6153
        %v6666 = vpack.c.b16 %v6154, %v6154
        %v6667 = vpack.c.b16 %v6155, %v6155
        %v6668 = vpack.c.b16 %v6156, %v6156
        %v6669 = vpack.c.b16 %v6157, %v6157
        %v6670 = vpack.c.b16 %v6158, %v6158
        %v6671 = vpack.c.b16 %v6159, %v6159
        %v6672 = vpack.c.b16 %v6160, %v6160
        %v6673 = vpack.c.b16 %v6161, %v6161
        %v6674 = vpack.c.b16 %v6162, %v6162
        %v6675 = vpack.c.b16 %v6163, %v6163
        %v6676 = vpack.c.b16 %v6164, %v6164
        %v6677 = vpack.c.b16 %v6165, %v6165
        %v6678 = vpack.c.b16 %v6166, %v6166
        %v6679 = vpack.c.b16 %v6167, %v6167
        %v6680 = vpack.c.b16 %v6168, %v6168
        %v6681 = vpack.c.b16 %v6169, %v6169
        %v6682 = vpack.c.b16 %v6170, %v6170
        %v6683 = vpack.c.b16 %v6171, %v6171
        %v6684 = vpack.c.b16 %v6172, %v6172
        %v6685 = vpack.c.b16 %v6173, %v6173
        %v6686 = vpack.c.b16 %v6174, %v6174
        %v6687 = vpack.c.b16 %v6175, %v6175
        %v6688 = vpack.c.b16 %v6176, %v6176
        %v6689 = vpack.c.b16 %v6177, %v6177
        %v6690 = vpack.c.b16 %v6178, %v6178
        %v6691 = vpack.c.b16 %v6179, %v6179
        %v6692 = vpack.c.b16 %v6180, %v6180
        %v6693 = vpack.c.b16 %v6181, %v6181
        %v6694 = vpack.c.b16 %v6182, %v6182
        %v6695 = vpack.c.b16 %v6183, %v6183
        %v6696 = vpack.c.b16 %v6184, %v6184
        %v6697 = vpack.c.b16 %v6185, %v6185
        %v6698 = vpack.c.b16 %v6186, %v6186
        %v6699 = vpack.c.b16 %v6187, %v6187
        %v6700 = vpack.c.b16 %v6188, %v6188
        %v6701 = vpack.c.b16 %v6189, %v6189
        %v6702 = vpack.c.b16 %v6190, %v6190
        %v6703 = vpack.c.b16 %v6191, %v6191
        %v6704 = vpack.c.b16 %v6192, %v6192
        %v6705 = vpack.c.b16 %v6193, %v6193
        %v6706 = vpack.c.b16 %v6194, %v6194
        %v6707 = vpack.c.b16 %v6195, %v6195
        %v6708 = vpack.c.b16 %v6196, %v6196
        %v6709 = vpack.c.b16 %v6197, %v6197
        %v6710 = vpack.c.b16 %v6198, %v6198
        %v6711 = vpack.c.b16 %v6199, %v6199
        %v6712 = vpack.c.b16 %v6200, %v6200
        %v6713 = vpack.c.b16 %v6201, %v6201
        %v6714 = vpack.c.b16 %v6202, %v6202
        %v6715 = vpack.c.b16 %v6203, %v6203
        %v6716 = vpack.c.b16 %v6204, %v6204
        %v6717 = vpack.c.b16 %v6205, %v6205
        %v6718 = vpack.c.b16 %v6206, %v6206
        %v6719 = vpack.c.b16 %v6207, %v6207
        %v6720 = vpack.c.b16 %v6208, %v6208
        %v6721 = vpack.c.b16 %v6209, %v6209
        %v6722 = vpack.c.b16 %v6210, %v6210
        %v6723 = vpack.c.b16 %v6211, %v6211
        %v6724 = vpack.c.b16 %v6212, %v6212
        %v6725 = vpack.c.b16 %v6213, %v6213
        %v6726 = vpack.c.b16 %v6214, %v6214
        %v6727 = vpack.c.b16 %v6215, %v6215
        %v6728 = vpack.c.b16 %v6216, %v6216
        %v6729 = vpack.c.b16 %v6217, %v6217
        %v6730 = vpack.c.b16 %v6218, %v6218
        %v6731 = vpack.c.b16 %v6219, %v6219
        %v6732 = vpack.c.b16 %v6220, %v6220
        %v6733 = vpack.c.b16 %v6221, %v6221
        %v6734 = vpack.c.b16 %v6222, %v6222
        %v6735 = vpack.c.b16 %v6223, %v6223
        %v6736 = vpack.c.b16 %v6224, %v6224
        %v6737 = vpack.c.b16 %v6225, %v6225
        %v6738 = vpack.c.b16 %v6226, %v6226
        %v6739 = vpack.c.b16 %v6227, %v6227
        %v6740 = vpack.c.b16 %v6228, %v6228
        %v6741 = vpack.c.b16 %v6229, %v6229
        %v6742 = vpack.c.b16 %v6230, %v6230
        %v6743 = vpack.c.b16 %v6231, %v6231
        %v6744 = vpack.c.b16 %v6232, %v6232
        %v6745 = vpack.c.b16 %v6233, %v6233
        %v6746 = vpack.c.b16 %v6234, %v6234
        %v6747 = vpack.c.b16 %v6235, %v6235
        %v6748 = vpack.c.b16 %v6236, %v6236
        %v6749 = vpack.c.b16 %v6237, %v6237
        %v6750 = vpack.c.b16 %v6238, %v6238
        %v6751 = vpack.c.b16 %v6239, %v6239
        %v6752 = vpack.c.b16 %v6240, %v6240
        %v6753 = vpack.c.b16 %v6241, %v6241
        %v6754 = vpack.c.b16 %v6242, %v6242
        %v6755 = vpack.c.b16 %v6243, %v6243
        %v6756 = vpack.c.b16 %v6244, %v6244
        %v6757 = vpack.c.b16 %v6245, %v6245
        %v6758 = vpack.c.b16 %v6246, %v6246
        %v6759 = vpack.c.b16 %v6247, %v6247
        %v6760 = vpack.c.b16 %v6248, %v6248
        %v6761 = vpack.c.b16 %v6249, %v6249
        %v6762 = vpack.c.b16 %v6250, %v6250
        %v6763 = vpack.c.b16 %v6251, %v6251
        %v6764 = vpack.c.b16 %v6252, %v6252
        %v6765 = vpack.c.b16 %v6253, %v6253
        %v6766 = vpack.c.b16 %v6254, %v6254
        %v6767 = vpack.c.b16 %v6255, %v6255
        %v6768 = vpack.c.b16 %v6256, %v6256
        %v6769 = vpack.c.b16 %v6257, %v6257
        %v6770 = vpack.c.b16 %v6258, %v6258
        %v6771 = vpack.c.b16 %v6259, %v6259
        %v6772 = vpack.c.b16 %v6260, %v6260
        %v6773 = vpack.c.b16 %v6261, %v6261
        %v6774 = vpack.c.b16 %v6262, %v6262
        %v6775 = vpack.c.b16 %v6263, %v6263
        %v6776 = vpack.c.b16 %v6264, %v6264
        %v6777 = vpack.c.b16 %v6265, %v6265
        %v6778 = vpack.c.b16 %v6266, %v6266
        %v6779 = vpack.c.b16 %v6267, %v6267
        %v6780 = vpack.c.b16 %v6268, %v6268
        %v6781 = vpack.c.b16 %v6269, %v6269
        %v6782 = vpack.c.b16 %v6270, %v6270
        %v6783 = vpack.c.b16 %v6271, %v6271
        %v6784 = vpack.c.b16 %v6272, %v6272
        %v6785 = vpack.c.b16 %v6273, %v6273
        %v6786 = vpack.c.b16 %v6274, %v6274
        %v6787 = vpack.c.b16 %v6275, %v6275
        %v6788 = vpack.c.b16 %v6276, %v6276
        %v6789 = vpack.c.b16 %v6277, %v6277
        %v6790 = vpack.c.b16 %v6278, %v6278
        %v6791 = vpack.c.b16 %v6279, %v6279
        %v6792 = vpack.c.b16 %v6280, %v6280
        %v6793 = vpack.c.b16 %v6281, %v6281
        %v6794 = vpack.c.b16 %v6282, %v6282
        %v6795 = vpack.c.b16 %v6283, %v6283
        %v6796 = vpack.c.b16 %v6284, %v6284
        %v6797 = vpack.c.b16 %v6285, %v6285
        %v6798 = vpack.c.b16 %v6286, %v6286
        %v6799 = vpack.c.b16 %v6287, %v6287
        %v6800 = vpack.c.b16 %v6288, %v6288
        %v6801 = vpack.c.b16 %v6289, %v6289
        %v6802 = vpack.c.b16 %v6290, %v6290
        %v6803 = vpack.c.b16 %v6291, %v6291
        %v6804 = vpack.c.b16 %v6292, %v6292
        %v6805 = vpack.c.b16 %v6293, %v6293
        %v6806 = vpack.c.b16 %v6294, %v6294
        %v6807 = vpack.c.b16 %v6295, %v6295
        %v6808 = vpack.c.b16 %v6296, %v6296
        %v6809 = vpack.c.b16 %v6297, %v6297
        %v6810 = vpack.c.b16 %v6298, %v6298
        %v6811 = vpack.c.b16 %v6299, %v6299
        %v6812 = vpack.c.b16 %v6300, %v6300
        %v6813 = vpack.c.b16 %v6301, %v6301
        %v6814 = vpack.c.b16 %v6302, %v6302
        %v6815 = vpack.c.b16 %v6303, %v6303
        %v6816 = vpack.c.b16 %v6304, %v6304
        %v6817 = vpack.c.b16 %v6305, %v6305
        %v6818 = vpack.c.b16 %v6306, %v6306
        %v6819 = vpack.c.b16 %v6307, %v6307
        %v6820 = vpack.c.b16 %v6308, %v6308
        %v6821 = vpack.c.b16 %v6309, %v6309
        %v6822 = vpack.c.b16 %v6310, %v6310
        %v6823 = vpack.c.b16 %v6311, %v6311
        %v6824 = vpack.c.b16 %v6312, %v6312
        %v6825 = vpack.c.b16 %v6313, %v6313
        %v6826 = vpack.c.b16 %v6314, %v6314
        %v6827 = vpack.c.b16 %v6315, %v6315
        %v6828 = vpack.c.b16 %v6316, %v6316
        %v6829 = vpack.c.b16 %v6317, %v6317
        %v6830 = vpack.c.b16 %v6318, %v6318
        %v6831 = vpack.c.b16 %v6319, %v6319
        %v6832 = vpack.c.b16 %v6320, %v6320
        %v6833 = vpack.c.b16 %v6321, %v6321
        %v6834 = vpack.c.b16 %v6322, %v6322
        %v6835 = vpack.c.b16 %v6323, %v6323
        %v6836 = vpack.c.b16 %v6324, %v6324
        %v6837 = vpack.c.b16 %v6325, %v6325
        %v6838 = vpack.c.b16 %v6326, %v6326
        %v6839 = vpack.c.b16 %v6327, %v6327
        %v6840 = vpack.c.b16 %v6328, %v6328
        %v6841 = vpack.c.b16 %v6329, %v6329
        %v6842 = vpack.c.b16 %v6330, %v6330
        %v6843 = vpack.c.b16 %v6331, %v6331
        %v6844 = vpack.c.b16 %v6332, %v6332
        %v6845 = vpack.c.b16 %v6333, %v6333
        %v6846 = vpack.c.b16 %v6334, %v6334
        %v6847 = vpack.c.b16 %v6335, %v6335
        %v6848 = vpack.c.b16 %v6336, %v6336
        %v6849 = vpack.c.b16 %v6337, %v6337
        %v6850 = vpack.c.b16 %v6338, %v6338
        %v6851 = vpack.c.b16 %v6339, %v6339
        %v6852 = vpack.c.b16 %v6340, %v6340
        %v6853 = vpack.c.b16 %v6341, %v6341
        %v6854 = vpack.c.b16 %v6342, %v6342
        %v6855 = vpack.c.b16 %v6343, %v6343
        %v6856 = vpack.c.b16 %v6344, %v6344
        %v6857 = vpack.c.b16 %v6345, %v6345
        %v6858 = vpack.c.b16 %v6346, %v6346
        %v6859 = vpack.c.b16 %v6347, %v6347
        %v6860 = vpack.c.b16 %v6348, %v6348
        %v6861 = vpack.c.b16 %v6349, %v6349
        %v6862 = vpack.c.b16 %v6350, %v6350
        %v6863 = vpack.c.b16 %v6351, %v6351
        %v6864 = vpack.c.b16 %v6352, %v6352
        %v6865 = vpack.c.b16 %v6353, %v6353
        %v6866 = vpack.c.b16 %v6354, %v6354
        %v6867 = vpack.c.b16 %v6355, %v6355
        %v6868 = vpack.c.b16 %v6356, %v6356
        %v6869 = vpack.c.b16 %v6357, %v6357
        %v6870 = vpack.c.b16 %v6358, %v6358
        %v6871 = vpack.c.b16 %v6359, %v6359
        %v6872 = vpack.c.b16 %v6360, %v6360
        %v6873 = vpack.c.b16 %v6361, %v6361
        %v6874 = vpack.c.b16 %v6362, %v6362
        %v6875 = vpack.c.b16 %v6363, %v6363
        %v6876 = vpack.c.b16 %v6364, %v6364
        %v6877 = vpack.c.b16 %v6365, %v6365
        %v6878 = vpack.c.b16 %v6366, %v6366
        %v6879 = vpack.c.b16 %v6367, %v6367
        %v6880 = vpack.c.b16 %v6368, %v6368
        %v6881 = vpack.c.b16 %v6369, %v6369
        %v6882 = vpack.c.b16 %v6370, %v6370
        %v6883 = vpack.c.b16 %v6371, %v6371
        %v6884 = vpack.c.b16 %v6372, %v6372
        %v6885 = vpack.c.b16 %v6373, %v6373
        %v6886 = vpack.c.b16 %v6374, %v6374
        %v6887 = vpack.c.b16 %v6375, %v6375
        %v6888 = vpack.c.b16 %v6376, %v6376
        %v6889 = vpack.c.b16 %v6377, %v6377
        %v6890 = vpack.c.b16 %v6378, %v6378
        %v6891 = vpack.c.b16 %v6379, %v6379
        %v6892 = vpack.c.b16 %v6380, %v6380
        %v6893 = vpack.c.b16 %v6381, %v6381
        %v6894 = vpack.c.b16 %v6382, %v6382
        %v6895 = vpack.c.b16 %v6383, %v6383
        %v6896 = vpack.c.b16 %v6384, %v6384
        %v6897 = vpack.c.b16 %v6385, %v6385
        %v6898 = vpack.c.b16 %v6386, %v6386
        %v6899 = vpack.c.b16 %v6387, %v6387
        %v6900 = vpack.c.b16 %v6388, %v6388
        %v6901 = vpack.c.b16 %v6389, %v6389
        %v6902 = vpack.c.b16 %v6390, %v6390
        %v6903 = vpack.c.b16 %v6391, %v6391
        %v6904 = vpack.c.b16 %v6392, %v6392
        %v6905 = vpack.c.b16 %v6393, %v6393
        %v6906 = vpack.c.b16 %v6394, %v6394
        %v6907 = vpack.c.b16 %v6395, %v6395
        %v6908 = vpack.c.b16 %v6396, %v6396
        %v6909 = vpack.c.b16 %v6397, %v6397
        %v6910 = vpack.c.b16 %v6398, %v6398
        %v6911 = vpack.c.b16 %v6399, %v6399
        %v6912 = vpack.c.b16 %v6400, %v6400
        %v6913 = vpack.c.b16 %v6401, %v6401
        %v6914 = vpack.c.b16 %v6402, %v6402
        %v6915 = vpack.c.b16 %v6403, %v6403
        %v6916 = vpack.c.b16 %v6404, %v6404
        %v6917 = vpack.c.b16 %v6405, %v6405
        %v6918 = vpack.c.b16 %v6406, %v6406
        %v6919 = vpack.c.b16 %v6407, %v6407
        %v6920 = vpack.c.b16 %v6408, %v6408
        %v6921 = vpack.c.b16 %v6409, %v6409
        %v6922 = vpack.c.b16 %v6410, %v6410
        %v6923 = vpack.c.b16 %v6411, %v6411
        %v6924 = vpack.c.b16 %v6412, %v6412
        %v6925 = vpack.c.b16 %v6413, %v6413
        %v6926 = vpack.c.b16 %v6414, %v6414
        %v6927 = vpack.c.b16 %v6415, %v6415
        %v6928 = vpack.c.b16 %v6416, %v6416
        %v6929 = vpack.c.b16 %v6417, %v6417
        %v6930 = vpack.c.b16 %v6418, %v6418
        %v6931 = vpack.c.b16 %v6419, %v6419
        %v6932 = vpack.c.b16 %v6420, %v6420
        %v6933 = vpack.c.b16 %v6421, %v6421
        %v6934 = vpack.c.b16 %v6422, %v6422
        %v6935 = vpack.c.b16 %v6423, %v6423
        %v6936 = vpack.c.b16 %v6424, %v6424
        %v6937 = vpack.c.b16 %v6425, %v6425
        %v6938 = vpack.c.b16 %v6426, %v6426
        %v6939 = vpack.c.b16 %v6427, %v6427
        %v6940 = vpack.c.b16 %v6428, %v6428
        %v6941 = vpack.c.b16 %v6429, %v6429
        %v6942 = vpack.c.b16 %v6430, %v6430
        %v6943 = vpack.c.b16 %v6431, %v6431
        %v6944 = vpack.c.b16 %v6432, %v6432
        %v6945 = vpack.c.b16 %v6433, %v6433
        %v6946 = vpack.c.b16 %v6434, %v6434
        %v6947 = vpack.c.b16 %v6435, %v6435
        %v6948 = vpack.c.b16 %v6436, %v6436
        %v6949 = vpack.c.b16 %v6437, %v6437
        %v6950 = vpack.c.b16 %v6438, %v6438
        %v6951 = vpack.c.b16 %v6439, %v6439
        %v6952 = vpack.c.b16 %v6440, %v6440
        %v6953 = vpack.c.b16 %v6441, %v6441
        %v6954 = vpack.c.b16 %v6442, %v6442
        %v6955 = vpack.c.b16 %v6443, %v6443
        %v6956 = vpack.c.b16 %v6444, %v6444
        %v6957 = vpack.c.b16 %v6445, %v6445
        %v6958 = vpack.c.b16 %v6446, %v6446
        %v6959 = vpack.c.b16 %v6447, %v6447
        %v6960 = vpack.c.b16 %v6448, %v6448
        %v6961 = vpack.c.b16 %v6449, %v6449
        %v6962 = vpack.c.b16 %v6450, %v6450
        %v6963 = vpack.c.b16 %v6451, %v6451
        %v6964 = vpack.c.b16 %v6452, %v6452
        %v6965 = vpack.c.b16 %v6453, %v6453
        %vm7478 = vcmask 519168
        %7479 = vst.msk [vmem:[%s234] sm:$0xf] %vm7478, %v6454
        %7480 = vst.msk [vmem:[%s234 + $0x4] sm:$0xf] %vm7478, %v6455
        %7481 = vst.msk [vmem:[%s234 + $0x8] sm:$0xf] %vm7478, %v6456
        %7482 = vst.msk [vmem:[%s234 + $0xc] sm:$0xf] %vm7478, %v6457
        %7483 = vst.msk [vmem:[%s234 + $0x10] sm:$0xf] %vm7478, %v6458
        %7484 = vst.msk [vmem:[%s234 + $0x14] sm:$0xf] %vm7478, %v6459
        %7485 = vst.msk [vmem:[%s234 + $0x18] sm:$0xf] %vm7478, %v6460
        %7486 = vst.msk [vmem:[%s234 + $0x1c] sm:$0xf] %vm7478, %v6461
        %7487 = vst.msk [vmem:[%s234 + $0x20] sm:$0xf] %vm7478, %v6462
        %7488 = vst.msk [vmem:[%s234 + $0x24] sm:$0xf] %vm7478, %v6463
        %7489 = vst.msk [vmem:[%s234 + $0x28] sm:$0xf] %vm7478, %v6464
        %7490 = vst.msk [vmem:[%s234 + $0x2c] sm:$0xf] %vm7478, %v6465
        %7491 = vst.msk [vmem:[%s234 + $0x30] sm:$0xf] %vm7478, %v6466
        %7492 = vst.msk [vmem:[%s234 + $0x34] sm:$0xf] %vm7478, %v6467
        %7493 = vst.msk [vmem:[%s234 + $0x38] sm:$0xf] %vm7478, %v6468
        %7494 = vst.msk [vmem:[%s234 + $0x3c] sm:$0xf] %vm7478, %v6469
        %7495 = vst.msk [vmem:[%s234 + $0x40] sm:$0xf] %vm7478, %v6470
        %7496 = vst.msk [vmem:[%s234 + $0x44] sm:$0xf] %vm7478, %v6471
        %7497 = vst.msk [vmem:[%s234 + $0x48] sm:$0xf] %vm7478, %v6472
        %7498 = vst.msk [vmem:[%s234 + $0x4c] sm:$0xf] %vm7478, %v6473
        %7499 = vst.msk [vmem:[%s234 + $0x50] sm:$0xf] %vm7478, %v6474
        %7500 = vst.msk [vmem:[%s234 + $0x54] sm:$0xf] %vm7478, %v6475
        %7501 = vst.msk [vmem:[%s234 + $0x58] sm:$0xf] %vm7478, %v6476
        %7502 = vst.msk [vmem:[%s234 + $0x5c] sm:$0xf] %vm7478, %v6477
        %7503 = vst.msk [vmem:[%s234 + $0x60] sm:$0xf] %vm7478, %v6478
        %7504 = vst.msk [vmem:[%s234 + $0x64] sm:$0xf] %vm7478, %v6479
        %7505 = vst.msk [vmem:[%s234 + $0x68] sm:$0xf] %vm7478, %v6480
        %7506 = vst.msk [vmem:[%s234 + $0x6c] sm:$0xf] %vm7478, %v6481
        %7507 = vst.msk [vmem:[%s234 + $0x70] sm:$0xf] %vm7478, %v6482
        %7508 = vst.msk [vmem:[%s234 + $0x74] sm:$0xf] %vm7478, %v6483
        %7509 = vst.msk [vmem:[%s234 + $0x78] sm:$0xf] %vm7478, %v6484
        %7510 = vst.msk [vmem:[%s234 + $0x7c] sm:$0xf] %vm7478, %v6485
        %7511 = vst.msk [vmem:[%s234 + $0x80] sm:$0xf] %vm7478, %v6486
        %7512 = vst.msk [vmem:[%s234 + $0x84] sm:$0xf] %vm7478, %v6487
        %7513 = vst.msk [vmem:[%s234 + $0x88] sm:$0xf] %vm7478, %v6488
        %7514 = vst.msk [vmem:[%s234 + $0x8c] sm:$0xf] %vm7478, %v6489
        %7515 = vst.msk [vmem:[%s234 + $0x90] sm:$0xf] %vm7478, %v6490
        %7516 = vst.msk [vmem:[%s234 + $0x94] sm:$0xf] %vm7478, %v6491
        %7517 = vst.msk [vmem:[%s234 + $0x98] sm:$0xf] %vm7478, %v6492
        %7518 = vst.msk [vmem:[%s234 + $0x9c] sm:$0xf] %vm7478, %v6493
        %7519 = vst.msk [vmem:[%s234 + $0xa0] sm:$0xf] %vm7478, %v6494
        %7520 = vst.msk [vmem:[%s234 + $0xa4] sm:$0xf] %vm7478, %v6495
        %7521 = vst.msk [vmem:[%s234 + $0xa8] sm:$0xf] %vm7478, %v6496
        %7522 = vst.msk [vmem:[%s234 + $0xac] sm:$0xf] %vm7478, %v6497
        %7523 = vst.msk [vmem:[%s234 + $0xb0] sm:$0xf] %vm7478, %v6498
        %7524 = vst.msk [vmem:[%s234 + $0xb4] sm:$0xf] %vm7478, %v6499
        %7525 = vst.msk [vmem:[%s234 + $0xb8] sm:$0xf] %vm7478, %v6500
        %7526 = vst.msk [vmem:[%s234 + $0xbc] sm:$0xf] %vm7478, %v6501
        %7527 = vst.msk [vmem:[%s234 + $0xc0] sm:$0xf] %vm7478, %v6502
        %7528 = vst.msk [vmem:[%s234 + $0xc4] sm:$0xf] %vm7478, %v6503
        %7529 = vst.msk [vmem:[%s234 + $0xc8] sm:$0xf] %vm7478, %v6504
        %7530 = vst.msk [vmem:[%s234 + $0xcc] sm:$0xf] %vm7478, %v6505
        %7531 = vst.msk [vmem:[%s234 + $0xd0] sm:$0xf] %vm7478, %v6506
        %7532 = vst.msk [vmem:[%s234 + $0xd4] sm:$0xf] %vm7478, %v6507
        %7533 = vst.msk [vmem:[%s234 + $0xd8] sm:$0xf] %vm7478, %v6508
        %7534 = vst.msk [vmem:[%s234 + $0xdc] sm:$0xf] %vm7478, %v6509
        %7535 = vst.msk [vmem:[%s234 + $0xe0] sm:$0xf] %vm7478, %v6510
        %7536 = vst.msk [vmem:[%s234 + $0xe4] sm:$0xf] %vm7478, %v6511
        %7537 = vst.msk [vmem:[%s234 + $0xe8] sm:$0xf] %vm7478, %v6512
        %7538 = vst.msk [vmem:[%s234 + $0xec] sm:$0xf] %vm7478, %v6513
        %7539 = vst.msk [vmem:[%s234 + $0xf0] sm:$0xf] %vm7478, %v6514
        %7540 = vst.msk [vmem:[%s234 + $0xf4] sm:$0xf] %vm7478, %v6515
        %7541 = vst.msk [vmem:[%s234 + $0xf8] sm:$0xf] %vm7478, %v6516
        %7542 = vst.msk [vmem:[%s234 + $0xfc] sm:$0xf] %vm7478, %v6517
        %7543 = vst.msk [vmem:[%s234 + $0x100] sm:$0xf] %vm7478, %v6518
        %7544 = vst.msk [vmem:[%s234 + $0x104] sm:$0xf] %vm7478, %v6519
        %7545 = vst.msk [vmem:[%s234 + $0x108] sm:$0xf] %vm7478, %v6520
        %7546 = vst.msk [vmem:[%s234 + $0x10c] sm:$0xf] %vm7478, %v6521
        %7547 = vst.msk [vmem:[%s234 + $0x110] sm:$0xf] %vm7478, %v6522
        %7548 = vst.msk [vmem:[%s234 + $0x114] sm:$0xf] %vm7478, %v6523
        %7549 = vst.msk [vmem:[%s234 + $0x118] sm:$0xf] %vm7478, %v6524
        %7550 = vst.msk [vmem:[%s234 + $0x11c] sm:$0xf] %vm7478, %v6525
        %7551 = vst.msk [vmem:[%s234 + $0x120] sm:$0xf] %vm7478, %v6526
        %7552 = vst.msk [vmem:[%s234 + $0x124] sm:$0xf] %vm7478, %v6527
        %7553 = vst.msk [vmem:[%s234 + $0x128] sm:$0xf] %vm7478, %v6528
        %7554 = vst.msk [vmem:[%s234 + $0x12c] sm:$0xf] %vm7478, %v6529
        %7555 = vst.msk [vmem:[%s234 + $0x130] sm:$0xf] %vm7478, %v6530
        %7556 = vst.msk [vmem:[%s234 + $0x134] sm:$0xf] %vm7478, %v6531
        %7557 = vst.msk [vmem:[%s234 + $0x138] sm:$0xf] %vm7478, %v6532
        %7558 = vst.msk [vmem:[%s234 + $0x13c] sm:$0xf] %vm7478, %v6533
        %7559 = vst.msk [vmem:[%s234 + $0x140] sm:$0xf] %vm7478, %v6534
        %7560 = vst.msk [vmem:[%s234 + $0x144] sm:$0xf] %vm7478, %v6535
        %7561 = vst.msk [vmem:[%s234 + $0x148] sm:$0xf] %vm7478, %v6536
        %7562 = vst.msk [vmem:[%s234 + $0x14c] sm:$0xf] %vm7478, %v6537
        %7563 = vst.msk [vmem:[%s234 + $0x150] sm:$0xf] %vm7478, %v6538
        %7564 = vst.msk [vmem:[%s234 + $0x154] sm:$0xf] %vm7478, %v6539
        %7565 = vst.msk [vmem:[%s234 + $0x158] sm:$0xf] %vm7478, %v6540
        %7566 = vst.msk [vmem:[%s234 + $0x15c] sm:$0xf] %vm7478, %v6541
        %7567 = vst.msk [vmem:[%s234 + $0x160] sm:$0xf] %vm7478, %v6542
        %7568 = vst.msk [vmem:[%s234 + $0x164] sm:$0xf] %vm7478, %v6543
        %7569 = vst.msk [vmem:[%s234 + $0x168] sm:$0xf] %vm7478, %v6544
        %7570 = vst.msk [vmem:[%s234 + $0x16c] sm:$0xf] %vm7478, %v6545
        %7571 = vst.msk [vmem:[%s234 + $0x170] sm:$0xf] %vm7478, %v6546
        %7572 = vst.msk [vmem:[%s234 + $0x174] sm:$0xf] %vm7478, %v6547
        %7573 = vst.msk [vmem:[%s234 + $0x178] sm:$0xf] %vm7478, %v6548
        %7574 = vst.msk [vmem:[%s234 + $0x17c] sm:$0xf] %vm7478, %v6549
        %7575 = vst.msk [vmem:[%s234 + $0x180] sm:$0xf] %vm7478, %v6550
        %7576 = vst.msk [vmem:[%s234 + $0x184] sm:$0xf] %vm7478, %v6551
        %7577 = vst.msk [vmem:[%s234 + $0x188] sm:$0xf] %vm7478, %v6552
        %7578 = vst.msk [vmem:[%s234 + $0x18c] sm:$0xf] %vm7478, %v6553
        %7579 = vst.msk [vmem:[%s234 + $0x190] sm:$0xf] %vm7478, %v6554
        %7580 = vst.msk [vmem:[%s234 + $0x194] sm:$0xf] %vm7478, %v6555
        %7581 = vst.msk [vmem:[%s234 + $0x198] sm:$0xf] %vm7478, %v6556
        %7582 = vst.msk [vmem:[%s234 + $0x19c] sm:$0xf] %vm7478, %v6557
        %7583 = vst.msk [vmem:[%s234 + $0x1a0] sm:$0xf] %vm7478, %v6558
        %7584 = vst.msk [vmem:[%s234 + $0x1a4] sm:$0xf] %vm7478, %v6559
        %7585 = vst.msk [vmem:[%s234 + $0x1a8] sm:$0xf] %vm7478, %v6560
        %7586 = vst.msk [vmem:[%s234 + $0x1ac] sm:$0xf] %vm7478, %v6561
        %7587 = vst.msk [vmem:[%s234 + $0x1b0] sm:$0xf] %vm7478, %v6562
        %7588 = vst.msk [vmem:[%s234 + $0x1b4] sm:$0xf] %vm7478, %v6563
        %7589 = vst.msk [vmem:[%s234 + $0x1b8] sm:$0xf] %vm7478, %v6564
        %7590 = vst.msk [vmem:[%s234 + $0x1bc] sm:$0xf] %vm7478, %v6565
        %7591 = vst.msk [vmem:[%s234 + $0x1c0] sm:$0xf] %vm7478, %v6566
        %7592 = vst.msk [vmem:[%s234 + $0x1c4] sm:$0xf] %vm7478, %v6567
        %7593 = vst.msk [vmem:[%s234 + $0x1c8] sm:$0xf] %vm7478, %v6568
        %7594 = vst.msk [vmem:[%s234 + $0x1cc] sm:$0xf] %vm7478, %v6569
        %7595 = vst.msk [vmem:[%s234 + $0x1d0] sm:$0xf] %vm7478, %v6570
        %7596 = vst.msk [vmem:[%s234 + $0x1d4] sm:$0xf] %vm7478, %v6571
        %7597 = vst.msk [vmem:[%s234 + $0x1d8] sm:$0xf] %vm7478, %v6572
        %7598 = vst.msk [vmem:[%s234 + $0x1dc] sm:$0xf] %vm7478, %v6573
        %7599 = vst.msk [vmem:[%s234 + $0x1e0] sm:$0xf] %vm7478, %v6574
        %7600 = vst.msk [vmem:[%s234 + $0x1e4] sm:$0xf] %vm7478, %v6575
        %7601 = vst.msk [vmem:[%s234 + $0x1e8] sm:$0xf] %vm7478, %v6576
        %7602 = vst.msk [vmem:[%s234 + $0x1ec] sm:$0xf] %vm7478, %v6577
        %7603 = vst.msk [vmem:[%s234 + $0x1f0] sm:$0xf] %vm7478, %v6578
        %7604 = vst.msk [vmem:[%s234 + $0x1f4] sm:$0xf] %vm7478, %v6579
        %7605 = vst.msk [vmem:[%s234 + $0x1f8] sm:$0xf] %vm7478, %v6580
        %7606 = vst.msk [vmem:[%s234 + $0x1fc] sm:$0xf] %vm7478, %v6581
        %7607 = vst.msk [vmem:[%s234 + $0x200] sm:$0xf] %vm7478, %v6582
        %7608 = vst.msk [vmem:[%s234 + $0x204] sm:$0xf] %vm7478, %v6583
        %7609 = vst.msk [vmem:[%s234 + $0x208] sm:$0xf] %vm7478, %v6584
        %7610 = vst.msk [vmem:[%s234 + $0x20c] sm:$0xf] %vm7478, %v6585
        %7611 = vst.msk [vmem:[%s234 + $0x210] sm:$0xf] %vm7478, %v6586
        %7612 = vst.msk [vmem:[%s234 + $0x214] sm:$0xf] %vm7478, %v6587
        %7613 = vst.msk [vmem:[%s234 + $0x218] sm:$0xf] %vm7478, %v6588
        %7614 = vst.msk [vmem:[%s234 + $0x21c] sm:$0xf] %vm7478, %v6589
        %7615 = vst.msk [vmem:[%s234 + $0x220] sm:$0xf] %vm7478, %v6590
        %7616 = vst.msk [vmem:[%s234 + $0x224] sm:$0xf] %vm7478, %v6591
        %7617 = vst.msk [vmem:[%s234 + $0x228] sm:$0xf] %vm7478, %v6592
        %7618 = vst.msk [vmem:[%s234 + $0x22c] sm:$0xf] %vm7478, %v6593
        %7619 = vst.msk [vmem:[%s234 + $0x230] sm:$0xf] %vm7478, %v6594
        %7620 = vst.msk [vmem:[%s234 + $0x234] sm:$0xf] %vm7478, %v6595
        %7621 = vst.msk [vmem:[%s234 + $0x238] sm:$0xf] %vm7478, %v6596
        %7622 = vst.msk [vmem:[%s234 + $0x23c] sm:$0xf] %vm7478, %v6597
        %7623 = vst.msk [vmem:[%s234 + $0x240] sm:$0xf] %vm7478, %v6598
        %7624 = vst.msk [vmem:[%s234 + $0x244] sm:$0xf] %vm7478, %v6599
        %7625 = vst.msk [vmem:[%s234 + $0x248] sm:$0xf] %vm7478, %v6600
        %7626 = vst.msk [vmem:[%s234 + $0x24c] sm:$0xf] %vm7478, %v6601
        %7627 = vst.msk [vmem:[%s234 + $0x250] sm:$0xf] %vm7478, %v6602
        %7628 = vst.msk [vmem:[%s234 + $0x254] sm:$0xf] %vm7478, %v6603
        %7629 = vst.msk [vmem:[%s234 + $0x258] sm:$0xf] %vm7478, %v6604
        %7630 = vst.msk [vmem:[%s234 + $0x25c] sm:$0xf] %vm7478, %v6605
        %7631 = vst.msk [vmem:[%s234 + $0x260] sm:$0xf] %vm7478, %v6606
        %7632 = vst.msk [vmem:[%s234 + $0x264] sm:$0xf] %vm7478, %v6607
        %7633 = vst.msk [vmem:[%s234 + $0x268] sm:$0xf] %vm7478, %v6608
        %7634 = vst.msk [vmem:[%s234 + $0x26c] sm:$0xf] %vm7478, %v6609
        %7635 = vst.msk [vmem:[%s234 + $0x270] sm:$0xf] %vm7478, %v6610
        %7636 = vst.msk [vmem:[%s234 + $0x274] sm:$0xf] %vm7478, %v6611
        %7637 = vst.msk [vmem:[%s234 + $0x278] sm:$0xf] %vm7478, %v6612
        %7638 = vst.msk [vmem:[%s234 + $0x27c] sm:$0xf] %vm7478, %v6613
        %7639 = vst.msk [vmem:[%s234 + $0x280] sm:$0xf] %vm7478, %v6614
        %7640 = vst.msk [vmem:[%s234 + $0x284] sm:$0xf] %vm7478, %v6615
        %7641 = vst.msk [vmem:[%s234 + $0x288] sm:$0xf] %vm7478, %v6616
        %7642 = vst.msk [vmem:[%s234 + $0x28c] sm:$0xf] %vm7478, %v6617
        %7643 = vst.msk [vmem:[%s234 + $0x290] sm:$0xf] %vm7478, %v6618
        %7644 = vst.msk [vmem:[%s234 + $0x294] sm:$0xf] %vm7478, %v6619
        %7645 = vst.msk [vmem:[%s234 + $0x298] sm:$0xf] %vm7478, %v6620
        %7646 = vst.msk [vmem:[%s234 + $0x29c] sm:$0xf] %vm7478, %v6621
        %7647 = vst.msk [vmem:[%s234 + $0x2a0] sm:$0xf] %vm7478, %v6622
        %7648 = vst.msk [vmem:[%s234 + $0x2a4] sm:$0xf] %vm7478, %v6623
        %7649 = vst.msk [vmem:[%s234 + $0x2a8] sm:$0xf] %vm7478, %v6624
        %7650 = vst.msk [vmem:[%s234 + $0x2ac] sm:$0xf] %vm7478, %v6625
        %7651 = vst.msk [vmem:[%s234 + $0x2b0] sm:$0xf] %vm7478, %v6626
        %7652 = vst.msk [vmem:[%s234 + $0x2b4] sm:$0xf] %vm7478, %v6627
        %7653 = vst.msk [vmem:[%s234 + $0x2b8] sm:$0xf] %vm7478, %v6628
        %7654 = vst.msk [vmem:[%s234 + $0x2bc] sm:$0xf] %vm7478, %v6629
        %7655 = vst.msk [vmem:[%s234 + $0x2c0] sm:$0xf] %vm7478, %v6630
        %7656 = vst.msk [vmem:[%s234 + $0x2c4] sm:$0xf] %vm7478, %v6631
        %7657 = vst.msk [vmem:[%s234 + $0x2c8] sm:$0xf] %vm7478, %v6632
        %7658 = vst.msk [vmem:[%s234 + $0x2cc] sm:$0xf] %vm7478, %v6633
        %7659 = vst.msk [vmem:[%s234 + $0x2d0] sm:$0xf] %vm7478, %v6634
        %7660 = vst.msk [vmem:[%s234 + $0x2d4] sm:$0xf] %vm7478, %v6635
        %7661 = vst.msk [vmem:[%s234 + $0x2d8] sm:$0xf] %vm7478, %v6636
        %7662 = vst.msk [vmem:[%s234 + $0x2dc] sm:$0xf] %vm7478, %v6637
        %7663 = vst.msk [vmem:[%s234 + $0x2e0] sm:$0xf] %vm7478, %v6638
        %7664 = vst.msk [vmem:[%s234 + $0x2e4] sm:$0xf] %vm7478, %v6639
        %7665 = vst.msk [vmem:[%s234 + $0x2e8] sm:$0xf] %vm7478, %v6640
        %7666 = vst.msk [vmem:[%s234 + $0x2ec] sm:$0xf] %vm7478, %v6641
        %7667 = vst.msk [vmem:[%s234 + $0x2f0] sm:$0xf] %vm7478, %v6642
        %7668 = vst.msk [vmem:[%s234 + $0x2f4] sm:$0xf] %vm7478, %v6643
        %7669 = vst.msk [vmem:[%s234 + $0x2f8] sm:$0xf] %vm7478, %v6644
        %7670 = vst.msk [vmem:[%s234 + $0x2fc] sm:$0xf] %vm7478, %v6645
        %7671 = vst.msk [vmem:[%s234 + $0x300] sm:$0xf] %vm7478, %v6646
        %7672 = vst.msk [vmem:[%s234 + $0x304] sm:$0xf] %vm7478, %v6647
        %7673 = vst.msk [vmem:[%s234 + $0x308] sm:$0xf] %vm7478, %v6648
        %7674 = vst.msk [vmem:[%s234 + $0x30c] sm:$0xf] %vm7478, %v6649
        %7675 = vst.msk [vmem:[%s234 + $0x310] sm:$0xf] %vm7478, %v6650
        %7676 = vst.msk [vmem:[%s234 + $0x314] sm:$0xf] %vm7478, %v6651
        %7677 = vst.msk [vmem:[%s234 + $0x318] sm:$0xf] %vm7478, %v6652
        %7678 = vst.msk [vmem:[%s234 + $0x31c] sm:$0xf] %vm7478, %v6653
        %7679 = vst.msk [vmem:[%s234 + $0x320] sm:$0xf] %vm7478, %v6654
        %7680 = vst.msk [vmem:[%s234 + $0x324] sm:$0xf] %vm7478, %v6655
        %7681 = vst.msk [vmem:[%s234 + $0x328] sm:$0xf] %vm7478, %v6656
        %7682 = vst.msk [vmem:[%s234 + $0x32c] sm:$0xf] %vm7478, %v6657
        %7683 = vst.msk [vmem:[%s234 + $0x330] sm:$0xf] %vm7478, %v6658
        %7684 = vst.msk [vmem:[%s234 + $0x334] sm:$0xf] %vm7478, %v6659
        %7685 = vst.msk [vmem:[%s234 + $0x338] sm:$0xf] %vm7478, %v6660
        %7686 = vst.msk [vmem:[%s234 + $0x33c] sm:$0xf] %vm7478, %v6661
        %7687 = vst.msk [vmem:[%s234 + $0x340] sm:$0xf] %vm7478, %v6662
        %7688 = vst.msk [vmem:[%s234 + $0x344] sm:$0xf] %vm7478, %v6663
        %7689 = vst.msk [vmem:[%s234 + $0x348] sm:$0xf] %vm7478, %v6664
        %7690 = vst.msk [vmem:[%s234 + $0x34c] sm:$0xf] %vm7478, %v6665
        %7691 = vst.msk [vmem:[%s234 + $0x350] sm:$0xf] %vm7478, %v6666
        %7692 = vst.msk [vmem:[%s234 + $0x354] sm:$0xf] %vm7478, %v6667
        %7693 = vst.msk [vmem:[%s234 + $0x358] sm:$0xf] %vm7478, %v6668
        %7694 = vst.msk [vmem:[%s234 + $0x35c] sm:$0xf] %vm7478, %v6669
        %7695 = vst.msk [vmem:[%s234 + $0x360] sm:$0xf] %vm7478, %v6670
        %7696 = vst.msk [vmem:[%s234 + $0x364] sm:$0xf] %vm7478, %v6671
        %7697 = vst.msk [vmem:[%s234 + $0x368] sm:$0xf] %vm7478, %v6672
        %7698 = vst.msk [vmem:[%s234 + $0x36c] sm:$0xf] %vm7478, %v6673
        %7699 = vst.msk [vmem:[%s234 + $0x370] sm:$0xf] %vm7478, %v6674
        %7700 = vst.msk [vmem:[%s234 + $0x374] sm:$0xf] %vm7478, %v6675
        %7701 = vst.msk [vmem:[%s234 + $0x378] sm:$0xf] %vm7478, %v6676
        %7702 = vst.msk [vmem:[%s234 + $0x37c] sm:$0xf] %vm7478, %v6677
        %7703 = vst.msk [vmem:[%s234 + $0x380] sm:$0xf] %vm7478, %v6678
        %7704 = vst.msk [vmem:[%s234 + $0x384] sm:$0xf] %vm7478, %v6679
        %7705 = vst.msk [vmem:[%s234 + $0x388] sm:$0xf] %vm7478, %v6680
        %7706 = vst.msk [vmem:[%s234 + $0x38c] sm:$0xf] %vm7478, %v6681
        %7707 = vst.msk [vmem:[%s234 + $0x390] sm:$0xf] %vm7478, %v6682
        %7708 = vst.msk [vmem:[%s234 + $0x394] sm:$0xf] %vm7478, %v6683
        %7709 = vst.msk [vmem:[%s234 + $0x398] sm:$0xf] %vm7478, %v6684
        %7710 = vst.msk [vmem:[%s234 + $0x39c] sm:$0xf] %vm7478, %v6685
        %7711 = vst.msk [vmem:[%s234 + $0x3a0] sm:$0xf] %vm7478, %v6686
        %7712 = vst.msk [vmem:[%s234 + $0x3a4] sm:$0xf] %vm7478, %v6687
        %7713 = vst.msk [vmem:[%s234 + $0x3a8] sm:$0xf] %vm7478, %v6688
        %7714 = vst.msk [vmem:[%s234 + $0x3ac] sm:$0xf] %vm7478, %v6689
        %7715 = vst.msk [vmem:[%s234 + $0x3b0] sm:$0xf] %vm7478, %v6690
        %7716 = vst.msk [vmem:[%s234 + $0x3b4] sm:$0xf] %vm7478, %v6691
        %7717 = vst.msk [vmem:[%s234 + $0x3b8] sm:$0xf] %vm7478, %v6692
        %7718 = vst.msk [vmem:[%s234 + $0x3bc] sm:$0xf] %vm7478, %v6693
        %7719 = vst.msk [vmem:[%s234 + $0x3c0] sm:$0xf] %vm7478, %v6694
        %7720 = vst.msk [vmem:[%s234 + $0x3c4] sm:$0xf] %vm7478, %v6695
        %7721 = vst.msk [vmem:[%s234 + $0x3c8] sm:$0xf] %vm7478, %v6696
        %7722 = vst.msk [vmem:[%s234 + $0x3cc] sm:$0xf] %vm7478, %v6697
        %7723 = vst.msk [vmem:[%s234 + $0x3d0] sm:$0xf] %vm7478, %v6698
        %7724 = vst.msk [vmem:[%s234 + $0x3d4] sm:$0xf] %vm7478, %v6699
        %7725 = vst.msk [vmem:[%s234 + $0x3d8] sm:$0xf] %vm7478, %v6700
        %7726 = vst.msk [vmem:[%s234 + $0x3dc] sm:$0xf] %vm7478, %v6701
        %7727 = vst.msk [vmem:[%s234 + $0x3e0] sm:$0xf] %vm7478, %v6702
        %7728 = vst.msk [vmem:[%s234 + $0x3e4] sm:$0xf] %vm7478, %v6703
        %7729 = vst.msk [vmem:[%s234 + $0x3e8] sm:$0xf] %vm7478, %v6704
        %7730 = vst.msk [vmem:[%s234 + $0x3ec] sm:$0xf] %vm7478, %v6705
        %7731 = vst.msk [vmem:[%s234 + $0x3f0] sm:$0xf] %vm7478, %v6706
        %7732 = vst.msk [vmem:[%s234 + $0x3f4] sm:$0xf] %vm7478, %v6707
        %7733 = vst.msk [vmem:[%s234 + $0x3f8] sm:$0xf] %vm7478, %v6708
        %7734 = vst.msk [vmem:[%s234 + $0x3fc] sm:$0xf] %vm7478, %v6709
        %7735 = vst.msk [vmem:[%s234 + $0x400] sm:$0xf] %vm7478, %v6710
        %7736 = vst.msk [vmem:[%s234 + $0x404] sm:$0xf] %vm7478, %v6711
        %7737 = vst.msk [vmem:[%s234 + $0x408] sm:$0xf] %vm7478, %v6712
        %7738 = vst.msk [vmem:[%s234 + $0x40c] sm:$0xf] %vm7478, %v6713
        %7739 = vst.msk [vmem:[%s234 + $0x410] sm:$0xf] %vm7478, %v6714
        %7740 = vst.msk [vmem:[%s234 + $0x414] sm:$0xf] %vm7478, %v6715
        %7741 = vst.msk [vmem:[%s234 + $0x418] sm:$0xf] %vm7478, %v6716
        %7742 = vst.msk [vmem:[%s234 + $0x41c] sm:$0xf] %vm7478, %v6717
        %7743 = vst.msk [vmem:[%s234 + $0x420] sm:$0xf] %vm7478, %v6718
        %7744 = vst.msk [vmem:[%s234 + $0x424] sm:$0xf] %vm7478, %v6719
        %7745 = vst.msk [vmem:[%s234 + $0x428] sm:$0xf] %vm7478, %v6720
        %7746 = vst.msk [vmem:[%s234 + $0x42c] sm:$0xf] %vm7478, %v6721
        %7747 = vst.msk [vmem:[%s234 + $0x430] sm:$0xf] %vm7478, %v6722
        %7748 = vst.msk [vmem:[%s234 + $0x434] sm:$0xf] %vm7478, %v6723
        %7749 = vst.msk [vmem:[%s234 + $0x438] sm:$0xf] %vm7478, %v6724
        %7750 = vst.msk [vmem:[%s234 + $0x43c] sm:$0xf] %vm7478, %v6725
        %7751 = vst.msk [vmem:[%s234 + $0x440] sm:$0xf] %vm7478, %v6726
        %7752 = vst.msk [vmem:[%s234 + $0x444] sm:$0xf] %vm7478, %v6727
        %7753 = vst.msk [vmem:[%s234 + $0x448] sm:$0xf] %vm7478, %v6728
        %7754 = vst.msk [vmem:[%s234 + $0x44c] sm:$0xf] %vm7478, %v6729
        %7755 = vst.msk [vmem:[%s234 + $0x450] sm:$0xf] %vm7478, %v6730
        %7756 = vst.msk [vmem:[%s234 + $0x454] sm:$0xf] %vm7478, %v6731
        %7757 = vst.msk [vmem:[%s234 + $0x458] sm:$0xf] %vm7478, %v6732
        %7758 = vst.msk [vmem:[%s234 + $0x45c] sm:$0xf] %vm7478, %v6733
        %7759 = vst.msk [vmem:[%s234 + $0x460] sm:$0xf] %vm7478, %v6734
        %7760 = vst.msk [vmem:[%s234 + $0x464] sm:$0xf] %vm7478, %v6735
        %7761 = vst.msk [vmem:[%s234 + $0x468] sm:$0xf] %vm7478, %v6736
        %7762 = vst.msk [vmem:[%s234 + $0x46c] sm:$0xf] %vm7478, %v6737
        %7763 = vst.msk [vmem:[%s234 + $0x470] sm:$0xf] %vm7478, %v6738
        %7764 = vst.msk [vmem:[%s234 + $0x474] sm:$0xf] %vm7478, %v6739
        %7765 = vst.msk [vmem:[%s234 + $0x478] sm:$0xf] %vm7478, %v6740
        %7766 = vst.msk [vmem:[%s234 + $0x47c] sm:$0xf] %vm7478, %v6741
        %7767 = vst.msk [vmem:[%s234 + $0x480] sm:$0xf] %vm7478, %v6742
        %7768 = vst.msk [vmem:[%s234 + $0x484] sm:$0xf] %vm7478, %v6743
        %7769 = vst.msk [vmem:[%s234 + $0x488] sm:$0xf] %vm7478, %v6744
        %7770 = vst.msk [vmem:[%s234 + $0x48c] sm:$0xf] %vm7478, %v6745
        %7771 = vst.msk [vmem:[%s234 + $0x490] sm:$0xf] %vm7478, %v6746
        %7772 = vst.msk [vmem:[%s234 + $0x494] sm:$0xf] %vm7478, %v6747
        %7773 = vst.msk [vmem:[%s234 + $0x498] sm:$0xf] %vm7478, %v6748
        %7774 = vst.msk [vmem:[%s234 + $0x49c] sm:$0xf] %vm7478, %v6749
        %7775 = vst.msk [vmem:[%s234 + $0x4a0] sm:$0xf] %vm7478, %v6750
        %7776 = vst.msk [vmem:[%s234 + $0x4a4] sm:$0xf] %vm7478, %v6751
        %7777 = vst.msk [vmem:[%s234 + $0x4a8] sm:$0xf] %vm7478, %v6752
        %7778 = vst.msk [vmem:[%s234 + $0x4ac] sm:$0xf] %vm7478, %v6753
        %7779 = vst.msk [vmem:[%s234 + $0x4b0] sm:$0xf] %vm7478, %v6754
        %7780 = vst.msk [vmem:[%s234 + $0x4b4] sm:$0xf] %vm7478, %v6755
        %7781 = vst.msk [vmem:[%s234 + $0x4b8] sm:$0xf] %vm7478, %v6756
        %7782 = vst.msk [vmem:[%s234 + $0x4bc] sm:$0xf] %vm7478, %v6757
        %7783 = vst.msk [vmem:[%s234 + $0x4c0] sm:$0xf] %vm7478, %v6758
        %7784 = vst.msk [vmem:[%s234 + $0x4c4] sm:$0xf] %vm7478, %v6759
        %7785 = vst.msk [vmem:[%s234 + $0x4c8] sm:$0xf] %vm7478, %v6760
        %7786 = vst.msk [vmem:[%s234 + $0x4cc] sm:$0xf] %vm7478, %v6761
        %7787 = vst.msk [vmem:[%s234 + $0x4d0] sm:$0xf] %vm7478, %v6762
        %7788 = vst.msk [vmem:[%s234 + $0x4d4] sm:$0xf] %vm7478, %v6763
        %7789 = vst.msk [vmem:[%s234 + $0x4d8] sm:$0xf] %vm7478, %v6764
        %7790 = vst.msk [vmem:[%s234 + $0x4dc] sm:$0xf] %vm7478, %v6765
        %7791 = vst.msk [vmem:[%s234 + $0x4e0] sm:$0xf] %vm7478, %v6766
        %7792 = vst.msk [vmem:[%s234 + $0x4e4] sm:$0xf] %vm7478, %v6767
        %7793 = vst.msk [vmem:[%s234 + $0x4e8] sm:$0xf] %vm7478, %v6768
        %7794 = vst.msk [vmem:[%s234 + $0x4ec] sm:$0xf] %vm7478, %v6769
        %7795 = vst.msk [vmem:[%s234 + $0x4f0] sm:$0xf] %vm7478, %v6770
        %7796 = vst.msk [vmem:[%s234 + $0x4f4] sm:$0xf] %vm7478, %v6771
        %7797 = vst.msk [vmem:[%s234 + $0x4f8] sm:$0xf] %vm7478, %v6772
        %7798 = vst.msk [vmem:[%s234 + $0x4fc] sm:$0xf] %vm7478, %v6773
        %7799 = vst.msk [vmem:[%s234 + $0x500] sm:$0xf] %vm7478, %v6774
        %7800 = vst.msk [vmem:[%s234 + $0x504] sm:$0xf] %vm7478, %v6775
        %7801 = vst.msk [vmem:[%s234 + $0x508] sm:$0xf] %vm7478, %v6776
        %7802 = vst.msk [vmem:[%s234 + $0x50c] sm:$0xf] %vm7478, %v6777
        %7803 = vst.msk [vmem:[%s234 + $0x510] sm:$0xf] %vm7478, %v6778
        %7804 = vst.msk [vmem:[%s234 + $0x514] sm:$0xf] %vm7478, %v6779
        %7805 = vst.msk [vmem:[%s234 + $0x518] sm:$0xf] %vm7478, %v6780
        %7806 = vst.msk [vmem:[%s234 + $0x51c] sm:$0xf] %vm7478, %v6781
        %7807 = vst.msk [vmem:[%s234 + $0x520] sm:$0xf] %vm7478, %v6782
        %7808 = vst.msk [vmem:[%s234 + $0x524] sm:$0xf] %vm7478, %v6783
        %7809 = vst.msk [vmem:[%s234 + $0x528] sm:$0xf] %vm7478, %v6784
        %7810 = vst.msk [vmem:[%s234 + $0x52c] sm:$0xf] %vm7478, %v6785
        %7811 = vst.msk [vmem:[%s234 + $0x530] sm:$0xf] %vm7478, %v6786
        %7812 = vst.msk [vmem:[%s234 + $0x534] sm:$0xf] %vm7478, %v6787
        %7813 = vst.msk [vmem:[%s234 + $0x538] sm:$0xf] %vm7478, %v6788
        %7814 = vst.msk [vmem:[%s234 + $0x53c] sm:$0xf] %vm7478, %v6789
        %7815 = vst.msk [vmem:[%s234 + $0x540] sm:$0xf] %vm7478, %v6790
        %7816 = vst.msk [vmem:[%s234 + $0x544] sm:$0xf] %vm7478, %v6791
        %7817 = vst.msk [vmem:[%s234 + $0x548] sm:$0xf] %vm7478, %v6792
        %7818 = vst.msk [vmem:[%s234 + $0x54c] sm:$0xf] %vm7478, %v6793
        %7819 = vst.msk [vmem:[%s234 + $0x550] sm:$0xf] %vm7478, %v6794
        %7820 = vst.msk [vmem:[%s234 + $0x554] sm:$0xf] %vm7478, %v6795
        %7821 = vst.msk [vmem:[%s234 + $0x558] sm:$0xf] %vm7478, %v6796
        %7822 = vst.msk [vmem:[%s234 + $0x55c] sm:$0xf] %vm7478, %v6797
        %7823 = vst.msk [vmem:[%s234 + $0x560] sm:$0xf] %vm7478, %v6798
        %7824 = vst.msk [vmem:[%s234 + $0x564] sm:$0xf] %vm7478, %v6799
        %7825 = vst.msk [vmem:[%s234 + $0x568] sm:$0xf] %vm7478, %v6800
        %7826 = vst.msk [vmem:[%s234 + $0x56c] sm:$0xf] %vm7478, %v6801
        %7827 = vst.msk [vmem:[%s234 + $0x570] sm:$0xf] %vm7478, %v6802
        %7828 = vst.msk [vmem:[%s234 + $0x574] sm:$0xf] %vm7478, %v6803
        %7829 = vst.msk [vmem:[%s234 + $0x578] sm:$0xf] %vm7478, %v6804
        %7830 = vst.msk [vmem:[%s234 + $0x57c] sm:$0xf] %vm7478, %v6805
        %7831 = vst.msk [vmem:[%s234 + $0x580] sm:$0xf] %vm7478, %v6806
        %7832 = vst.msk [vmem:[%s234 + $0x584] sm:$0xf] %vm7478, %v6807
        %7833 = vst.msk [vmem:[%s234 + $0x588] sm:$0xf] %vm7478, %v6808
        %7834 = vst.msk [vmem:[%s234 + $0x58c] sm:$0xf] %vm7478, %v6809
        %7835 = vst.msk [vmem:[%s234 + $0x590] sm:$0xf] %vm7478, %v6810
        %7836 = vst.msk [vmem:[%s234 + $0x594] sm:$0xf] %vm7478, %v6811
        %7837 = vst.msk [vmem:[%s234 + $0x598] sm:$0xf] %vm7478, %v6812
        %7838 = vst.msk [vmem:[%s234 + $0x59c] sm:$0xf] %vm7478, %v6813
        %7839 = vst.msk [vmem:[%s234 + $0x5a0] sm:$0xf] %vm7478, %v6814
        %7840 = vst.msk [vmem:[%s234 + $0x5a4] sm:$0xf] %vm7478, %v6815
        %7841 = vst.msk [vmem:[%s234 + $0x5a8] sm:$0xf] %vm7478, %v6816
        %7842 = vst.msk [vmem:[%s234 + $0x5ac] sm:$0xf] %vm7478, %v6817
        %7843 = vst.msk [vmem:[%s234 + $0x5b0] sm:$0xf] %vm7478, %v6818
        %7844 = vst.msk [vmem:[%s234 + $0x5b4] sm:$0xf] %vm7478, %v6819
        %7845 = vst.msk [vmem:[%s234 + $0x5b8] sm:$0xf] %vm7478, %v6820
        %7846 = vst.msk [vmem:[%s234 + $0x5bc] sm:$0xf] %vm7478, %v6821
        %7847 = vst.msk [vmem:[%s234 + $0x5c0] sm:$0xf] %vm7478, %v6822
        %7848 = vst.msk [vmem:[%s234 + $0x5c4] sm:$0xf] %vm7478, %v6823
        %7849 = vst.msk [vmem:[%s234 + $0x5c8] sm:$0xf] %vm7478, %v6824
        %7850 = vst.msk [vmem:[%s234 + $0x5cc] sm:$0xf] %vm7478, %v6825
        %7851 = vst.msk [vmem:[%s234 + $0x5d0] sm:$0xf] %vm7478, %v6826
        %7852 = vst.msk [vmem:[%s234 + $0x5d4] sm:$0xf] %vm7478, %v6827
        %7853 = vst.msk [vmem:[%s234 + $0x5d8] sm:$0xf] %vm7478, %v6828
        %7854 = vst.msk [vmem:[%s234 + $0x5dc] sm:$0xf] %vm7478, %v6829
        %7855 = vst.msk [vmem:[%s234 + $0x5e0] sm:$0xf] %vm7478, %v6830
        %7856 = vst.msk [vmem:[%s234 + $0x5e4] sm:$0xf] %vm7478, %v6831
        %7857 = vst.msk [vmem:[%s234 + $0x5e8] sm:$0xf] %vm7478, %v6832
        %7858 = vst.msk [vmem:[%s234 + $0x5ec] sm:$0xf] %vm7478, %v6833
        %7859 = vst.msk [vmem:[%s234 + $0x5f0] sm:$0xf] %vm7478, %v6834
        %7860 = vst.msk [vmem:[%s234 + $0x5f4] sm:$0xf] %vm7478, %v6835
        %7861 = vst.msk [vmem:[%s234 + $0x5f8] sm:$0xf] %vm7478, %v6836
        %7862 = vst.msk [vmem:[%s234 + $0x5fc] sm:$0xf] %vm7478, %v6837
        %7863 = vst.msk [vmem:[%s234 + $0x600] sm:$0xf] %vm7478, %v6838
        %7864 = vst.msk [vmem:[%s234 + $0x604] sm:$0xf] %vm7478, %v6839
        %7865 = vst.msk [vmem:[%s234 + $0x608] sm:$0xf] %vm7478, %v6840
        %7866 = vst.msk [vmem:[%s234 + $0x60c] sm:$0xf] %vm7478, %v6841
        %7867 = vst.msk [vmem:[%s234 + $0x610] sm:$0xf] %vm7478, %v6842
        %7868 = vst.msk [vmem:[%s234 + $0x614] sm:$0xf] %vm7478, %v6843
        %7869 = vst.msk [vmem:[%s234 + $0x618] sm:$0xf] %vm7478, %v6844
        %7870 = vst.msk [vmem:[%s234 + $0x61c] sm:$0xf] %vm7478, %v6845
        %7871 = vst.msk [vmem:[%s234 + $0x620] sm:$0xf] %vm7478, %v6846
        %7872 = vst.msk [vmem:[%s234 + $0x624] sm:$0xf] %vm7478, %v6847
        %7873 = vst.msk [vmem:[%s234 + $0x628] sm:$0xf] %vm7478, %v6848
        %7874 = vst.msk [vmem:[%s234 + $0x62c] sm:$0xf] %vm7478, %v6849
        %7875 = vst.msk [vmem:[%s234 + $0x630] sm:$0xf] %vm7478, %v6850
        %7876 = vst.msk [vmem:[%s234 + $0x634] sm:$0xf] %vm7478, %v6851
        %7877 = vst.msk [vmem:[%s234 + $0x638] sm:$0xf] %vm7478, %v6852
        %7878 = vst.msk [vmem:[%s234 + $0x63c] sm:$0xf] %vm7478, %v6853
        %7879 = vst.msk [vmem:[%s234 + $0x640] sm:$0xf] %vm7478, %v6854
        %7880 = vst.msk [vmem:[%s234 + $0x644] sm:$0xf] %vm7478, %v6855
        %7881 = vst.msk [vmem:[%s234 + $0x648] sm:$0xf] %vm7478, %v6856
        %7882 = vst.msk [vmem:[%s234 + $0x64c] sm:$0xf] %vm7478, %v6857
        %7883 = vst.msk [vmem:[%s234 + $0x650] sm:$0xf] %vm7478, %v6858
        %7884 = vst.msk [vmem:[%s234 + $0x654] sm:$0xf] %vm7478, %v6859
        %7885 = vst.msk [vmem:[%s234 + $0x658] sm:$0xf] %vm7478, %v6860
        %7886 = vst.msk [vmem:[%s234 + $0x65c] sm:$0xf] %vm7478, %v6861
        %7887 = vst.msk [vmem:[%s234 + $0x660] sm:$0xf] %vm7478, %v6862
        %7888 = vst.msk [vmem:[%s234 + $0x664] sm:$0xf] %vm7478, %v6863
        %7889 = vst.msk [vmem:[%s234 + $0x668] sm:$0xf] %vm7478, %v6864
        %7890 = vst.msk [vmem:[%s234 + $0x66c] sm:$0xf] %vm7478, %v6865
        %7891 = vst.msk [vmem:[%s234 + $0x670] sm:$0xf] %vm7478, %v6866
        %7892 = vst.msk [vmem:[%s234 + $0x674] sm:$0xf] %vm7478, %v6867
        %7893 = vst.msk [vmem:[%s234 + $0x678] sm:$0xf] %vm7478, %v6868
        %7894 = vst.msk [vmem:[%s234 + $0x67c] sm:$0xf] %vm7478, %v6869
        %7895 = vst.msk [vmem:[%s234 + $0x680] sm:$0xf] %vm7478, %v6870
        %7896 = vst.msk [vmem:[%s234 + $0x684] sm:$0xf] %vm7478, %v6871
        %7897 = vst.msk [vmem:[%s234 + $0x688] sm:$0xf] %vm7478, %v6872
        %7898 = vst.msk [vmem:[%s234 + $0x68c] sm:$0xf] %vm7478, %v6873
        %7899 = vst.msk [vmem:[%s234 + $0x690] sm:$0xf] %vm7478, %v6874
        %7900 = vst.msk [vmem:[%s234 + $0x694] sm:$0xf] %vm7478, %v6875
        %7901 = vst.msk [vmem:[%s234 + $0x698] sm:$0xf] %vm7478, %v6876
        %7902 = vst.msk [vmem:[%s234 + $0x69c] sm:$0xf] %vm7478, %v6877
        %7903 = vst.msk [vmem:[%s234 + $0x6a0] sm:$0xf] %vm7478, %v6878
        %7904 = vst.msk [vmem:[%s234 + $0x6a4] sm:$0xf] %vm7478, %v6879
        %7905 = vst.msk [vmem:[%s234 + $0x6a8] sm:$0xf] %vm7478, %v6880
        %7906 = vst.msk [vmem:[%s234 + $0x6ac] sm:$0xf] %vm7478, %v6881
        %7907 = vst.msk [vmem:[%s234 + $0x6b0] sm:$0xf] %vm7478, %v6882
        %7908 = vst.msk [vmem:[%s234 + $0x6b4] sm:$0xf] %vm7478, %v6883
        %7909 = vst.msk [vmem:[%s234 + $0x6b8] sm:$0xf] %vm7478, %v6884
        %7910 = vst.msk [vmem:[%s234 + $0x6bc] sm:$0xf] %vm7478, %v6885
        %7911 = vst.msk [vmem:[%s234 + $0x6c0] sm:$0xf] %vm7478, %v6886
        %7912 = vst.msk [vmem:[%s234 + $0x6c4] sm:$0xf] %vm7478, %v6887
        %7913 = vst.msk [vmem:[%s234 + $0x6c8] sm:$0xf] %vm7478, %v6888
        %7914 = vst.msk [vmem:[%s234 + $0x6cc] sm:$0xf] %vm7478, %v6889
        %7915 = vst.msk [vmem:[%s234 + $0x6d0] sm:$0xf] %vm7478, %v6890
        %7916 = vst.msk [vmem:[%s234 + $0x6d4] sm:$0xf] %vm7478, %v6891
        %7917 = vst.msk [vmem:[%s234 + $0x6d8] sm:$0xf] %vm7478, %v6892
        %7918 = vst.msk [vmem:[%s234 + $0x6dc] sm:$0xf] %vm7478, %v6893
        %7919 = vst.msk [vmem:[%s234 + $0x6e0] sm:$0xf] %vm7478, %v6894
        %7920 = vst.msk [vmem:[%s234 + $0x6e4] sm:$0xf] %vm7478, %v6895
        %7921 = vst.msk [vmem:[%s234 + $0x6e8] sm:$0xf] %vm7478, %v6896
        %7922 = vst.msk [vmem:[%s234 + $0x6ec] sm:$0xf] %vm7478, %v6897
        %7923 = vst.msk [vmem:[%s234 + $0x6f0] sm:$0xf] %vm7478, %v6898
        %7924 = vst.msk [vmem:[%s234 + $0x6f4] sm:$0xf] %vm7478, %v6899
        %7925 = vst.msk [vmem:[%s234 + $0x6f8] sm:$0xf] %vm7478, %v6900
        %7926 = vst.msk [vmem:[%s234 + $0x6fc] sm:$0xf] %vm7478, %v6901
        %7927 = vst.msk [vmem:[%s234 + $0x700] sm:$0xf] %vm7478, %v6902
        %7928 = vst.msk [vmem:[%s234 + $0x704] sm:$0xf] %vm7478, %v6903
        %7929 = vst.msk [vmem:[%s234 + $0x708] sm:$0xf] %vm7478, %v6904
        %7930 = vst.msk [vmem:[%s234 + $0x70c] sm:$0xf] %vm7478, %v6905
        %7931 = vst.msk [vmem:[%s234 + $0x710] sm:$0xf] %vm7478, %v6906
        %7932 = vst.msk [vmem:[%s234 + $0x714] sm:$0xf] %vm7478, %v6907
        %7933 = vst.msk [vmem:[%s234 + $0x718] sm:$0xf] %vm7478, %v6908
        %7934 = vst.msk [vmem:[%s234 + $0x71c] sm:$0xf] %vm7478, %v6909
        %7935 = vst.msk [vmem:[%s234 + $0x720] sm:$0xf] %vm7478, %v6910
        %7936 = vst.msk [vmem:[%s234 + $0x724] sm:$0xf] %vm7478, %v6911
        %7937 = vst.msk [vmem:[%s234 + $0x728] sm:$0xf] %vm7478, %v6912
        %7938 = vst.msk [vmem:[%s234 + $0x72c] sm:$0xf] %vm7478, %v6913
        %7939 = vst.msk [vmem:[%s234 + $0x730] sm:$0xf] %vm7478, %v6914
        %7940 = vst.msk [vmem:[%s234 + $0x734] sm:$0xf] %vm7478, %v6915
        %7941 = vst.msk [vmem:[%s234 + $0x738] sm:$0xf] %vm7478, %v6916
        %7942 = vst.msk [vmem:[%s234 + $0x73c] sm:$0xf] %vm7478, %v6917
        %7943 = vst.msk [vmem:[%s234 + $0x740] sm:$0xf] %vm7478, %v6918
        %7944 = vst.msk [vmem:[%s234 + $0x744] sm:$0xf] %vm7478, %v6919
        %7945 = vst.msk [vmem:[%s234 + $0x748] sm:$0xf] %vm7478, %v6920
        %7946 = vst.msk [vmem:[%s234 + $0x74c] sm:$0xf] %vm7478, %v6921
        %7947 = vst.msk [vmem:[%s234 + $0x750] sm:$0xf] %vm7478, %v6922
        %7948 = vst.msk [vmem:[%s234 + $0x754] sm:$0xf] %vm7478, %v6923
        %7949 = vst.msk [vmem:[%s234 + $0x758] sm:$0xf] %vm7478, %v6924
        %7950 = vst.msk [vmem:[%s234 + $0x75c] sm:$0xf] %vm7478, %v6925
        %7951 = vst.msk [vmem:[%s234 + $0x760] sm:$0xf] %vm7478, %v6926
        %7952 = vst.msk [vmem:[%s234 + $0x764] sm:$0xf] %vm7478, %v6927
        %7953 = vst.msk [vmem:[%s234 + $0x768] sm:$0xf] %vm7478, %v6928
        %7954 = vst.msk [vmem:[%s234 + $0x76c] sm:$0xf] %vm7478, %v6929
        %7955 = vst.msk [vmem:[%s234 + $0x770] sm:$0xf] %vm7478, %v6930
        %7956 = vst.msk [vmem:[%s234 + $0x774] sm:$0xf] %vm7478, %v6931
        %7957 = vst.msk [vmem:[%s234 + $0x778] sm:$0xf] %vm7478, %v6932
        %7958 = vst.msk [vmem:[%s234 + $0x77c] sm:$0xf] %vm7478, %v6933
        %7959 = vst.msk [vmem:[%s234 + $0x780] sm:$0xf] %vm7478, %v6934
        %7960 = vst.msk [vmem:[%s234 + $0x784] sm:$0xf] %vm7478, %v6935
        %7961 = vst.msk [vmem:[%s234 + $0x788] sm:$0xf] %vm7478, %v6936
        %7962 = vst.msk [vmem:[%s234 + $0x78c] sm:$0xf] %vm7478, %v6937
        %7963 = vst.msk [vmem:[%s234 + $0x790] sm:$0xf] %vm7478, %v6938
        %7964 = vst.msk [vmem:[%s234 + $0x794] sm:$0xf] %vm7478, %v6939
        %7965 = vst.msk [vmem:[%s234 + $0x798] sm:$0xf] %vm7478, %v6940
        %7966 = vst.msk [vmem:[%s234 + $0x79c] sm:$0xf] %vm7478, %v6941
        %7967 = vst.msk [vmem:[%s234 + $0x7a0] sm:$0xf] %vm7478, %v6942
        %7968 = vst.msk [vmem:[%s234 + $0x7a4] sm:$0xf] %vm7478, %v6943
        %7969 = vst.msk [vmem:[%s234 + $0x7a8] sm:$0xf] %vm7478, %v6944
        %7970 = vst.msk [vmem:[%s234 + $0x7ac] sm:$0xf] %vm7478, %v6945
        %7971 = vst.msk [vmem:[%s234 + $0x7b0] sm:$0xf] %vm7478, %v6946
        %7972 = vst.msk [vmem:[%s234 + $0x7b4] sm:$0xf] %vm7478, %v6947
        %7973 = vst.msk [vmem:[%s234 + $0x7b8] sm:$0xf] %vm7478, %v6948
        %7974 = vst.msk [vmem:[%s234 + $0x7bc] sm:$0xf] %vm7478, %v6949
        %7975 = vst.msk [vmem:[%s234 + $0x7c0] sm:$0xf] %vm7478, %v6950
        %7976 = vst.msk [vmem:[%s234 + $0x7c4] sm:$0xf] %vm7478, %v6951
        %7977 = vst.msk [vmem:[%s234 + $0x7c8] sm:$0xf] %vm7478, %v6952
        %7978 = vst.msk [vmem:[%s234 + $0x7cc] sm:$0xf] %vm7478, %v6953
        %7979 = vst.msk [vmem:[%s234 + $0x7d0] sm:$0xf] %vm7478, %v6954
        %7980 = vst.msk [vmem:[%s234 + $0x7d4] sm:$0xf] %vm7478, %v6955
        %7981 = vst.msk [vmem:[%s234 + $0x7d8] sm:$0xf] %vm7478, %v6956
        %7982 = vst.msk [vmem:[%s234 + $0x7dc] sm:$0xf] %vm7478, %v6957
        %7983 = vst.msk [vmem:[%s234 + $0x7e0] sm:$0xf] %vm7478, %v6958
        %7984 = vst.msk [vmem:[%s234 + $0x7e4] sm:$0xf] %vm7478, %v6959
        %7985 = vst.msk [vmem:[%s234 + $0x7e8] sm:$0xf] %vm7478, %v6960
        %7986 = vst.msk [vmem:[%s234 + $0x7ec] sm:$0xf] %vm7478, %v6961
        %7987 = vst.msk [vmem:[%s234 + $0x7f0] sm:$0xf] %vm7478, %v6962
        %7988 = vst.msk [vmem:[%s234 + $0x7f4] sm:$0xf] %vm7478, %v6963
        %7989 = vst.msk [vmem:[%s234 + $0x7f8] sm:$0xf] %vm7478, %v6964
        %7990 = vst.msk [vmem:[%s234 + $0x7fc] sm:$0xf] %vm7478, %v6965
        %s7991 = smul.u32 512, %s20
        %p7992 = scmp.lt.s32.totalorder %s7991, 4095
        %s7993 = scalar_select %p7992, %s7991, 4095
        %p7994 = scmp.lt.s32.totalorder %s21, 0
        %s7995 = scalar_select %p7994, %s21, 0
        %s7996 = sadd.s32 %s7995, %s7993
        %s7997 = smul.addr %s7996, 4
        %s7998 = scalar_lea.vmem %s3, %s7997
        // Predicated region
        $region41: #{tpu_custom_call.1} parent=31 // pred_check
          %p7999 = pneg %p126
        $region42: #{tpu_custom_call.1} parent=31 // pred_check_branch
          %8001 = sbr.rel (%p7999) target = $region44
        $region43: #{tpu_custom_call.1} parent=31 // pred_region
          %s8002 = smul.u32 512, %s20
        $region44: #{tpu_custom_call.1} parent=31 // pred_fallthru
          _
      $region32: #{tpu_custom_call.1} parent=5 // pred_fallthru
        _
      %p8003 = scmp.le.s32.totalorder 2, %s11
      // Predicated region
      $region45: #{tpu_custom_call.1} parent=5 // pred_check
        %p8004 = pneg %p8003
      $region46: #{tpu_custom_call.1} parent=5 // pred_check_branch
        %8006 = sbr.rel (%p8004) target = $region48
      $region47: #{tpu_custom_call.1} parent=5 // pred_region
        %s8007 = ssub.s32 %s11, 2
        // Predicated region
        $region49: #{tpu_custom_call.1} parent=47 // pred_check
          %p8008 = pneg %p132
        $region50: #{tpu_custom_call.1} parent=47 // pred_check_branch
          %8010 = sbr.rel (%p8008) target = $region52
        $region51: #{tpu_custom_call.1} parent=47 // pred_region
          %s8011 = smul.u32 512, %s22
          %p8012 = scmp.lt.s32.totalorder %s8011, 4095
          %s8013 = scalar_select %p8012, %s8011, 4095
          %p8014 = scmp.lt.s32.totalorder %s23, 0
          %s8015 = scalar_select %p8014, %s23, 0
          %s8016 = sadd.s32 %s8015, %s8013
          %s8017 = smul.addr %s8016, 4
          %s8018 = scalar_lea.vmem %s3, %s8017
        $region52: #{tpu_custom_call.1} parent=47 // pred_fallthru
          _
      $region48: #{tpu_custom_call.1} parent=5 // pred_fallthru
        _
    $region6: #{tpu_custom_call.1} parent=1 // loop_footer
      %s15 = sadd.s32 1, %s11
    $region7: #{tpu_custom_call.1} parent=1 // loop_footer_branch
      %10 = sbr.rel target = $region3
    $region8: #{tpu_custom_call.1} parent=1 // loop_exit
      _
    %8019 = vsyncpa [#allocation3], 1
    %s8020 = scalar_lea.sflag [#allocation3], 1
    %8021 = vsyncpa %s8020, 1
    %8022 = vsyncpa [#allocation5], 1

</llo_original>
